<compile_context>
chip_gen: v5e
topology: v5e:2x2
jax: 0.10.0
libtpu: 0.0.40
codegen_flags: <defaults>
</compile_context>

<pallas_src>
from functools import partial

import jax
import jax.numpy as jnp
from jax.experimental import pallas as pl
from jax.experimental.pallas import tpu as pltpu


# Per-phase 2x2 stencil offsets on the pre-upsample grid:
#   phase 0 -> taps at row/col offsets (-1, 0); phase 1 -> (0, +1).
_OFFS = ((-1, 0), (0, 1))


def _rup(n, m):
    return ((n + m - 1) // m) * m


# ----------------------------------------------------------------------------
# Host-side: fold "nearest-2x upsample then 3x3 conv (pad=1)" into four 2x2
# phase convolutions on the pre-upsample activation:
#   out[2y+py, 2x+px] = sum_{ri,cj} Weff[(py,px)][:,:,ri,cj] .
#                                   a_pad[y + _OFFS[py][ri], x + _OFFS[px][cj]]
# ----------------------------------------------------------------------------
def _phase_weights_3x3(w):
    """w: (Cout, Cin, 3, 3) -> (16, Cout, Cin), idx = (py*2+px)*4 + ri*2 + cj."""
    E = (jnp.array([[1., 0., 0.], [0., 1., 1.]], jnp.float32),   # phase 0
         jnp.array([[1., 1., 0.], [0., 0., 1.]], jnp.float32))   # phase 1
    w = w.astype(jnp.float32)
    mats = []
    for py in (0, 1):
        for px in (0, 1):
            eff = jnp.einsum('rk,cl,oikl->rcoi', E[py], E[px], w)  # (2,2,Co,Ci)
            for ri in (0, 1):
                for cj in (0, 1):
                    mats.append(eff[ri, cj])                       # (Cout, Cin)
    return jnp.stack(mats, axis=0)


# ----------------------------------------------------------------------------
# The fused decoder kernel (one grid step == one image).  All activations use
# a flat row-padded layout: (channels, head + H0*W0 + head) with the interior
# at lane-aligned offset `head`; a tap (dy,dx) is a contiguous lane slice at
# interior + dy*W0 + dx, plus a hoisted column mask for dx != 0.
# ----------------------------------------------------------------------------
def _decoder_kernel(x_ref, w1_ref, b1_ref, w2e_ref, b2_ref, w3e_ref, b3_ref,
                    o_ref, pad1, a1pad, a2ph, *, H0, W0, head1, head_a):
    N = H0 * W0
    C1 = b2_ref.shape[0]
    Cf = b3_ref.shape[0]

    # ---- border-only zeroing (interiors are fully overwritten every step) --
    z1 = jnp.zeros((1, head1), jnp.float32)
    pad1[:, :head1] = z1
    pad1[:, head1 + N:] = z1
    zc = jnp.zeros((C1, head_a), jnp.float32)
    a1pad[:, :head_a] = zc
    a1pad[:, head_a + N:] = zc
    for p in range(4):
        a2ph[p, :, :head_a] = zc
        a2ph[p, :, head_a + N:] = zc

    # ---- stage 1: 5x5 conv (Cin=1 -> C1) + bias + ReLU, pure VPU -----------
    pad1[:, head1:head1 + N] = x_ref[0]
    col1 = jax.lax.broadcasted_iota(jnp.int32, (1, N), 1) % W0
    m1 = {dx: ((col1 + dx >= 0) & (col1 + dx < W0)).astype(jnp.float32)
          for dx in (-2, -1, 1, 2)}                       # hoisted masks
    w1 = w1_ref[...]                                      # (C1, 25), col=kh*5+kw
    acc1 = jnp.zeros((C1, N), jnp.float32)
    for kh in range(5):
        for kw in range(5):
            dy, dx = kh - 2, kw - 2
            off = head1 + dy * W0 + dx
            slab = pad1[:, off:off + N]                   # (1, N)
            if dx != 0:
                slab = slab * m1[dx]
            t = kh * 5 + kw
            acc1 = acc1 + w1[:, t:t + 1] * slab           # (C1,1)*(1,N)
    a1pad[:, head_a:head_a + N] = jnp.maximum(acc1 + b1_ref[...], 0.0)

    # ---- hoisted full-shape column masks shared by stages 2 and 3 ----------
    col = jax.lax.broadcasted_iota(jnp.int32, (C1, N), 1) % W0
    masks = {-1: (col >= 1).astype(jnp.float32),
             +1: (col <= W0 - 2).astype(jnp.float32)}

    # ---- stage 2: up2 + 3x3 conv as four 2x2 phase convs on a1 -------------
    b2 = b2_ref[...]
    for py in (0, 1):
        for px in (0, 1):
            p1 = py * 2 + px
            acc = jnp.zeros((C1, N), jnp.float32)
            for ri, r in enumerate(_OFFS[py]):
                for cj, c in enumerate(_OFFS[px]):
                    off = head_a + r * W0 + c
                    slab = a1pad[:, off:off + N]          # (C1, N)
                    if c != 0:
                        slab = slab * masks[c]
                    wt = w2e_ref[p1 * 4 + ri * 2 + cj]    # (C1, C1)
                    acc = acc + jnp.dot(wt, slab,
                                        preferred_element_type=jnp.float32)
            a2ph[p1, :, head_a:head_a + N] = jnp.maximum(acc + b2, 0.0)

    # ---- stage 3: up2 + 3x3 conv, a2 kept phase-separated; each tap of the
    #      2x2 stencil resolves to (source a2 phase, row/col offset in -1..1) -
    b3 = b3_ref[...]
    for py1 in (0, 1):
        for px1 in (0, 1):
            for py2 in (0, 1):
                for px2 in (0, 1):
                    acc = jnp.zeros((Cf, N), jnp.float32)
                    for ri2, r2 in enumerate(_OFFS[py2]):
                        sy, dr = (py1 + r2) % 2, (py1 + r2) // 2
                        for cj2, c2 in enumerate(_OFFS[px2]):
                            sx, dc = (px1 + c2) % 2, (px1 + c2) // 2
                            off = head_a + dr * W0 + dc
                            slab = a2ph[sy * 2 + sx, :, off:off + N]  # (C1, N)
                            if dc != 0:
                                slab = slab * masks[dc]
                            wt = w3e_ref[(py2 * 2 + px2) * 4 + ri2 * 2 + cj2]
                            acc = acc + jnp.dot(
                                wt, slab, preferred_element_type=jnp.float32)
                    q = (2 * py1 + py2) * 4 + (2 * px1 + px2)
                    o_ref[0, q * Cf:(q + 1) * Cf, :] = \
                        jnp.maximum(acc + b3, 0.0)


# ----------------------------------------------------------------------------
# Host-side wrapper: weight phase-folding + single pallas_call + de-interleave.
# ----------------------------------------------------------------------------
@jax.jit
def decoder_forward(x_nchw, params):
    B, Ci, H0, W0 = x_nchw.shape
    assert Ci == 1, "Decoder.conv1 has a single input channel"
    C1 = params["w1"].shape[0]
    Cf = params["w3"].shape[0]
    N0 = H0 * W0

    head1 = _rup(2 * W0 + 2, 128)        # conv1 padding = 2  (lane-aligned head)
    head_a = _rup(W0 + 1, 128)           # stage 2/3 padding = 1
    L1 = 2 * head1 + N0
    La = 2 * head_a + N0

    w1f = params["w1"].reshape(C1, 25).astype(jnp.float32)   # col = kh*5 + kw
    w2e = _phase_weights_3x3(params["w2"])                   # (16, C1, C1)
    w3e = _phase_weights_3x3(params["w3"])                   # (16, Cf, C1)
    b1c = params["b1"].reshape(C1, 1).astype(jnp.float32)
    b2c = params["b2"].reshape(C1, 1).astype(jnp.float32)
    b3c = params["b3"].reshape(Cf, 1).astype(jnp.float32)
    x_flat = x_nchw.reshape(B, Ci, N0).astype(jnp.float32)

    kernel = partial(_decoder_kernel, H0=H0, W0=W0, head1=head1, head_a=head_a)
    out_pm = pl.pallas_call(
        kernel,
        out_shape=jax.ShapeDtypeStruct((B, 16 * Cf, N0), jnp.float32),
        grid_spec=pltpu.PrefetchScalarGridSpec(
            num_scalar_prefetch=0,
            grid=(B,),
            in_specs=[
                pl.BlockSpec((1, Ci, N0), lambda b: (b, 0, 0)),
                pl.BlockSpec((C1, 25), lambda b: (0, 0)),
                pl.BlockSpec((C1, 1), lambda b: (0, 0)),
                pl.BlockSpec((16, C1, C1), lambda b: (0, 0, 0)),
                pl.BlockSpec((C1, 1), lambda b: (0, 0)),
                pl.BlockSpec((16, Cf, C1), lambda b: (0, 0, 0)),
                pl.BlockSpec((Cf, 1), lambda b: (0, 0)),
            ],
            out_specs=pl.BlockSpec((1, 16 * Cf, N0), lambda b: (b, 0, 0)),
            scratch_shapes=[
                pltpu.VMEM((1, L1), jnp.float32),        # conv1 padded input
                pltpu.VMEM((C1, La), jnp.float32),       # a1 (pad=1, flat)
                pltpu.VMEM((4, C1, La), jnp.float32),    # a2 phase buffers
            ]),
        compiler_params=pltpu.CompilerParams(
            dimension_semantics=("parallel",)),
    )(x_flat, w1f, b1c, w2e, b2c, w3e, b3c)

    # De-interleave the 16 output phases (row = (qy*4+qx)*Cf + co):
    # out[b, co, 4*yo+qy, 4*xo+qx] = out_pm[b, (qy*4+qx)*Cf+co, yo*W0+xo]
    out = out_pm.reshape(B, 4, 4, Cf, H0, W0)
    out = jnp.transpose(out, (0, 3, 4, 1, 5, 2)).reshape(B, Cf, 4 * H0, 4 * W0)
    return out


# ----------------------------------------------------------------------------
# Params init (PyTorch-style) and a pure-JAX reference.
# ----------------------------------------------------------------------------
def init_decoder_params(key, in_chan, hidden_chan):
    ks = jax.random.split(key, 6)

    def conv_init(kw_key, kb_key, cout, cin, k):
        bound = 1.0 / float((cin * k * k) ** 0.5)
        w = jax.random.uniform(kw_key, (cout, cin, k, k), jnp.float32,
                               -bound, bound)
        b = jax.random.uniform(kb_key, (cout,), jnp.float32, -bound, bound)
        return w, b

    w1, b1 = conv_init(ks[0], ks[1], hidden_chan, 1, 5)
    w2, b2 = conv_init(ks[2], ks[3], hidden_chan, hidden_chan, 3)
    w3, b3 = conv_init(ks[4], ks[5], in_chan, hidden_chan, 3)
    return {"w1": w1, "b1": b1, "w2": w2, "b2": b2, "w3": w3, "b3": b3}


def decoder_reference(x, params):
    """Pure-JAX reference matching the PyTorch forward exactly (NCHW)."""
    def conv(x, w, b, pad):
        y = jax.lax.conv_general_dilated(
            x, w, window_strides=(1, 1),
            padding=[(pad, pad), (pad, pad)],
            dimension_numbers=("NCHW", "OIHW", "NCHW"),
            precision=jax.lax.Precision.HIGHEST)
        return y + b[None, :, None, None]

    def up2(x):
        return jnp.repeat(jnp.repeat(x, 2, axis=2), 2, axis=3)

    relu = jax.nn.relu
    x = relu(up2(conv(x, params["w1"], params["b1"], 2)))
    x = relu(up2(conv(x, params["w2"], params["b2"], 1)))
    x = relu(conv(x, params["w3"], params["b3"], 1))
    return x


if __name__ == "__main__":
    B, in_chan, hidden_chan, H, W = 2, 1, 8, 16, 16   # conv1 needs 1 input chan
    key = jax.random.PRNGKey(0)
    kx, kp = jax.random.split(key)
    x = jax.random.normal(kx, (B, in_chan, H, W), jnp.float32)  # NCHW input
    params = init_decoder_params(kp, in_chan, hidden_chan)

    out = jax.block_until_ready(decoder_forward(x, params))
    ref = decoder_reference(x, params)

    assert out.shape == (B, in_chan, 4 * H, 4 * W), out.shape
    max_err = float(jnp.max(jnp.abs(out - ref)))
    assert jnp.allclose(out, ref, atol=1e-3, rtol=1e-3), max_err
    print("KERNEL_OK")
</pallas_src>

<mosaic_0001>
module attributes {stable_mosaic.version = 11 : i64} {
  func.func @_decoder_kernel(%arg0: i32, %arg1: memref<1x1x256xf32, #tpu.memory_space<vmem>>, %arg2: memref<8x25xf32, #tpu.memory_space<vmem>>, %arg3: memref<8x1xf32, #tpu.memory_space<vmem>>, %arg4: memref<16x8x8xf32, #tpu.memory_space<vmem>>, %arg5: memref<8x1xf32, #tpu.memory_space<vmem>>, %arg6: memref<16x1x8xf32, #tpu.memory_space<vmem>>, %arg7: memref<1x1xf32, #tpu.memory_space<vmem>>, %arg8: memref<1x16x256xf32, #tpu.memory_space<vmem>>, %arg9: memref<1x512xf32, #tpu.memory_space<vmem>>, %arg10: memref<8x512xf32, #tpu.memory_space<vmem>>, %arg11: memref<4x8x512xf32, #tpu.memory_space<vmem>>) attributes {dimension_semantics = [#tpu.dimension_semantics<parallel>], iteration_bounds = array<i64: 2>, scalar_prefetch = 0 : i64, scratch_operands = 3 : i64, tpu.core_type = #tpu.core_type<tc>, window_params = [{transform_indices = @transform_0, window_bounds = array<i64: 1, 1, 256>}, {pipeline_mode = #tpu.pipeline_mode<synchronous>, transform_indices = @transform_1, window_bounds = array<i64: 8, 25>}, {pipeline_mode = #tpu.pipeline_mode<synchronous>, transform_indices = @transform_2, window_bounds = array<i64: 8, 1>}, {pipeline_mode = #tpu.pipeline_mode<synchronous>, transform_indices = @transform_3, window_bounds = array<i64: 16, 8, 8>}, {pipeline_mode = #tpu.pipeline_mode<synchronous>, transform_indices = @transform_4, window_bounds = array<i64: 8, 1>}, {pipeline_mode = #tpu.pipeline_mode<synchronous>, transform_indices = @transform_5, window_bounds = array<i64: 16, 1, 8>}, {pipeline_mode = #tpu.pipeline_mode<synchronous>, transform_indices = @transform_6, window_bounds = array<i64: 1, 1>}, {transform_indices = @transform_7, window_bounds = array<i64: 1, 16, 256>}]} {
    %cst = arith.constant 0.000000e+00 : f32
    %0 = vector.broadcast %cst : f32 to vector<1x128xf32>
    %c0 = arith.constant 0 : index
    %c0_0 = arith.constant 0 : index
    %1 = vector.load %arg9[%c0, %c0_0] : memref<1x512xf32, #tpu.memory_space<vmem>>, vector<1x128xf32>
    tpu.vector_store %arg9[%c0, %c0_0], %0 {strides = array<i32>} : memref<1x512xf32, #tpu.memory_space<vmem>>, vector<1x128xf32>,
    %c0_1 = arith.constant 0 : index
    %c384 = arith.constant 384 : index
    %2 = vector.load %arg9[%c0_1, %c384] : memref<1x512xf32, #tpu.memory_space<vmem>>, vector<1x128xf32>
    tpu.vector_store %arg9[%c0_1, %c384], %0 {strides = array<i32>} : memref<1x512xf32, #tpu.memory_space<vmem>>, vector<1x128xf32>,
    %cst_2 = arith.constant 0.000000e+00 : f32
    %3 = vector.broadcast %cst_2 : f32 to vector<8x128xf32>
    %c0_3 = arith.constant 0 : index
    %c0_4 = arith.constant 0 : index
    %4 = vector.load %arg10[%c0_3, %c0_4] : memref<8x512xf32, #tpu.memory_space<vmem>>, vector<8x128xf32>
    tpu.vector_store %arg10[%c0_3, %c0_4], %3 {strides = array<i32>} : memref<8x512xf32, #tpu.memory_space<vmem>>, vector<8x128xf32>,
    %c0_5 = arith.constant 0 : index
    %c384_6 = arith.constant 384 : index
    %5 = vector.load %arg10[%c0_5, %c384_6] : memref<8x512xf32, #tpu.memory_space<vmem>>, vector<8x128xf32>
    tpu.vector_store %arg10[%c0_5, %c384_6], %3 {strides = array<i32>} : memref<8x512xf32, #tpu.memory_space<vmem>>, vector<8x128xf32>,
    %c0_7 = arith.constant 0 : index
    %c0_8 = arith.constant 0 : index
    %c0_9 = arith.constant 0 : index
    %6 = vector.load %arg11[%c0_7, %c0_8, %c0_9] : memref<4x8x512xf32, #tpu.memory_space<vmem>>, vector<1x8x128xf32>
    %7 = vector.shape_cast %6 : vector<1x8x128xf32> to vector<8x128xf32>
    %8 = vector.shape_cast %3 : vector<8x128xf32> to vector<1x8x128xf32>
    tpu.vector_store %arg11[%c0_7, %c0_8, %c0_9], %8 {strides = array<i32>} : memref<4x8x512xf32, #tpu.memory_space<vmem>>, vector<1x8x128xf32>,
    %c0_10 = arith.constant 0 : index
    %c0_11 = arith.constant 0 : index
    %c384_12 = arith.constant 384 : index
    %9 = vector.load %arg11[%c0_10, %c0_11, %c384_12] : memref<4x8x512xf32, #tpu.memory_space<vmem>>, vector<1x8x128xf32>
    %10 = vector.shape_cast %9 : vector<1x8x128xf32> to vector<8x128xf32>
    %11 = vector.shape_cast %3 : vector<8x128xf32> to vector<1x8x128xf32>
    tpu.vector_store %arg11[%c0_10, %c0_11, %c384_12], %11 {strides = array<i32>} : memref<4x8x512xf32, #tpu.memory_space<vmem>>, vector<1x8x128xf32>,
    %c1 = arith.constant 1 : index
    %c0_13 = arith.constant 0 : index
    %c0_14 = arith.constant 0 : index
    %12 = vector.load %arg11[%c1, %c0_13, %c0_14] : memref<4x8x512xf32, #tpu.memory_space<vmem>>, vector<1x8x128xf32>
    %13 = vector.shape_cast %12 : vector<1x8x128xf32> to vector<8x128xf32>
    %14 = vector.shape_cast %3 : vector<8x128xf32> to vector<1x8x128xf32>
    tpu.vector_store %arg11[%c1, %c0_13, %c0_14], %14 {strides = array<i32>} : memref<4x8x512xf32, #tpu.memory_space<vmem>>, vector<1x8x128xf32>,
    %c1_15 = arith.constant 1 : index
    %c0_16 = arith.constant 0 : index
    %c384_17 = arith.constant 384 : index
    %15 = vector.load %arg11[%c1_15, %c0_16, %c384_17] : memref<4x8x512xf32, #tpu.memory_space<vmem>>, vector<1x8x128xf32>
    %16 = vector.shape_cast %15 : vector<1x8x128xf32> to vector<8x128xf32>
    %17 = vector.shape_cast %3 : vector<8x128xf32> to vector<1x8x128xf32>
    tpu.vector_store %arg11[%c1_15, %c0_16, %c384_17], %17 {strides = array<i32>} : memref<4x8x512xf32, #tpu.memory_space<vmem>>, vector<1x8x128xf32>,
    %c2 = arith.constant 2 : index
    %c0_18 = arith.constant 0 : index
    %c0_19 = arith.constant 0 : index
    %18 = vector.load %arg11[%c2, %c0_18, %c0_19] : memref<4x8x512xf32, #tpu.memory_space<vmem>>, vector<1x8x128xf32>
    %19 = vector.shape_cast %18 : vector<1x8x128xf32> to vector<8x128xf32>
    %20 = vector.shape_cast %3 : vector<8x128xf32> to vector<1x8x128xf32>
    tpu.vector_store %arg11[%c2, %c0_18, %c0_19], %20 {strides = array<i32>} : memref<4x8x512xf32, #tpu.memory_space<vmem>>, vector<1x8x128xf32>,
    %c2_20 = arith.constant 2 : index
    %c0_21 = arith.constant 0 : index
    %c384_22 = arith.constant 384 : index
    %21 = vector.load %arg11[%c2_20, %c0_21, %c384_22] : memref<4x8x512xf32, #tpu.memory_space<vmem>>, vector<1x8x128xf32>
    %22 = vector.shape_cast %21 : vector<1x8x128xf32> to vector<8x128xf32>
    %23 = vector.shape_cast %3 : vector<8x128xf32> to vector<1x8x128xf32>
    tpu.vector_store %arg11[%c2_20, %c0_21, %c384_22], %23 {strides = array<i32>} : memref<4x8x512xf32, #tpu.memory_space<vmem>>, vector<1x8x128xf32>,
    %c3 = arith.constant 3 : index
    %c0_23 = arith.constant 0 : index
    %c0_24 = arith.constant 0 : index
    %24 = vector.load %arg11[%c3, %c0_23, %c0_24] : memref<4x8x512xf32, #tpu.memory_space<vmem>>, vector<1x8x128xf32>
    %25 = vector.shape_cast %24 : vector<1x8x128xf32> to vector<8x128xf32>
    %26 = vector.shape_cast %3 : vector<8x128xf32> to vector<1x8x128xf32>
    tpu.vector_store %arg11[%c3, %c0_23, %c0_24], %26 {strides = array<i32>} : memref<4x8x512xf32, #tpu.memory_space<vmem>>, vector<1x8x128xf32>,
    %c3_25 = arith.constant 3 : index
    %c0_26 = arith.constant 0 : index
    %c384_27 = arith.constant 384 : index
    %27 = vector.load %arg11[%c3_25, %c0_26, %c384_27] : memref<4x8x512xf32, #tpu.memory_space<vmem>>, vector<1x8x128xf32>
    %28 = vector.shape_cast %27 : vector<1x8x128xf32> to vector<8x128xf32>
    %29 = vector.shape_cast %3 : vector<8x128xf32> to vector<1x8x128xf32>
    tpu.vector_store %arg11[%c3_25, %c0_26, %c384_27], %29 {strides = array<i32>} : memref<4x8x512xf32, #tpu.memory_space<vmem>>, vector<1x8x128xf32>,
    %c0_28 = arith.constant 0 : index
    %c0_29 = arith.constant 0 : index
    %c0_30 = arith.constant 0 : index
    %30 = vector.load %arg1[%c0_28, %c0_29, %c0_30] : memref<1x1x256xf32, #tpu.memory_space<vmem>>, vector<1x1x256xf32>
    %31 = vector.shape_cast %30 : vector<1x1x256xf32> to vector<1x256xf32>
    %c0_31 = arith.constant 0 : index
    %c128 = arith.constant 128 : index
    %32 = vector.load %arg9[%c0_31, %c128] : memref<1x512xf32, #tpu.memory_space<vmem>>, vector<1x256xf32>
    tpu.vector_store %arg9[%c0_31, %c128], %31 {strides = array<i32>} : memref<1x512xf32, #tpu.memory_space<vmem>>, vector<1x256xf32>,
    %33 = tpu.iota {dimensions = array<i32: 1>} : vector<1x256xi32>
    %c16_i32 = arith.constant 16 : i32
    %c0_i32 = arith.constant 0 : i32
    %34 = arith.cmpi eq, %c16_i32, %c0_i32 : i32
    %c1_i32 = arith.constant 1 : i32
    %35 = arith.select %34, %c1_i32, %c16_i32 : i32
    %36 = vector.broadcast %35 : i32 to vector<1x256xi32>
    %37 = arith.remsi %33, %36 : vector<1x256xi32>
    %c0_i32_32 = arith.constant 0 : i32
    %38 = vector.broadcast %c0_i32_32 : i32 to vector<1x256xi32>
    %39 = arith.cmpi ne, %37, %38 : vector<1x256xi32>
    %c0_i32_33 = arith.constant 0 : i32
    %40 = vector.broadcast %c0_i32_33 : i32 to vector<1x256xi32>
    %41 = arith.cmpi slt, %37, %40 : vector<1x256xi32>
    %c0_i32_34 = arith.constant 0 : i32
    %42 = arith.cmpi slt, %35, %c0_i32_34 : i32
    %43 = vector.broadcast %42 : i1 to vector<1x256xi1>
    %44 = vector.broadcast %43 : vector<1x256xi1> to vector<1x256xi1>
    %45 = arith.xori %41, %44 : vector<1x256xi1>
    %46 = arith.andi %45, %39 : vector<1x256xi1>
    %47 = vector.broadcast %35 : i32 to vector<1x256xi32>
    %48 = arith.addi %37, %47 : vector<1x256xi32>
    %49 = arith.select %46, %48, %37 : vector<1x256xi1>, vector<1x256xi32>
    %c-2_i32 = arith.constant -2 : i32
    %50 = vector.broadcast %c-2_i32 : i32 to vector<1x256xi32>
    %51 = arith.addi %49, %50 : vector<1x256xi32>
    %c0_i32_35 = arith.constant 0 : i32
    %52 = vector.broadcast %c0_i32_35 : i32 to vector<1x256xi32>
    %53 = arith.cmpi sge, %51, %52 : vector<1x256xi32>
    %c-2_i32_36 = arith.constant -2 : i32
    %54 = vector.broadcast %c-2_i32_36 : i32 to vector<1x256xi32>
    %55 = arith.addi %49, %54 : vector<1x256xi32>
    %c16_i32_37 = arith.constant 16 : i32
    %56 = vector.broadcast %c16_i32_37 : i32 to vector<1x256xi32>
    %57 = arith.cmpi slt, %55, %56 : vector<1x256xi32>
    %58 = arith.andi %53, %57 : vector<1x256xi1>
    %59 = arith.extui %58 : vector<1x256xi1> to vector<1x256xi32>
    %60 = arith.sitofp %59 : vector<1x256xi32> to vector<1x256xf32>
    %c-1_i32 = arith.constant -1 : i32
    %61 = vector.broadcast %c-1_i32 : i32 to vector<1x256xi32>
    %62 = arith.addi %49, %61 : vector<1x256xi32>
    %c0_i32_38 = arith.constant 0 : i32
    %63 = vector.broadcast %c0_i32_38 : i32 to vector<1x256xi32>
    %64 = arith.cmpi sge, %62, %63 : vector<1x256xi32>
    %c-1_i32_39 = arith.constant -1 : i32
    %65 = vector.broadcast %c-1_i32_39 : i32 to vector<1x256xi32>
    %66 = arith.addi %49, %65 : vector<1x256xi32>
    %c16_i32_40 = arith.constant 16 : i32
    %67 = vector.broadcast %c16_i32_40 : i32 to vector<1x256xi32>
    %68 = arith.cmpi slt, %66, %67 : vector<1x256xi32>
    %69 = arith.andi %64, %68 : vector<1x256xi1>
    %70 = arith.extui %69 : vector<1x256xi1> to vector<1x256xi32>
    %71 = arith.sitofp %70 : vector<1x256xi32> to vector<1x256xf32>
    %c1_i32_41 = arith.constant 1 : i32
    %72 = vector.broadcast %c1_i32_41 : i32 to vector<1x256xi32>
    %73 = arith.addi %49, %72 : vector<1x256xi32>
    %c0_i32_42 = arith.constant 0 : i32
    %74 = vector.broadcast %c0_i32_42 : i32 to vector<1x256xi32>
    %75 = arith.cmpi sge, %73, %74 : vector<1x256xi32>
    %c1_i32_43 = arith.constant 1 : i32
    %76 = vector.broadcast %c1_i32_43 : i32 to vector<1x256xi32>
    %77 = arith.addi %49, %76 : vector<1x256xi32>
    %c16_i32_44 = arith.constant 16 : i32
    %78 = vector.broadcast %c16_i32_44 : i32 to vector<1x256xi32>
    %79 = arith.cmpi slt, %77, %78 : vector<1x256xi32>
    %80 = arith.andi %75, %79 : vector<1x256xi1>
    %81 = arith.extui %80 : vector<1x256xi1> to vector<1x256xi32>
    %82 = arith.sitofp %81 : vector<1x256xi32> to vector<1x256xf32>
    %c2_i32 = arith.constant 2 : i32
    %83 = vector.broadcast %c2_i32 : i32 to vector<1x256xi32>
    %84 = arith.addi %49, %83 : vector<1x256xi32>
    %c0_i32_45 = arith.constant 0 : i32
    %85 = vector.broadcast %c0_i32_45 : i32 to vector<1x256xi32>
    %86 = arith.cmpi sge, %84, %85 : vector<1x256xi32>
    %c2_i32_46 = arith.constant 2 : i32
    %87 = vector.broadcast %c2_i32_46 : i32 to vector<1x256xi32>
    %88 = arith.addi %49, %87 : vector<1x256xi32>
    %c16_i32_47 = arith.constant 16 : i32
    %89 = vector.broadcast %c16_i32_47 : i32 to vector<1x256xi32>
    %90 = arith.cmpi slt, %88, %89 : vector<1x256xi32>
    %91 = arith.andi %86, %90 : vector<1x256xi1>
    %92 = arith.extui %91 : vector<1x256xi1> to vector<1x256xi32>
    %93 = arith.sitofp %92 : vector<1x256xi32> to vector<1x256xf32>
    %c0_48 = arith.constant 0 : index
    %c0_49 = arith.constant 0 : index
    %94 = vector.load %arg2[%c0_48, %c0_49] : memref<8x25xf32, #tpu.memory_space<vmem>>, vector<8x25xf32>
    %cst_50 = arith.constant 0.000000e+00 : f32
    %95 = vector.broadcast %cst_50 : f32 to vector<8x256xf32>
    %c0_51 = arith.constant 0 : index
    %c94 = arith.constant 94 : index
    %96 = vector.load %arg9[%c0_51, %c94] : memref<1x512xf32, #tpu.memory_space<vmem>>, vector<1x256xf32>
    %97 = arith.mulf %96, %60 : vector<1x256xf32>
    %98 = vector.extract_strided_slice %94 {offsets = [0, 0], sizes = [8, 1], strides = [1, 1]} : vector<8x25xf32> to vector<8x1xf32>
    %99 = vector.broadcast %98 : vector<8x1xf32> to vector<8x256xf32>
    %100 = vector.broadcast %97 : vector<1x256xf32> to vector<8x256xf32>
    %101 = arith.mulf %99, %100 : vector<8x256xf32>
    %102 = arith.addf %95, %101 : vector<8x256xf32>
    %c0_52 = arith.constant 0 : index
    %c95 = arith.constant 95 : index
    %103 = vector.load %arg9[%c0_52, %c95] : memref<1x512xf32, #tpu.memory_space<vmem>>, vector<1x256xf32>
    %104 = arith.mulf %103, %71 : vector<1x256xf32>
    %105 = vector.extract_strided_slice %94 {offsets = [0, 1], sizes = [8, 1], strides = [1, 1]} : vector<8x25xf32> to vector<8x1xf32>
    %106 = vector.broadcast %105 : vector<8x1xf32> to vector<8x256xf32>
    %107 = vector.broadcast %104 : vector<1x256xf32> to vector<8x256xf32>
    %108 = arith.mulf %106, %107 : vector<8x256xf32>
    %109 = arith.addf %102, %108 : vector<8x256xf32>
    %c0_53 = arith.constant 0 : index
    %c96 = arith.constant 96 : index
    %110 = vector.load %arg9[%c0_53, %c96] : memref<1x512xf32, #tpu.memory_space<vmem>>, vector<1x256xf32>
    %111 = vector.extract_strided_slice %94 {offsets = [0, 2], sizes = [8, 1], strides = [1, 1]} : vector<8x25xf32> to vector<8x1xf32>
    %112 = vector.broadcast %111 : vector<8x1xf32> to vector<8x256xf32>
    %113 = vector.broadcast %110 : vector<1x256xf32> to vector<8x256xf32>
    %114 = arith.mulf %112, %113 : vector<8x256xf32>
    %115 = arith.addf %109, %114 : vector<8x256xf32>
    %c0_54 = arith.constant 0 : index
    %c97 = arith.constant 97 : index
    %116 = vector.load %arg9[%c0_54, %c97] : memref<1x512xf32, #tpu.memory_space<vmem>>, vector<1x256xf32>
    %117 = arith.mulf %116, %82 : vector<1x256xf32>
    %118 = vector.extract_strided_slice %94 {offsets = [0, 3], sizes = [8, 1], strides = [1, 1]} : vector<8x25xf32> to vector<8x1xf32>
    %119 = vector.broadcast %118 : vector<8x1xf32> to vector<8x256xf32>
    %120 = vector.broadcast %117 : vector<1x256xf32> to vector<8x256xf32>
    %121 = arith.mulf %119, %120 : vector<8x256xf32>
    %122 = arith.addf %115, %121 : vector<8x256xf32>
    %c0_55 = arith.constant 0 : index
    %c98 = arith.constant 98 : index
    %123 = vector.load %arg9[%c0_55, %c98] : memref<1x512xf32, #tpu.memory_space<vmem>>, vector<1x256xf32>
    %124 = arith.mulf %123, %93 : vector<1x256xf32>
    %125 = vector.extract_strided_slice %94 {offsets = [0, 4], sizes = [8, 1], strides = [1, 1]} : vector<8x25xf32> to vector<8x1xf32>
    %126 = vector.broadcast %125 : vector<8x1xf32> to vector<8x256xf32>
    %127 = vector.broadcast %124 : vector<1x256xf32> to vector<8x256xf32>
    %128 = arith.mulf %126, %127 : vector<8x256xf32>
    %129 = arith.addf %122, %128 : vector<8x256xf32>
    %c0_56 = arith.constant 0 : index
    %c110 = arith.constant 110 : index
    %130 = vector.load %arg9[%c0_56, %c110] : memref<1x512xf32, #tpu.memory_space<vmem>>, vector<1x256xf32>
    %131 = arith.mulf %130, %60 : vector<1x256xf32>
    %132 = vector.extract_strided_slice %94 {offsets = [0, 5], sizes = [8, 1], strides = [1, 1]} : vector<8x25xf32> to vector<8x1xf32>
    %133 = vector.broadcast %132 : vector<8x1xf32> to vector<8x256xf32>
    %134 = vector.broadcast %131 : vector<1x256xf32> to vector<8x256xf32>
    %135 = arith.mulf %133, %134 : vector<8x256xf32>
    %136 = arith.addf %129, %135 : vector<8x256xf32>
    %c0_57 = arith.constant 0 : index
    %c111 = arith.constant 111 : index
    %137 = vector.load %arg9[%c0_57, %c111] : memref<1x512xf32, #tpu.memory_space<vmem>>, vector<1x256xf32>
    %138 = arith.mulf %137, %71 : vector<1x256xf32>
    %139 = vector.extract_strided_slice %94 {offsets = [0, 6], sizes = [8, 1], strides = [1, 1]} : vector<8x25xf32> to vector<8x1xf32>
    %140 = vector.broadcast %139 : vector<8x1xf32> to vector<8x256xf32>
    %141 = vector.broadcast %138 : vector<1x256xf32> to vector<8x256xf32>
    %142 = arith.mulf %140, %141 : vector<8x256xf32>
    %143 = arith.addf %136, %142 : vector<8x256xf32>
    %c0_58 = arith.constant 0 : index
    %c112 = arith.constant 112 : index
    %144 = vector.load %arg9[%c0_58, %c112] : memref<1x512xf32, #tpu.memory_space<vmem>>, vector<1x256xf32>
    %145 = vector.extract_strided_slice %94 {offsets = [0, 7], sizes = [8, 1], strides = [1, 1]} : vector<8x25xf32> to vector<8x1xf32>
    %146 = vector.broadcast %145 : vector<8x1xf32> to vector<8x256xf32>
    %147 = vector.broadcast %144 : vector<1x256xf32> to vector<8x256xf32>
    %148 = arith.mulf %146, %147 : vector<8x256xf32>
    %149 = arith.addf %143, %148 : vector<8x256xf32>
    %c0_59 = arith.constant 0 : index
    %c113 = arith.constant 113 : index
    %150 = vector.load %arg9[%c0_59, %c113] : memref<1x512xf32, #tpu.memory_space<vmem>>, vector<1x256xf32>
    %151 = arith.mulf %150, %82 : vector<1x256xf32>
    %152 = vector.extract_strided_slice %94 {offsets = [0, 8], sizes = [8, 1], strides = [1, 1]} : vector<8x25xf32> to vector<8x1xf32>
    %153 = vector.broadcast %152 : vector<8x1xf32> to vector<8x256xf32>
    %154 = vector.broadcast %151 : vector<1x256xf32> to vector<8x256xf32>
    %155 = arith.mulf %153, %154 : vector<8x256xf32>
    %156 = arith.addf %149, %155 : vector<8x256xf32>
    %c0_60 = arith.constant 0 : index
    %c114 = arith.constant 114 : index
    %157 = vector.load %arg9[%c0_60, %c114] : memref<1x512xf32, #tpu.memory_space<vmem>>, vector<1x256xf32>
    %158 = arith.mulf %157, %93 : vector<1x256xf32>
    %159 = vector.extract_strided_slice %94 {offsets = [0, 9], sizes = [8, 1], strides = [1, 1]} : vector<8x25xf32> to vector<8x1xf32>
    %160 = vector.broadcast %159 : vector<8x1xf32> to vector<8x256xf32>
    %161 = vector.broadcast %158 : vector<1x256xf32> to vector<8x256xf32>
    %162 = arith.mulf %160, %161 : vector<8x256xf32>
    %163 = arith.addf %156, %162 : vector<8x256xf32>
    %c0_61 = arith.constant 0 : index
    %c126 = arith.constant 126 : index
    %164 = vector.load %arg9[%c0_61, %c126] : memref<1x512xf32, #tpu.memory_space<vmem>>, vector<1x256xf32>
    %165 = arith.mulf %164, %60 : vector<1x256xf32>
    %166 = vector.extract_strided_slice %94 {offsets = [0, 10], sizes = [8, 1], strides = [1, 1]} : vector<8x25xf32> to vector<8x1xf32>
    %167 = vector.broadcast %166 : vector<8x1xf32> to vector<8x256xf32>
    %168 = vector.broadcast %165 : vector<1x256xf32> to vector<8x256xf32>
    %169 = arith.mulf %167, %168 : vector<8x256xf32>
    %170 = arith.addf %163, %169 : vector<8x256xf32>
    %c0_62 = arith.constant 0 : index
    %c127 = arith.constant 127 : index
    %171 = vector.load %arg9[%c0_62, %c127] : memref<1x512xf32, #tpu.memory_space<vmem>>, vector<1x256xf32>
    %172 = arith.mulf %171, %71 : vector<1x256xf32>
    %173 = vector.extract_strided_slice %94 {offsets = [0, 11], sizes = [8, 1], strides = [1, 1]} : vector<8x25xf32> to vector<8x1xf32>
    %174 = vector.broadcast %173 : vector<8x1xf32> to vector<8x256xf32>
    %175 = vector.broadcast %172 : vector<1x256xf32> to vector<8x256xf32>
    %176 = arith.mulf %174, %175 : vector<8x256xf32>
    %177 = arith.addf %170, %176 : vector<8x256xf32>
    %c0_63 = arith.constant 0 : index
    %c128_64 = arith.constant 128 : index
    %178 = vector.load %arg9[%c0_63, %c128_64] : memref<1x512xf32, #tpu.memory_space<vmem>>, vector<1x256xf32>
    %179 = vector.extract_strided_slice %94 {offsets = [0, 12], sizes = [8, 1], strides = [1, 1]} : vector<8x25xf32> to vector<8x1xf32>
    %180 = vector.broadcast %179 : vector<8x1xf32> to vector<8x256xf32>
    %181 = vector.broadcast %178 : vector<1x256xf32> to vector<8x256xf32>
    %182 = arith.mulf %180, %181 : vector<8x256xf32>
    %183 = arith.addf %177, %182 : vector<8x256xf32>
    %c0_65 = arith.constant 0 : index
    %c129 = arith.constant 129 : index
    %184 = vector.load %arg9[%c0_65, %c129] : memref<1x512xf32, #tpu.memory_space<vmem>>, vector<1x256xf32>
    %185 = arith.mulf %184, %82 : vector<1x256xf32>
    %186 = vector.extract_strided_slice %94 {offsets = [0, 13], sizes = [8, 1], strides = [1, 1]} : vector<8x25xf32> to vector<8x1xf32>
    %187 = vector.broadcast %186 : vector<8x1xf32> to vector<8x256xf32>
    %188 = vector.broadcast %185 : vector<1x256xf32> to vector<8x256xf32>
    %189 = arith.mulf %187, %188 : vector<8x256xf32>
    %190 = arith.addf %183, %189 : vector<8x256xf32>
    %c0_66 = arith.constant 0 : index
    %c130 = arith.constant 130 : index
    %191 = vector.load %arg9[%c0_66, %c130] : memref<1x512xf32, #tpu.memory_space<vmem>>, vector<1x256xf32>
    %192 = arith.mulf %191, %93 : vector<1x256xf32>
    %193 = vector.extract_strided_slice %94 {offsets = [0, 14], sizes = [8, 1], strides = [1, 1]} : vector<8x25xf32> to vector<8x1xf32>
    %194 = vector.broadcast %193 : vector<8x1xf32> to vector<8x256xf32>
    %195 = vector.broadcast %192 : vector<1x256xf32> to vector<8x256xf32>
    %196 = arith.mulf %194, %195 : vector<8x256xf32>
    %197 = arith.addf %190, %196 : vector<8x256xf32>
    %c0_67 = arith.constant 0 : index
    %c142 = arith.constant 142 : index
    %198 = vector.load %arg9[%c0_67, %c142] : memref<1x512xf32, #tpu.memory_space<vmem>>, vector<1x256xf32>
    %199 = arith.mulf %198, %60 : vector<1x256xf32>
    %200 = vector.extract_strided_slice %94 {offsets = [0, 15], sizes = [8, 1], strides = [1, 1]} : vector<8x25xf32> to vector<8x1xf32>
    %201 = vector.broadcast %200 : vector<8x1xf32> to vector<8x256xf32>
    %202 = vector.broadcast %199 : vector<1x256xf32> to vector<8x256xf32>
    %203 = arith.mulf %201, %202 : vector<8x256xf32>
    %204 = arith.addf %197, %203 : vector<8x256xf32>
    %c0_68 = arith.constant 0 : index
    %c143 = arith.constant 143 : index
    %205 = vector.load %arg9[%c0_68, %c143] : memref<1x512xf32, #tpu.memory_space<vmem>>, vector<1x256xf32>
    %206 = arith.mulf %205, %71 : vector<1x256xf32>
    %207 = vector.extract_strided_slice %94 {offsets = [0, 16], sizes = [8, 1], strides = [1, 1]} : vector<8x25xf32> to vector<8x1xf32>
    %208 = vector.broadcast %207 : vector<8x1xf32> to vector<8x256xf32>
    %209 = vector.broadcast %206 : vector<1x256xf32> to vector<8x256xf32>
    %210 = arith.mulf %208, %209 : vector<8x256xf32>
    %211 = arith.addf %204, %210 : vector<8x256xf32>
    %c0_69 = arith.constant 0 : index
    %c144 = arith.constant 144 : index
    %212 = vector.load %arg9[%c0_69, %c144] : memref<1x512xf32, #tpu.memory_space<vmem>>, vector<1x256xf32>
    %213 = vector.extract_strided_slice %94 {offsets = [0, 17], sizes = [8, 1], strides = [1, 1]} : vector<8x25xf32> to vector<8x1xf32>
    %214 = vector.broadcast %213 : vector<8x1xf32> to vector<8x256xf32>
    %215 = vector.broadcast %212 : vector<1x256xf32> to vector<8x256xf32>
    %216 = arith.mulf %214, %215 : vector<8x256xf32>
    %217 = arith.addf %211, %216 : vector<8x256xf32>
    %c0_70 = arith.constant 0 : index
    %c145 = arith.constant 145 : index
    %218 = vector.load %arg9[%c0_70, %c145] : memref<1x512xf32, #tpu.memory_space<vmem>>, vector<1x256xf32>
    %219 = arith.mulf %218, %82 : vector<1x256xf32>
    %220 = vector.extract_strided_slice %94 {offsets = [0, 18], sizes = [8, 1], strides = [1, 1]} : vector<8x25xf32> to vector<8x1xf32>
    %221 = vector.broadcast %220 : vector<8x1xf32> to vector<8x256xf32>
    %222 = vector.broadcast %219 : vector<1x256xf32> to vector<8x256xf32>
    %223 = arith.mulf %221, %222 : vector<8x256xf32>
    %224 = arith.addf %217, %223 : vector<8x256xf32>
    %c0_71 = arith.constant 0 : index
    %c146 = arith.constant 146 : index
    %225 = vector.load %arg9[%c0_71, %c146] : memref<1x512xf32, #tpu.memory_space<vmem>>, vector<1x256xf32>
    %226 = arith.mulf %225, %93 : vector<1x256xf32>
    %227 = vector.extract_strided_slice %94 {offsets = [0, 19], sizes = [8, 1], strides = [1, 1]} : vector<8x25xf32> to vector<8x1xf32>
    %228 = vector.broadcast %227 : vector<8x1xf32> to vector<8x256xf32>
    %229 = vector.broadcast %226 : vector<1x256xf32> to vector<8x256xf32>
    %230 = arith.mulf %228, %229 : vector<8x256xf32>
    %231 = arith.addf %224, %230 : vector<8x256xf32>
    %c0_72 = arith.constant 0 : index
    %c158 = arith.constant 158 : index
    %232 = vector.load %arg9[%c0_72, %c158] : memref<1x512xf32, #tpu.memory_space<vmem>>, vector<1x256xf32>
    %233 = arith.mulf %232, %60 : vector<1x256xf32>
    %234 = vector.extract_strided_slice %94 {offsets = [0, 20], sizes = [8, 1], strides = [1, 1]} : vector<8x25xf32> to vector<8x1xf32>
    %235 = vector.broadcast %234 : vector<8x1xf32> to vector<8x256xf32>
    %236 = vector.broadcast %233 : vector<1x256xf32> to vector<8x256xf32>
    %237 = arith.mulf %235, %236 : vector<8x256xf32>
    %238 = arith.addf %231, %237 : vector<8x256xf32>
    %c0_73 = arith.constant 0 : index
    %c159 = arith.constant 159 : index
    %239 = vector.load %arg9[%c0_73, %c159] : memref<1x512xf32, #tpu.memory_space<vmem>>, vector<1x256xf32>
    %240 = arith.mulf %239, %71 : vector<1x256xf32>
    %241 = vector.extract_strided_slice %94 {offsets = [0, 21], sizes = [8, 1], strides = [1, 1]} : vector<8x25xf32> to vector<8x1xf32>
    %242 = vector.broadcast %241 : vector<8x1xf32> to vector<8x256xf32>
    %243 = vector.broadcast %240 : vector<1x256xf32> to vector<8x256xf32>
    %244 = arith.mulf %242, %243 : vector<8x256xf32>
    %245 = arith.addf %238, %244 : vector<8x256xf32>
    %c0_74 = arith.constant 0 : index
    %c160 = arith.constant 160 : index
    %246 = vector.load %arg9[%c0_74, %c160] : memref<1x512xf32, #tpu.memory_space<vmem>>, vector<1x256xf32>
    %247 = vector.extract_strided_slice %94 {offsets = [0, 22], sizes = [8, 1], strides = [1, 1]} : vector<8x25xf32> to vector<8x1xf32>
    %248 = vector.broadcast %247 : vector<8x1xf32> to vector<8x256xf32>
    %249 = vector.broadcast %246 : vector<1x256xf32> to vector<8x256xf32>
    %250 = arith.mulf %248, %249 : vector<8x256xf32>
    %251 = arith.addf %245, %250 : vector<8x256xf32>
    %c0_75 = arith.constant 0 : index
    %c161 = arith.constant 161 : index
    %252 = vector.load %arg9[%c0_75, %c161] : memref<1x512xf32, #tpu.memory_space<vmem>>, vector<1x256xf32>
    %253 = arith.mulf %252, %82 : vector<1x256xf32>
    %254 = vector.extract_strided_slice %94 {offsets = [0, 23], sizes = [8, 1], strides = [1, 1]} : vector<8x25xf32> to vector<8x1xf32>
    %255 = vector.broadcast %254 : vector<8x1xf32> to vector<8x256xf32>
    %256 = vector.broadcast %253 : vector<1x256xf32> to vector<8x256xf32>
    %257 = arith.mulf %255, %256 : vector<8x256xf32>
    %258 = arith.addf %251, %257 : vector<8x256xf32>
    %c0_76 = arith.constant 0 : index
    %c162 = arith.constant 162 : index
    %259 = vector.load %arg9[%c0_76, %c162] : memref<1x512xf32, #tpu.memory_space<vmem>>, vector<1x256xf32>
    %260 = arith.mulf %259, %93 : vector<1x256xf32>
    %261 = vector.extract_strided_slice %94 {offsets = [0, 24], sizes = [8, 1], strides = [1, 1]} : vector<8x25xf32> to vector<8x1xf32>
    %262 = vector.broadcast %261 : vector<8x1xf32> to vector<8x256xf32>
    %263 = vector.broadcast %260 : vector<1x256xf32> to vector<8x256xf32>
    %264 = arith.mulf %262, %263 : vector<8x256xf32>
    %265 = arith.addf %258, %264 : vector<8x256xf32>
    %c0_77 = arith.constant 0 : index
    %c0_78 = arith.constant 0 : index
    %266 = vector.load %arg3[%c0_77, %c0_78] : memref<8x1xf32, #tpu.memory_space<vmem>>, vector<8x1xf32>
    %267 = vector.broadcast %266 : vector<8x1xf32> to vector<8x256xf32>
    %268 = arith.addf %265, %267 : vector<8x256xf32>
    %cst_79 = arith.constant 0.000000e+00 : f32
    %269 = vector.broadcast %cst_79 : f32 to vector<8x256xf32>
    %270 = arith.maximumf %268, %269 : vector<8x256xf32>
    %c0_80 = arith.constant 0 : index
    %c128_81 = arith.constant 128 : index
    %271 = vector.load %arg10[%c0_80, %c128_81] : memref<8x512xf32, #tpu.memory_space<vmem>>, vector<8x256xf32>
    tpu.vector_store %arg10[%c0_80, %c128_81], %270 {strides = array<i32>} : memref<8x512xf32, #tpu.memory_space<vmem>>, vector<8x256xf32>,
    %272 = tpu.iota {dimensions = array<i32: 1>} : vector<8x256xi32>
    %c16_i32_82 = arith.constant 16 : i32
    %c0_i32_83 = arith.constant 0 : i32
    %273 = arith.cmpi eq, %c16_i32_82, %c0_i32_83 : i32
    %c1_i32_84 = arith.constant 1 : i32
    %274 = arith.select %273, %c1_i32_84, %c16_i32_82 : i32
    %275 = vector.broadcast %274 : i32 to vector<8x256xi32>
    %276 = arith.remsi %272, %275 : vector<8x256xi32>
    %c0_i32_85 = arith.constant 0 : i32
    %277 = vector.broadcast %c0_i32_85 : i32 to vector<8x256xi32>
    %278 = arith.cmpi ne, %276, %277 : vector<8x256xi32>
    %c0_i32_86 = arith.constant 0 : i32
    %279 = vector.broadcast %c0_i32_86 : i32 to vector<8x256xi32>
    %280 = arith.cmpi slt, %276, %279 : vector<8x256xi32>
    %c0_i32_87 = arith.constant 0 : i32
    %281 = arith.cmpi slt, %274, %c0_i32_87 : i32
    %282 = vector.broadcast %281 : i1 to vector<8x256xi1>
    %283 = vector.broadcast %282 : vector<8x256xi1> to vector<8x256xi1>
    %284 = arith.xori %280, %283 : vector<8x256xi1>
    %285 = arith.andi %284, %278 : vector<8x256xi1>
    %286 = vector.broadcast %274 : i32 to vector<8x256xi32>
    %287 = arith.addi %276, %286 : vector<8x256xi32>
    %288 = arith.select %285, %287, %276 : vector<8x256xi1>, vector<8x256xi32>
    %c1_i32_88 = arith.constant 1 : i32
    %289 = vector.broadcast %c1_i32_88 : i32 to vector<8x256xi32>
    %290 = arith.cmpi sge, %288, %289 : vector<8x256xi32>
    %291 = arith.extui %290 : vector<8x256xi1> to vector<8x256xi32>
    %292 = arith.sitofp %291 : vector<8x256xi32> to vector<8x256xf32>
    %c14_i32 = arith.constant 14 : i32
    %293 = vector.broadcast %c14_i32 : i32 to vector<8x256xi32>
    %294 = arith.cmpi sle, %288, %293 : vector<8x256xi32>
    %295 = arith.extui %294 : vector<8x256xi1> to vector<8x256xi32>
    %296 = arith.sitofp %295 : vector<8x256xi32> to vector<8x256xf32>
    %c0_89 = arith.constant 0 : index
    %c0_90 = arith.constant 0 : index
    %297 = vector.load %arg5[%c0_89, %c0_90] : memref<8x1xf32, #tpu.memory_space<vmem>>, vector<8x1xf32>
    %cst_91 = arith.constant 0.000000e+00 : f32
    %298 = vector.broadcast %cst_91 : f32 to vector<8x256xf32>
    %c0_92 = arith.constant 0 : index
    %c111_93 = arith.constant 111 : index
    %299 = vector.load %arg10[%c0_92, %c111_93] : memref<8x512xf32, #tpu.memory_space<vmem>>, vector<8x256xf32>
    %300 = arith.mulf %299, %292 : vector<8x256xf32>
    %c0_94 = arith.constant 0 : index
    %c0_95 = arith.constant 0 : index
    %c0_96 = arith.constant 0 : index
    %301 = vector.load %arg4[%c0_94, %c0_95, %c0_96] : memref<16x8x8xf32, #tpu.memory_space<vmem>>, vector<1x8x8xf32>
    %302 = vector.shape_cast %301 : vector<1x8x8xf32> to vector<8x8xf32>
    %cst_97 = arith.constant dense<0.000000e+00> : vector<8x256xf32>
    %303 = tpu.matmul %302, %300, %cst_97 {dimension_numbers = #tpu.dot_dimension_numbers<[1], [0], [0], [1], [0, 0, 1, 1], [], []>} : vector<8x8xf32>, vector<8x256xf32>, vector<8x256xf32> -> vector<8x256xf32>
    %304 = arith.addf %298, %303 : vector<8x256xf32>
    %c0_98 = arith.constant 0 : index
    %c112_99 = arith.constant 112 : index
    %305 = vector.load %arg10[%c0_98, %c112_99] : memref<8x512xf32, #tpu.memory_space<vmem>>, vector<8x256xf32>
    %c1_100 = arith.constant 1 : index
    %c0_101 = arith.constant 0 : index
    %c0_102 = arith.constant 0 : index
    %306 = vector.load %arg4[%c1_100, %c0_101, %c0_102] : memref<16x8x8xf32, #tpu.memory_space<vmem>>, vector<1x8x8xf32>
    %307 = vector.shape_cast %306 : vector<1x8x8xf32> to vector<8x8xf32>
    %cst_103 = arith.constant dense<0.000000e+00> : vector<8x256xf32>
    %308 = tpu.matmul %307, %305, %cst_103 {dimension_numbers = #tpu.dot_dimension_numbers<[1], [0], [0], [1], [0, 0, 1, 1], [], []>} : vector<8x8xf32>, vector<8x256xf32>, vector<8x256xf32> -> vector<8x256xf32>
    %309 = arith.addf %304, %308 : vector<8x256xf32>
    %c0_104 = arith.constant 0 : index
    %c127_105 = arith.constant 127 : index
    %310 = vector.load %arg10[%c0_104, %c127_105] : memref<8x512xf32, #tpu.memory_space<vmem>>, vector<8x256xf32>
    %311 = arith.mulf %310, %292 : vector<8x256xf32>
    %c2_106 = arith.constant 2 : index
    %c0_107 = arith.constant 0 : index
    %c0_108 = arith.constant 0 : index
    %312 = vector.load %arg4[%c2_106, %c0_107, %c0_108] : memref<16x8x8xf32, #tpu.memory_space<vmem>>, vector<1x8x8xf32>
    %313 = vector.shape_cast %312 : vector<1x8x8xf32> to vector<8x8xf32>
    %cst_109 = arith.constant dense<0.000000e+00> : vector<8x256xf32>
    %314 = tpu.matmul %313, %311, %cst_109 {dimension_numbers = #tpu.dot_dimension_numbers<[1], [0], [0], [1], [0, 0, 1, 1], [], []>} : vector<8x8xf32>, vector<8x256xf32>, vector<8x256xf32> -> vector<8x256xf32>
    %315 = arith.addf %309, %314 : vector<8x256xf32>
    %c0_110 = arith.constant 0 : index
    %c128_111 = arith.constant 128 : index
    %316 = vector.load %arg10[%c0_110, %c128_111] : memref<8x512xf32, #tpu.memory_space<vmem>>, vector<8x256xf32>
    %c3_112 = arith.constant 3 : index
    %c0_113 = arith.constant 0 : index
    %c0_114 = arith.constant 0 : index
    %317 = vector.load %arg4[%c3_112, %c0_113, %c0_114] : memref<16x8x8xf32, #tpu.memory_space<vmem>>, vector<1x8x8xf32>
    %318 = vector.shape_cast %317 : vector<1x8x8xf32> to vector<8x8xf32>
    %cst_115 = arith.constant dense<0.000000e+00> : vector<8x256xf32>
    %319 = tpu.matmul %318, %316, %cst_115 {dimension_numbers = #tpu.dot_dimension_numbers<[1], [0], [0], [1], [0, 0, 1, 1], [], []>} : vector<8x8xf32>, vector<8x256xf32>, vector<8x256xf32> -> vector<8x256xf32>
    %320 = arith.addf %315, %319 : vector<8x256xf32>
    %321 = vector.broadcast %297 : vector<8x1xf32> to vector<8x256xf32>
    %322 = arith.addf %320, %321 : vector<8x256xf32>
    %cst_116 = arith.constant 0.000000e+00 : f32
    %323 = vector.broadcast %cst_116 : f32 to vector<8x256xf32>
    %324 = arith.maximumf %322, %323 : vector<8x256xf32>
    %c0_117 = arith.constant 0 : index
    %c0_118 = arith.constant 0 : index
    %c128_119 = arith.constant 128 : index
    %325 = vector.load %arg11[%c0_117, %c0_118, %c128_119] : memref<4x8x512xf32, #tpu.memory_space<vmem>>, vector<1x8x256xf32>
    %326 = vector.shape_cast %325 : vector<1x8x256xf32> to vector<8x256xf32>
    %327 = vector.shape_cast %324 : vector<8x256xf32> to vector<1x8x256xf32>
    tpu.vector_store %arg11[%c0_117, %c0_118, %c128_119], %327 {strides = array<i32>} : memref<4x8x512xf32, #tpu.memory_space<vmem>>, vector<1x8x256xf32>,
    %cst_120 = arith.constant 0.000000e+00 : f32
    %328 = vector.broadcast %cst_120 : f32 to vector<8x256xf32>
    %c0_121 = arith.constant 0 : index
    %c112_122 = arith.constant 112 : index
    %329 = vector.load %arg10[%c0_121, %c112_122] : memref<8x512xf32, #tpu.memory_space<vmem>>, vector<8x256xf32>
    %c4 = arith.constant 4 : index
    %c0_123 = arith.constant 0 : index
    %c0_124 = arith.constant 0 : index
    %330 = vector.load %arg4[%c4, %c0_123, %c0_124] : memref<16x8x8xf32, #tpu.memory_space<vmem>>, vector<1x8x8xf32>
    %331 = vector.shape_cast %330 : vector<1x8x8xf32> to vector<8x8xf32>
    %cst_125 = arith.constant dense<0.000000e+00> : vector<8x256xf32>
    %332 = tpu.matmul %331, %329, %cst_125 {dimension_numbers = #tpu.dot_dimension_numbers<[1], [0], [0], [1], [0, 0, 1, 1], [], []>} : vector<8x8xf32>, vector<8x256xf32>, vector<8x256xf32> -> vector<8x256xf32>
    %333 = arith.addf %328, %332 : vector<8x256xf32>
    %c0_126 = arith.constant 0 : index
    %c113_127 = arith.constant 113 : index
    %334 = vector.load %arg10[%c0_126, %c113_127] : memref<8x512xf32, #tpu.memory_space<vmem>>, vector<8x256xf32>
    %335 = arith.mulf %334, %296 : vector<8x256xf32>
    %c5 = arith.constant 5 : index
    %c0_128 = arith.constant 0 : index
    %c0_129 = arith.constant 0 : index
    %336 = vector.load %arg4[%c5, %c0_128, %c0_129] : memref<16x8x8xf32, #tpu.memory_space<vmem>>, vector<1x8x8xf32>
    %337 = vector.shape_cast %336 : vector<1x8x8xf32> to vector<8x8xf32>
    %cst_130 = arith.constant dense<0.000000e+00> : vector<8x256xf32>
    %338 = tpu.matmul %337, %335, %cst_130 {dimension_numbers = #tpu.dot_dimension_numbers<[1], [0], [0], [1], [0, 0, 1, 1], [], []>} : vector<8x8xf32>, vector<8x256xf32>, vector<8x256xf32> -> vector<8x256xf32>
    %339 = arith.addf %333, %338 : vector<8x256xf32>
    %c0_131 = arith.constant 0 : index
    %c128_132 = arith.constant 128 : index
    %340 = vector.load %arg10[%c0_131, %c128_132] : memref<8x512xf32, #tpu.memory_space<vmem>>, vector<8x256xf32>
    %c6 = arith.constant 6 : index
    %c0_133 = arith.constant 0 : index
    %c0_134 = arith.constant 0 : index
    %341 = vector.load %arg4[%c6, %c0_133, %c0_134] : memref<16x8x8xf32, #tpu.memory_space<vmem>>, vector<1x8x8xf32>
    %342 = vector.shape_cast %341 : vector<1x8x8xf32> to vector<8x8xf32>
    %cst_135 = arith.constant dense<0.000000e+00> : vector<8x256xf32>
    %343 = tpu.matmul %342, %340, %cst_135 {dimension_numbers = #tpu.dot_dimension_numbers<[1], [0], [0], [1], [0, 0, 1, 1], [], []>} : vector<8x8xf32>, vector<8x256xf32>, vector<8x256xf32> -> vector<8x256xf32>
    %344 = arith.addf %339, %343 : vector<8x256xf32>
    %c0_136 = arith.constant 0 : index
    %c129_137 = arith.constant 129 : index
    %345 = vector.load %arg10[%c0_136, %c129_137] : memref<8x512xf32, #tpu.memory_space<vmem>>, vector<8x256xf32>
    %346 = arith.mulf %345, %296 : vector<8x256xf32>
    %c7 = arith.constant 7 : index
    %c0_138 = arith.constant 0 : index
    %c0_139 = arith.constant 0 : index
    %347 = vector.load %arg4[%c7, %c0_138, %c0_139] : memref<16x8x8xf32, #tpu.memory_space<vmem>>, vector<1x8x8xf32>
    %348 = vector.shape_cast %347 : vector<1x8x8xf32> to vector<8x8xf32>
    %cst_140 = arith.constant dense<0.000000e+00> : vector<8x256xf32>
    %349 = tpu.matmul %348, %346, %cst_140 {dimension_numbers = #tpu.dot_dimension_numbers<[1], [0], [0], [1], [0, 0, 1, 1], [], []>} : vector<8x8xf32>, vector<8x256xf32>, vector<8x256xf32> -> vector<8x256xf32>
    %350 = arith.addf %344, %349 : vector<8x256xf32>
    %351 = vector.broadcast %297 : vector<8x1xf32> to vector<8x256xf32>
    %352 = arith.addf %350, %351 : vector<8x256xf32>
    %cst_141 = arith.constant 0.000000e+00 : f32
    %353 = vector.broadcast %cst_141 : f32 to vector<8x256xf32>
    %354 = arith.maximumf %352, %353 : vector<8x256xf32>
    %c1_142 = arith.constant 1 : index
    %c0_143 = arith.constant 0 : index
    %c128_144 = arith.constant 128 : index
    %355 = vector.load %arg11[%c1_142, %c0_143, %c128_144] : memref<4x8x512xf32, #tpu.memory_space<vmem>>, vector<1x8x256xf32>
    %356 = vector.shape_cast %355 : vector<1x8x256xf32> to vector<8x256xf32>
    %357 = vector.shape_cast %354 : vector<8x256xf32> to vector<1x8x256xf32>
    tpu.vector_store %arg11[%c1_142, %c0_143, %c128_144], %357 {strides = array<i32>} : memref<4x8x512xf32, #tpu.memory_space<vmem>>, vector<1x8x256xf32>,
    %cst_145 = arith.constant 0.000000e+00 : f32
    %358 = vector.broadcast %cst_145 : f32 to vector<8x256xf32>
    %c0_146 = arith.constant 0 : index
    %c127_147 = arith.constant 127 : index
    %359 = vector.load %arg10[%c0_146, %c127_147] : memref<8x512xf32, #tpu.memory_space<vmem>>, vector<8x256xf32>
    %360 = arith.mulf %359, %292 : vector<8x256xf32>
    %c8 = arith.constant 8 : index
    %c0_148 = arith.constant 0 : index
    %c0_149 = arith.constant 0 : index
    %361 = vector.load %arg4[%c8, %c0_148, %c0_149] : memref<16x8x8xf32, #tpu.memory_space<vmem>>, vector<1x8x8xf32>
    %362 = vector.shape_cast %361 : vector<1x8x8xf32> to vector<8x8xf32>
    %cst_150 = arith.constant dense<0.000000e+00> : vector<8x256xf32>
    %363 = tpu.matmul %362, %360, %cst_150 {dimension_numbers = #tpu.dot_dimension_numbers<[1], [0], [0], [1], [0, 0, 1, 1], [], []>} : vector<8x8xf32>, vector<8x256xf32>, vector<8x256xf32> -> vector<8x256xf32>
    %364 = arith.addf %358, %363 : vector<8x256xf32>
    %c0_151 = arith.constant 0 : index
    %c128_152 = arith.constant 128 : index
    %365 = vector.load %arg10[%c0_151, %c128_152] : memref<8x512xf32, #tpu.memory_space<vmem>>, vector<8x256xf32>
    %c9 = arith.constant 9 : index
    %c0_153 = arith.constant 0 : index
    %c0_154 = arith.constant 0 : index
    %366 = vector.load %arg4[%c9, %c0_153, %c0_154] : memref<16x8x8xf32, #tpu.memory_space<vmem>>, vector<1x8x8xf32>
    %367 = vector.shape_cast %366 : vector<1x8x8xf32> to vector<8x8xf32>
    %cst_155 = arith.constant dense<0.000000e+00> : vector<8x256xf32>
    %368 = tpu.matmul %367, %365, %cst_155 {dimension_numbers = #tpu.dot_dimension_numbers<[1], [0], [0], [1], [0, 0, 1, 1], [], []>} : vector<8x8xf32>, vector<8x256xf32>, vector<8x256xf32> -> vector<8x256xf32>
    %369 = arith.addf %364, %368 : vector<8x256xf32>
    %c0_156 = arith.constant 0 : index
    %c143_157 = arith.constant 143 : index
    %370 = vector.load %arg10[%c0_156, %c143_157] : memref<8x512xf32, #tpu.memory_space<vmem>>, vector<8x256xf32>
    %371 = arith.mulf %370, %292 : vector<8x256xf32>
    %c10 = arith.constant 10 : index
    %c0_158 = arith.constant 0 : index
    %c0_159 = arith.constant 0 : index
    %372 = vector.load %arg4[%c10, %c0_158, %c0_159] : memref<16x8x8xf32, #tpu.memory_space<vmem>>, vector<1x8x8xf32>
    %373 = vector.shape_cast %372 : vector<1x8x8xf32> to vector<8x8xf32>
    %cst_160 = arith.constant dense<0.000000e+00> : vector<8x256xf32>
    %374 = tpu.matmul %373, %371, %cst_160 {dimension_numbers = #tpu.dot_dimension_numbers<[1], [0], [0], [1], [0, 0, 1, 1], [], []>} : vector<8x8xf32>, vector<8x256xf32>, vector<8x256xf32> -> vector<8x256xf32>
    %375 = arith.addf %369, %374 : vector<8x256xf32>
    %c0_161 = arith.constant 0 : index
    %c144_162 = arith.constant 144 : index
    %376 = vector.load %arg10[%c0_161, %c144_162] : memref<8x512xf32, #tpu.memory_space<vmem>>, vector<8x256xf32>
    %c11 = arith.constant 11 : index
    %c0_163 = arith.constant 0 : index
    %c0_164 = arith.constant 0 : index
    %377 = vector.load %arg4[%c11, %c0_163, %c0_164] : memref<16x8x8xf32, #tpu.memory_space<vmem>>, vector<1x8x8xf32>
    %378 = vector.shape_cast %377 : vector<1x8x8xf32> to vector<8x8xf32>
    %cst_165 = arith.constant dense<0.000000e+00> : vector<8x256xf32>
    %379 = tpu.matmul %378, %376, %cst_165 {dimension_numbers = #tpu.dot_dimension_numbers<[1], [0], [0], [1], [0, 0, 1, 1], [], []>} : vector<8x8xf32>, vector<8x256xf32>, vector<8x256xf32> -> vector<8x256xf32>
    %380 = arith.addf %375, %379 : vector<8x256xf32>
    %381 = vector.broadcast %297 : vector<8x1xf32> to vector<8x256xf32>
    %382 = arith.addf %380, %381 : vector<8x256xf32>
    %cst_166 = arith.constant 0.000000e+00 : f32
    %383 = vector.broadcast %cst_166 : f32 to vector<8x256xf32>
    %384 = arith.maximumf %382, %383 : vector<8x256xf32>
    %c2_167 = arith.constant 2 : index
    %c0_168 = arith.constant 0 : index
    %c128_169 = arith.constant 128 : index
    %385 = vector.load %arg11[%c2_167, %c0_168, %c128_169] : memref<4x8x512xf32, #tpu.memory_space<vmem>>, vector<1x8x256xf32>
    %386 = vector.shape_cast %385 : vector<1x8x256xf32> to vector<8x256xf32>
    %387 = vector.shape_cast %384 : vector<8x256xf32> to vector<1x8x256xf32>
    tpu.vector_store %arg11[%c2_167, %c0_168, %c128_169], %387 {strides = array<i32>} : memref<4x8x512xf32, #tpu.memory_space<vmem>>, vector<1x8x256xf32>,
    %cst_170 = arith.constant 0.000000e+00 : f32
    %388 = vector.broadcast %cst_170 : f32 to vector<8x256xf32>
    %c0_171 = arith.constant 0 : index
    %c128_172 = arith.constant 128 : index
    %389 = vector.load %arg10[%c0_171, %c128_172] : memref<8x512xf32, #tpu.memory_space<vmem>>, vector<8x256xf32>
    %c12 = arith.constant 12 : index
    %c0_173 = arith.constant 0 : index
    %c0_174 = arith.constant 0 : index
    %390 = vector.load %arg4[%c12, %c0_173, %c0_174] : memref<16x8x8xf32, #tpu.memory_space<vmem>>, vector<1x8x8xf32>
    %391 = vector.shape_cast %390 : vector<1x8x8xf32> to vector<8x8xf32>
    %cst_175 = arith.constant dense<0.000000e+00> : vector<8x256xf32>
    %392 = tpu.matmul %391, %389, %cst_175 {dimension_numbers = #tpu.dot_dimension_numbers<[1], [0], [0], [1], [0, 0, 1, 1], [], []>} : vector<8x8xf32>, vector<8x256xf32>, vector<8x256xf32> -> vector<8x256xf32>
    %393 = arith.addf %388, %392 : vector<8x256xf32>
    %c0_176 = arith.constant 0 : index
    %c129_177 = arith.constant 129 : index
    %394 = vector.load %arg10[%c0_176, %c129_177] : memref<8x512xf32, #tpu.memory_space<vmem>>, vector<8x256xf32>
    %395 = arith.mulf %394, %296 : vector<8x256xf32>
    %c13 = arith.constant 13 : index
    %c0_178 = arith.constant 0 : index
    %c0_179 = arith.constant 0 : index
    %396 = vector.load %arg4[%c13, %c0_178, %c0_179] : memref<16x8x8xf32, #tpu.memory_space<vmem>>, vector<1x8x8xf32>
    %397 = vector.shape_cast %396 : vector<1x8x8xf32> to vector<8x8xf32>
    %cst_180 = arith.constant dense<0.000000e+00> : vector<8x256xf32>
    %398 = tpu.matmul %397, %395, %cst_180 {dimension_numbers = #tpu.dot_dimension_numbers<[1], [0], [0], [1], [0, 0, 1, 1], [], []>} : vector<8x8xf32>, vector<8x256xf32>, vector<8x256xf32> -> vector<8x256xf32>
    %399 = arith.addf %393, %398 : vector<8x256xf32>
    %c0_181 = arith.constant 0 : index
    %c144_182 = arith.constant 144 : index
    %400 = vector.load %arg10[%c0_181, %c144_182] : memref<8x512xf32, #tpu.memory_space<vmem>>, vector<8x256xf32>
    %c14 = arith.constant 14 : index
    %c0_183 = arith.constant 0 : index
    %c0_184 = arith.constant 0 : index
    %401 = vector.load %arg4[%c14, %c0_183, %c0_184] : memref<16x8x8xf32, #tpu.memory_space<vmem>>, vector<1x8x8xf32>
    %402 = vector.shape_cast %401 : vector<1x8x8xf32> to vector<8x8xf32>
    %cst_185 = arith.constant dense<0.000000e+00> : vector<8x256xf32>
    %403 = tpu.matmul %402, %400, %cst_185 {dimension_numbers = #tpu.dot_dimension_numbers<[1], [0], [0], [1], [0, 0, 1, 1], [], []>} : vector<8x8xf32>, vector<8x256xf32>, vector<8x256xf32> -> vector<8x256xf32>
    %404 = arith.addf %399, %403 : vector<8x256xf32>
    %c0_186 = arith.constant 0 : index
    %c145_187 = arith.constant 145 : index
    %405 = vector.load %arg10[%c0_186, %c145_187] : memref<8x512xf32, #tpu.memory_space<vmem>>, vector<8x256xf32>
    %406 = arith.mulf %405, %296 : vector<8x256xf32>
    %c15 = arith.constant 15 : index
    %c0_188 = arith.constant 0 : index
    %c0_189 = arith.constant 0 : index
    %407 = vector.load %arg4[%c15, %c0_188, %c0_189] : memref<16x8x8xf32, #tpu.memory_space<vmem>>, vector<1x8x8xf32>
    %408 = vector.shape_cast %407 : vector<1x8x8xf32> to vector<8x8xf32>
    %cst_190 = arith.constant dense<0.000000e+00> : vector<8x256xf32>
    %409 = tpu.matmul %408, %406, %cst_190 {dimension_numbers = #tpu.dot_dimension_numbers<[1], [0], [0], [1], [0, 0, 1, 1], [], []>} : vector<8x8xf32>, vector<8x256xf32>, vector<8x256xf32> -> vector<8x256xf32>
    %410 = arith.addf %404, %409 : vector<8x256xf32>
    %411 = vector.broadcast %297 : vector<8x1xf32> to vector<8x256xf32>
    %412 = arith.addf %410, %411 : vector<8x256xf32>
    %cst_191 = arith.constant 0.000000e+00 : f32
    %413 = vector.broadcast %cst_191 : f32 to vector<8x256xf32>
    %414 = arith.maximumf %412, %413 : vector<8x256xf32>
    %c3_192 = arith.constant 3 : index
    %c0_193 = arith.constant 0 : index
    %c128_194 = arith.constant 128 : index
    %415 = vector.load %arg11[%c3_192, %c0_193, %c128_194] : memref<4x8x512xf32, #tpu.memory_space<vmem>>, vector<1x8x256xf32>
    %416 = vector.shape_cast %415 : vector<1x8x256xf32> to vector<8x256xf32>
    %417 = vector.shape_cast %414 : vector<8x256xf32> to vector<1x8x256xf32>
    tpu.vector_store %arg11[%c3_192, %c0_193, %c128_194], %417 {strides = array<i32>} : memref<4x8x512xf32, #tpu.memory_space<vmem>>, vector<1x8x256xf32>,
    %c0_195 = arith.constant 0 : index
    %c0_196 = arith.constant 0 : index
    %418 = vector.load %arg7[%c0_195, %c0_196] : memref<1x1xf32, #tpu.memory_space<vmem>>, vector<1x1xf32>
    %cst_197 = arith.constant 0.000000e+00 : f32
    %419 = vector.broadcast %cst_197 : f32 to vector<1x256xf32>
    %c3_198 = arith.constant 3 : index
    %c0_199 = arith.constant 0 : index
    %c111_200 = arith.constant 111 : index
    %420 = vector.load %arg11[%c3_198, %c0_199, %c111_200] : memref<4x8x512xf32, #tpu.memory_space<vmem>>, vector<1x8x256xf32>
    %421 = vector.shape_cast %420 : vector<1x8x256xf32> to vector<8x256xf32>
    %422 = arith.mulf %421, %292 : vector<8x256xf32>
    %c0_201 = arith.constant 0 : index
    %c0_202 = arith.constant 0 : index
    %c0_203 = arith.constant 0 : index
    %423 = vector.load %arg6[%c0_201, %c0_202, %c0_203] : memref<16x1x8xf32, #tpu.memory_space<vmem>>, vector<1x1x8xf32>
    %424 = vector.shape_cast %423 : vector<1x1x8xf32> to vector<1x8xf32>
    %cst_204 = arith.constant dense<0.000000e+00> : vector<1x256xf32>
    %425 = tpu.matmul %424, %422, %cst_204 {dimension_numbers = #tpu.dot_dimension_numbers<[1], [0], [0], [1], [0, 0, 1, 1], [], []>} : vector<1x8xf32>, vector<8x256xf32>, vector<1x256xf32> -> vector<1x256xf32>
    %426 = arith.addf %419, %425 : vector<1x256xf32>
    %c2_205 = arith.constant 2 : index
    %c0_206 = arith.constant 0 : index
    %c112_207 = arith.constant 112 : index
    %427 = vector.load %arg11[%c2_205, %c0_206, %c112_207] : memref<4x8x512xf32, #tpu.memory_space<vmem>>, vector<1x8x256xf32>
    %428 = vector.shape_cast %427 : vector<1x8x256xf32> to vector<8x256xf32>
    %c1_208 = arith.constant 1 : index
    %c0_209 = arith.constant 0 : index
    %c0_210 = arith.constant 0 : index
    %429 = vector.load %arg6[%c1_208, %c0_209, %c0_210] : memref<16x1x8xf32, #tpu.memory_space<vmem>>, vector<1x1x8xf32>
    %430 = vector.shape_cast %429 : vector<1x1x8xf32> to vector<1x8xf32>
    %cst_211 = arith.constant dense<0.000000e+00> : vector<1x256xf32>
    %431 = tpu.matmul %430, %428, %cst_211 {dimension_numbers = #tpu.dot_dimension_numbers<[1], [0], [0], [1], [0, 0, 1, 1], [], []>} : vector<1x8xf32>, vector<8x256xf32>, vector<1x256xf32> -> vector<1x256xf32>
    %432 = arith.addf %426, %431 : vector<1x256xf32>
    %c1_212 = arith.constant 1 : index
    %c0_213 = arith.constant 0 : index
    %c127_214 = arith.constant 127 : index
    %433 = vector.load %arg11[%c1_212, %c0_213, %c127_214] : memref<4x8x512xf32, #tpu.memory_space<vmem>>, vector<1x8x256xf32>
    %434 = vector.shape_cast %433 : vector<1x8x256xf32> to vector<8x256xf32>
    %435 = arith.mulf %434, %292 : vector<8x256xf32>
    %c2_215 = arith.constant 2 : index
    %c0_216 = arith.constant 0 : index
    %c0_217 = arith.constant 0 : index
    %436 = vector.load %arg6[%c2_215, %c0_216, %c0_217] : memref<16x1x8xf32, #tpu.memory_space<vmem>>, vector<1x1x8xf32>
    %437 = vector.shape_cast %436 : vector<1x1x8xf32> to vector<1x8xf32>
    %cst_218 = arith.constant dense<0.000000e+00> : vector<1x256xf32>
    %438 = tpu.matmul %437, %435, %cst_218 {dimension_numbers = #tpu.dot_dimension_numbers<[1], [0], [0], [1], [0, 0, 1, 1], [], []>} : vector<1x8xf32>, vector<8x256xf32>, vector<1x256xf32> -> vector<1x256xf32>
    %439 = arith.addf %432, %438 : vector<1x256xf32>
    %c0_219 = arith.constant 0 : index
    %c0_220 = arith.constant 0 : index
    %c128_221 = arith.constant 128 : index
    %440 = vector.load %arg11[%c0_219, %c0_220, %c128_221] : memref<4x8x512xf32, #tpu.memory_space<vmem>>, vector<1x8x256xf32>
    %441 = vector.shape_cast %440 : vector<1x8x256xf32> to vector<8x256xf32>
    %c3_222 = arith.constant 3 : index
    %c0_223 = arith.constant 0 : index
    %c0_224 = arith.constant 0 : index
    %442 = vector.load %arg6[%c3_222, %c0_223, %c0_224] : memref<16x1x8xf32, #tpu.memory_space<vmem>>, vector<1x1x8xf32>
    %443 = vector.shape_cast %442 : vector<1x1x8xf32> to vector<1x8xf32>
    %cst_225 = arith.constant dense<0.000000e+00> : vector<1x256xf32>
    %444 = tpu.matmul %443, %441, %cst_225 {dimension_numbers = #tpu.dot_dimension_numbers<[1], [0], [0], [1], [0, 0, 1, 1], [], []>} : vector<1x8xf32>, vector<8x256xf32>, vector<1x256xf32> -> vector<1x256xf32>
    %445 = arith.addf %439, %444 : vector<1x256xf32>
    %446 = vector.broadcast %418 : vector<1x1xf32> to vector<1x256xf32>
    %447 = arith.addf %445, %446 : vector<1x256xf32>
    %cst_226 = arith.constant 0.000000e+00 : f32
    %448 = vector.broadcast %cst_226 : f32 to vector<1x256xf32>
    %449 = arith.maximumf %447, %448 : vector<1x256xf32>
    %c0_227 = arith.constant 0 : index
    %c0_228 = arith.constant 0 : index
    %c0_229 = arith.constant 0 : index
    %450 = vector.load %arg8[%c0_227, %c0_228, %c0_229] : memref<1x16x256xf32, #tpu.memory_space<vmem>>, vector<1x1x256xf32>
    %451 = vector.shape_cast %450 : vector<1x1x256xf32> to vector<1x256xf32>
    %452 = vector.shape_cast %449 : vector<1x256xf32> to vector<1x1x256xf32>
    tpu.vector_store %arg8[%c0_227, %c0_228, %c0_229], %452 {strides = array<i32>} : memref<1x16x256xf32, #tpu.memory_space<vmem>>, vector<1x1x256xf32>,
    %cst_230 = arith.constant 0.000000e+00 : f32
    %453 = vector.broadcast %cst_230 : f32 to vector<1x256xf32>
    %c2_231 = arith.constant 2 : index
    %c0_232 = arith.constant 0 : index
    %c112_233 = arith.constant 112 : index
    %454 = vector.load %arg11[%c2_231, %c0_232, %c112_233] : memref<4x8x512xf32, #tpu.memory_space<vmem>>, vector<1x8x256xf32>
    %455 = vector.shape_cast %454 : vector<1x8x256xf32> to vector<8x256xf32>
    %c4_234 = arith.constant 4 : index
    %c0_235 = arith.constant 0 : index
    %c0_236 = arith.constant 0 : index
    %456 = vector.load %arg6[%c4_234, %c0_235, %c0_236] : memref<16x1x8xf32, #tpu.memory_space<vmem>>, vector<1x1x8xf32>
    %457 = vector.shape_cast %456 : vector<1x1x8xf32> to vector<1x8xf32>
    %cst_237 = arith.constant dense<0.000000e+00> : vector<1x256xf32>
    %458 = tpu.matmul %457, %455, %cst_237 {dimension_numbers = #tpu.dot_dimension_numbers<[1], [0], [0], [1], [0, 0, 1, 1], [], []>} : vector<1x8xf32>, vector<8x256xf32>, vector<1x256xf32> -> vector<1x256xf32>
    %459 = arith.addf %453, %458 : vector<1x256xf32>
    %c3_238 = arith.constant 3 : index
    %c0_239 = arith.constant 0 : index
    %c112_240 = arith.constant 112 : index
    %460 = vector.load %arg11[%c3_238, %c0_239, %c112_240] : memref<4x8x512xf32, #tpu.memory_space<vmem>>, vector<1x8x256xf32>
    %461 = vector.shape_cast %460 : vector<1x8x256xf32> to vector<8x256xf32>
    %c5_241 = arith.constant 5 : index
    %c0_242 = arith.constant 0 : index
    %c0_243 = arith.constant 0 : index
    %462 = vector.load %arg6[%c5_241, %c0_242, %c0_243] : memref<16x1x8xf32, #tpu.memory_space<vmem>>, vector<1x1x8xf32>
    %463 = vector.shape_cast %462 : vector<1x1x8xf32> to vector<1x8xf32>
    %cst_244 = arith.constant dense<0.000000e+00> : vector<1x256xf32>
    %464 = tpu.matmul %463, %461, %cst_244 {dimension_numbers = #tpu.dot_dimension_numbers<[1], [0], [0], [1], [0, 0, 1, 1], [], []>} : vector<1x8xf32>, vector<8x256xf32>, vector<1x256xf32> -> vector<1x256xf32>
    %465 = arith.addf %459, %464 : vector<1x256xf32>
    %c0_245 = arith.constant 0 : index
    %c0_246 = arith.constant 0 : index
    %c128_247 = arith.constant 128 : index
    %466 = vector.load %arg11[%c0_245, %c0_246, %c128_247] : memref<4x8x512xf32, #tpu.memory_space<vmem>>, vector<1x8x256xf32>
    %467 = vector.shape_cast %466 : vector<1x8x256xf32> to vector<8x256xf32>
    %c6_248 = arith.constant 6 : index
    %c0_249 = arith.constant 0 : index
    %c0_250 = arith.constant 0 : index
    %468 = vector.load %arg6[%c6_248, %c0_249, %c0_250] : memref<16x1x8xf32, #tpu.memory_space<vmem>>, vector<1x1x8xf32>
    %469 = vector.shape_cast %468 : vector<1x1x8xf32> to vector<1x8xf32>
    %cst_251 = arith.constant dense<0.000000e+00> : vector<1x256xf32>
    %470 = tpu.matmul %469, %467, %cst_251 {dimension_numbers = #tpu.dot_dimension_numbers<[1], [0], [0], [1], [0, 0, 1, 1], [], []>} : vector<1x8xf32>, vector<8x256xf32>, vector<1x256xf32> -> vector<1x256xf32>
    %471 = arith.addf %465, %470 : vector<1x256xf32>
    %c1_252 = arith.constant 1 : index
    %c0_253 = arith.constant 0 : index
    %c128_254 = arith.constant 128 : index
    %472 = vector.load %arg11[%c1_252, %c0_253, %c128_254] : memref<4x8x512xf32, #tpu.memory_space<vmem>>, vector<1x8x256xf32>
    %473 = vector.shape_cast %472 : vector<1x8x256xf32> to vector<8x256xf32>
    %c7_255 = arith.constant 7 : index
    %c0_256 = arith.constant 0 : index
    %c0_257 = arith.constant 0 : index
    %474 = vector.load %arg6[%c7_255, %c0_256, %c0_257] : memref<16x1x8xf32, #tpu.memory_space<vmem>>, vector<1x1x8xf32>
    %475 = vector.shape_cast %474 : vector<1x1x8xf32> to vector<1x8xf32>
    %cst_258 = arith.constant dense<0.000000e+00> : vector<1x256xf32>
    %476 = tpu.matmul %475, %473, %cst_258 {dimension_numbers = #tpu.dot_dimension_numbers<[1], [0], [0], [1], [0, 0, 1, 1], [], []>} : vector<1x8xf32>, vector<8x256xf32>, vector<1x256xf32> -> vector<1x256xf32>
    %477 = arith.addf %471, %476 : vector<1x256xf32>
    %478 = vector.broadcast %418 : vector<1x1xf32> to vector<1x256xf32>
    %479 = arith.addf %477, %478 : vector<1x256xf32>
    %cst_259 = arith.constant 0.000000e+00 : f32
    %480 = vector.broadcast %cst_259 : f32 to vector<1x256xf32>
    %481 = arith.maximumf %479, %480 : vector<1x256xf32>
    %c0_260 = arith.constant 0 : index
    %c1_261 = arith.constant 1 : index
    %c0_262 = arith.constant 0 : index
    %482 = vector.load %arg8[%c0_260, %c1_261, %c0_262] : memref<1x16x256xf32, #tpu.memory_space<vmem>>, vector<1x1x256xf32>
    %483 = vector.shape_cast %482 : vector<1x1x256xf32> to vector<1x256xf32>
    %484 = vector.shape_cast %481 : vector<1x256xf32> to vector<1x1x256xf32>
    tpu.vector_store %arg8[%c0_260, %c1_261, %c0_262], %484 {strides = array<i32>} : memref<1x16x256xf32, #tpu.memory_space<vmem>>, vector<1x1x256xf32>,
    %cst_263 = arith.constant 0.000000e+00 : f32
    %485 = vector.broadcast %cst_263 : f32 to vector<1x256xf32>
    %c1_264 = arith.constant 1 : index
    %c0_265 = arith.constant 0 : index
    %c127_266 = arith.constant 127 : index
    %486 = vector.load %arg11[%c1_264, %c0_265, %c127_266] : memref<4x8x512xf32, #tpu.memory_space<vmem>>, vector<1x8x256xf32>
    %487 = vector.shape_cast %486 : vector<1x8x256xf32> to vector<8x256xf32>
    %488 = arith.mulf %487, %292 : vector<8x256xf32>
    %c8_267 = arith.constant 8 : index
    %c0_268 = arith.constant 0 : index
    %c0_269 = arith.constant 0 : index
    %489 = vector.load %arg6[%c8_267, %c0_268, %c0_269] : memref<16x1x8xf32, #tpu.memory_space<vmem>>, vector<1x1x8xf32>
    %490 = vector.shape_cast %489 : vector<1x1x8xf32> to vector<1x8xf32>
    %cst_270 = arith.constant dense<0.000000e+00> : vector<1x256xf32>
    %491 = tpu.matmul %490, %488, %cst_270 {dimension_numbers = #tpu.dot_dimension_numbers<[1], [0], [0], [1], [0, 0, 1, 1], [], []>} : vector<1x8xf32>, vector<8x256xf32>, vector<1x256xf32> -> vector<1x256xf32>
    %492 = arith.addf %485, %491 : vector<1x256xf32>
    %c0_271 = arith.constant 0 : index
    %c0_272 = arith.constant 0 : index
    %c128_273 = arith.constant 128 : index
    %493 = vector.load %arg11[%c0_271, %c0_272, %c128_273] : memref<4x8x512xf32, #tpu.memory_space<vmem>>, vector<1x8x256xf32>
    %494 = vector.shape_cast %493 : vector<1x8x256xf32> to vector<8x256xf32>
    %c9_274 = arith.constant 9 : index
    %c0_275 = arith.constant 0 : index
    %c0_276 = arith.constant 0 : index
    %495 = vector.load %arg6[%c9_274, %c0_275, %c0_276] : memref<16x1x8xf32, #tpu.memory_space<vmem>>, vector<1x1x8xf32>
    %496 = vector.shape_cast %495 : vector<1x1x8xf32> to vector<1x8xf32>
    %cst_277 = arith.constant dense<0.000000e+00> : vector<1x256xf32>
    %497 = tpu.matmul %496, %494, %cst_277 {dimension_numbers = #tpu.dot_dimension_numbers<[1], [0], [0], [1], [0, 0, 1, 1], [], []>} : vector<1x8xf32>, vector<8x256xf32>, vector<1x256xf32> -> vector<1x256xf32>
    %498 = arith.addf %492, %497 : vector<1x256xf32>
    %c3_278 = arith.constant 3 : index
    %c0_279 = arith.constant 0 : index
    %c127_280 = arith.constant 127 : index
    %499 = vector.load %arg11[%c3_278, %c0_279, %c127_280] : memref<4x8x512xf32, #tpu.memory_space<vmem>>, vector<1x8x256xf32>
    %500 = vector.shape_cast %499 : vector<1x8x256xf32> to vector<8x256xf32>
    %501 = arith.mulf %500, %292 : vector<8x256xf32>
    %c10_281 = arith.constant 10 : index
    %c0_282 = arith.constant 0 : index
    %c0_283 = arith.constant 0 : index
    %502 = vector.load %arg6[%c10_281, %c0_282, %c0_283] : memref<16x1x8xf32, #tpu.memory_space<vmem>>, vector<1x1x8xf32>
    %503 = vector.shape_cast %502 : vector<1x1x8xf32> to vector<1x8xf32>
    %cst_284 = arith.constant dense<0.000000e+00> : vector<1x256xf32>
    %504 = tpu.matmul %503, %501, %cst_284 {dimension_numbers = #tpu.dot_dimension_numbers<[1], [0], [0], [1], [0, 0, 1, 1], [], []>} : vector<1x8xf32>, vector<8x256xf32>, vector<1x256xf32> -> vector<1x256xf32>
    %505 = arith.addf %498, %504 : vector<1x256xf32>
    %c2_285 = arith.constant 2 : index
    %c0_286 = arith.constant 0 : index
    %c128_287 = arith.constant 128 : index
    %506 = vector.load %arg11[%c2_285, %c0_286, %c128_287] : memref<4x8x512xf32, #tpu.memory_space<vmem>>, vector<1x8x256xf32>
    %507 = vector.shape_cast %506 : vector<1x8x256xf32> to vector<8x256xf32>
    %c11_288 = arith.constant 11 : index
    %c0_289 = arith.constant 0 : index
    %c0_290 = arith.constant 0 : index
    %508 = vector.load %arg6[%c11_288, %c0_289, %c0_290] : memref<16x1x8xf32, #tpu.memory_space<vmem>>, vector<1x1x8xf32>
    %509 = vector.shape_cast %508 : vector<1x1x8xf32> to vector<1x8xf32>
    %cst_291 = arith.constant dense<0.000000e+00> : vector<1x256xf32>
    %510 = tpu.matmul %509, %507, %cst_291 {dimension_numbers = #tpu.dot_dimension_numbers<[1], [0], [0], [1], [0, 0, 1, 1], [], []>} : vector<1x8xf32>, vector<8x256xf32>, vector<1x256xf32> -> vector<1x256xf32>
    %511 = arith.addf %505, %510 : vector<1x256xf32>
    %512 = vector.broadcast %418 : vector<1x1xf32> to vector<1x256xf32>
    %513 = arith.addf %511, %512 : vector<1x256xf32>
    %cst_292 = arith.constant 0.000000e+00 : f32
    %514 = vector.broadcast %cst_292 : f32 to vector<1x256xf32>
    %515 = arith.maximumf %513, %514 : vector<1x256xf32>
    %c0_293 = arith.constant 0 : index
    %c4_294 = arith.constant 4 : index
    %c0_295 = arith.constant 0 : index
    %516 = vector.load %arg8[%c0_293, %c4_294, %c0_295] : memref<1x16x256xf32, #tpu.memory_space<vmem>>, vector<1x1x256xf32>
    %517 = vector.shape_cast %516 : vector<1x1x256xf32> to vector<1x256xf32>
    %518 = vector.shape_cast %515 : vector<1x256xf32> to vector<1x1x256xf32>
    tpu.vector_store %arg8[%c0_293, %c4_294, %c0_295], %518 {strides = array<i32>} : memref<1x16x256xf32, #tpu.memory_space<vmem>>, vector<1x1x256xf32>,
    %cst_296 = arith.constant 0.000000e+00 : f32
    %519 = vector.broadcast %cst_296 : f32 to vector<1x256xf32>
    %c0_297 = arith.constant 0 : index
    %c0_298 = arith.constant 0 : index
    %c128_299 = arith.constant 128 : index
    %520 = vector.load %arg11[%c0_297, %c0_298, %c128_299] : memref<4x8x512xf32, #tpu.memory_space<vmem>>, vector<1x8x256xf32>
    %521 = vector.shape_cast %520 : vector<1x8x256xf32> to vector<8x256xf32>
    %c12_300 = arith.constant 12 : index
    %c0_301 = arith.constant 0 : index
    %c0_302 = arith.constant 0 : index
    %522 = vector.load %arg6[%c12_300, %c0_301, %c0_302] : memref<16x1x8xf32, #tpu.memory_space<vmem>>, vector<1x1x8xf32>
    %523 = vector.shape_cast %522 : vector<1x1x8xf32> to vector<1x8xf32>
    %cst_303 = arith.constant dense<0.000000e+00> : vector<1x256xf32>
    %524 = tpu.matmul %523, %521, %cst_303 {dimension_numbers = #tpu.dot_dimension_numbers<[1], [0], [0], [1], [0, 0, 1, 1], [], []>} : vector<1x8xf32>, vector<8x256xf32>, vector<1x256xf32> -> vector<1x256xf32>
    %525 = arith.addf %519, %524 : vector<1x256xf32>
    %c1_304 = arith.constant 1 : index
    %c0_305 = arith.constant 0 : index
    %c128_306 = arith.constant 128 : index
    %526 = vector.load %arg11[%c1_304, %c0_305, %c128_306] : memref<4x8x512xf32, #tpu.memory_space<vmem>>, vector<1x8x256xf32>
    %527 = vector.shape_cast %526 : vector<1x8x256xf32> to vector<8x256xf32>
    %c13_307 = arith.constant 13 : index
    %c0_308 = arith.constant 0 : index
    %c0_309 = arith.constant 0 : index
    %528 = vector.load %arg6[%c13_307, %c0_308, %c0_309] : memref<16x1x8xf32, #tpu.memory_space<vmem>>, vector<1x1x8xf32>
    %529 = vector.shape_cast %528 : vector<1x1x8xf32> to vector<1x8xf32>
    %cst_310 = arith.constant dense<0.000000e+00> : vector<1x256xf32>
    %530 = tpu.matmul %529, %527, %cst_310 {dimension_numbers = #tpu.dot_dimension_numbers<[1], [0], [0], [1], [0, 0, 1, 1], [], []>} : vector<1x8xf32>, vector<8x256xf32>, vector<1x256xf32> -> vector<1x256xf32>
    %531 = arith.addf %525, %530 : vector<1x256xf32>
    %c2_311 = arith.constant 2 : index
    %c0_312 = arith.constant 0 : index
    %c128_313 = arith.constant 128 : index
    %532 = vector.load %arg11[%c2_311, %c0_312, %c128_313] : memref<4x8x512xf32, #tpu.memory_space<vmem>>, vector<1x8x256xf32>
    %533 = vector.shape_cast %532 : vector<1x8x256xf32> to vector<8x256xf32>
    %c14_314 = arith.constant 14 : index
    %c0_315 = arith.constant 0 : index
    %c0_316 = arith.constant 0 : index
    %534 = vector.load %arg6[%c14_314, %c0_315, %c0_316] : memref<16x1x8xf32, #tpu.memory_space<vmem>>, vector<1x1x8xf32>
    %535 = vector.shape_cast %534 : vector<1x1x8xf32> to vector<1x8xf32>
    %cst_317 = arith.constant dense<0.000000e+00> : vector<1x256xf32>
    %536 = tpu.matmul %535, %533, %cst_317 {dimension_numbers = #tpu.dot_dimension_numbers<[1], [0], [0], [1], [0, 0, 1, 1], [], []>} : vector<1x8xf32>, vector<8x256xf32>, vector<1x256xf32> -> vector<1x256xf32>
    %537 = arith.addf %531, %536 : vector<1x256xf32>
    %c3_318 = arith.constant 3 : index
    %c0_319 = arith.constant 0 : index
    %c128_320 = arith.constant 128 : index
    %538 = vector.load %arg11[%c3_318, %c0_319, %c128_320] : memref<4x8x512xf32, #tpu.memory_space<vmem>>, vector<1x8x256xf32>
    %539 = vector.shape_cast %538 : vector<1x8x256xf32> to vector<8x256xf32>
    %c15_321 = arith.constant 15 : index
    %c0_322 = arith.constant 0 : index
    %c0_323 = arith.constant 0 : index
    %540 = vector.load %arg6[%c15_321, %c0_322, %c0_323] : memref<16x1x8xf32, #tpu.memory_space<vmem>>, vector<1x1x8xf32>
    %541 = vector.shape_cast %540 : vector<1x1x8xf32> to vector<1x8xf32>
    %cst_324 = arith.constant dense<0.000000e+00> : vector<1x256xf32>
    %542 = tpu.matmul %541, %539, %cst_324 {dimension_numbers = #tpu.dot_dimension_numbers<[1], [0], [0], [1], [0, 0, 1, 1], [], []>} : vector<1x8xf32>, vector<8x256xf32>, vector<1x256xf32> -> vector<1x256xf32>
    %543 = arith.addf %537, %542 : vector<1x256xf32>
    %544 = vector.broadcast %418 : vector<1x1xf32> to vector<1x256xf32>
    %545 = arith.addf %543, %544 : vector<1x256xf32>
    %cst_325 = arith.constant 0.000000e+00 : f32
    %546 = vector.broadcast %cst_325 : f32 to vector<1x256xf32>
    %547 = arith.maximumf %545, %546 : vector<1x256xf32>
    %c0_326 = arith.constant 0 : index
    %c5_327 = arith.constant 5 : index
    %c0_328 = arith.constant 0 : index
    %548 = vector.load %arg8[%c0_326, %c5_327, %c0_328] : memref<1x16x256xf32, #tpu.memory_space<vmem>>, vector<1x1x256xf32>
    %549 = vector.shape_cast %548 : vector<1x1x256xf32> to vector<1x256xf32>
    %550 = vector.shape_cast %547 : vector<1x256xf32> to vector<1x1x256xf32>
    tpu.vector_store %arg8[%c0_326, %c5_327, %c0_328], %550 {strides = array<i32>} : memref<1x16x256xf32, #tpu.memory_space<vmem>>, vector<1x1x256xf32>,
    %cst_329 = arith.constant 0.000000e+00 : f32
    %551 = vector.broadcast %cst_329 : f32 to vector<1x256xf32>
    %c2_330 = arith.constant 2 : index
    %c0_331 = arith.constant 0 : index
    %c112_332 = arith.constant 112 : index
    %552 = vector.load %arg11[%c2_330, %c0_331, %c112_332] : memref<4x8x512xf32, #tpu.memory_space<vmem>>, vector<1x8x256xf32>
    %553 = vector.shape_cast %552 : vector<1x8x256xf32> to vector<8x256xf32>
    %c0_333 = arith.constant 0 : index
    %c0_334 = arith.constant 0 : index
    %c0_335 = arith.constant 0 : index
    %554 = vector.load %arg6[%c0_333, %c0_334, %c0_335] : memref<16x1x8xf32, #tpu.memory_space<vmem>>, vector<1x1x8xf32>
    %555 = vector.shape_cast %554 : vector<1x1x8xf32> to vector<1x8xf32>
    %cst_336 = arith.constant dense<0.000000e+00> : vector<1x256xf32>
    %556 = tpu.matmul %555, %553, %cst_336 {dimension_numbers = #tpu.dot_dimension_numbers<[1], [0], [0], [1], [0, 0, 1, 1], [], []>} : vector<1x8xf32>, vector<8x256xf32>, vector<1x256xf32> -> vector<1x256xf32>
    %557 = arith.addf %551, %556 : vector<1x256xf32>
    %c3_337 = arith.constant 3 : index
    %c0_338 = arith.constant 0 : index
    %c112_339 = arith.constant 112 : index
    %558 = vector.load %arg11[%c3_337, %c0_338, %c112_339] : memref<4x8x512xf32, #tpu.memory_space<vmem>>, vector<1x8x256xf32>
    %559 = vector.shape_cast %558 : vector<1x8x256xf32> to vector<8x256xf32>
    %c1_340 = arith.constant 1 : index
    %c0_341 = arith.constant 0 : index
    %c0_342 = arith.constant 0 : index
    %560 = vector.load %arg6[%c1_340, %c0_341, %c0_342] : memref<16x1x8xf32, #tpu.memory_space<vmem>>, vector<1x1x8xf32>
    %561 = vector.shape_cast %560 : vector<1x1x8xf32> to vector<1x8xf32>
    %cst_343 = arith.constant dense<0.000000e+00> : vector<1x256xf32>
    %562 = tpu.matmul %561, %559, %cst_343 {dimension_numbers = #tpu.dot_dimension_numbers<[1], [0], [0], [1], [0, 0, 1, 1], [], []>} : vector<1x8xf32>, vector<8x256xf32>, vector<1x256xf32> -> vector<1x256xf32>
    %563 = arith.addf %557, %562 : vector<1x256xf32>
    %c0_344 = arith.constant 0 : index
    %c0_345 = arith.constant 0 : index
    %c128_346 = arith.constant 128 : index
    %564 = vector.load %arg11[%c0_344, %c0_345, %c128_346] : memref<4x8x512xf32, #tpu.memory_space<vmem>>, vector<1x8x256xf32>
    %565 = vector.shape_cast %564 : vector<1x8x256xf32> to vector<8x256xf32>
    %c2_347 = arith.constant 2 : index
    %c0_348 = arith.constant 0 : index
    %c0_349 = arith.constant 0 : index
    %566 = vector.load %arg6[%c2_347, %c0_348, %c0_349] : memref<16x1x8xf32, #tpu.memory_space<vmem>>, vector<1x1x8xf32>
    %567 = vector.shape_cast %566 : vector<1x1x8xf32> to vector<1x8xf32>
    %cst_350 = arith.constant dense<0.000000e+00> : vector<1x256xf32>
    %568 = tpu.matmul %567, %565, %cst_350 {dimension_numbers = #tpu.dot_dimension_numbers<[1], [0], [0], [1], [0, 0, 1, 1], [], []>} : vector<1x8xf32>, vector<8x256xf32>, vector<1x256xf32> -> vector<1x256xf32>
    %569 = arith.addf %563, %568 : vector<1x256xf32>
    %c1_351 = arith.constant 1 : index
    %c0_352 = arith.constant 0 : index
    %c128_353 = arith.constant 128 : index
    %570 = vector.load %arg11[%c1_351, %c0_352, %c128_353] : memref<4x8x512xf32, #tpu.memory_space<vmem>>, vector<1x8x256xf32>
    %571 = vector.shape_cast %570 : vector<1x8x256xf32> to vector<8x256xf32>
    %c3_354 = arith.constant 3 : index
    %c0_355 = arith.constant 0 : index
    %c0_356 = arith.constant 0 : index
    %572 = vector.load %arg6[%c3_354, %c0_355, %c0_356] : memref<16x1x8xf32, #tpu.memory_space<vmem>>, vector<1x1x8xf32>
    %573 = vector.shape_cast %572 : vector<1x1x8xf32> to vector<1x8xf32>
    %cst_357 = arith.constant dense<0.000000e+00> : vector<1x256xf32>
    %574 = tpu.matmul %573, %571, %cst_357 {dimension_numbers = #tpu.dot_dimension_numbers<[1], [0], [0], [1], [0, 0, 1, 1], [], []>} : vector<1x8xf32>, vector<8x256xf32>, vector<1x256xf32> -> vector<1x256xf32>
    %575 = arith.addf %569, %574 : vector<1x256xf32>
    %576 = vector.broadcast %418 : vector<1x1xf32> to vector<1x256xf32>
    %577 = arith.addf %575, %576 : vector<1x256xf32>
    %cst_358 = arith.constant 0.000000e+00 : f32
    %578 = vector.broadcast %cst_358 : f32 to vector<1x256xf32>
    %579 = arith.maximumf %577, %578 : vector<1x256xf32>
    %c0_359 = arith.constant 0 : index
    %c2_360 = arith.constant 2 : index
    %c0_361 = arith.constant 0 : index
    %580 = vector.load %arg8[%c0_359, %c2_360, %c0_361] : memref<1x16x256xf32, #tpu.memory_space<vmem>>, vector<1x1x256xf32>
    %581 = vector.shape_cast %580 : vector<1x1x256xf32> to vector<1x256xf32>
    %582 = vector.shape_cast %579 : vector<1x256xf32> to vector<1x1x256xf32>
    tpu.vector_store %arg8[%c0_359, %c2_360, %c0_361], %582 {strides = array<i32>} : memref<1x16x256xf32, #tpu.memory_space<vmem>>, vector<1x1x256xf32>,
    %cst_362 = arith.constant 0.000000e+00 : f32
    %583 = vector.broadcast %cst_362 : f32 to vector<1x256xf32>
    %c3_363 = arith.constant 3 : index
    %c0_364 = arith.constant 0 : index
    %c112_365 = arith.constant 112 : index
    %584 = vector.load %arg11[%c3_363, %c0_364, %c112_365] : memref<4x8x512xf32, #tpu.memory_space<vmem>>, vector<1x8x256xf32>
    %585 = vector.shape_cast %584 : vector<1x8x256xf32> to vector<8x256xf32>
    %c4_366 = arith.constant 4 : index
    %c0_367 = arith.constant 0 : index
    %c0_368 = arith.constant 0 : index
    %586 = vector.load %arg6[%c4_366, %c0_367, %c0_368] : memref<16x1x8xf32, #tpu.memory_space<vmem>>, vector<1x1x8xf32>
    %587 = vector.shape_cast %586 : vector<1x1x8xf32> to vector<1x8xf32>
    %cst_369 = arith.constant dense<0.000000e+00> : vector<1x256xf32>
    %588 = tpu.matmul %587, %585, %cst_369 {dimension_numbers = #tpu.dot_dimension_numbers<[1], [0], [0], [1], [0, 0, 1, 1], [], []>} : vector<1x8xf32>, vector<8x256xf32>, vector<1x256xf32> -> vector<1x256xf32>
    %589 = arith.addf %583, %588 : vector<1x256xf32>
    %c2_370 = arith.constant 2 : index
    %c0_371 = arith.constant 0 : index
    %c113_372 = arith.constant 113 : index
    %590 = vector.load %arg11[%c2_370, %c0_371, %c113_372] : memref<4x8x512xf32, #tpu.memory_space<vmem>>, vector<1x8x256xf32>
    %591 = vector.shape_cast %590 : vector<1x8x256xf32> to vector<8x256xf32>
    %592 = arith.mulf %591, %296 : vector<8x256xf32>
    %c5_373 = arith.constant 5 : index
    %c0_374 = arith.constant 0 : index
    %c0_375 = arith.constant 0 : index
    %593 = vector.load %arg6[%c5_373, %c0_374, %c0_375] : memref<16x1x8xf32, #tpu.memory_space<vmem>>, vector<1x1x8xf32>
    %594 = vector.shape_cast %593 : vector<1x1x8xf32> to vector<1x8xf32>
    %cst_376 = arith.constant dense<0.000000e+00> : vector<1x256xf32>
    %595 = tpu.matmul %594, %592, %cst_376 {dimension_numbers = #tpu.dot_dimension_numbers<[1], [0], [0], [1], [0, 0, 1, 1], [], []>} : vector<1x8xf32>, vector<8x256xf32>, vector<1x256xf32> -> vector<1x256xf32>
    %596 = arith.addf %589, %595 : vector<1x256xf32>
    %c1_377 = arith.constant 1 : index
    %c0_378 = arith.constant 0 : index
    %c128_379 = arith.constant 128 : index
    %597 = vector.load %arg11[%c1_377, %c0_378, %c128_379] : memref<4x8x512xf32, #tpu.memory_space<vmem>>, vector<1x8x256xf32>
    %598 = vector.shape_cast %597 : vector<1x8x256xf32> to vector<8x256xf32>
    %c6_380 = arith.constant 6 : index
    %c0_381 = arith.constant 0 : index
    %c0_382 = arith.constant 0 : index
    %599 = vector.load %arg6[%c6_380, %c0_381, %c0_382] : memref<16x1x8xf32, #tpu.memory_space<vmem>>, vector<1x1x8xf32>
    %600 = vector.shape_cast %599 : vector<1x1x8xf32> to vector<1x8xf32>
    %cst_383 = arith.constant dense<0.000000e+00> : vector<1x256xf32>
    %601 = tpu.matmul %600, %598, %cst_383 {dimension_numbers = #tpu.dot_dimension_numbers<[1], [0], [0], [1], [0, 0, 1, 1], [], []>} : vector<1x8xf32>, vector<8x256xf32>, vector<1x256xf32> -> vector<1x256xf32>
    %602 = arith.addf %596, %601 : vector<1x256xf32>
    %c0_384 = arith.constant 0 : index
    %c0_385 = arith.constant 0 : index
    %c129_386 = arith.constant 129 : index
    %603 = vector.load %arg11[%c0_384, %c0_385, %c129_386] : memref<4x8x512xf32, #tpu.memory_space<vmem>>, vector<1x8x256xf32>
    %604 = vector.shape_cast %603 : vector<1x8x256xf32> to vector<8x256xf32>
    %605 = arith.mulf %604, %296 : vector<8x256xf32>
    %c7_387 = arith.constant 7 : index
    %c0_388 = arith.constant 0 : index
    %c0_389 = arith.constant 0 : index
    %606 = vector.load %arg6[%c7_387, %c0_388, %c0_389] : memref<16x1x8xf32, #tpu.memory_space<vmem>>, vector<1x1x8xf32>
    %607 = vector.shape_cast %606 : vector<1x1x8xf32> to vector<1x8xf32>
    %cst_390 = arith.constant dense<0.000000e+00> : vector<1x256xf32>
    %608 = tpu.matmul %607, %605, %cst_390 {dimension_numbers = #tpu.dot_dimension_numbers<[1], [0], [0], [1], [0, 0, 1, 1], [], []>} : vector<1x8xf32>, vector<8x256xf32>, vector<1x256xf32> -> vector<1x256xf32>
    %609 = arith.addf %602, %608 : vector<1x256xf32>
    %610 = vector.broadcast %418 : vector<1x1xf32> to vector<1x256xf32>
    %611 = arith.addf %609, %610 : vector<1x256xf32>
    %cst_391 = arith.constant 0.000000e+00 : f32
    %612 = vector.broadcast %cst_391 : f32 to vector<1x256xf32>
    %613 = arith.maximumf %611, %612 : vector<1x256xf32>
    %c0_392 = arith.constant 0 : index
    %c3_393 = arith.constant 3 : index
    %c0_394 = arith.constant 0 : index
    %614 = vector.load %arg8[%c0_392, %c3_393, %c0_394] : memref<1x16x256xf32, #tpu.memory_space<vmem>>, vector<1x1x256xf32>
    %615 = vector.shape_cast %614 : vector<1x1x256xf32> to vector<1x256xf32>
    %616 = vector.shape_cast %613 : vector<1x256xf32> to vector<1x1x256xf32>
    tpu.vector_store %arg8[%c0_392, %c3_393, %c0_394], %616 {strides = array<i32>} : memref<1x16x256xf32, #tpu.memory_space<vmem>>, vector<1x1x256xf32>,
    %cst_395 = arith.constant 0.000000e+00 : f32
    %617 = vector.broadcast %cst_395 : f32 to vector<1x256xf32>
    %c0_396 = arith.constant 0 : index
    %c0_397 = arith.constant 0 : index
    %c128_398 = arith.constant 128 : index
    %618 = vector.load %arg11[%c0_396, %c0_397, %c128_398] : memref<4x8x512xf32, #tpu.memory_space<vmem>>, vector<1x8x256xf32>
    %619 = vector.shape_cast %618 : vector<1x8x256xf32> to vector<8x256xf32>
    %c8_399 = arith.constant 8 : index
    %c0_400 = arith.constant 0 : index
    %c0_401 = arith.constant 0 : index
    %620 = vector.load %arg6[%c8_399, %c0_400, %c0_401] : memref<16x1x8xf32, #tpu.memory_space<vmem>>, vector<1x1x8xf32>
    %621 = vector.shape_cast %620 : vector<1x1x8xf32> to vector<1x8xf32>
    %cst_402 = arith.constant dense<0.000000e+00> : vector<1x256xf32>
    %622 = tpu.matmul %621, %619, %cst_402 {dimension_numbers = #tpu.dot_dimension_numbers<[1], [0], [0], [1], [0, 0, 1, 1], [], []>} : vector<1x8xf32>, vector<8x256xf32>, vector<1x256xf32> -> vector<1x256xf32>
    %623 = arith.addf %617, %622 : vector<1x256xf32>
    %c1_403 = arith.constant 1 : index
    %c0_404 = arith.constant 0 : index
    %c128_405 = arith.constant 128 : index
    %624 = vector.load %arg11[%c1_403, %c0_404, %c128_405] : memref<4x8x512xf32, #tpu.memory_space<vmem>>, vector<1x8x256xf32>
    %625 = vector.shape_cast %624 : vector<1x8x256xf32> to vector<8x256xf32>
    %c9_406 = arith.constant 9 : index
    %c0_407 = arith.constant 0 : index
    %c0_408 = arith.constant 0 : index
    %626 = vector.load %arg6[%c9_406, %c0_407, %c0_408] : memref<16x1x8xf32, #tpu.memory_space<vmem>>, vector<1x1x8xf32>
    %627 = vector.shape_cast %626 : vector<1x1x8xf32> to vector<1x8xf32>
    %cst_409 = arith.constant dense<0.000000e+00> : vector<1x256xf32>
    %628 = tpu.matmul %627, %625, %cst_409 {dimension_numbers = #tpu.dot_dimension_numbers<[1], [0], [0], [1], [0, 0, 1, 1], [], []>} : vector<1x8xf32>, vector<8x256xf32>, vector<1x256xf32> -> vector<1x256xf32>
    %629 = arith.addf %623, %628 : vector<1x256xf32>
    %c2_410 = arith.constant 2 : index
    %c0_411 = arith.constant 0 : index
    %c128_412 = arith.constant 128 : index
    %630 = vector.load %arg11[%c2_410, %c0_411, %c128_412] : memref<4x8x512xf32, #tpu.memory_space<vmem>>, vector<1x8x256xf32>
    %631 = vector.shape_cast %630 : vector<1x8x256xf32> to vector<8x256xf32>
    %c10_413 = arith.constant 10 : index
    %c0_414 = arith.constant 0 : index
    %c0_415 = arith.constant 0 : index
    %632 = vector.load %arg6[%c10_413, %c0_414, %c0_415] : memref<16x1x8xf32, #tpu.memory_space<vmem>>, vector<1x1x8xf32>
    %633 = vector.shape_cast %632 : vector<1x1x8xf32> to vector<1x8xf32>
    %cst_416 = arith.constant dense<0.000000e+00> : vector<1x256xf32>
    %634 = tpu.matmul %633, %631, %cst_416 {dimension_numbers = #tpu.dot_dimension_numbers<[1], [0], [0], [1], [0, 0, 1, 1], [], []>} : vector<1x8xf32>, vector<8x256xf32>, vector<1x256xf32> -> vector<1x256xf32>
    %635 = arith.addf %629, %634 : vector<1x256xf32>
    %c3_417 = arith.constant 3 : index
    %c0_418 = arith.constant 0 : index
    %c128_419 = arith.constant 128 : index
    %636 = vector.load %arg11[%c3_417, %c0_418, %c128_419] : memref<4x8x512xf32, #tpu.memory_space<vmem>>, vector<1x8x256xf32>
    %637 = vector.shape_cast %636 : vector<1x8x256xf32> to vector<8x256xf32>
    %c11_420 = arith.constant 11 : index
    %c0_421 = arith.constant 0 : index
    %c0_422 = arith.constant 0 : index
    %638 = vector.load %arg6[%c11_420, %c0_421, %c0_422] : memref<16x1x8xf32, #tpu.memory_space<vmem>>, vector<1x1x8xf32>
    %639 = vector.shape_cast %638 : vector<1x1x8xf32> to vector<1x8xf32>
    %cst_423 = arith.constant dense<0.000000e+00> : vector<1x256xf32>
    %640 = tpu.matmul %639, %637, %cst_423 {dimension_numbers = #tpu.dot_dimension_numbers<[1], [0], [0], [1], [0, 0, 1, 1], [], []>} : vector<1x8xf32>, vector<8x256xf32>, vector<1x256xf32> -> vector<1x256xf32>
    %641 = arith.addf %635, %640 : vector<1x256xf32>
    %642 = vector.broadcast %418 : vector<1x1xf32> to vector<1x256xf32>
    %643 = arith.addf %641, %642 : vector<1x256xf32>
    %cst_424 = arith.constant 0.000000e+00 : f32
    %644 = vector.broadcast %cst_424 : f32 to vector<1x256xf32>
    %645 = arith.maximumf %643, %644 : vector<1x256xf32>
    %c0_425 = arith.constant 0 : index
    %c6_426 = arith.constant 6 : index
    %c0_427 = arith.constant 0 : index
    %646 = vector.load %arg8[%c0_425, %c6_426, %c0_427] : memref<1x16x256xf32, #tpu.memory_space<vmem>>, vector<1x1x256xf32>
    %647 = vector.shape_cast %646 : vector<1x1x256xf32> to vector<1x256xf32>
    %648 = vector.shape_cast %645 : vector<1x256xf32> to vector<1x1x256xf32>
    tpu.vector_store %arg8[%c0_425, %c6_426, %c0_427], %648 {strides = array<i32>} : memref<1x16x256xf32, #tpu.memory_space<vmem>>, vector<1x1x256xf32>,
    %cst_428 = arith.constant 0.000000e+00 : f32
    %649 = vector.broadcast %cst_428 : f32 to vector<1x256xf32>
    %c1_429 = arith.constant 1 : index
    %c0_430 = arith.constant 0 : index
    %c128_431 = arith.constant 128 : index
    %650 = vector.load %arg11[%c1_429, %c0_430, %c128_431] : memref<4x8x512xf32, #tpu.memory_space<vmem>>, vector<1x8x256xf32>
    %651 = vector.shape_cast %650 : vector<1x8x256xf32> to vector<8x256xf32>
    %c12_432 = arith.constant 12 : index
    %c0_433 = arith.constant 0 : index
    %c0_434 = arith.constant 0 : index
    %652 = vector.load %arg6[%c12_432, %c0_433, %c0_434] : memref<16x1x8xf32, #tpu.memory_space<vmem>>, vector<1x1x8xf32>
    %653 = vector.shape_cast %652 : vector<1x1x8xf32> to vector<1x8xf32>
    %cst_435 = arith.constant dense<0.000000e+00> : vector<1x256xf32>
    %654 = tpu.matmul %653, %651, %cst_435 {dimension_numbers = #tpu.dot_dimension_numbers<[1], [0], [0], [1], [0, 0, 1, 1], [], []>} : vector<1x8xf32>, vector<8x256xf32>, vector<1x256xf32> -> vector<1x256xf32>
    %655 = arith.addf %649, %654 : vector<1x256xf32>
    %c0_436 = arith.constant 0 : index
    %c0_437 = arith.constant 0 : index
    %c129_438 = arith.constant 129 : index
    %656 = vector.load %arg11[%c0_436, %c0_437, %c129_438] : memref<4x8x512xf32, #tpu.memory_space<vmem>>, vector<1x8x256xf32>
    %657 = vector.shape_cast %656 : vector<1x8x256xf32> to vector<8x256xf32>
    %658 = arith.mulf %657, %296 : vector<8x256xf32>
    %c13_439 = arith.constant 13 : index
    %c0_440 = arith.constant 0 : index
    %c0_441 = arith.constant 0 : index
    %659 = vector.load %arg6[%c13_439, %c0_440, %c0_441] : memref<16x1x8xf32, #tpu.memory_space<vmem>>, vector<1x1x8xf32>
    %660 = vector.shape_cast %659 : vector<1x1x8xf32> to vector<1x8xf32>
    %cst_442 = arith.constant dense<0.000000e+00> : vector<1x256xf32>
    %661 = tpu.matmul %660, %658, %cst_442 {dimension_numbers = #tpu.dot_dimension_numbers<[1], [0], [0], [1], [0, 0, 1, 1], [], []>} : vector<1x8xf32>, vector<8x256xf32>, vector<1x256xf32> -> vector<1x256xf32>
    %662 = arith.addf %655, %661 : vector<1x256xf32>
    %c3_443 = arith.constant 3 : index
    %c0_444 = arith.constant 0 : index
    %c128_445 = arith.constant 128 : index
    %663 = vector.load %arg11[%c3_443, %c0_444, %c128_445] : memref<4x8x512xf32, #tpu.memory_space<vmem>>, vector<1x8x256xf32>
    %664 = vector.shape_cast %663 : vector<1x8x256xf32> to vector<8x256xf32>
    %c14_446 = arith.constant 14 : index
    %c0_447 = arith.constant 0 : index
    %c0_448 = arith.constant 0 : index
    %665 = vector.load %arg6[%c14_446, %c0_447, %c0_448] : memref<16x1x8xf32, #tpu.memory_space<vmem>>, vector<1x1x8xf32>
    %666 = vector.shape_cast %665 : vector<1x1x8xf32> to vector<1x8xf32>
    %cst_449 = arith.constant dense<0.000000e+00> : vector<1x256xf32>
    %667 = tpu.matmul %666, %664, %cst_449 {dimension_numbers = #tpu.dot_dimension_numbers<[1], [0], [0], [1], [0, 0, 1, 1], [], []>} : vector<1x8xf32>, vector<8x256xf32>, vector<1x256xf32> -> vector<1x256xf32>
    %668 = arith.addf %662, %667 : vector<1x256xf32>
    %c2_450 = arith.constant 2 : index
    %c0_451 = arith.constant 0 : index
    %c129_452 = arith.constant 129 : index
    %669 = vector.load %arg11[%c2_450, %c0_451, %c129_452] : memref<4x8x512xf32, #tpu.memory_space<vmem>>, vector<1x8x256xf32>
    %670 = vector.shape_cast %669 : vector<1x8x256xf32> to vector<8x256xf32>
    %671 = arith.mulf %670, %296 : vector<8x256xf32>
    %c15_453 = arith.constant 15 : index
    %c0_454 = arith.constant 0 : index
    %c0_455 = arith.constant 0 : index
    %672 = vector.load %arg6[%c15_453, %c0_454, %c0_455] : memref<16x1x8xf32, #tpu.memory_space<vmem>>, vector<1x1x8xf32>
    %673 = vector.shape_cast %672 : vector<1x1x8xf32> to vector<1x8xf32>
    %cst_456 = arith.constant dense<0.000000e+00> : vector<1x256xf32>
    %674 = tpu.matmul %673, %671, %cst_456 {dimension_numbers = #tpu.dot_dimension_numbers<[1], [0], [0], [1], [0, 0, 1, 1], [], []>} : vector<1x8xf32>, vector<8x256xf32>, vector<1x256xf32> -> vector<1x256xf32>
    %675 = arith.addf %668, %674 : vector<1x256xf32>
    %676 = vector.broadcast %418 : vector<1x1xf32> to vector<1x256xf32>
    %677 = arith.addf %675, %676 : vector<1x256xf32>
    %cst_457 = arith.constant 0.000000e+00 : f32
    %678 = vector.broadcast %cst_457 : f32 to vector<1x256xf32>
    %679 = arith.maximumf %677, %678 : vector<1x256xf32>
    %c0_458 = arith.constant 0 : index
    %c7_459 = arith.constant 7 : index
    %c0_460 = arith.constant 0 : index
    %680 = vector.load %arg8[%c0_458, %c7_459, %c0_460] : memref<1x16x256xf32, #tpu.memory_space<vmem>>, vector<1x1x256xf32>
    %681 = vector.shape_cast %680 : vector<1x1x256xf32> to vector<1x256xf32>
    %682 = vector.shape_cast %679 : vector<1x256xf32> to vector<1x1x256xf32>
    tpu.vector_store %arg8[%c0_458, %c7_459, %c0_460], %682 {strides = array<i32>} : memref<1x16x256xf32, #tpu.memory_space<vmem>>, vector<1x1x256xf32>,
    %cst_461 = arith.constant 0.000000e+00 : f32
    %683 = vector.broadcast %cst_461 : f32 to vector<1x256xf32>
    %c1_462 = arith.constant 1 : index
    %c0_463 = arith.constant 0 : index
    %c127_464 = arith.constant 127 : index
    %684 = vector.load %arg11[%c1_462, %c0_463, %c127_464] : memref<4x8x512xf32, #tpu.memory_space<vmem>>, vector<1x8x256xf32>
    %685 = vector.shape_cast %684 : vector<1x8x256xf32> to vector<8x256xf32>
    %686 = arith.mulf %685, %292 : vector<8x256xf32>
    %c0_465 = arith.constant 0 : index
    %c0_466 = arith.constant 0 : index
    %c0_467 = arith.constant 0 : index
    %687 = vector.load %arg6[%c0_465, %c0_466, %c0_467] : memref<16x1x8xf32, #tpu.memory_space<vmem>>, vector<1x1x8xf32>
    %688 = vector.shape_cast %687 : vector<1x1x8xf32> to vector<1x8xf32>
    %cst_468 = arith.constant dense<0.000000e+00> : vector<1x256xf32>
    %689 = tpu.matmul %688, %686, %cst_468 {dimension_numbers = #tpu.dot_dimension_numbers<[1], [0], [0], [1], [0, 0, 1, 1], [], []>} : vector<1x8xf32>, vector<8x256xf32>, vector<1x256xf32> -> vector<1x256xf32>
    %690 = arith.addf %683, %689 : vector<1x256xf32>
    %c0_469 = arith.constant 0 : index
    %c0_470 = arith.constant 0 : index
    %c128_471 = arith.constant 128 : index
    %691 = vector.load %arg11[%c0_469, %c0_470, %c128_471] : memref<4x8x512xf32, #tpu.memory_space<vmem>>, vector<1x8x256xf32>
    %692 = vector.shape_cast %691 : vector<1x8x256xf32> to vector<8x256xf32>
    %c1_472 = arith.constant 1 : index
    %c0_473 = arith.constant 0 : index
    %c0_474 = arith.constant 0 : index
    %693 = vector.load %arg6[%c1_472, %c0_473, %c0_474] : memref<16x1x8xf32, #tpu.memory_space<vmem>>, vector<1x1x8xf32>
    %694 = vector.shape_cast %693 : vector<1x1x8xf32> to vector<1x8xf32>
    %cst_475 = arith.constant dense<0.000000e+00> : vector<1x256xf32>
    %695 = tpu.matmul %694, %692, %cst_475 {dimension_numbers = #tpu.dot_dimension_numbers<[1], [0], [0], [1], [0, 0, 1, 1], [], []>} : vector<1x8xf32>, vector<8x256xf32>, vector<1x256xf32> -> vector<1x256xf32>
    %696 = arith.addf %690, %695 : vector<1x256xf32>
    %c3_476 = arith.constant 3 : index
    %c0_477 = arith.constant 0 : index
    %c127_478 = arith.constant 127 : index
    %697 = vector.load %arg11[%c3_476, %c0_477, %c127_478] : memref<4x8x512xf32, #tpu.memory_space<vmem>>, vector<1x8x256xf32>
    %698 = vector.shape_cast %697 : vector<1x8x256xf32> to vector<8x256xf32>
    %699 = arith.mulf %698, %292 : vector<8x256xf32>
    %c2_479 = arith.constant 2 : index
    %c0_480 = arith.constant 0 : index
    %c0_481 = arith.constant 0 : index
    %700 = vector.load %arg6[%c2_479, %c0_480, %c0_481] : memref<16x1x8xf32, #tpu.memory_space<vmem>>, vector<1x1x8xf32>
    %701 = vector.shape_cast %700 : vector<1x1x8xf32> to vector<1x8xf32>
    %cst_482 = arith.constant dense<0.000000e+00> : vector<1x256xf32>
    %702 = tpu.matmul %701, %699, %cst_482 {dimension_numbers = #tpu.dot_dimension_numbers<[1], [0], [0], [1], [0, 0, 1, 1], [], []>} : vector<1x8xf32>, vector<8x256xf32>, vector<1x256xf32> -> vector<1x256xf32>
    %703 = arith.addf %696, %702 : vector<1x256xf32>
    %c2_483 = arith.constant 2 : index
    %c0_484 = arith.constant 0 : index
    %c128_485 = arith.constant 128 : index
    %704 = vector.load %arg11[%c2_483, %c0_484, %c128_485] : memref<4x8x512xf32, #tpu.memory_space<vmem>>, vector<1x8x256xf32>
    %705 = vector.shape_cast %704 : vector<1x8x256xf32> to vector<8x256xf32>
    %c3_486 = arith.constant 3 : index
    %c0_487 = arith.constant 0 : index
    %c0_488 = arith.constant 0 : index
    %706 = vector.load %arg6[%c3_486, %c0_487, %c0_488] : memref<16x1x8xf32, #tpu.memory_space<vmem>>, vector<1x1x8xf32>
    %707 = vector.shape_cast %706 : vector<1x1x8xf32> to vector<1x8xf32>
    %cst_489 = arith.constant dense<0.000000e+00> : vector<1x256xf32>
    %708 = tpu.matmul %707, %705, %cst_489 {dimension_numbers = #tpu.dot_dimension_numbers<[1], [0], [0], [1], [0, 0, 1, 1], [], []>} : vector<1x8xf32>, vector<8x256xf32>, vector<1x256xf32> -> vector<1x256xf32>
    %709 = arith.addf %703, %708 : vector<1x256xf32>
    %710 = vector.broadcast %418 : vector<1x1xf32> to vector<1x256xf32>
    %711 = arith.addf %709, %710 : vector<1x256xf32>
    %cst_490 = arith.constant 0.000000e+00 : f32
    %712 = vector.broadcast %cst_490 : f32 to vector<1x256xf32>
    %713 = arith.maximumf %711, %712 : vector<1x256xf32>
    %c0_491 = arith.constant 0 : index
    %c8_492 = arith.constant 8 : index
    %c0_493 = arith.constant 0 : index
    %714 = vector.load %arg8[%c0_491, %c8_492, %c0_493] : memref<1x16x256xf32, #tpu.memory_space<vmem>>, vector<1x1x256xf32>
    %715 = vector.shape_cast %714 : vector<1x1x256xf32> to vector<1x256xf32>
    %716 = vector.shape_cast %713 : vector<1x256xf32> to vector<1x1x256xf32>
    tpu.vector_store %arg8[%c0_491, %c8_492, %c0_493], %716 {strides = array<i32>} : memref<1x16x256xf32, #tpu.memory_space<vmem>>, vector<1x1x256xf32>,
    %cst_494 = arith.constant 0.000000e+00 : f32
    %717 = vector.broadcast %cst_494 : f32 to vector<1x256xf32>
    %c0_495 = arith.constant 0 : index
    %c0_496 = arith.constant 0 : index
    %c128_497 = arith.constant 128 : index
    %718 = vector.load %arg11[%c0_495, %c0_496, %c128_497] : memref<4x8x512xf32, #tpu.memory_space<vmem>>, vector<1x8x256xf32>
    %719 = vector.shape_cast %718 : vector<1x8x256xf32> to vector<8x256xf32>
    %c4_498 = arith.constant 4 : index
    %c0_499 = arith.constant 0 : index
    %c0_500 = arith.constant 0 : index
    %720 = vector.load %arg6[%c4_498, %c0_499, %c0_500] : memref<16x1x8xf32, #tpu.memory_space<vmem>>, vector<1x1x8xf32>
    %721 = vector.shape_cast %720 : vector<1x1x8xf32> to vector<1x8xf32>
    %cst_501 = arith.constant dense<0.000000e+00> : vector<1x256xf32>
    %722 = tpu.matmul %721, %719, %cst_501 {dimension_numbers = #tpu.dot_dimension_numbers<[1], [0], [0], [1], [0, 0, 1, 1], [], []>} : vector<1x8xf32>, vector<8x256xf32>, vector<1x256xf32> -> vector<1x256xf32>
    %723 = arith.addf %717, %722 : vector<1x256xf32>
    %c1_502 = arith.constant 1 : index
    %c0_503 = arith.constant 0 : index
    %c128_504 = arith.constant 128 : index
    %724 = vector.load %arg11[%c1_502, %c0_503, %c128_504] : memref<4x8x512xf32, #tpu.memory_space<vmem>>, vector<1x8x256xf32>
    %725 = vector.shape_cast %724 : vector<1x8x256xf32> to vector<8x256xf32>
    %c5_505 = arith.constant 5 : index
    %c0_506 = arith.constant 0 : index
    %c0_507 = arith.constant 0 : index
    %726 = vector.load %arg6[%c5_505, %c0_506, %c0_507] : memref<16x1x8xf32, #tpu.memory_space<vmem>>, vector<1x1x8xf32>
    %727 = vector.shape_cast %726 : vector<1x1x8xf32> to vector<1x8xf32>
    %cst_508 = arith.constant dense<0.000000e+00> : vector<1x256xf32>
    %728 = tpu.matmul %727, %725, %cst_508 {dimension_numbers = #tpu.dot_dimension_numbers<[1], [0], [0], [1], [0, 0, 1, 1], [], []>} : vector<1x8xf32>, vector<8x256xf32>, vector<1x256xf32> -> vector<1x256xf32>
    %729 = arith.addf %723, %728 : vector<1x256xf32>
    %c2_509 = arith.constant 2 : index
    %c0_510 = arith.constant 0 : index
    %c128_511 = arith.constant 128 : index
    %730 = vector.load %arg11[%c2_509, %c0_510, %c128_511] : memref<4x8x512xf32, #tpu.memory_space<vmem>>, vector<1x8x256xf32>
    %731 = vector.shape_cast %730 : vector<1x8x256xf32> to vector<8x256xf32>
    %c6_512 = arith.constant 6 : index
    %c0_513 = arith.constant 0 : index
    %c0_514 = arith.constant 0 : index
    %732 = vector.load %arg6[%c6_512, %c0_513, %c0_514] : memref<16x1x8xf32, #tpu.memory_space<vmem>>, vector<1x1x8xf32>
    %733 = vector.shape_cast %732 : vector<1x1x8xf32> to vector<1x8xf32>
    %cst_515 = arith.constant dense<0.000000e+00> : vector<1x256xf32>
    %734 = tpu.matmul %733, %731, %cst_515 {dimension_numbers = #tpu.dot_dimension_numbers<[1], [0], [0], [1], [0, 0, 1, 1], [], []>} : vector<1x8xf32>, vector<8x256xf32>, vector<1x256xf32> -> vector<1x256xf32>
    %735 = arith.addf %729, %734 : vector<1x256xf32>
    %c3_516 = arith.constant 3 : index
    %c0_517 = arith.constant 0 : index
    %c128_518 = arith.constant 128 : index
    %736 = vector.load %arg11[%c3_516, %c0_517, %c128_518] : memref<4x8x512xf32, #tpu.memory_space<vmem>>, vector<1x8x256xf32>
    %737 = vector.shape_cast %736 : vector<1x8x256xf32> to vector<8x256xf32>
    %c7_519 = arith.constant 7 : index
    %c0_520 = arith.constant 0 : index
    %c0_521 = arith.constant 0 : index
    %738 = vector.load %arg6[%c7_519, %c0_520, %c0_521] : memref<16x1x8xf32, #tpu.memory_space<vmem>>, vector<1x1x8xf32>
    %739 = vector.shape_cast %738 : vector<1x1x8xf32> to vector<1x8xf32>
    %cst_522 = arith.constant dense<0.000000e+00> : vector<1x256xf32>
    %740 = tpu.matmul %739, %737, %cst_522 {dimension_numbers = #tpu.dot_dimension_numbers<[1], [0], [0], [1], [0, 0, 1, 1], [], []>} : vector<1x8xf32>, vector<8x256xf32>, vector<1x256xf32> -> vector<1x256xf32>
    %741 = arith.addf %735, %740 : vector<1x256xf32>
    %742 = vector.broadcast %418 : vector<1x1xf32> to vector<1x256xf32>
    %743 = arith.addf %741, %742 : vector<1x256xf32>
    %cst_523 = arith.constant 0.000000e+00 : f32
    %744 = vector.broadcast %cst_523 : f32 to vector<1x256xf32>
    %745 = arith.maximumf %743, %744 : vector<1x256xf32>
    %c0_524 = arith.constant 0 : index
    %c9_525 = arith.constant 9 : index
    %c0_526 = arith.constant 0 : index
    %746 = vector.load %arg8[%c0_524, %c9_525, %c0_526] : memref<1x16x256xf32, #tpu.memory_space<vmem>>, vector<1x1x256xf32>
    %747 = vector.shape_cast %746 : vector<1x1x256xf32> to vector<1x256xf32>
    %748 = vector.shape_cast %745 : vector<1x256xf32> to vector<1x1x256xf32>
    tpu.vector_store %arg8[%c0_524, %c9_525, %c0_526], %748 {strides = array<i32>} : memref<1x16x256xf32, #tpu.memory_space<vmem>>, vector<1x1x256xf32>,
    %cst_527 = arith.constant 0.000000e+00 : f32
    %749 = vector.broadcast %cst_527 : f32 to vector<1x256xf32>
    %c3_528 = arith.constant 3 : index
    %c0_529 = arith.constant 0 : index
    %c127_530 = arith.constant 127 : index
    %750 = vector.load %arg11[%c3_528, %c0_529, %c127_530] : memref<4x8x512xf32, #tpu.memory_space<vmem>>, vector<1x8x256xf32>
    %751 = vector.shape_cast %750 : vector<1x8x256xf32> to vector<8x256xf32>
    %752 = arith.mulf %751, %292 : vector<8x256xf32>
    %c8_531 = arith.constant 8 : index
    %c0_532 = arith.constant 0 : index
    %c0_533 = arith.constant 0 : index
    %753 = vector.load %arg6[%c8_531, %c0_532, %c0_533] : memref<16x1x8xf32, #tpu.memory_space<vmem>>, vector<1x1x8xf32>
    %754 = vector.shape_cast %753 : vector<1x1x8xf32> to vector<1x8xf32>
    %cst_534 = arith.constant dense<0.000000e+00> : vector<1x256xf32>
    %755 = tpu.matmul %754, %752, %cst_534 {dimension_numbers = #tpu.dot_dimension_numbers<[1], [0], [0], [1], [0, 0, 1, 1], [], []>} : vector<1x8xf32>, vector<8x256xf32>, vector<1x256xf32> -> vector<1x256xf32>
    %756 = arith.addf %749, %755 : vector<1x256xf32>
    %c2_535 = arith.constant 2 : index
    %c0_536 = arith.constant 0 : index
    %c128_537 = arith.constant 128 : index
    %757 = vector.load %arg11[%c2_535, %c0_536, %c128_537] : memref<4x8x512xf32, #tpu.memory_space<vmem>>, vector<1x8x256xf32>
    %758 = vector.shape_cast %757 : vector<1x8x256xf32> to vector<8x256xf32>
    %c9_538 = arith.constant 9 : index
    %c0_539 = arith.constant 0 : index
    %c0_540 = arith.constant 0 : index
    %759 = vector.load %arg6[%c9_538, %c0_539, %c0_540] : memref<16x1x8xf32, #tpu.memory_space<vmem>>, vector<1x1x8xf32>
    %760 = vector.shape_cast %759 : vector<1x1x8xf32> to vector<1x8xf32>
    %cst_541 = arith.constant dense<0.000000e+00> : vector<1x256xf32>
    %761 = tpu.matmul %760, %758, %cst_541 {dimension_numbers = #tpu.dot_dimension_numbers<[1], [0], [0], [1], [0, 0, 1, 1], [], []>} : vector<1x8xf32>, vector<8x256xf32>, vector<1x256xf32> -> vector<1x256xf32>
    %762 = arith.addf %756, %761 : vector<1x256xf32>
    %c1_542 = arith.constant 1 : index
    %c0_543 = arith.constant 0 : index
    %c143_544 = arith.constant 143 : index
    %763 = vector.load %arg11[%c1_542, %c0_543, %c143_544] : memref<4x8x512xf32, #tpu.memory_space<vmem>>, vector<1x8x256xf32>
    %764 = vector.shape_cast %763 : vector<1x8x256xf32> to vector<8x256xf32>
    %765 = arith.mulf %764, %292 : vector<8x256xf32>
    %c10_545 = arith.constant 10 : index
    %c0_546 = arith.constant 0 : index
    %c0_547 = arith.constant 0 : index
    %766 = vector.load %arg6[%c10_545, %c0_546, %c0_547] : memref<16x1x8xf32, #tpu.memory_space<vmem>>, vector<1x1x8xf32>
    %767 = vector.shape_cast %766 : vector<1x1x8xf32> to vector<1x8xf32>
    %cst_548 = arith.constant dense<0.000000e+00> : vector<1x256xf32>
    %768 = tpu.matmul %767, %765, %cst_548 {dimension_numbers = #tpu.dot_dimension_numbers<[1], [0], [0], [1], [0, 0, 1, 1], [], []>} : vector<1x8xf32>, vector<8x256xf32>, vector<1x256xf32> -> vector<1x256xf32>
    %769 = arith.addf %762, %768 : vector<1x256xf32>
    %c0_549 = arith.constant 0 : index
    %c0_550 = arith.constant 0 : index
    %c144_551 = arith.constant 144 : index
    %770 = vector.load %arg11[%c0_549, %c0_550, %c144_551] : memref<4x8x512xf32, #tpu.memory_space<vmem>>, vector<1x8x256xf32>
    %771 = vector.shape_cast %770 : vector<1x8x256xf32> to vector<8x256xf32>
    %c11_552 = arith.constant 11 : index
    %c0_553 = arith.constant 0 : index
    %c0_554 = arith.constant 0 : index
    %772 = vector.load %arg6[%c11_552, %c0_553, %c0_554] : memref<16x1x8xf32, #tpu.memory_space<vmem>>, vector<1x1x8xf32>
    %773 = vector.shape_cast %772 : vector<1x1x8xf32> to vector<1x8xf32>
    %cst_555 = arith.constant dense<0.000000e+00> : vector<1x256xf32>
    %774 = tpu.matmul %773, %771, %cst_555 {dimension_numbers = #tpu.dot_dimension_numbers<[1], [0], [0], [1], [0, 0, 1, 1], [], []>} : vector<1x8xf32>, vector<8x256xf32>, vector<1x256xf32> -> vector<1x256xf32>
    %775 = arith.addf %769, %774 : vector<1x256xf32>
    %776 = vector.broadcast %418 : vector<1x1xf32> to vector<1x256xf32>
    %777 = arith.addf %775, %776 : vector<1x256xf32>
    %cst_556 = arith.constant 0.000000e+00 : f32
    %778 = vector.broadcast %cst_556 : f32 to vector<1x256xf32>
    %779 = arith.maximumf %777, %778 : vector<1x256xf32>
    %c0_557 = arith.constant 0 : index
    %c12_558 = arith.constant 12 : index
    %c0_559 = arith.constant 0 : index
    %780 = vector.load %arg8[%c0_557, %c12_558, %c0_559] : memref<1x16x256xf32, #tpu.memory_space<vmem>>, vector<1x1x256xf32>
    %781 = vector.shape_cast %780 : vector<1x1x256xf32> to vector<1x256xf32>
    %782 = vector.shape_cast %779 : vector<1x256xf32> to vector<1x1x256xf32>
    tpu.vector_store %arg8[%c0_557, %c12_558, %c0_559], %782 {strides = array<i32>} : memref<1x16x256xf32, #tpu.memory_space<vmem>>, vector<1x1x256xf32>,
    %cst_560 = arith.constant 0.000000e+00 : f32
    %783 = vector.broadcast %cst_560 : f32 to vector<1x256xf32>
    %c2_561 = arith.constant 2 : index
    %c0_562 = arith.constant 0 : index
    %c128_563 = arith.constant 128 : index
    %784 = vector.load %arg11[%c2_561, %c0_562, %c128_563] : memref<4x8x512xf32, #tpu.memory_space<vmem>>, vector<1x8x256xf32>
    %785 = vector.shape_cast %784 : vector<1x8x256xf32> to vector<8x256xf32>
    %c12_564 = arith.constant 12 : index
    %c0_565 = arith.constant 0 : index
    %c0_566 = arith.constant 0 : index
    %786 = vector.load %arg6[%c12_564, %c0_565, %c0_566] : memref<16x1x8xf32, #tpu.memory_space<vmem>>, vector<1x1x8xf32>
    %787 = vector.shape_cast %786 : vector<1x1x8xf32> to vector<1x8xf32>
    %cst_567 = arith.constant dense<0.000000e+00> : vector<1x256xf32>
    %788 = tpu.matmul %787, %785, %cst_567 {dimension_numbers = #tpu.dot_dimension_numbers<[1], [0], [0], [1], [0, 0, 1, 1], [], []>} : vector<1x8xf32>, vector<8x256xf32>, vector<1x256xf32> -> vector<1x256xf32>
    %789 = arith.addf %783, %788 : vector<1x256xf32>
    %c3_568 = arith.constant 3 : index
    %c0_569 = arith.constant 0 : index
    %c128_570 = arith.constant 128 : index
    %790 = vector.load %arg11[%c3_568, %c0_569, %c128_570] : memref<4x8x512xf32, #tpu.memory_space<vmem>>, vector<1x8x256xf32>
    %791 = vector.shape_cast %790 : vector<1x8x256xf32> to vector<8x256xf32>
    %c13_571 = arith.constant 13 : index
    %c0_572 = arith.constant 0 : index
    %c0_573 = arith.constant 0 : index
    %792 = vector.load %arg6[%c13_571, %c0_572, %c0_573] : memref<16x1x8xf32, #tpu.memory_space<vmem>>, vector<1x1x8xf32>
    %793 = vector.shape_cast %792 : vector<1x1x8xf32> to vector<1x8xf32>
    %cst_574 = arith.constant dense<0.000000e+00> : vector<1x256xf32>
    %794 = tpu.matmul %793, %791, %cst_574 {dimension_numbers = #tpu.dot_dimension_numbers<[1], [0], [0], [1], [0, 0, 1, 1], [], []>} : vector<1x8xf32>, vector<8x256xf32>, vector<1x256xf32> -> vector<1x256xf32>
    %795 = arith.addf %789, %794 : vector<1x256xf32>
    %c0_575 = arith.constant 0 : index
    %c0_576 = arith.constant 0 : index
    %c144_577 = arith.constant 144 : index
    %796 = vector.load %arg11[%c0_575, %c0_576, %c144_577] : memref<4x8x512xf32, #tpu.memory_space<vmem>>, vector<1x8x256xf32>
    %797 = vector.shape_cast %796 : vector<1x8x256xf32> to vector<8x256xf32>
    %c14_578 = arith.constant 14 : index
    %c0_579 = arith.constant 0 : index
    %c0_580 = arith.constant 0 : index
    %798 = vector.load %arg6[%c14_578, %c0_579, %c0_580] : memref<16x1x8xf32, #tpu.memory_space<vmem>>, vector<1x1x8xf32>
    %799 = vector.shape_cast %798 : vector<1x1x8xf32> to vector<1x8xf32>
    %cst_581 = arith.constant dense<0.000000e+00> : vector<1x256xf32>
    %800 = tpu.matmul %799, %797, %cst_581 {dimension_numbers = #tpu.dot_dimension_numbers<[1], [0], [0], [1], [0, 0, 1, 1], [], []>} : vector<1x8xf32>, vector<8x256xf32>, vector<1x256xf32> -> vector<1x256xf32>
    %801 = arith.addf %795, %800 : vector<1x256xf32>
    %c1_582 = arith.constant 1 : index
    %c0_583 = arith.constant 0 : index
    %c144_584 = arith.constant 144 : index
    %802 = vector.load %arg11[%c1_582, %c0_583, %c144_584] : memref<4x8x512xf32, #tpu.memory_space<vmem>>, vector<1x8x256xf32>
    %803 = vector.shape_cast %802 : vector<1x8x256xf32> to vector<8x256xf32>
    %c15_585 = arith.constant 15 : index
    %c0_586 = arith.constant 0 : index
    %c0_587 = arith.constant 0 : index
    %804 = vector.load %arg6[%c15_585, %c0_586, %c0_587] : memref<16x1x8xf32, #tpu.memory_space<vmem>>, vector<1x1x8xf32>
    %805 = vector.shape_cast %804 : vector<1x1x8xf32> to vector<1x8xf32>
    %cst_588 = arith.constant dense<0.000000e+00> : vector<1x256xf32>
    %806 = tpu.matmul %805, %803, %cst_588 {dimension_numbers = #tpu.dot_dimension_numbers<[1], [0], [0], [1], [0, 0, 1, 1], [], []>} : vector<1x8xf32>, vector<8x256xf32>, vector<1x256xf32> -> vector<1x256xf32>
    %807 = arith.addf %801, %806 : vector<1x256xf32>
    %808 = vector.broadcast %418 : vector<1x1xf32> to vector<1x256xf32>
    %809 = arith.addf %807, %808 : vector<1x256xf32>
    %cst_589 = arith.constant 0.000000e+00 : f32
    %810 = vector.broadcast %cst_589 : f32 to vector<1x256xf32>
    %811 = arith.maximumf %809, %810 : vector<1x256xf32>
    %c0_590 = arith.constant 0 : index
    %c13_591 = arith.constant 13 : index
    %c0_592 = arith.constant 0 : index
    %812 = vector.load %arg8[%c0_590, %c13_591, %c0_592] : memref<1x16x256xf32, #tpu.memory_space<vmem>>, vector<1x1x256xf32>
    %813 = vector.shape_cast %812 : vector<1x1x256xf32> to vector<1x256xf32>
    %814 = vector.shape_cast %811 : vector<1x256xf32> to vector<1x1x256xf32>
    tpu.vector_store %arg8[%c0_590, %c13_591, %c0_592], %814 {strides = array<i32>} : memref<1x16x256xf32, #tpu.memory_space<vmem>>, vector<1x1x256xf32>,
    %cst_593 = arith.constant 0.000000e+00 : f32
    %815 = vector.broadcast %cst_593 : f32 to vector<1x256xf32>
    %c0_594 = arith.constant 0 : index
    %c0_595 = arith.constant 0 : index
    %c128_596 = arith.constant 128 : index
    %816 = vector.load %arg11[%c0_594, %c0_595, %c128_596] : memref<4x8x512xf32, #tpu.memory_space<vmem>>, vector<1x8x256xf32>
    %817 = vector.shape_cast %816 : vector<1x8x256xf32> to vector<8x256xf32>
    %c0_597 = arith.constant 0 : index
    %c0_598 = arith.constant 0 : index
    %c0_599 = arith.constant 0 : index
    %818 = vector.load %arg6[%c0_597, %c0_598, %c0_599] : memref<16x1x8xf32, #tpu.memory_space<vmem>>, vector<1x1x8xf32>
    %819 = vector.shape_cast %818 : vector<1x1x8xf32> to vector<1x8xf32>
    %cst_600 = arith.constant dense<0.000000e+00> : vector<1x256xf32>
    %820 = tpu.matmul %819, %817, %cst_600 {dimension_numbers = #tpu.dot_dimension_numbers<[1], [0], [0], [1], [0, 0, 1, 1], [], []>} : vector<1x8xf32>, vector<8x256xf32>, vector<1x256xf32> -> vector<1x256xf32>
    %821 = arith.addf %815, %820 : vector<1x256xf32>
    %c1_601 = arith.constant 1 : index
    %c0_602 = arith.constant 0 : index
    %c128_603 = arith.constant 128 : index
    %822 = vector.load %arg11[%c1_601, %c0_602, %c128_603] : memref<4x8x512xf32, #tpu.memory_space<vmem>>, vector<1x8x256xf32>
    %823 = vector.shape_cast %822 : vector<1x8x256xf32> to vector<8x256xf32>
    %c1_604 = arith.constant 1 : index
    %c0_605 = arith.constant 0 : index
    %c0_606 = arith.constant 0 : index
    %824 = vector.load %arg6[%c1_604, %c0_605, %c0_606] : memref<16x1x8xf32, #tpu.memory_space<vmem>>, vector<1x1x8xf32>
    %825 = vector.shape_cast %824 : vector<1x1x8xf32> to vector<1x8xf32>
    %cst_607 = arith.constant dense<0.000000e+00> : vector<1x256xf32>
    %826 = tpu.matmul %825, %823, %cst_607 {dimension_numbers = #tpu.dot_dimension_numbers<[1], [0], [0], [1], [0, 0, 1, 1], [], []>} : vector<1x8xf32>, vector<8x256xf32>, vector<1x256xf32> -> vector<1x256xf32>
    %827 = arith.addf %821, %826 : vector<1x256xf32>
    %c2_608 = arith.constant 2 : index
    %c0_609 = arith.constant 0 : index
    %c128_610 = arith.constant 128 : index
    %828 = vector.load %arg11[%c2_608, %c0_609, %c128_610] : memref<4x8x512xf32, #tpu.memory_space<vmem>>, vector<1x8x256xf32>
    %829 = vector.shape_cast %828 : vector<1x8x256xf32> to vector<8x256xf32>
    %c2_611 = arith.constant 2 : index
    %c0_612 = arith.constant 0 : index
    %c0_613 = arith.constant 0 : index
    %830 = vector.load %arg6[%c2_611, %c0_612, %c0_613] : memref<16x1x8xf32, #tpu.memory_space<vmem>>, vector<1x1x8xf32>
    %831 = vector.shape_cast %830 : vector<1x1x8xf32> to vector<1x8xf32>
    %cst_614 = arith.constant dense<0.000000e+00> : vector<1x256xf32>
    %832 = tpu.matmul %831, %829, %cst_614 {dimension_numbers = #tpu.dot_dimension_numbers<[1], [0], [0], [1], [0, 0, 1, 1], [], []>} : vector<1x8xf32>, vector<8x256xf32>, vector<1x256xf32> -> vector<1x256xf32>
    %833 = arith.addf %827, %832 : vector<1x256xf32>
    %c3_615 = arith.constant 3 : index
    %c0_616 = arith.constant 0 : index
    %c128_617 = arith.constant 128 : index
    %834 = vector.load %arg11[%c3_615, %c0_616, %c128_617] : memref<4x8x512xf32, #tpu.memory_space<vmem>>, vector<1x8x256xf32>
    %835 = vector.shape_cast %834 : vector<1x8x256xf32> to vector<8x256xf32>
    %c3_618 = arith.constant 3 : index
    %c0_619 = arith.constant 0 : index
    %c0_620 = arith.constant 0 : index
    %836 = vector.load %arg6[%c3_618, %c0_619, %c0_620] : memref<16x1x8xf32, #tpu.memory_space<vmem>>, vector<1x1x8xf32>
    %837 = vector.shape_cast %836 : vector<1x1x8xf32> to vector<1x8xf32>
    %cst_621 = arith.constant dense<0.000000e+00> : vector<1x256xf32>
    %838 = tpu.matmul %837, %835, %cst_621 {dimension_numbers = #tpu.dot_dimension_numbers<[1], [0], [0], [1], [0, 0, 1, 1], [], []>} : vector<1x8xf32>, vector<8x256xf32>, vector<1x256xf32> -> vector<1x256xf32>
    %839 = arith.addf %833, %838 : vector<1x256xf32>
    %840 = vector.broadcast %418 : vector<1x1xf32> to vector<1x256xf32>
    %841 = arith.addf %839, %840 : vector<1x256xf32>
    %cst_622 = arith.constant 0.000000e+00 : f32
    %842 = vector.broadcast %cst_622 : f32 to vector<1x256xf32>
    %843 = arith.maximumf %841, %842 : vector<1x256xf32>
    %c0_623 = arith.constant 0 : index
    %c10_624 = arith.constant 10 : index
    %c0_625 = arith.constant 0 : index
    %844 = vector.load %arg8[%c0_623, %c10_624, %c0_625] : memref<1x16x256xf32, #tpu.memory_space<vmem>>, vector<1x1x256xf32>
    %845 = vector.shape_cast %844 : vector<1x1x256xf32> to vector<1x256xf32>
    %846 = vector.shape_cast %843 : vector<1x256xf32> to vector<1x1x256xf32>
    tpu.vector_store %arg8[%c0_623, %c10_624, %c0_625], %846 {strides = array<i32>} : memref<1x16x256xf32, #tpu.memory_space<vmem>>, vector<1x1x256xf32>,
    %cst_626 = arith.constant 0.000000e+00 : f32
    %847 = vector.broadcast %cst_626 : f32 to vector<1x256xf32>
    %c1_627 = arith.constant 1 : index
    %c0_628 = arith.constant 0 : index
    %c128_629 = arith.constant 128 : index
    %848 = vector.load %arg11[%c1_627, %c0_628, %c128_629] : memref<4x8x512xf32, #tpu.memory_space<vmem>>, vector<1x8x256xf32>
    %849 = vector.shape_cast %848 : vector<1x8x256xf32> to vector<8x256xf32>
    %c4_630 = arith.constant 4 : index
    %c0_631 = arith.constant 0 : index
    %c0_632 = arith.constant 0 : index
    %850 = vector.load %arg6[%c4_630, %c0_631, %c0_632] : memref<16x1x8xf32, #tpu.memory_space<vmem>>, vector<1x1x8xf32>
    %851 = vector.shape_cast %850 : vector<1x1x8xf32> to vector<1x8xf32>
    %cst_633 = arith.constant dense<0.000000e+00> : vector<1x256xf32>
    %852 = tpu.matmul %851, %849, %cst_633 {dimension_numbers = #tpu.dot_dimension_numbers<[1], [0], [0], [1], [0, 0, 1, 1], [], []>} : vector<1x8xf32>, vector<8x256xf32>, vector<1x256xf32> -> vector<1x256xf32>
    %853 = arith.addf %847, %852 : vector<1x256xf32>
    %c0_634 = arith.constant 0 : index
    %c0_635 = arith.constant 0 : index
    %c129_636 = arith.constant 129 : index
    %854 = vector.load %arg11[%c0_634, %c0_635, %c129_636] : memref<4x8x512xf32, #tpu.memory_space<vmem>>, vector<1x8x256xf32>
    %855 = vector.shape_cast %854 : vector<1x8x256xf32> to vector<8x256xf32>
    %856 = arith.mulf %855, %296 : vector<8x256xf32>
    %c5_637 = arith.constant 5 : index
    %c0_638 = arith.constant 0 : index
    %c0_639 = arith.constant 0 : index
    %857 = vector.load %arg6[%c5_637, %c0_638, %c0_639] : memref<16x1x8xf32, #tpu.memory_space<vmem>>, vector<1x1x8xf32>
    %858 = vector.shape_cast %857 : vector<1x1x8xf32> to vector<1x8xf32>
    %cst_640 = arith.constant dense<0.000000e+00> : vector<1x256xf32>
    %859 = tpu.matmul %858, %856, %cst_640 {dimension_numbers = #tpu.dot_dimension_numbers<[1], [0], [0], [1], [0, 0, 1, 1], [], []>} : vector<1x8xf32>, vector<8x256xf32>, vector<1x256xf32> -> vector<1x256xf32>
    %860 = arith.addf %853, %859 : vector<1x256xf32>
    %c3_641 = arith.constant 3 : index
    %c0_642 = arith.constant 0 : index
    %c128_643 = arith.constant 128 : index
    %861 = vector.load %arg11[%c3_641, %c0_642, %c128_643] : memref<4x8x512xf32, #tpu.memory_space<vmem>>, vector<1x8x256xf32>
    %862 = vector.shape_cast %861 : vector<1x8x256xf32> to vector<8x256xf32>
    %c6_644 = arith.constant 6 : index
    %c0_645 = arith.constant 0 : index
    %c0_646 = arith.constant 0 : index
    %863 = vector.load %arg6[%c6_644, %c0_645, %c0_646] : memref<16x1x8xf32, #tpu.memory_space<vmem>>, vector<1x1x8xf32>
    %864 = vector.shape_cast %863 : vector<1x1x8xf32> to vector<1x8xf32>
    %cst_647 = arith.constant dense<0.000000e+00> : vector<1x256xf32>
    %865 = tpu.matmul %864, %862, %cst_647 {dimension_numbers = #tpu.dot_dimension_numbers<[1], [0], [0], [1], [0, 0, 1, 1], [], []>} : vector<1x8xf32>, vector<8x256xf32>, vector<1x256xf32> -> vector<1x256xf32>
    %866 = arith.addf %860, %865 : vector<1x256xf32>
    %c2_648 = arith.constant 2 : index
    %c0_649 = arith.constant 0 : index
    %c129_650 = arith.constant 129 : index
    %867 = vector.load %arg11[%c2_648, %c0_649, %c129_650] : memref<4x8x512xf32, #tpu.memory_space<vmem>>, vector<1x8x256xf32>
    %868 = vector.shape_cast %867 : vector<1x8x256xf32> to vector<8x256xf32>
    %869 = arith.mulf %868, %296 : vector<8x256xf32>
    %c7_651 = arith.constant 7 : index
    %c0_652 = arith.constant 0 : index
    %c0_653 = arith.constant 0 : index
    %870 = vector.load %arg6[%c7_651, %c0_652, %c0_653] : memref<16x1x8xf32, #tpu.memory_space<vmem>>, vector<1x1x8xf32>
    %871 = vector.shape_cast %870 : vector<1x1x8xf32> to vector<1x8xf32>
    %cst_654 = arith.constant dense<0.000000e+00> : vector<1x256xf32>
    %872 = tpu.matmul %871, %869, %cst_654 {dimension_numbers = #tpu.dot_dimension_numbers<[1], [0], [0], [1], [0, 0, 1, 1], [], []>} : vector<1x8xf32>, vector<8x256xf32>, vector<1x256xf32> -> vector<1x256xf32>
    %873 = arith.addf %866, %872 : vector<1x256xf32>
    %874 = vector.broadcast %418 : vector<1x1xf32> to vector<1x256xf32>
    %875 = arith.addf %873, %874 : vector<1x256xf32>
    %cst_655 = arith.constant 0.000000e+00 : f32
    %876 = vector.broadcast %cst_655 : f32 to vector<1x256xf32>
    %877 = arith.maximumf %875, %876 : vector<1x256xf32>
    %c0_656 = arith.constant 0 : index
    %c11_657 = arith.constant 11 : index
    %c0_658 = arith.constant 0 : index
    %878 = vector.load %arg8[%c0_656, %c11_657, %c0_658] : memref<1x16x256xf32, #tpu.memory_space<vmem>>, vector<1x1x256xf32>
    %879 = vector.shape_cast %878 : vector<1x1x256xf32> to vector<1x256xf32>
    %880 = vector.shape_cast %877 : vector<1x256xf32> to vector<1x1x256xf32>
    tpu.vector_store %arg8[%c0_656, %c11_657, %c0_658], %880 {strides = array<i32>} : memref<1x16x256xf32, #tpu.memory_space<vmem>>, vector<1x1x256xf32>,
    %cst_659 = arith.constant 0.000000e+00 : f32
    %881 = vector.broadcast %cst_659 : f32 to vector<1x256xf32>
    %c2_660 = arith.constant 2 : index
    %c0_661 = arith.constant 0 : index
    %c128_662 = arith.constant 128 : index
    %882 = vector.load %arg11[%c2_660, %c0_661, %c128_662] : memref<4x8x512xf32, #tpu.memory_space<vmem>>, vector<1x8x256xf32>
    %883 = vector.shape_cast %882 : vector<1x8x256xf32> to vector<8x256xf32>
    %c8_663 = arith.constant 8 : index
    %c0_664 = arith.constant 0 : index
    %c0_665 = arith.constant 0 : index
    %884 = vector.load %arg6[%c8_663, %c0_664, %c0_665] : memref<16x1x8xf32, #tpu.memory_space<vmem>>, vector<1x1x8xf32>
    %885 = vector.shape_cast %884 : vector<1x1x8xf32> to vector<1x8xf32>
    %cst_666 = arith.constant dense<0.000000e+00> : vector<1x256xf32>
    %886 = tpu.matmul %885, %883, %cst_666 {dimension_numbers = #tpu.dot_dimension_numbers<[1], [0], [0], [1], [0, 0, 1, 1], [], []>} : vector<1x8xf32>, vector<8x256xf32>, vector<1x256xf32> -> vector<1x256xf32>
    %887 = arith.addf %881, %886 : vector<1x256xf32>
    %c3_667 = arith.constant 3 : index
    %c0_668 = arith.constant 0 : index
    %c128_669 = arith.constant 128 : index
    %888 = vector.load %arg11[%c3_667, %c0_668, %c128_669] : memref<4x8x512xf32, #tpu.memory_space<vmem>>, vector<1x8x256xf32>
    %889 = vector.shape_cast %888 : vector<1x8x256xf32> to vector<8x256xf32>
    %c9_670 = arith.constant 9 : index
    %c0_671 = arith.constant 0 : index
    %c0_672 = arith.constant 0 : index
    %890 = vector.load %arg6[%c9_670, %c0_671, %c0_672] : memref<16x1x8xf32, #tpu.memory_space<vmem>>, vector<1x1x8xf32>
    %891 = vector.shape_cast %890 : vector<1x1x8xf32> to vector<1x8xf32>
    %cst_673 = arith.constant dense<0.000000e+00> : vector<1x256xf32>
    %892 = tpu.matmul %891, %889, %cst_673 {dimension_numbers = #tpu.dot_dimension_numbers<[1], [0], [0], [1], [0, 0, 1, 1], [], []>} : vector<1x8xf32>, vector<8x256xf32>, vector<1x256xf32> -> vector<1x256xf32>
    %893 = arith.addf %887, %892 : vector<1x256xf32>
    %c0_674 = arith.constant 0 : index
    %c0_675 = arith.constant 0 : index
    %c144_676 = arith.constant 144 : index
    %894 = vector.load %arg11[%c0_674, %c0_675, %c144_676] : memref<4x8x512xf32, #tpu.memory_space<vmem>>, vector<1x8x256xf32>
    %895 = vector.shape_cast %894 : vector<1x8x256xf32> to vector<8x256xf32>
    %c10_677 = arith.constant 10 : index
    %c0_678 = arith.constant 0 : index
    %c0_679 = arith.constant 0 : index
    %896 = vector.load %arg6[%c10_677, %c0_678, %c0_679] : memref<16x1x8xf32, #tpu.memory_space<vmem>>, vector<1x1x8xf32>
    %897 = vector.shape_cast %896 : vector<1x1x8xf32> to vector<1x8xf32>
    %cst_680 = arith.constant dense<0.000000e+00> : vector<1x256xf32>
    %898 = tpu.matmul %897, %895, %cst_680 {dimension_numbers = #tpu.dot_dimension_numbers<[1], [0], [0], [1], [0, 0, 1, 1], [], []>} : vector<1x8xf32>, vector<8x256xf32>, vector<1x256xf32> -> vector<1x256xf32>
    %899 = arith.addf %893, %898 : vector<1x256xf32>
    %c1_681 = arith.constant 1 : index
    %c0_682 = arith.constant 0 : index
    %c144_683 = arith.constant 144 : index
    %900 = vector.load %arg11[%c1_681, %c0_682, %c144_683] : memref<4x8x512xf32, #tpu.memory_space<vmem>>, vector<1x8x256xf32>
    %901 = vector.shape_cast %900 : vector<1x8x256xf32> to vector<8x256xf32>
    %c11_684 = arith.constant 11 : index
    %c0_685 = arith.constant 0 : index
    %c0_686 = arith.constant 0 : index
    %902 = vector.load %arg6[%c11_684, %c0_685, %c0_686] : memref<16x1x8xf32, #tpu.memory_space<vmem>>, vector<1x1x8xf32>
    %903 = vector.shape_cast %902 : vector<1x1x8xf32> to vector<1x8xf32>
    %cst_687 = arith.constant dense<0.000000e+00> : vector<1x256xf32>
    %904 = tpu.matmul %903, %901, %cst_687 {dimension_numbers = #tpu.dot_dimension_numbers<[1], [0], [0], [1], [0, 0, 1, 1], [], []>} : vector<1x8xf32>, vector<8x256xf32>, vector<1x256xf32> -> vector<1x256xf32>
    %905 = arith.addf %899, %904 : vector<1x256xf32>
    %906 = vector.broadcast %418 : vector<1x1xf32> to vector<1x256xf32>
    %907 = arith.addf %905, %906 : vector<1x256xf32>
    %cst_688 = arith.constant 0.000000e+00 : f32
    %908 = vector.broadcast %cst_688 : f32 to vector<1x256xf32>
    %909 = arith.maximumf %907, %908 : vector<1x256xf32>
    %c0_689 = arith.constant 0 : index
    %c14_690 = arith.constant 14 : index
    %c0_691 = arith.constant 0 : index
    %910 = vector.load %arg8[%c0_689, %c14_690, %c0_691] : memref<1x16x256xf32, #tpu.memory_space<vmem>>, vector<1x1x256xf32>
    %911 = vector.shape_cast %910 : vector<1x1x256xf32> to vector<1x256xf32>
    %912 = vector.shape_cast %909 : vector<1x256xf32> to vector<1x1x256xf32>
    tpu.vector_store %arg8[%c0_689, %c14_690, %c0_691], %912 {strides = array<i32>} : memref<1x16x256xf32, #tpu.memory_space<vmem>>, vector<1x1x256xf32>,
    %cst_692 = arith.constant 0.000000e+00 : f32
    %913 = vector.broadcast %cst_692 : f32 to vector<1x256xf32>
    %c3_693 = arith.constant 3 : index
    %c0_694 = arith.constant 0 : index
    %c128_695 = arith.constant 128 : index
    %914 = vector.load %arg11[%c3_693, %c0_694, %c128_695] : memref<4x8x512xf32, #tpu.memory_space<vmem>>, vector<1x8x256xf32>
    %915 = vector.shape_cast %914 : vector<1x8x256xf32> to vector<8x256xf32>
    %c12_696 = arith.constant 12 : index
    %c0_697 = arith.constant 0 : index
    %c0_698 = arith.constant 0 : index
    %916 = vector.load %arg6[%c12_696, %c0_697, %c0_698] : memref<16x1x8xf32, #tpu.memory_space<vmem>>, vector<1x1x8xf32>
    %917 = vector.shape_cast %916 : vector<1x1x8xf32> to vector<1x8xf32>
    %cst_699 = arith.constant dense<0.000000e+00> : vector<1x256xf32>
    %918 = tpu.matmul %917, %915, %cst_699 {dimension_numbers = #tpu.dot_dimension_numbers<[1], [0], [0], [1], [0, 0, 1, 1], [], []>} : vector<1x8xf32>, vector<8x256xf32>, vector<1x256xf32> -> vector<1x256xf32>
    %919 = arith.addf %913, %918 : vector<1x256xf32>
    %c2_700 = arith.constant 2 : index
    %c0_701 = arith.constant 0 : index
    %c129_702 = arith.constant 129 : index
    %920 = vector.load %arg11[%c2_700, %c0_701, %c129_702] : memref<4x8x512xf32, #tpu.memory_space<vmem>>, vector<1x8x256xf32>
    %921 = vector.shape_cast %920 : vector<1x8x256xf32> to vector<8x256xf32>
    %922 = arith.mulf %921, %296 : vector<8x256xf32>
    %c13_703 = arith.constant 13 : index
    %c0_704 = arith.constant 0 : index
    %c0_705 = arith.constant 0 : index
    %923 = vector.load %arg6[%c13_703, %c0_704, %c0_705] : memref<16x1x8xf32, #tpu.memory_space<vmem>>, vector<1x1x8xf32>
    %924 = vector.shape_cast %923 : vector<1x1x8xf32> to vector<1x8xf32>
    %cst_706 = arith.constant dense<0.000000e+00> : vector<1x256xf32>
    %925 = tpu.matmul %924, %922, %cst_706 {dimension_numbers = #tpu.dot_dimension_numbers<[1], [0], [0], [1], [0, 0, 1, 1], [], []>} : vector<1x8xf32>, vector<8x256xf32>, vector<1x256xf32> -> vector<1x256xf32>
    %926 = arith.addf %919, %925 : vector<1x256xf32>
    %c1_707 = arith.constant 1 : index
    %c0_708 = arith.constant 0 : index
    %c144_709 = arith.constant 144 : index
    %927 = vector.load %arg11[%c1_707, %c0_708, %c144_709] : memref<4x8x512xf32, #tpu.memory_space<vmem>>, vector<1x8x256xf32>
    %928 = vector.shape_cast %927 : vector<1x8x256xf32> to vector<8x256xf32>
    %c14_710 = arith.constant 14 : index
    %c0_711 = arith.constant 0 : index
    %c0_712 = arith.constant 0 : index
    %929 = vector.load %arg6[%c14_710, %c0_711, %c0_712] : memref<16x1x8xf32, #tpu.memory_space<vmem>>, vector<1x1x8xf32>
    %930 = vector.shape_cast %929 : vector<1x1x8xf32> to vector<1x8xf32>
    %cst_713 = arith.constant dense<0.000000e+00> : vector<1x256xf32>
    %931 = tpu.matmul %930, %928, %cst_713 {dimension_numbers = #tpu.dot_dimension_numbers<[1], [0], [0], [1], [0, 0, 1, 1], [], []>} : vector<1x8xf32>, vector<8x256xf32>, vector<1x256xf32> -> vector<1x256xf32>
    %932 = arith.addf %926, %931 : vector<1x256xf32>
    %c0_714 = arith.constant 0 : index
    %c0_715 = arith.constant 0 : index
    %c145_716 = arith.constant 145 : index
    %933 = vector.load %arg11[%c0_714, %c0_715, %c145_716] : memref<4x8x512xf32, #tpu.memory_space<vmem>>, vector<1x8x256xf32>
    %934 = vector.shape_cast %933 : vector<1x8x256xf32> to vector<8x256xf32>
    %935 = arith.mulf %934, %296 : vector<8x256xf32>
    %c15_717 = arith.constant 15 : index
    %c0_718 = arith.constant 0 : index
    %c0_719 = arith.constant 0 : index
    %936 = vector.load %arg6[%c15_717, %c0_718, %c0_719] : memref<16x1x8xf32, #tpu.memory_space<vmem>>, vector<1x1x8xf32>
    %937 = vector.shape_cast %936 : vector<1x1x8xf32> to vector<1x8xf32>
    %cst_720 = arith.constant dense<0.000000e+00> : vector<1x256xf32>
    %938 = tpu.matmul %937, %935, %cst_720 {dimension_numbers = #tpu.dot_dimension_numbers<[1], [0], [0], [1], [0, 0, 1, 1], [], []>} : vector<1x8xf32>, vector<8x256xf32>, vector<1x256xf32> -> vector<1x256xf32>
    %939 = arith.addf %932, %938 : vector<1x256xf32>
    %940 = vector.broadcast %418 : vector<1x1xf32> to vector<1x256xf32>
    %941 = arith.addf %939, %940 : vector<1x256xf32>
    %cst_721 = arith.constant 0.000000e+00 : f32
    %942 = vector.broadcast %cst_721 : f32 to vector<1x256xf32>
    %943 = arith.maximumf %941, %942 : vector<1x256xf32>
    %c0_722 = arith.constant 0 : index
    %c15_723 = arith.constant 15 : index
    %c0_724 = arith.constant 0 : index
    %944 = vector.load %arg8[%c0_722, %c15_723, %c0_724] : memref<1x16x256xf32, #tpu.memory_space<vmem>>, vector<1x1x256xf32>
    %945 = vector.shape_cast %944 : vector<1x1x256xf32> to vector<1x256xf32>
    %946 = vector.shape_cast %943 : vector<1x256xf32> to vector<1x1x256xf32>
    tpu.vector_store %arg8[%c0_722, %c15_723, %c0_724], %946 {strides = array<i32>} : memref<1x16x256xf32, #tpu.memory_space<vmem>>, vector<1x1x256xf32>,
    return
  }
  func.func @transform_0(%arg0: i32) -> (i32, i32, i32) {
    %c0_i32 = arith.constant 0 : i32
    %c0_i32_0 = arith.constant 0 : i32
    %c0_i32_1 = arith.constant 0 : i32
    return %arg0, %c0_i32, %c0_i32_0 : i32, i32, i32
  }
  func.func @transform_1(%arg0: i32) -> (i32, i32) {
    %c0_i32 = arith.constant 0 : i32
    %c0_i32_0 = arith.constant 0 : i32
    %c0_i32_1 = arith.constant 0 : i32
    return %c0_i32, %c0_i32_0 : i32, i32
  }
  func.func @transform_2(%arg0: i32) -> (i32, i32) {
    %c0_i32 = arith.constant 0 : i32
    %c0_i32_0 = arith.constant 0 : i32
    %c0_i32_1 = arith.constant 0 : i32
    return %c0_i32, %c0_i32_0 : i32, i32
  }
  func.func @transform_3(%arg0: i32) -> (i32, i32, i32) {
    %c0_i32 = arith.constant 0 : i32
    %c0_i32_0 = arith.constant 0 : i32
    %c0_i32_1 = arith.constant 0 : i32
    %c0_i32_2 = arith.constant 0 : i32
    return %c0_i32, %c0_i32_0, %c0_i32_1 : i32, i32, i32
  }
  func.func @transform_4(%arg0: i32) -> (i32, i32) {
    %c0_i32 = arith.constant 0 : i32
    %c0_i32_0 = arith.constant 0 : i32
    %c0_i32_1 = arith.constant 0 : i32
    return %c0_i32, %c0_i32_0 : i32, i32
  }
  func.func @transform_5(%arg0: i32) -> (i32, i32, i32) {
    %c0_i32 = arith.constant 0 : i32
    %c0_i32_0 = arith.constant 0 : i32
    %c0_i32_1 = arith.constant 0 : i32
    %c0_i32_2 = arith.constant 0 : i32
    return %c0_i32, %c0_i32_0, %c0_i32_1 : i32, i32, i32
  }
  func.func @transform_6(%arg0: i32) -> (i32, i32) {
    %c0_i32 = arith.constant 0 : i32
    %c0_i32_0 = arith.constant 0 : i32
    %c0_i32_1 = arith.constant 0 : i32
    return %c0_i32, %c0_i32_0 : i32, i32
  }
  func.func @transform_7(%arg0: i32) -> (i32, i32, i32) {
    %c0_i32 = arith.constant 0 : i32
    %c0_i32_0 = arith.constant 0 : i32
    %c0_i32_1 = arith.constant 0 : i32
    return %arg0, %c0_i32, %c0_i32_0 : i32, i32, i32
  }
}

</mosaic_0001>

<llo_original>
// kernel: decoder_forward.1
$region0: #{decoder_forward.1}
  #allocation0 [shape = 'u32[]', space=smem, size = 0x4, offset = 0x4, fixed_abs, tag = 'smem constant byte address 0x4 - core index']
  #allocation1 [shape = 'u32[72,128]{1,0:T(1,128)}', space=vmem, size = 0x9000, scoped, tag = 'internal scratch']
  #allocation2 [shape = 'f32[1,512]{1,0:T(1,128)}', space=vmem, size = 0x800, scoped, tag = 'scratch operand']
  #allocation3 [shape = 'f32[8,512]{1,0:T(8,128)}', space=vmem, size = 0x4000, scoped, tag = 'scratch operand']
  #allocation4 [shape = 'f32[4,8,512]{2,1,0:T(8,128)}', space=vmem, size = 0x10000, scoped, tag = 'scratch operand']
  #allocation5 [shape = 'f32[1,1]{1,0:T(1,128)S(1)}', space=vmem, size = 0x200, scoped, tag = 'scoped memory for decoder_forward.1']
  %s0 = inlined_call_operand.vmem [shape: f32[2,1,256], index: 0, kind: input, shape index: {}]
  %s1 = inlined_call_operand.vmem [shape: f32[8,25], index: 1, kind: input, shape index: {}]
  %s2 = inlined_call_operand.vmem [shape: f32[8,1], index: 2, kind: input, shape index: {}]
  %s3 = inlined_call_operand.vmem [shape: f32[16,8,8], index: 3, kind: input, shape index: {}]
  %s4 = inlined_call_operand.vmem [shape: f32[8,1], index: 4, kind: input, shape index: {}]
  %s5 = inlined_call_operand.vmem [shape: f32[16,1,8], index: 5, kind: input, shape index: {}]
  %s6 = inlined_call_operand.<no memory space> [shape: f32[1,1], index: 6, kind: input, shape index: {}]
  %s7 = inlined_call_operand.vmem [shape: f32[2,16,256], index: 7, kind: output, shape index: {}]
  %s8 = sld [smem:[#allocation0]]
  $region61: #{decoder_forward.1} parent=0
    _
  %s10 = ssub.s32 1, %s8
  %s11 = scalar_select 0, %s10, %s8
  %v12 = vstv %s6
  %13 = vst [vmem:[#allocation5] sm:$0x1] %v12
  loop: start=0, step=1, limit=4
  $region2: #{decoder_forward.1} parent=0 // loop_pre_header
    _
  $region3: #{decoder_forward.1} parent=0 // loop_header
    %s15 = sphi 0, %s19
    %p16 = scmp.ge.s32.totalorder %s15, 4
    %s25 = sphi 0, %s27
    %s28 = sphi 0, %s25
    %s29 = sphi 0, %s28
    %s45 = sphi 0, %s29
    %s49 = sphi 0, %s49
    %s51 = sphi 0, %s49
    %s52 = sphi 0, %s51
    %s66 = sphi 0, %s52
    %s70 = sphi 0, %s70
    %s72 = sphi 0, %s70
    %s73 = sphi 0, %s72
    %s87 = sphi 0, %s73
    %s91 = sphi 0, %s91
    %s93 = sphi 0, %s91
    %s94 = sphi 0, %s93
    %s108 = sphi 0, %s94
    %s112 = sphi 0, %s112
    %s114 = sphi 0, %s112
    %s115 = sphi 0, %s114
    %s129 = sphi 0, %s115
    %s133 = sphi 0, %s133
    %s135 = sphi 0, %s133
    %s136 = sphi 0, %s135
    %s150 = sphi 0, %s136
    %s154 = sphi 0, %s154
    %s156 = sphi 0, %s154
    %s157 = sphi 0, %s156
    %s171 = sphi 0, %s157
    %s177 = sphi 0, %s179
    %s180 = sphi 0, %s177
    %s181 = sphi 0, %s180
    %s197 = sphi 0, %s181
  $region4: #{decoder_forward.1} parent=0 // loop_header_branch
    %18 = sbr.rel (%p16) target = $region8
  $region5: #{decoder_forward.1} parent=0 // loop_body
    %s20 = ssub.s32 %s15, 1
    %s21 = ssub.s32 %s15, 2
    %s22 = sadd.s32 %s15, 1
    %s23 = ssub.s32 %s15, %s22
    %p24 = scmp.eq.s32.totalorder %s23, 0
    %s26 = sadd.s32 %s25, 1
    %s27 = scalar_select %p24, %s25, %s26
    %p30 = pneg %p24
    %p31 = scmp.eq.s32.totalorder %s15, 1
    %p32 = por %p30, %p31
    %p33 = scmp.ne.s32.totalorder %s25, %s28
    %p34 = scmp.eq.s32.totalorder %s15, 0
    %p35 = por %p33, %p34
    %p36 = scmp.ne.s32.totalorder %s25, %s28
    %p37 = scmp.eq.s32.totalorder %s20, 1
    %p38 = por %p36, %p37
    %p39 = scmp.ne.s32.totalorder %s28, %s29
    %p40 = scmp.eq.s32.totalorder %s20, 0
    %p41 = por %p39, %p40
    %p42 = scmp.ne.s32.totalorder %s28, %s29
    %p43 = scmp.eq.s32.totalorder %s21, 1
    %p44 = por %p42, %p43
    %p46 = scmp.ne.s32.totalorder %s29, %s45
    %p47 = scmp.eq.s32.totalorder %s21, 0
    %p48 = por %p46, %p47
    %s50 = sadd.s32 %s49, 1
    %p53 = scmp.eq.s32.totalorder %s15, 1
    %p54 = scmp.ne.s32.totalorder %s49, %s51
    %p55 = scmp.eq.s32.totalorder %s15, 0
    %p56 = por %p54, %p55
    %p57 = scmp.ne.s32.totalorder %s49, %s51
    %p58 = scmp.eq.s32.totalorder %s20, 1
    %p59 = por %p57, %p58
    %p60 = scmp.ne.s32.totalorder %s51, %s52
    %p61 = scmp.eq.s32.totalorder %s20, 0
    %p62 = por %p60, %p61
    %p63 = scmp.ne.s32.totalorder %s51, %s52
    %p64 = scmp.eq.s32.totalorder %s21, 1
    %p65 = por %p63, %p64
    %p67 = scmp.ne.s32.totalorder %s52, %s66
    %p68 = scmp.eq.s32.totalorder %s21, 0
    %p69 = por %p67, %p68
    %s71 = sadd.s32 %s70, 1
    %p74 = scmp.eq.s32.totalorder %s15, 1
    %p75 = scmp.ne.s32.totalorder %s70, %s72
    %p76 = scmp.eq.s32.totalorder %s15, 0
    %p77 = por %p75, %p76
    %p78 = scmp.ne.s32.totalorder %s70, %s72
    %p79 = scmp.eq.s32.totalorder %s20, 1
    %p80 = por %p78, %p79
    %p81 = scmp.ne.s32.totalorder %s72, %s73
    %p82 = scmp.eq.s32.totalorder %s20, 0
    %p83 = por %p81, %p82
    %p84 = scmp.ne.s32.totalorder %s72, %s73
    %p85 = scmp.eq.s32.totalorder %s21, 1
    %p86 = por %p84, %p85
    %p88 = scmp.ne.s32.totalorder %s73, %s87
    %p89 = scmp.eq.s32.totalorder %s21, 0
    %p90 = por %p88, %p89
    %s92 = sadd.s32 %s91, 1
    %p95 = scmp.eq.s32.totalorder %s15, 1
    %p96 = scmp.ne.s32.totalorder %s91, %s93
    %p97 = scmp.eq.s32.totalorder %s15, 0
    %p98 = por %p96, %p97
    %p99 = scmp.ne.s32.totalorder %s91, %s93
    %p100 = scmp.eq.s32.totalorder %s20, 1
    %p101 = por %p99, %p100
    %p102 = scmp.ne.s32.totalorder %s93, %s94
    %p103 = scmp.eq.s32.totalorder %s20, 0
    %p104 = por %p102, %p103
    %p105 = scmp.ne.s32.totalorder %s93, %s94
    %p106 = scmp.eq.s32.totalorder %s21, 1
    %p107 = por %p105, %p106
    %p109 = scmp.ne.s32.totalorder %s94, %s108
    %p110 = scmp.eq.s32.totalorder %s21, 0
    %p111 = por %p109, %p110
    %s113 = sadd.s32 %s112, 1
    %p116 = scmp.eq.s32.totalorder %s15, 1
    %p117 = scmp.ne.s32.totalorder %s112, %s114
    %p118 = scmp.eq.s32.totalorder %s15, 0
    %p119 = por %p117, %p118
    %p120 = scmp.ne.s32.totalorder %s112, %s114
    %p121 = scmp.eq.s32.totalorder %s20, 1
    %p122 = por %p120, %p121
    %p123 = scmp.ne.s32.totalorder %s114, %s115
    %p124 = scmp.eq.s32.totalorder %s20, 0
    %p125 = por %p123, %p124
    %p126 = scmp.ne.s32.totalorder %s114, %s115
    %p127 = scmp.eq.s32.totalorder %s21, 1
    %p128 = por %p126, %p127
    %p130 = scmp.ne.s32.totalorder %s115, %s129
    %p131 = scmp.eq.s32.totalorder %s21, 0
    %p132 = por %p130, %p131
    %s134 = sadd.s32 %s133, 1
    %p137 = scmp.eq.s32.totalorder %s15, 1
    %p138 = scmp.ne.s32.totalorder %s133, %s135
    %p139 = scmp.eq.s32.totalorder %s15, 0
    %p140 = por %p138, %p139
    %p141 = scmp.ne.s32.totalorder %s133, %s135
    %p142 = scmp.eq.s32.totalorder %s20, 1
    %p143 = por %p141, %p142
    %p144 = scmp.ne.s32.totalorder %s135, %s136
    %p145 = scmp.eq.s32.totalorder %s20, 0
    %p146 = por %p144, %p145
    %p147 = scmp.ne.s32.totalorder %s135, %s136
    %p148 = scmp.eq.s32.totalorder %s21, 1
    %p149 = por %p147, %p148
    %p151 = scmp.ne.s32.totalorder %s136, %s150
    %p152 = scmp.eq.s32.totalorder %s21, 0
    %p153 = por %p151, %p152
    %s155 = sadd.s32 %s154, 1
    %p158 = scmp.eq.s32.totalorder %s15, 1
    %p159 = scmp.ne.s32.totalorder %s154, %s156
    %p160 = scmp.eq.s32.totalorder %s15, 0
    %p161 = por %p159, %p160
    %p162 = scmp.ne.s32.totalorder %s154, %s156
    %p163 = scmp.eq.s32.totalorder %s20, 1
    %p164 = por %p162, %p163
    %p165 = scmp.ne.s32.totalorder %s156, %s157
    %p166 = scmp.eq.s32.totalorder %s20, 0
    %p167 = por %p165, %p166
    %p168 = scmp.ne.s32.totalorder %s156, %s157
    %p169 = scmp.eq.s32.totalorder %s21, 1
    %p170 = por %p168, %p169
    %p172 = scmp.ne.s32.totalorder %s157, %s171
    %p173 = scmp.eq.s32.totalorder %s21, 0
    %p174 = por %p172, %p173
    %s175 = ssub.s32 %s15, %s22
    %p176 = scmp.eq.s32.totalorder %s175, 0
    %s178 = sadd.s32 %s177, 1
    %s179 = scalar_select %p176, %s177, %s178
    %p182 = pneg %p176
    %p183 = scmp.eq.s32.totalorder %s15, 1
    %p184 = por %p182, %p183
    %p185 = scmp.ne.s32.totalorder %s177, %s180
    %p186 = scmp.eq.s32.totalorder %s15, 0
    %p187 = por %p185, %p186
    %p188 = scmp.ne.s32.totalorder %s177, %s180
    %p189 = scmp.eq.s32.totalorder %s20, 1
    %p190 = por %p188, %p189
    %p191 = scmp.ne.s32.totalorder %s180, %s181
    %p192 = scmp.eq.s32.totalorder %s20, 0
    %p193 = por %p191, %p192
    %p194 = scmp.ne.s32.totalorder %s180, %s181
    %p195 = scmp.eq.s32.totalorder %s21, 1
    %p196 = por %p194, %p195
    %p198 = scmp.ne.s32.totalorder %s181, %s197
    %p199 = scmp.eq.s32.totalorder %s21, 0
    %p200 = por %p198, %p199
    %p201 = scmp.le.s32.totalorder 1, %s15
    %p202 = scmp.lt.s32.totalorder %s15, 3
    %p203 = pnand %p201, %p202
    %p204 = pneg %p203
    // Predicated region
    $region9: #{decoder_forward.1} parent=5 // pred_check
      _
    $region10: #{decoder_forward.1} parent=5 // pred_check_branch
      %206 = sbr.rel (%p203) target = $region12
    $region11: #{decoder_forward.1} parent=5 // pred_region
      %s207 = ssub.s32 %s15, 1
      // Predicated region
      $region13: #{decoder_forward.1} parent=11 // pred_check
        %p208 = pneg %p62
      $region14: #{decoder_forward.1} parent=11 // pred_check_branch
        %210 = sbr.rel (%p208) target = $region16
      $region15: #{decoder_forward.1} parent=11 // pred_region
        _
      $region16: #{decoder_forward.1} parent=11 // pred_fallthru
        _
      // Predicated region
      $region17: #{decoder_forward.1} parent=11 // pred_check
        %p211 = pneg %p83
      $region18: #{decoder_forward.1} parent=11 // pred_check_branch
        %213 = sbr.rel (%p211) target = $region20
      $region19: #{decoder_forward.1} parent=11 // pred_region
        _
      $region20: #{decoder_forward.1} parent=11 // pred_fallthru
        _
      // Predicated region
      $region21: #{decoder_forward.1} parent=11 // pred_check
        %p214 = pneg %p104
      $region22: #{decoder_forward.1} parent=11 // pred_check_branch
        %216 = sbr.rel (%p214) target = $region24
      $region23: #{decoder_forward.1} parent=11 // pred_region
        _
      $region24: #{decoder_forward.1} parent=11 // pred_fallthru
        _
      // Predicated region
      $region25: #{decoder_forward.1} parent=11 // pred_check
        %p217 = pneg %p125
      $region26: #{decoder_forward.1} parent=11 // pred_check_branch
        %219 = sbr.rel (%p217) target = $region28
      $region27: #{decoder_forward.1} parent=11 // pred_region
        _
      $region28: #{decoder_forward.1} parent=11 // pred_fallthru
        _
      // Predicated region
      $region29: #{decoder_forward.1} parent=11 // pred_check
        %p220 = pneg %p146
      $region30: #{decoder_forward.1} parent=11 // pred_check_branch
        %222 = sbr.rel (%p220) target = $region32
      $region31: #{decoder_forward.1} parent=11 // pred_region
        _
      $region32: #{decoder_forward.1} parent=11 // pred_fallthru
        _
      // Predicated region
      $region33: #{decoder_forward.1} parent=11 // pred_check
        %p223 = pneg %p167
      $region34: #{decoder_forward.1} parent=11 // pred_check_branch
        %225 = sbr.rel (%p223) target = $region36
      $region35: #{decoder_forward.1} parent=11 // pred_region
        _
      $region36: #{decoder_forward.1} parent=11 // pred_fallthru
        _
    $region12: #{decoder_forward.1} parent=5 // pred_fallthru
      _
    %p226 = scmp.lt.s32.totalorder %s15, 2
    // Predicated region
    $region37: #{decoder_forward.1} parent=5 // pred_check
      %p227 = pneg %p226
    $region38: #{decoder_forward.1} parent=5 // pred_check_branch
      %229 = sbr.rel (%p227) target = $region40
    $region39: #{decoder_forward.1} parent=5 // pred_region
      // Predicated region
      $region41: #{decoder_forward.1} parent=39 // pred_check
        %p230 = pneg %p35
      $region42: #{decoder_forward.1} parent=39 // pred_check_branch
        %232 = sbr.rel (%p230) target = $region44
      $region43: #{decoder_forward.1} parent=39 // pred_region
        %p233 = scmp.lt.s32.totalorder %s15, 1
        %s234 = scalar_select %p233, %s15, 1
        %s235 = smul.addr %s234, 2
        %s236 = scalar_lea.vmem %s0, %s235
      $region44: #{decoder_forward.1} parent=39 // pred_fallthru
        _
    $region40: #{decoder_forward.1} parent=5 // pred_fallthru
      _
    %p237 = scmp.le.s32.totalorder 1, %s15
    %p238 = scmp.lt.s32.totalorder %s15, 3
    %p239 = pnand %p237, %p238
    %p240 = pneg %p239
    // Predicated region
    $region45: #{decoder_forward.1} parent=5 // pred_check
      _
    $region46: #{decoder_forward.1} parent=5 // pred_check_branch
      %242 = sbr.rel (%p239) target = $region48
    $region47: #{decoder_forward.1} parent=5 // pred_region
      %s243 = ssub.s32 %s15, 1
      %p244 = scmp.lt.s32.totalorder %s20, 1
      %s245 = scalar_select %p244, %s20, 1
      %s246 = smul.addr %s245, 2
      %s247 = scalar_lea.vmem %s0, %s246
      %p248 = pneg %p41
      %p249 = pneg %p38
      %p250 = pneg %p62
      %p251 = pneg %p59
      %p252 = pneg %p83
      %p253 = pneg %p80
      %p254 = pneg %p104
      %p255 = pneg %p101
      %p256 = pneg %p125
      %p257 = pneg %p122
      %p258 = pneg %p146
      %p259 = pneg %p143
      %p260 = pneg %p167
      %p261 = pneg %p164
      %p262 = pneg %p193
      %p263 = pneg %p190
      %p264 = scmp.lt.s32.totalorder %s20, 1
      %s265 = scalar_select %p264, %s20, 1
      %s266 = smul.addr %s265, 4
      %s267 = smul.addr %s266, 8
      %s268 = scalar_lea.vmem %s7, %s267
      %p269 = scmp.lt.s32.totalorder %s20, 1
      %s270 = scalar_select %p269, %s20, 1
      %s271 = smul.addr %s270, 2
      %s272 = scalar_lea.vmem %s0, %s271
      %p273 = scmp.lt.s32.totalorder %s20, 1
      %s274 = scalar_select %p273, %s20, 1
      %s275 = smul.addr %s274, 4
      %s276 = smul.addr %s275, 8
      %s277 = scalar_lea.vmem %s7, %s276
      %v278 = vlaneseq
      %vm279 = vcmp.ge.s32.totalorder %v278, 0
      %vm280 = vcmp.lt.s32.totalorder %v278, 128
      %vm281 = vmand %vm279, %vm280
      %282 = vst.msk [vmem:[#allocation2] sm:$0x1] %vm281, 0.0
      %283 = vst.msk [vmem:[#allocation2 + $0x3] sm:$0x1] %vm281, 0.0
      %284 = vst [vmem:[#allocation3] sm:$0xff] 0.0
      %285 = vst [vmem:[#allocation3 + $0x18] sm:$0xff] 0.0
      %286 = vst [vmem:[#allocation4] sm:$0xff] 0.0
      %287 = vst [vmem:[#allocation4 + $0x18] sm:$0xff] 0.0
      %s288 = scalar_lea.vmem [#allocation4], 32
      %289 = vst [vmem:[%s288] sm:$0xff] 0.0
      %290 = vst [vmem:[%s288 + $0x18] sm:$0xff] 0.0
      %s291 = scalar_lea.vmem [#allocation4], 64
      %292 = vst [vmem:[%s291] sm:$0xff] 0.0
      %293 = vst [vmem:[%s291 + $0x18] sm:$0xff] 0.0
      %s294 = scalar_lea.vmem [#allocation4], 96
      %295 = vst [vmem:[%s294] sm:$0xff] 0.0
      %296 = vst [vmem:[%s294 + $0x18] sm:$0xff] 0.0
      %v297 = vld [vmem:[%s272] sm:$0x3]
      %vm298 = vcmp.lt.s32.totalorder %v278, 256
      %vm299 = vmand %vm279, %vm298
      %300 = vst.msk [vmem:[#allocation2 + $0x1] sm:$0x3] %vm299, %v297
      %v301 = vlaneseq
      %v302 = vand.u32 %v301, 127
      %v303 = vadd.s32 %v302, 128
      %vm304 = vcmp.lt.s32.totalorder %v302, 0
      %v305 = vsub.s32 0, %v302
      %v306 = vsel %vm304, %v305, %v302
      %v307 = vshrl.u32 %v306, 4
      %v308 = vand.u32 %v306, 15
      %v309 = vsub.s32 0, %v308
      %v310 = vsel %vm304, %v309, %v308
      %vm311 = vcmp.lt.s32.totalorder %v303, 0
      %v312 = vsub.s32 0, %v303
      %v313 = vsel %vm311, %v312, %v303
      %v314 = vshrl.u32 %v313, 4
      %v315 = vand.u32 %v313, 15
      %v316 = vsub.s32 0, %v315
      %v317 = vsel %vm311, %v316, %v315
      %vm318 = vcmp.ne.s32.totalorder %v310, 0
      %vm319 = vcmp.ne.s32.totalorder %v317, 0
      %vm320 = vcmp.lt.s32.totalorder %v310, 0
      %vm321 = vcmp.lt.s32.totalorder %v317, 0
      %vm322 = vmand %vm320, %vm318
      %vm323 = vmand %vm321, %vm319
      %v324 = vadd.s32 %v310, 16
      %v325 = vadd.s32 %v317, 16
      %v326 = vsel %vm322, %v324, %v310
      %v327 = vsel %vm323, %v325, %v317
      %v328 = vadd.s32 %v326, 4294967294
      %v329 = vadd.s32 %v327, 4294967294
      %vm330 = vcmp.ge.s32.totalorder %v328, 0
      %vm331 = vcmp.ge.s32.totalorder %v329, 0
      %vm332 = vcmp.lt.s32.totalorder %v328, 16
      %vm333 = vcmp.lt.s32.totalorder %v329, 16
      %vm334 = vmand %vm330, %vm332
      %vm335 = vmand %vm331, %vm333
      %v336 = vsel %vm334, 1, 0
      %v337 = vsel %vm335, 1, 0
      %v338 = vcvt.s32.f32 %v336
      %v339 = vcvt.s32.f32 %v337
      %v340 = vadd.s32 %v326, 4294967295
      %v341 = vadd.s32 %v327, 4294967295
      %vm342 = vcmp.ge.s32.totalorder %v340, 0
      %vm343 = vcmp.ge.s32.totalorder %v341, 0
      %vm344 = vcmp.lt.s32.totalorder %v340, 16
      %vm345 = vcmp.lt.s32.totalorder %v341, 16
      %vm346 = vmand %vm342, %vm344
      %vm347 = vmand %vm343, %vm345
      %v348 = vsel %vm346, 1, 0
      %v349 = vsel %vm347, 1, 0
      %v350 = vcvt.s32.f32 %v348
      %v351 = vcvt.s32.f32 %v349
      %v352 = vadd.s32 %v326, 1
      %v353 = vadd.s32 %v327, 1
      %vm354 = vcmp.ge.s32.totalorder %v352, 0
      %vm355 = vcmp.ge.s32.totalorder %v353, 0
      %vm356 = vcmp.lt.s32.totalorder %v352, 16
      %vm357 = vcmp.lt.s32.totalorder %v353, 16
      %vm358 = vmand %vm354, %vm356
      %vm359 = vmand %vm355, %vm357
      %v360 = vsel %vm358, 1, 0
      %v361 = vsel %vm359, 1, 0
      %v362 = vcvt.s32.f32 %v360
      %v363 = vcvt.s32.f32 %v361
      %v364 = vadd.s32 %v326, 2
      %v365 = vadd.s32 %v327, 2
      %vm366 = vcmp.ge.s32.totalorder %v364, 0
      %vm367 = vcmp.ge.s32.totalorder %v365, 0
      %vm368 = vcmp.lt.s32.totalorder %v364, 16
      %vm369 = vcmp.lt.s32.totalorder %v365, 16
      %vm370 = vmand %vm366, %vm368
      %vm371 = vmand %vm367, %vm369
      %v372 = vsel %vm370, 1, 0
      %v373 = vsel %vm371, 1, 0
      %v374 = vcvt.s32.f32 %v372
      %v375 = vcvt.s32.f32 %v373
      %v376 = vld [vmem:[%s1] sm:$0xff]
      %v377 = vld [vmem:[#allocation2] sm:$0x7]
      %v380 = vrot.slane %v339, 7
      %vm381 = vcmask 1040384
      %v382 = vsel %vm381, %v338, %v380
      %383 = vrot.lane.b32.xlu0 %v382, 94
      %v384 = vpop.permute.xlu0 %383
      %v385 = vrot.slane %v384, 7
      %vm386 = vcmask 769024
      %v387 = vsel %vm386, %v385, %v384
      %v389 = vmul.f32 %v377, %v387
      %391 = vset.pattern.permute.xlu0 0
      %392 = vperm.xlu0 %391, %v376
      %v393 = vpop.permute.xlu0 %392
      %v396 = vperm.slane %v389, 0
      %v397 = vperm.slane %v389, 1
      %v398 = vperm.slane %v389, 2
      %v402 = vmul.f32 %v393, %v396
      %v403 = vmul.f32 %v393, %v397
      %v404 = vmul.f32 %v393, %v398
      %v405 = vadd.f32 %v402, 0.0
      %v406 = vadd.f32 %v403, 0.0
      %v407 = vadd.f32 %v404, 0.0
      %v410 = vrot.slane %v351, 7
      %v411 = vsel %vm381, %v350, %v410
      %412 = vrot.lane.b32.xlu0 %v411, 95
      %v413 = vpop.permute.xlu0 %412
      %v414 = vrot.slane %v413, 7
      %vm415 = vcmask 777216
      %v416 = vsel %vm415, %v414, %v413
      %v418 = vmul.f32 %v377, %v416
      %419 = vset.pattern.permute.xlu0 1
      %420 = vperm.xlu0 %419, %v376
      %v421 = vpop.permute.xlu0 %420
      %v424 = vperm.slane %v418, 0
      %v425 = vperm.slane %v418, 1
      %v426 = vperm.slane %v418, 2
      %v430 = vmul.f32 %v421, %v424
      %v431 = vmul.f32 %v421, %v425
      %v432 = vmul.f32 %v421, %v426
      %436 = vrot.lane.b32.xlu0 %v430, 127
      %v437 = vpop.permute.xlu0 %436
      %438 = vrot.lane.b32.xlu0 %v431, 127
      %v439 = vpop.permute.xlu0 %438
      %440 = vrot.lane.b32.xlu0 %v432, 127
      %v441 = vpop.permute.xlu0 %440
      %vm442 = vcmask 1039360
      %v443 = vsel %vm442, %v437, %v439
      %v444 = vsel %vm442, %v439, %v441
      %v448 = vadd.f32 %v405, %v443
      %v449 = vadd.f32 %v406, %v444
      %v450 = vadd.f32 %v407, %v441
      %451 = vset.pattern.permute.xlu0 2
      %452 = vperm.xlu0 %451, %v376
      %v453 = vpop.permute.xlu0 %452
      %v456 = vperm.slane %v377, 0
      %v457 = vperm.slane %v377, 1
      %v458 = vperm.slane %v377, 2
      %v462 = vmul.f32 %v453, %v456
      %v463 = vmul.f32 %v453, %v457
      %v464 = vmul.f32 %v453, %v458
      %468 = vrot.lane.b32.xlu0 %v462, 126
      %v469 = vpop.permute.xlu0 %468
      %470 = vrot.lane.b32.xlu0 %v463, 126
      %v471 = vpop.permute.xlu0 %470
      %472 = vrot.lane.b32.xlu0 %v464, 126
      %v473 = vpop.permute.xlu0 %472
      %vm474 = vcmask 1031168
      %v475 = vsel %vm474, %v469, %v471
      %v476 = vsel %vm474, %v471, %v473
      %v480 = vadd.f32 %v448, %v475
      %v481 = vadd.f32 %v449, %v476
      %v482 = vadd.f32 %v450, %v473
      %v485 = vrot.slane %v363, 7
      %v486 = vsel %vm381, %v362, %v485
      %487 = vrot.lane.b32.xlu0 %v486, 97
      %v488 = vpop.permute.xlu0 %487
      %v489 = vrot.slane %v488, 7
      %vm490 = vcmask 793600
      %v491 = vsel %vm490, %v489, %v488
      %v493 = vmul.f32 %v377, %v491
      %494 = vset.pattern.permute.xlu0 3
      %495 = vperm.xlu0 %494, %v376
      %v496 = vpop.permute.xlu0 %495
      %v499 = vperm.slane %v493, 0
      %v500 = vperm.slane %v493, 1
      %v501 = vperm.slane %v493, 2
      %v505 = vmul.f32 %v496, %v499
      %v506 = vmul.f32 %v496, %v500
      %v507 = vmul.f32 %v496, %v501
      %511 = vrot.lane.b32.xlu0 %v505, 125
      %v512 = vpop.permute.xlu0 %511
      %513 = vrot.lane.b32.xlu0 %v506, 125
      %v514 = vpop.permute.xlu0 %513
      %515 = vrot.lane.b32.xlu0 %v507, 125
      %v516 = vpop.permute.xlu0 %515
      %vm517 = vcmask 1022976
      %v518 = vsel %vm517, %v512, %v514
      %v519 = vsel %vm517, %v514, %v516
      %v523 = vadd.f32 %v480, %v518
      %v524 = vadd.f32 %v481, %v519
      %v525 = vadd.f32 %v482, %v516
      %v528 = vrot.slane %v375, 7
      %v529 = vsel %vm381, %v374, %v528
      %530 = vrot.lane.b32.xlu0 %v529, 98
      %v531 = vpop.permute.xlu0 %530
      %v532 = vrot.slane %v531, 7
      %vm533 = vcmask 801792
      %v534 = vsel %vm533, %v532, %v531
      %v536 = vmul.f32 %v377, %v534
      %537 = vset.pattern.permute.xlu0 4
      %538 = vperm.xlu0 %537, %v376
      %v539 = vpop.permute.xlu0 %538
      %v542 = vperm.slane %v536, 0
      %v543 = vperm.slane %v536, 1
      %v544 = vperm.slane %v536, 2
      %v548 = vmul.f32 %v539, %v542
      %v549 = vmul.f32 %v539, %v543
      %v550 = vmul.f32 %v539, %v544
      %554 = vrot.lane.b32.xlu0 %v548, 124
      %v555 = vpop.permute.xlu0 %554
      %556 = vrot.lane.b32.xlu0 %v549, 124
      %v557 = vpop.permute.xlu0 %556
      %558 = vrot.lane.b32.xlu0 %v550, 124
      %v559 = vpop.permute.xlu0 %558
      %vm560 = vcmask 1014784
      %v561 = vsel %vm560, %v555, %v557
      %v562 = vsel %vm560, %v557, %v559
      %v566 = vadd.f32 %v523, %v561
      %v567 = vadd.f32 %v524, %v562
      %v568 = vadd.f32 %v525, %v559
      %569 = vrot.lane.b32.xlu0 %v382, 110
      %v570 = vpop.permute.xlu0 %569
      %v571 = vrot.slane %v570, 7
      %vm572 = vcmask 900096
      %v573 = vsel %vm572, %v571, %v570
      %v575 = vmul.f32 %v377, %v573
      %576 = vset.pattern.permute.xlu0 5
      %577 = vperm.xlu0 %576, %v376
      %v578 = vpop.permute.xlu0 %577
      %v581 = vperm.slane %v575, 0
      %v582 = vperm.slane %v575, 1
      %v583 = vperm.slane %v575, 2
      %v587 = vmul.f32 %v578, %v581
      %v588 = vmul.f32 %v578, %v582
      %v589 = vmul.f32 %v578, %v583
      %593 = vrot.lane.b32.xlu0 %v587, 112
      %v594 = vpop.permute.xlu0 %593
      %595 = vrot.lane.b32.xlu0 %v588, 112
      %v596 = vpop.permute.xlu0 %595
      %597 = vrot.lane.b32.xlu0 %v589, 112
      %v598 = vpop.permute.xlu0 %597
      %vm599 = vcmask 916480
      %v600 = vsel %vm599, %v594, %v596
      %v601 = vsel %vm599, %v596, %v598
      %v605 = vadd.f32 %v566, %v600
      %v606 = vadd.f32 %v567, %v601
      %v607 = vadd.f32 %v568, %v598
      %608 = vrot.lane.b32.xlu0 %v411, 111
      %v609 = vpop.permute.xlu0 %608
      %v610 = vrot.slane %v609, 7
      %vm611 = vcmask 908288
      %v612 = vsel %vm611, %v610, %v609
      %v614 = vmul.f32 %v377, %v612
      %615 = vset.pattern.permute.xlu0 6
      %616 = vperm.xlu0 %615, %v376
      %v617 = vpop.permute.xlu0 %616
      %v620 = vperm.slane %v614, 0
      %v621 = vperm.slane %v614, 1
      %v622 = vperm.slane %v614, 2
      %v626 = vmul.f32 %v617, %v620
      %v627 = vmul.f32 %v617, %v621
      %v628 = vmul.f32 %v617, %v622
      %632 = vrot.lane.b32.xlu0 %v626, 111
      %v633 = vpop.permute.xlu0 %632
      %634 = vrot.lane.b32.xlu0 %v627, 111
      %v635 = vpop.permute.xlu0 %634
      %636 = vrot.lane.b32.xlu0 %v628, 111
      %v637 = vpop.permute.xlu0 %636
      %v638 = vsel %vm611, %v633, %v635
      %v639 = vsel %vm611, %v635, %v637
      %v643 = vadd.f32 %v605, %v638
      %v644 = vadd.f32 %v606, %v639
      %v645 = vadd.f32 %v607, %v637
      %646 = vset.pattern.permute.xlu0 7
      %647 = vperm.xlu0 %646, %v376
      %v648 = vpop.permute.xlu0 %647
      %v650 = vmul.f32 %v648, %v456
      %v651 = vmul.f32 %v648, %v457
      %v652 = vmul.f32 %v648, %v458
      %656 = vrot.lane.b32.xlu0 %v650, 110
      %v657 = vpop.permute.xlu0 %656
      %658 = vrot.lane.b32.xlu0 %v651, 110
      %v659 = vpop.permute.xlu0 %658
      %660 = vrot.lane.b32.xlu0 %v652, 110
      %v661 = vpop.permute.xlu0 %660
      %v662 = vsel %vm572, %v657, %v659
      %v663 = vsel %vm572, %v659, %v661
      %v667 = vadd.f32 %v643, %v662
      %v668 = vadd.f32 %v644, %v663
      %v669 = vadd.f32 %v645, %v661
      %670 = vrot.lane.b32.xlu0 %v486, 113
      %v671 = vpop.permute.xlu0 %670
      %v672 = vrot.slane %v671, 7
      %vm673 = vcmask 924672
      %v674 = vsel %vm673, %v672, %v671
      %v676 = vmul.f32 %v377, %v674
      %677 = vset.pattern.permute.xlu0 8
      %678 = vperm.xlu0 %677, %v376
      %v679 = vpop.permute.xlu0 %678
      %v682 = vperm.slane %v676, 0
      %v683 = vperm.slane %v676, 1
      %v684 = vperm.slane %v676, 2
      %v688 = vmul.f32 %v679, %v682
      %v689 = vmul.f32 %v679, %v683
      %v690 = vmul.f32 %v679, %v684
      %694 = vrot.lane.b32.xlu0 %v688, 109
      %v695 = vpop.permute.xlu0 %694
      %696 = vrot.lane.b32.xlu0 %v689, 109
      %v697 = vpop.permute.xlu0 %696
      %698 = vrot.lane.b32.xlu0 %v690, 109
      %v699 = vpop.permute.xlu0 %698
      %vm700 = vcmask 891904
      %v701 = vsel %vm700, %v695, %v697
      %v702 = vsel %vm700, %v697, %v699
      %v706 = vadd.f32 %v667, %v701
      %v707 = vadd.f32 %v668, %v702
      %v708 = vadd.f32 %v669, %v699
      %709 = vrot.lane.b32.xlu0 %v529, 114
      %v710 = vpop.permute.xlu0 %709
      %v711 = vrot.slane %v710, 7
      %vm712 = vcmask 932864
      %v713 = vsel %vm712, %v711, %v710
      %v715 = vmul.f32 %v377, %v713
      %716 = vset.pattern.permute.xlu0 9
      %717 = vperm.xlu0 %716, %v376
      %v718 = vpop.permute.xlu0 %717
      %v721 = vperm.slane %v715, 0
      %v722 = vperm.slane %v715, 1
      %v723 = vperm.slane %v715, 2
      %v727 = vmul.f32 %v718, %v721
      %v728 = vmul.f32 %v718, %v722
      %v729 = vmul.f32 %v718, %v723
      %733 = vrot.lane.b32.xlu0 %v727, 108
      %v734 = vpop.permute.xlu0 %733
      %735 = vrot.lane.b32.xlu0 %v728, 108
      %v736 = vpop.permute.xlu0 %735
      %737 = vrot.lane.b32.xlu0 %v729, 108
      %v738 = vpop.permute.xlu0 %737
      %vm739 = vcmask 883712
      %v740 = vsel %vm739, %v734, %v736
      %v741 = vsel %vm739, %v736, %v738
      %v745 = vadd.f32 %v706, %v740
      %v746 = vadd.f32 %v707, %v741
      %v747 = vadd.f32 %v708, %v738
      %748 = vrot.lane.b32.xlu0 %v382, 126
      %v749 = vpop.permute.xlu0 %748
      %v750 = vrot.slane %v749, 7
      %v751 = vsel %vm474, %v750, %v749
      %v753 = vmul.f32 %v377, %v751
      %754 = vset.pattern.permute.xlu0 10
      %755 = vperm.xlu0 %754, %v376
      %v756 = vpop.permute.xlu0 %755
      %v759 = vperm.slane %v753, 0
      %v760 = vperm.slane %v753, 1
      %v761 = vperm.slane %v753, 2
      %v765 = vmul.f32 %v756, %v759
      %v766 = vmul.f32 %v756, %v760
      %v767 = vmul.f32 %v756, %v761
      %771 = vrot.lane.b32.xlu0 %v765, 96
      %v772 = vpop.permute.xlu0 %771
      %773 = vrot.lane.b32.xlu0 %v766, 96
      %v774 = vpop.permute.xlu0 %773
      %775 = vrot.lane.b32.xlu0 %v767, 96
      %v776 = vpop.permute.xlu0 %775
      %vm777 = vcmask 785408
      %v778 = vsel %vm777, %v772, %v774
      %v779 = vsel %vm777, %v774, %v776
      %v783 = vadd.f32 %v745, %v778
      %v784 = vadd.f32 %v746, %v779
      %v785 = vadd.f32 %v747, %v776
      %786 = vrot.lane.b32.xlu0 %v411, 127
      %v787 = vpop.permute.xlu0 %786
      %v788 = vrot.slane %v787, 7
      %v789 = vsel %vm442, %v788, %v787
      %v791 = vmul.f32 %v377, %v789
      %792 = vset.pattern.permute.xlu0 11
      %793 = vperm.xlu0 %792, %v376
      %v794 = vpop.permute.xlu0 %793
      %v797 = vperm.slane %v791, 0
      %v798 = vperm.slane %v791, 1
      %v799 = vperm.slane %v791, 2
      %v803 = vmul.f32 %v794, %v797
      %v804 = vmul.f32 %v794, %v798
      %v805 = vmul.f32 %v794, %v799
      %809 = vrot.lane.b32.xlu0 %v803, 95
      %v810 = vpop.permute.xlu0 %809
      %811 = vrot.lane.b32.xlu0 %v804, 95
      %v812 = vpop.permute.xlu0 %811
      %813 = vrot.lane.b32.xlu0 %v805, 95
      %v814 = vpop.permute.xlu0 %813
      %v815 = vsel %vm415, %v810, %v812
      %v816 = vsel %vm415, %v812, %v814
      %v820 = vadd.f32 %v783, %v815
      %v821 = vadd.f32 %v784, %v816
      %v822 = vadd.f32 %v785, %v814
      %v823 = vld [vmem:[#allocation2 + $0x1] sm:$0x3]
      %824 = vset.pattern.permute.xlu0 12
      %825 = vperm.xlu0 %824, %v376
      %v826 = vpop.permute.xlu0 %825
      %v829 = vperm.slane %v823, 0
      %v830 = vperm.slane %v823, 1
      %v833 = vmul.f32 %v826, %v829
      %v834 = vmul.f32 %v826, %v830
      %837 = vrot.lane.b32.xlu0 %v833, 94
      %v838 = vpop.permute.xlu0 %837
      %839 = vrot.lane.b32.xlu0 %v834, 94
      %v840 = vpop.permute.xlu0 %839
      %v841 = vsel %vm386, %v838, %v840
      %v845 = vadd.f32 %v820, %v838
      %v846 = vadd.f32 %v821, %v841
      %v847 = vadd.f32 %v822, %v840
      %v848 = vld [vmem:[#allocation2 + $0x1] sm:$0x7]
      %849 = vrot.lane.b32.xlu0 %v486, 1
      %v850 = vpop.permute.xlu0 %849
      %v851 = vrot.slane %v850, 7
      %vm852 = vcmask 7168
      %v853 = vsel %vm852, %v851, %v850
      %v855 = vmul.f32 %v848, %v853
      %856 = vset.pattern.permute.xlu0 13
      %857 = vperm.xlu0 %856, %v376
      %v858 = vpop.permute.xlu0 %857
      %v861 = vperm.slane %v855, 0
      %v862 = vperm.slane %v855, 1
      %v863 = vperm.slane %v855, 2
      %v867 = vmul.f32 %v858, %v861
      %v868 = vmul.f32 %v858, %v862
      %v869 = vmul.f32 %v858, %v863
      %873 = vrot.lane.b32.xlu0 %v867, 93
      %v874 = vpop.permute.xlu0 %873
      %875 = vrot.lane.b32.xlu0 %v868, 93
      %v876 = vpop.permute.xlu0 %875
      %877 = vrot.lane.b32.xlu0 %v869, 93
      %v878 = vpop.permute.xlu0 %877
      %vm879 = vcmask 760832
      %v880 = vsel %vm879, %v874, %v876
      %v881 = vsel %vm879, %v876, %v878
      %v885 = vadd.f32 %v845, %v874
      %v886 = vadd.f32 %v846, %v880
      %v887 = vadd.f32 %v847, %v881
      %888 = vrot.lane.b32.xlu0 %v529, 2
      %v889 = vpop.permute.xlu0 %888
      %v890 = vrot.slane %v889, 7
      %vm891 = vcmask 15360
      %v892 = vsel %vm891, %v890, %v889
      %v894 = vmul.f32 %v848, %v892
      %895 = vset.pattern.permute.xlu0 14
      %896 = vperm.xlu0 %895, %v376
      %v897 = vpop.permute.xlu0 %896
      %v900 = vperm.slane %v894, 0
      %v901 = vperm.slane %v894, 1
      %v902 = vperm.slane %v894, 2
      %v906 = vmul.f32 %v897, %v900
      %v907 = vmul.f32 %v897, %v901
      %v908 = vmul.f32 %v897, %v902
      %912 = vrot.lane.b32.xlu0 %v906, 92
      %v913 = vpop.permute.xlu0 %912
      %914 = vrot.lane.b32.xlu0 %v907, 92
      %v915 = vpop.permute.xlu0 %914
      %916 = vrot.lane.b32.xlu0 %v908, 92
      %v917 = vpop.permute.xlu0 %916
      %vm918 = vcmask 752640
      %v919 = vsel %vm918, %v913, %v915
      %v920 = vsel %vm918, %v915, %v917
      %v924 = vadd.f32 %v885, %v913
      %v925 = vadd.f32 %v886, %v919
      %v926 = vadd.f32 %v887, %v920
      %927 = vrot.lane.b32.xlu0 %v382, 14
      %v928 = vpop.permute.xlu0 %927
      %v929 = vrot.slane %v928, 7
      %vm930 = vcmask 113664
      %v931 = vsel %vm930, %v929, %v928
      %v933 = vmul.f32 %v848, %v931
      %934 = vset.pattern.permute.xlu0 15
      %935 = vperm.xlu0 %934, %v376
      %v936 = vpop.permute.xlu0 %935
      %v939 = vperm.slane %v933, 0
      %v940 = vperm.slane %v933, 1
      %v941 = vperm.slane %v933, 2
      %v945 = vmul.f32 %v936, %v939
      %v946 = vmul.f32 %v936, %v940
      %v947 = vmul.f32 %v936, %v941
      %951 = vrot.lane.b32.xlu0 %v945, 80
      %v952 = vpop.permute.xlu0 %951
      %953 = vrot.lane.b32.xlu0 %v946, 80
      %v954 = vpop.permute.xlu0 %953
      %955 = vrot.lane.b32.xlu0 %v947, 80
      %v956 = vpop.permute.xlu0 %955
      %vm957 = vcmask 654336
      %v958 = vsel %vm957, %v952, %v954
      %v959 = vsel %vm957, %v954, %v956
      %v963 = vadd.f32 %v924, %v952
      %v964 = vadd.f32 %v925, %v958
      %v965 = vadd.f32 %v926, %v959
      %966 = vrot.lane.b32.xlu0 %v411, 15
      %v967 = vpop.permute.xlu0 %966
      %v968 = vrot.slane %v967, 7
      %vm969 = vcmask 121856
      %v970 = vsel %vm969, %v968, %v967
      %v972 = vmul.f32 %v848, %v970
      %973 = vset.pattern.permute.xlu0 16
      %974 = vperm.xlu0 %973, %v376
      %v975 = vpop.permute.xlu0 %974
      %v978 = vperm.slane %v972, 0
      %v979 = vperm.slane %v972, 1
      %v980 = vperm.slane %v972, 2
      %v984 = vmul.f32 %v975, %v978
      %v985 = vmul.f32 %v975, %v979
      %v986 = vmul.f32 %v975, %v980
      %990 = vrot.lane.b32.xlu0 %v984, 79
      %v991 = vpop.permute.xlu0 %990
      %992 = vrot.lane.b32.xlu0 %v985, 79
      %v993 = vpop.permute.xlu0 %992
      %994 = vrot.lane.b32.xlu0 %v986, 79
      %v995 = vpop.permute.xlu0 %994
      %vm996 = vcmask 646144
      %v997 = vsel %vm996, %v991, %v993
      %v998 = vsel %vm996, %v993, %v995
      %v1002 = vadd.f32 %v963, %v991
      %v1003 = vadd.f32 %v964, %v997
      %v1004 = vadd.f32 %v965, %v998
      %1005 = vset.pattern.permute.xlu0 17
      %1006 = vperm.xlu0 %1005, %v376
      %v1007 = vpop.permute.xlu0 %1006
      %v1010 = vperm.slane %v848, 0
      %v1011 = vperm.slane %v848, 1
      %v1012 = vperm.slane %v848, 2
      %v1016 = vmul.f32 %v1007, %v1010
      %v1017 = vmul.f32 %v1007, %v1011
      %v1018 = vmul.f32 %v1007, %v1012
      %1022 = vrot.lane.b32.xlu0 %v1016, 78
      %v1023 = vpop.permute.xlu0 %1022
      %1024 = vrot.lane.b32.xlu0 %v1017, 78
      %v1025 = vpop.permute.xlu0 %1024
      %1026 = vrot.lane.b32.xlu0 %v1018, 78
      %v1027 = vpop.permute.xlu0 %1026
      %vm1028 = vcmask 637952
      %v1029 = vsel %vm1028, %v1023, %v1025
      %v1030 = vsel %vm1028, %v1025, %v1027
      %v1034 = vadd.f32 %v1002, %v1023
      %v1035 = vadd.f32 %v1003, %v1029
      %v1036 = vadd.f32 %v1004, %v1030
      %1037 = vrot.lane.b32.xlu0 %v486, 17
      %v1038 = vpop.permute.xlu0 %1037
      %v1039 = vrot.slane %v1038, 7
      %vm1040 = vcmask 138240
      %v1041 = vsel %vm1040, %v1039, %v1038
      %v1043 = vmul.f32 %v848, %v1041
      %1044 = vset.pattern.permute.xlu0 18
      %1045 = vperm.xlu0 %1044, %v376
      %v1046 = vpop.permute.xlu0 %1045
      %v1049 = vperm.slane %v1043, 0
      %v1050 = vperm.slane %v1043, 1
      %v1051 = vperm.slane %v1043, 2
      %v1055 = vmul.f32 %v1046, %v1049
      %v1056 = vmul.f32 %v1046, %v1050
      %v1057 = vmul.f32 %v1046, %v1051
      %1061 = vrot.lane.b32.xlu0 %v1055, 77
      %v1062 = vpop.permute.xlu0 %1061
      %1063 = vrot.lane.b32.xlu0 %v1056, 77
      %v1064 = vpop.permute.xlu0 %1063
      %1065 = vrot.lane.b32.xlu0 %v1057, 77
      %v1066 = vpop.permute.xlu0 %1065
      %vm1067 = vcmask 629760
      %v1068 = vsel %vm1067, %v1062, %v1064
      %v1069 = vsel %vm1067, %v1064, %v1066
      %v1073 = vadd.f32 %v1034, %v1062
      %v1074 = vadd.f32 %v1035, %v1068
      %v1075 = vadd.f32 %v1036, %v1069
      %1076 = vrot.lane.b32.xlu0 %v529, 18
      %v1077 = vpop.permute.xlu0 %1076
      %v1078 = vrot.slane %v1077, 7
      %vm1079 = vcmask 146432
      %v1080 = vsel %vm1079, %v1078, %v1077
      %v1082 = vmul.f32 %v848, %v1080
      %1083 = vset.pattern.permute.xlu0 19
      %1084 = vperm.xlu0 %1083, %v376
      %v1085 = vpop.permute.xlu0 %1084
      %v1088 = vperm.slane %v1082, 0
      %v1089 = vperm.slane %v1082, 1
      %v1090 = vperm.slane %v1082, 2
      %v1094 = vmul.f32 %v1085, %v1088
      %v1095 = vmul.f32 %v1085, %v1089
      %v1096 = vmul.f32 %v1085, %v1090
      %1100 = vrot.lane.b32.xlu0 %v1094, 76
      %v1101 = vpop.permute.xlu0 %1100
      %1102 = vrot.lane.b32.xlu0 %v1095, 76
      %v1103 = vpop.permute.xlu0 %1102
      %1104 = vrot.lane.b32.xlu0 %v1096, 76
      %v1105 = vpop.permute.xlu0 %1104
      %vm1106 = vcmask 621568
      %v1107 = vsel %vm1106, %v1101, %v1103
      %v1108 = vsel %vm1106, %v1103, %v1105
      %v1112 = vadd.f32 %v1073, %v1101
      %v1113 = vadd.f32 %v1074, %v1107
      %v1114 = vadd.f32 %v1075, %v1108
      %1115 = vrot.lane.b32.xlu0 %v382, 30
      %v1116 = vpop.permute.xlu0 %1115
      %v1117 = vrot.slane %v1116, 7
      %vm1118 = vcmask 244736
      %v1119 = vsel %vm1118, %v1117, %v1116
      %v1121 = vmul.f32 %v848, %v1119
      %1122 = vset.pattern.permute.xlu0 20
      %1123 = vperm.xlu0 %1122, %v376
      %v1124 = vpop.permute.xlu0 %1123
      %v1127 = vperm.slane %v1121, 0
      %v1128 = vperm.slane %v1121, 1
      %v1129 = vperm.slane %v1121, 2
      %v1133 = vmul.f32 %v1124, %v1127
      %v1134 = vmul.f32 %v1124, %v1128
      %v1135 = vmul.f32 %v1124, %v1129
      %1139 = vrot.lane.b32.xlu0 %v1133, 64
      %v1140 = vpop.permute.xlu0 %1139
      %1141 = vrot.lane.b32.xlu0 %v1134, 64
      %v1142 = vpop.permute.xlu0 %1141
      %1143 = vrot.lane.b32.xlu0 %v1135, 64
      %v1144 = vpop.permute.xlu0 %1143
      %vm1145 = vcmask 523264
      %v1146 = vsel %vm1145, %v1140, %v1142
      %v1147 = vsel %vm1145, %v1142, %v1144
      %v1151 = vadd.f32 %v1112, %v1140
      %v1152 = vadd.f32 %v1113, %v1146
      %v1153 = vadd.f32 %v1114, %v1147
      %1154 = vrot.lane.b32.xlu0 %v411, 31
      %v1155 = vpop.permute.xlu0 %1154
      %v1156 = vrot.slane %v1155, 7
      %vm1157 = vcmask 252928
      %v1158 = vsel %vm1157, %v1156, %v1155
      %v1160 = vmul.f32 %v848, %v1158
      %1161 = vset.pattern.permute.xlu0 21
      %1162 = vperm.xlu0 %1161, %v376
      %v1163 = vpop.permute.xlu0 %1162
      %v1166 = vperm.slane %v1160, 0
      %v1167 = vperm.slane %v1160, 1
      %v1168 = vperm.slane %v1160, 2
      %v1172 = vmul.f32 %v1163, %v1166
      %v1173 = vmul.f32 %v1163, %v1167
      %v1174 = vmul.f32 %v1163, %v1168
      %1178 = vrot.lane.b32.xlu0 %v1172, 63
      %v1179 = vpop.permute.xlu0 %1178
      %1180 = vrot.lane.b32.xlu0 %v1173, 63
      %v1181 = vpop.permute.xlu0 %1180
      %1182 = vrot.lane.b32.xlu0 %v1174, 63
      %v1183 = vpop.permute.xlu0 %1182
      %vm1184 = vcmask 515072
      %v1185 = vsel %vm1184, %v1179, %v1181
      %v1186 = vsel %vm1184, %v1181, %v1183
      %v1190 = vadd.f32 %v1151, %v1179
      %v1191 = vadd.f32 %v1152, %v1185
      %v1192 = vadd.f32 %v1153, %v1186
      %1193 = vset.pattern.permute.xlu0 22
      %1194 = vperm.xlu0 %1193, %v376
      %v1195 = vpop.permute.xlu0 %1194
      %v1197 = vmul.f32 %v1195, %v1010
      %v1198 = vmul.f32 %v1195, %v1011
      %v1199 = vmul.f32 %v1195, %v1012
      %1203 = vrot.lane.b32.xlu0 %v1197, 62
      %v1204 = vpop.permute.xlu0 %1203
      %1205 = vrot.lane.b32.xlu0 %v1198, 62
      %v1206 = vpop.permute.xlu0 %1205
      %1207 = vrot.lane.b32.xlu0 %v1199, 62
      %v1208 = vpop.permute.xlu0 %1207
      %vm1209 = vcmask 506880
      %v1210 = vsel %vm1209, %v1204, %v1206
      %v1211 = vsel %vm1209, %v1206, %v1208
      %v1215 = vadd.f32 %v1190, %v1204
      %v1216 = vadd.f32 %v1191, %v1210
      %v1217 = vadd.f32 %v1192, %v1211
      %1218 = vrot.lane.b32.xlu0 %v486, 33
      %v1219 = vpop.permute.xlu0 %1218
      %v1220 = vrot.slane %v1219, 7
      %vm1221 = vcmask 269312
      %v1222 = vsel %vm1221, %v1220, %v1219
      %v1224 = vmul.f32 %v848, %v1222
      %1225 = vset.pattern.permute.xlu0 23
      %1226 = vperm.xlu0 %1225, %v376
      %v1227 = vpop.permute.xlu0 %1226
      %v1230 = vperm.slane %v1224, 0
      %v1231 = vperm.slane %v1224, 1
      %v1232 = vperm.slane %v1224, 2
      %v1236 = vmul.f32 %v1227, %v1230
      %v1237 = vmul.f32 %v1227, %v1231
      %v1238 = vmul.f32 %v1227, %v1232
      %1242 = vrot.lane.b32.xlu0 %v1236, 61
      %v1243 = vpop.permute.xlu0 %1242
      %1244 = vrot.lane.b32.xlu0 %v1237, 61
      %v1245 = vpop.permute.xlu0 %1244
      %1246 = vrot.lane.b32.xlu0 %v1238, 61
      %v1247 = vpop.permute.xlu0 %1246
      %vm1248 = vcmask 498688
      %v1249 = vsel %vm1248, %v1243, %v1245
      %v1250 = vsel %vm1248, %v1245, %v1247
      %v1254 = vadd.f32 %v1215, %v1243
      %v1255 = vadd.f32 %v1216, %v1249
      %v1256 = vadd.f32 %v1217, %v1250
      %1257 = vrot.lane.b32.xlu0 %v529, 34
      %v1258 = vpop.permute.xlu0 %1257
      %v1259 = vrot.slane %v1258, 7
      %vm1260 = vcmask 277504
      %v1261 = vsel %vm1260, %v1259, %v1258
      %v1263 = vmul.f32 %v848, %v1261
      %1264 = vset.pattern.permute.xlu0 24
      %1265 = vperm.xlu0 %1264, %v376
      %v1266 = vpop.permute.xlu0 %1265
      %v1269 = vperm.slane %v1263, 0
      %v1270 = vperm.slane %v1263, 1
      %v1271 = vperm.slane %v1263, 2
      %v1275 = vmul.f32 %v1266, %v1269
      %v1276 = vmul.f32 %v1266, %v1270
      %v1277 = vmul.f32 %v1266, %v1271
      %1281 = vrot.lane.b32.xlu0 %v1275, 60
      %v1282 = vpop.permute.xlu0 %1281
      %1283 = vrot.lane.b32.xlu0 %v1276, 60
      %v1284 = vpop.permute.xlu0 %1283
      %1285 = vrot.lane.b32.xlu0 %v1277, 60
      %v1286 = vpop.permute.xlu0 %1285
      %vm1287 = vcmask 490496
      %v1288 = vsel %vm1287, %v1282, %v1284
      %v1289 = vsel %vm1287, %v1284, %v1286
      %v1293 = vadd.f32 %v1254, %v1282
      %v1294 = vadd.f32 %v1255, %v1288
      %v1295 = vadd.f32 %v1256, %v1289
      %v1296 = vld [vmem:[%s2] sm:$0xff]
      %1298 = vset.pattern.permute.xlu0 0
      %1299 = vperm.xlu0 %1298, %v1296
      %v1300 = vpop.permute.xlu0 %1299
      %v1302 = vadd.f32 %v1293, %v1300
      %v1303 = vadd.f32 %v1294, %v1300
      %v1304 = vadd.f32 %v1295, %v1300
      %v1305 = vmax.f32 %v1302, 0.0
      %v1306 = vmax.f32 %v1303, 0.0
      %v1307 = vmax.f32 %v1304, 0.0
      %1311 = vrot.lane.b32.xlu0 %v1305, 34
      %v1312 = vpop.permute.xlu0 %1311
      %1313 = vrot.lane.b32.xlu0 %v1306, 34
      %v1314 = vpop.permute.xlu0 %1313
      %1315 = vrot.lane.b32.xlu0 %v1307, 34
      %v1316 = vpop.permute.xlu0 %1315
      %v1317 = vsel %vm1260, %v1312, %v1314
      %v1318 = vsel %vm1260, %v1314, %v1316
      %1321 = vst [vmem:[#allocation3 + $0x8] sm:$0xff] %v1317
      %1322 = vst [vmem:[#allocation3 + $0x10] sm:$0xff] %v1318
      %vm1323 = vcmp.ge.s32.totalorder %v326, 1
      %vm1324 = vcmp.ge.s32.totalorder %v327, 1
      %v1325 = vsel %vm1323, 1, 0
      %v1326 = vsel %vm1324, 1, 0
      %v1327 = vcvt.s32.f32 %v1325
      %v1328 = vcvt.s32.f32 %v1326
      %vm1329 = vcmp.le.s32.totalorder %v326, 14
      %vm1330 = vcmp.le.s32.totalorder %v327, 14
      %v1331 = vsel %vm1329, 1, 0
      %v1332 = vsel %vm1330, 1, 0
      %v1333 = vcvt.s32.f32 %v1331
      %v1334 = vcvt.s32.f32 %v1332
      %v1335 = vld [vmem:[%s4] sm:$0xff]
      %v1336 = vld [vmem:[#allocation3] sm:$0xff]
      %v1337 = vld [vmem:[#allocation3 + $0x8] sm:$0xff]
      %v1338 = vld [vmem:[#allocation3 + $0x10] sm:$0xff]
      %1341 = vrot.lane.b32.xlu0 %v1327, 111
      %v1342 = vpop.permute.xlu0 %1341
      %1343 = vrot.lane.b32.xlu0 %v1328, 111
      %v1344 = vpop.permute.xlu0 %1343
      %v1345 = vsel %vm611, %v1342, %v1344
      %v1349 = vmul.f32 %v1336, %v1342
      %v1350 = vmul.f32 %v1337, %v1345
      %v1351 = vmul.f32 %v1338, %v1344
      %v1352 = vld [vmem:[%s3] sm:$0xff]
      %s1353 = scalar_lea.vmem %s3, 8
      %v1354 = vld [vmem:[%s1353] sm:$0xff]
      %1358 = vrot.lane.b32.xlu0 %v1336, 16
      %v1359 = vpop.permute.xlu0 %1358
      %1360 = vrot.lane.b32.xlu0 %v1337, 16
      %v1361 = vpop.permute.xlu0 %1360
      %1362 = vrot.lane.b32.xlu0 %v1338, 16
      %v1363 = vpop.permute.xlu0 %1362
      %vm1364 = vcmask 130048
      %v1365 = vsel %vm1364, %v1359, %v1361
      %v1366 = vsel %vm1364, %v1361, %v1363
      %vm1369 = vcmask 64512
      %v1371 = vsel %vm1369, %v1354, 0
      %1373 = vmatpush.msra.mxu0 0.0
      %1374 = vmatpush.msra.mxu0 0.0
      %1375 = vmatpush.msra.mxu0 0.0
      %1376 = vmatpush.msra.mxu0 0.0
      %1377 = vmatpush.msra.mxu0 0.0
      %1378 = vmatpush.msra.mxu0 0.0
      %1379 = vmatpush.msra.mxu0 0.0
      %1380 = vmatpush.msra.mxu0 0.0
      %1381 = vmatpush.msra.mxu0 0.0
      %1382 = vmatpush.msra.mxu0 0.0
      %1383 = vmatpush.msra.mxu0 0.0
      %1384 = vmatpush.msra.mxu0 0.0
      %1385 = vmatpush.msra.mxu0 0.0
      %1386 = vmatpush.msra.mxu0 0.0
      %1387 = vmatpush.msra.mxu0 0.0
      %1388 = vmatpush.msra.mxu0 %v1365
      %1389 = vmatmul.f32.gmra.mxu0 %v1371
      %v1390 = vpop.f32.mrf.mxu0
      %v1391 = vadd.f32 0.0, %v1390
      %1392 = vdwg.mxu0
      %1393 = vmatpush.msra.mxu0 0.0
      %1394 = vmatpush.msra.mxu0 0.0
      %1395 = vmatpush.msra.mxu0 0.0
      %1396 = vmatpush.msra.mxu0 0.0
      %1397 = vmatpush.msra.mxu0 0.0
      %1398 = vmatpush.msra.mxu0 0.0
      %1399 = vmatpush.msra.mxu0 0.0
      %1400 = vmatpush.msra.mxu0 0.0
      %1401 = vmatpush.msra.mxu0 0.0
      %1402 = vmatpush.msra.mxu0 0.0
      %1403 = vmatpush.msra.mxu0 0.0
      %1404 = vmatpush.msra.mxu0 0.0
      %1405 = vmatpush.msra.mxu0 0.0
      %1406 = vmatpush.msra.mxu0 0.0
      %1407 = vmatpush.msra.mxu0 0.0
      %1408 = vmatpush.msra.mxu0 %v1366
      %1409 = vmatmul.f32.gmra.mxu0 %v1371
      %v1410 = vpop.f32.mrf.mxu0
      %v1411 = vadd.f32 0.0, %v1410
      %1412 = vdwg.mxu0
      %1416 = vrot.lane.b32.xlu0 %v1349, 17
      %v1417 = vpop.permute.xlu0 %1416
      %1418 = vrot.lane.b32.xlu0 %v1350, 17
      %v1419 = vpop.permute.xlu0 %1418
      %1420 = vrot.lane.b32.xlu0 %v1351, 17
      %v1421 = vpop.permute.xlu0 %1420
      %v1422 = vsel %vm1040, %v1417, %v1419
      %v1423 = vsel %vm1040, %v1419, %v1421
      %v1427 = vsel %vm1369, %v1352, 0
      %1429 = vmatpush.msra.mxu0 0.0
      %1430 = vmatpush.msra.mxu0 0.0
      %1431 = vmatpush.msra.mxu0 0.0
      %1432 = vmatpush.msra.mxu0 0.0
      %1433 = vmatpush.msra.mxu0 0.0
      %1434 = vmatpush.msra.mxu0 0.0
      %1435 = vmatpush.msra.mxu0 0.0
      %1436 = vmatpush.msra.mxu0 0.0
      %1437 = vmatpush.msra.mxu0 0.0
      %1438 = vmatpush.msra.mxu0 0.0
      %1439 = vmatpush.msra.mxu0 0.0
      %1440 = vmatpush.msra.mxu0 0.0
      %1441 = vmatpush.msra.mxu0 0.0
      %1442 = vmatpush.msra.mxu0 0.0
      %1443 = vmatpush.msra.mxu0 0.0
      %1444 = vmatpush.msra.mxu0 %v1422
      %1445 = vmatmul.f32.gmra.mxu0 %v1427
      %v1446 = vpop.f32.mrf.mxu0
      %v1447 = vadd.f32 %v1391, %v1446
      %1448 = vdwg.mxu0
      %1449 = vmatpush.msra.mxu0 0.0
      %1450 = vmatpush.msra.mxu0 0.0
      %1451 = vmatpush.msra.mxu0 0.0
      %1452 = vmatpush.msra.mxu0 0.0
      %1453 = vmatpush.msra.mxu0 0.0
      %1454 = vmatpush.msra.mxu0 0.0
      %1455 = vmatpush.msra.mxu0 0.0
      %1456 = vmatpush.msra.mxu0 0.0
      %1457 = vmatpush.msra.mxu0 0.0
      %1458 = vmatpush.msra.mxu0 0.0
      %1459 = vmatpush.msra.mxu0 0.0
      %1460 = vmatpush.msra.mxu0 0.0
      %1461 = vmatpush.msra.mxu0 0.0
      %1462 = vmatpush.msra.mxu0 0.0
      %1463 = vmatpush.msra.mxu0 0.0
      %1464 = vmatpush.msra.mxu0 %v1423
      %1465 = vmatmul.f32.gmra.mxu0 %v1427
      %v1466 = vpop.f32.mrf.mxu0
      %v1467 = vadd.f32 %v1411, %v1466
      %1468 = vdwg.mxu0
      %1469 = vrot.lane.b32.xlu0 %v1327, 127
      %v1470 = vpop.permute.xlu0 %1469
      %1471 = vrot.lane.b32.xlu0 %v1328, 127
      %v1472 = vpop.permute.xlu0 %1471
      %v1473 = vsel %vm442, %v1470, %v1472
      %v1477 = vmul.f32 %v1336, %v1470
      %v1478 = vmul.f32 %v1337, %v1473
      %v1479 = vmul.f32 %v1338, %v1472
      %s1480 = scalar_lea.vmem %s3, 16
      %v1481 = vld [vmem:[%s1480] sm:$0xff]
      %1485 = vrot.lane.b32.xlu0 %v1477, 1
      %v1486 = vpop.permute.xlu0 %1485
      %1487 = vrot.lane.b32.xlu0 %v1478, 1
      %v1488 = vpop.permute.xlu0 %1487
      %1489 = vrot.lane.b32.xlu0 %v1479, 1
      %v1490 = vpop.permute.xlu0 %1489
      %v1491 = vsel %vm852, %v1486, %v1488
      %v1492 = vsel %vm852, %v1488, %v1490
      %v1496 = vsel %vm1369, %v1481, 0
      %1498 = vmatpush.msra.mxu0 0.0
      %1499 = vmatpush.msra.mxu0 0.0
      %1500 = vmatpush.msra.mxu0 0.0
      %1501 = vmatpush.msra.mxu0 0.0
      %1502 = vmatpush.msra.mxu0 0.0
      %1503 = vmatpush.msra.mxu0 0.0
      %1504 = vmatpush.msra.mxu0 0.0
      %1505 = vmatpush.msra.mxu0 0.0
      %1506 = vmatpush.msra.mxu0 0.0
      %1507 = vmatpush.msra.mxu0 0.0
      %1508 = vmatpush.msra.mxu0 0.0
      %1509 = vmatpush.msra.mxu0 0.0
      %1510 = vmatpush.msra.mxu0 0.0
      %1511 = vmatpush.msra.mxu0 0.0
      %1512 = vmatpush.msra.mxu0 0.0
      %1513 = vmatpush.msra.mxu0 %v1491
      %1514 = vmatmul.f32.gmra.mxu0 %v1496
      %v1515 = vpop.f32.mrf.mxu0
      %v1516 = vadd.f32 0.0, %v1515
      %1517 = vdwg.mxu0
      %1518 = vmatpush.msra.mxu0 0.0
      %1519 = vmatpush.msra.mxu0 0.0
      %1520 = vmatpush.msra.mxu0 0.0
      %1521 = vmatpush.msra.mxu0 0.0
      %1522 = vmatpush.msra.mxu0 0.0
      %1523 = vmatpush.msra.mxu0 0.0
      %1524 = vmatpush.msra.mxu0 0.0
      %1525 = vmatpush.msra.mxu0 0.0
      %1526 = vmatpush.msra.mxu0 0.0
      %1527 = vmatpush.msra.mxu0 0.0
      %1528 = vmatpush.msra.mxu0 0.0
      %1529 = vmatpush.msra.mxu0 0.0
      %1530 = vmatpush.msra.mxu0 0.0
      %1531 = vmatpush.msra.mxu0 0.0
      %1532 = vmatpush.msra.mxu0 0.0
      %1533 = vmatpush.msra.mxu0 %v1492
      %1534 = vmatmul.f32.gmra.mxu0 %v1496
      %v1535 = vpop.f32.mrf.mxu0
      %v1536 = vadd.f32 0.0, %v1535
      %1537 = vdwg.mxu0
      %v1538 = vadd.f32 %v1447, %v1516
      %v1539 = vadd.f32 %v1467, %v1536
      %s1540 = scalar_lea.vmem %s3, 24
      %v1541 = vld [vmem:[%s1540] sm:$0xff]
      %v1543 = vsel %vm1369, %v1541, 0
      %1545 = vmatpush.msra.mxu0 0.0
      %1546 = vmatpush.msra.mxu0 0.0
      %1547 = vmatpush.msra.mxu0 0.0
      %1548 = vmatpush.msra.mxu0 0.0
      %1549 = vmatpush.msra.mxu0 0.0
      %1550 = vmatpush.msra.mxu0 0.0
      %1551 = vmatpush.msra.mxu0 0.0
      %1552 = vmatpush.msra.mxu0 0.0
      %1553 = vmatpush.msra.mxu0 0.0
      %1554 = vmatpush.msra.mxu0 0.0
      %1555 = vmatpush.msra.mxu0 0.0
      %1556 = vmatpush.msra.mxu0 0.0
      %1557 = vmatpush.msra.mxu0 0.0
      %1558 = vmatpush.msra.mxu0 0.0
      %1559 = vmatpush.msra.mxu0 0.0
      %1560 = vmatpush.msra.mxu0 %v1337
      %1561 = vmatmul.f32.gmra.mxu0 %v1543
      %v1562 = vpop.f32.mrf.mxu0
      %v1563 = vadd.f32 0.0, %v1562
      %1564 = vdwg.mxu0
      %1565 = vmatpush.msra.mxu0 0.0
      %1566 = vmatpush.msra.mxu0 0.0
      %1567 = vmatpush.msra.mxu0 0.0
      %1568 = vmatpush.msra.mxu0 0.0
      %1569 = vmatpush.msra.mxu0 0.0
      %1570 = vmatpush.msra.mxu0 0.0
      %1571 = vmatpush.msra.mxu0 0.0
      %1572 = vmatpush.msra.mxu0 0.0
      %1573 = vmatpush.msra.mxu0 0.0
      %1574 = vmatpush.msra.mxu0 0.0
      %1575 = vmatpush.msra.mxu0 0.0
      %1576 = vmatpush.msra.mxu0 0.0
      %1577 = vmatpush.msra.mxu0 0.0
      %1578 = vmatpush.msra.mxu0 0.0
      %1579 = vmatpush.msra.mxu0 0.0
      %1580 = vmatpush.msra.mxu0 %v1338
      %1581 = vmatmul.f32.gmra.mxu0 %v1543
      %v1582 = vpop.f32.mrf.mxu0
      %v1583 = vadd.f32 0.0, %v1582
      %1584 = vdwg.mxu0
      %v1585 = vadd.f32 %v1538, %v1563
      %v1586 = vadd.f32 %v1539, %v1583
      %1588 = vset.pattern.permute.xlu0 0
      %1589 = vperm.xlu0 %1588, %v1335
      %v1590 = vpop.permute.xlu0 %1589
      %v1592 = vadd.f32 %v1585, %v1590
      %v1593 = vadd.f32 %v1586, %v1590
      %v1594 = vmax.f32 %v1592, 0.0
      %v1595 = vmax.f32 %v1593, 0.0
      %1596 = vst [vmem:[#allocation4 + $0x8] sm:$0xff] %v1594
      %1597 = vst [vmem:[#allocation4 + $0x10] sm:$0xff] %v1595
      %v1598 = vld [vmem:[#allocation3] sm:$0xff]
      %v1599 = vld [vmem:[#allocation3 + $0x8] sm:$0xff]
      %v1600 = vld [vmem:[#allocation3 + $0x10] sm:$0xff]
      %s1601 = scalar_lea.vmem %s3, 32
      %v1602 = vld [vmem:[%s1601] sm:$0xff]
      %1605 = vrot.lane.b32.xlu0 %v1333, 113
      %v1606 = vpop.permute.xlu0 %1605
      %1607 = vrot.lane.b32.xlu0 %v1334, 113
      %v1608 = vpop.permute.xlu0 %1607
      %v1609 = vsel %vm673, %v1606, %v1608
      %v1613 = vmul.f32 %v1598, %v1606
      %v1614 = vmul.f32 %v1599, %v1609
      %v1615 = vmul.f32 %v1600, %v1608
      %s1616 = scalar_lea.vmem %s3, 40
      %v1617 = vld [vmem:[%s1616] sm:$0xff]
      %1621 = vrot.lane.b32.xlu0 %v1613, 15
      %v1622 = vpop.permute.xlu0 %1621
      %1623 = vrot.lane.b32.xlu0 %v1614, 15
      %v1624 = vpop.permute.xlu0 %1623
      %1625 = vrot.lane.b32.xlu0 %v1615, 15
      %v1626 = vpop.permute.xlu0 %1625
      %v1627 = vsel %vm969, %v1622, %v1624
      %v1628 = vsel %vm969, %v1624, %v1626
      %v1632 = vsel %vm1369, %v1617, 0
      %1634 = vmatpush.msra.mxu0 0.0
      %1635 = vmatpush.msra.mxu0 0.0
      %1636 = vmatpush.msra.mxu0 0.0
      %1637 = vmatpush.msra.mxu0 0.0
      %1638 = vmatpush.msra.mxu0 0.0
      %1639 = vmatpush.msra.mxu0 0.0
      %1640 = vmatpush.msra.mxu0 0.0
      %1641 = vmatpush.msra.mxu0 0.0
      %1642 = vmatpush.msra.mxu0 0.0
      %1643 = vmatpush.msra.mxu0 0.0
      %1644 = vmatpush.msra.mxu0 0.0
      %1645 = vmatpush.msra.mxu0 0.0
      %1646 = vmatpush.msra.mxu0 0.0
      %1647 = vmatpush.msra.mxu0 0.0
      %1648 = vmatpush.msra.mxu0 0.0
      %1649 = vmatpush.msra.mxu0 %v1627
      %1650 = vmatmul.f32.gmra.mxu0 %v1632
      %v1651 = vpop.f32.mrf.mxu0
      %v1652 = vadd.f32 0.0, %v1651
      %1653 = vdwg.mxu0
      %1654 = vmatpush.msra.mxu0 0.0
      %1655 = vmatpush.msra.mxu0 0.0
      %1656 = vmatpush.msra.mxu0 0.0
      %1657 = vmatpush.msra.mxu0 0.0
      %1658 = vmatpush.msra.mxu0 0.0
      %1659 = vmatpush.msra.mxu0 0.0
      %1660 = vmatpush.msra.mxu0 0.0
      %1661 = vmatpush.msra.mxu0 0.0
      %1662 = vmatpush.msra.mxu0 0.0
      %1663 = vmatpush.msra.mxu0 0.0
      %1664 = vmatpush.msra.mxu0 0.0
      %1665 = vmatpush.msra.mxu0 0.0
      %1666 = vmatpush.msra.mxu0 0.0
      %1667 = vmatpush.msra.mxu0 0.0
      %1668 = vmatpush.msra.mxu0 0.0
      %1669 = vmatpush.msra.mxu0 %v1628
      %1670 = vmatmul.f32.gmra.mxu0 %v1632
      %v1671 = vpop.f32.mrf.mxu0
      %v1672 = vadd.f32 0.0, %v1671
      %1673 = vdwg.mxu0
      %1677 = vrot.lane.b32.xlu0 %v1598, 16
      %v1678 = vpop.permute.xlu0 %1677
      %1679 = vrot.lane.b32.xlu0 %v1599, 16
      %v1680 = vpop.permute.xlu0 %1679
      %1681 = vrot.lane.b32.xlu0 %v1600, 16
      %v1682 = vpop.permute.xlu0 %1681
      %v1683 = vsel %vm1364, %v1678, %v1680
      %v1684 = vsel %vm1364, %v1680, %v1682
      %v1688 = vsel %vm1369, %v1602, 0
      %1690 = vmatpush.msra.mxu0 0.0
      %1691 = vmatpush.msra.mxu0 0.0
      %1692 = vmatpush.msra.mxu0 0.0
      %1693 = vmatpush.msra.mxu0 0.0
      %1694 = vmatpush.msra.mxu0 0.0
      %1695 = vmatpush.msra.mxu0 0.0
      %1696 = vmatpush.msra.mxu0 0.0
      %1697 = vmatpush.msra.mxu0 0.0
      %1698 = vmatpush.msra.mxu0 0.0
      %1699 = vmatpush.msra.mxu0 0.0
      %1700 = vmatpush.msra.mxu0 0.0
      %1701 = vmatpush.msra.mxu0 0.0
      %1702 = vmatpush.msra.mxu0 0.0
      %1703 = vmatpush.msra.mxu0 0.0
      %1704 = vmatpush.msra.mxu0 0.0
      %1705 = vmatpush.msra.mxu0 %v1683
      %1706 = vmatmul.f32.gmra.mxu0 %v1688
      %v1707 = vpop.f32.mrf.mxu0
      %v1708 = vadd.f32 %v1652, %v1707
      %1709 = vdwg.mxu0
      %1710 = vmatpush.msra.mxu0 0.0
      %1711 = vmatpush.msra.mxu0 0.0
      %1712 = vmatpush.msra.mxu0 0.0
      %1713 = vmatpush.msra.mxu0 0.0
      %1714 = vmatpush.msra.mxu0 0.0
      %1715 = vmatpush.msra.mxu0 0.0
      %1716 = vmatpush.msra.mxu0 0.0
      %1717 = vmatpush.msra.mxu0 0.0
      %1718 = vmatpush.msra.mxu0 0.0
      %1719 = vmatpush.msra.mxu0 0.0
      %1720 = vmatpush.msra.mxu0 0.0
      %1721 = vmatpush.msra.mxu0 0.0
      %1722 = vmatpush.msra.mxu0 0.0
      %1723 = vmatpush.msra.mxu0 0.0
      %1724 = vmatpush.msra.mxu0 0.0
      %1725 = vmatpush.msra.mxu0 %v1684
      %1726 = vmatmul.f32.gmra.mxu0 %v1688
      %v1727 = vpop.f32.mrf.mxu0
      %v1728 = vadd.f32 %v1672, %v1727
      %1729 = vdwg.mxu0
      %s1730 = scalar_lea.vmem %s3, 48
      %v1731 = vld [vmem:[%s1730] sm:$0xff]
      %v1733 = vsel %vm1369, %v1731, 0
      %1735 = vmatpush.msra.mxu0 0.0
      %1736 = vmatpush.msra.mxu0 0.0
      %1737 = vmatpush.msra.mxu0 0.0
      %1738 = vmatpush.msra.mxu0 0.0
      %1739 = vmatpush.msra.mxu0 0.0
      %1740 = vmatpush.msra.mxu0 0.0
      %1741 = vmatpush.msra.mxu0 0.0
      %1742 = vmatpush.msra.mxu0 0.0
      %1743 = vmatpush.msra.mxu0 0.0
      %1744 = vmatpush.msra.mxu0 0.0
      %1745 = vmatpush.msra.mxu0 0.0
      %1746 = vmatpush.msra.mxu0 0.0
      %1747 = vmatpush.msra.mxu0 0.0
      %1748 = vmatpush.msra.mxu0 0.0
      %1749 = vmatpush.msra.mxu0 0.0
      %1750 = vmatpush.msra.mxu0 %v1599
      %1751 = vmatmul.f32.gmra.mxu0 %v1733
      %v1752 = vpop.f32.mrf.mxu0
      %v1753 = vadd.f32 0.0, %v1752
      %1754 = vdwg.mxu0
      %1755 = vmatpush.msra.mxu0 0.0
      %1756 = vmatpush.msra.mxu0 0.0
      %1757 = vmatpush.msra.mxu0 0.0
      %1758 = vmatpush.msra.mxu0 0.0
      %1759 = vmatpush.msra.mxu0 0.0
      %1760 = vmatpush.msra.mxu0 0.0
      %1761 = vmatpush.msra.mxu0 0.0
      %1762 = vmatpush.msra.mxu0 0.0
      %1763 = vmatpush.msra.mxu0 0.0
      %1764 = vmatpush.msra.mxu0 0.0
      %1765 = vmatpush.msra.mxu0 0.0
      %1766 = vmatpush.msra.mxu0 0.0
      %1767 = vmatpush.msra.mxu0 0.0
      %1768 = vmatpush.msra.mxu0 0.0
      %1769 = vmatpush.msra.mxu0 0.0
      %1770 = vmatpush.msra.mxu0 %v1600
      %1771 = vmatmul.f32.gmra.mxu0 %v1733
      %v1772 = vpop.f32.mrf.mxu0
      %v1773 = vadd.f32 0.0, %v1772
      %1774 = vdwg.mxu0
      %v1775 = vadd.f32 %v1708, %v1753
      %v1776 = vadd.f32 %v1728, %v1773
      %v1777 = vld [vmem:[#allocation3 + $0x8] sm:$0xff]
      %v1778 = vld [vmem:[#allocation3 + $0x10] sm:$0xff]
      %v1779 = vld [vmem:[#allocation3 + $0x18] sm:$0xff]
      %1780 = vrot.lane.b32.xlu0 %v1333, 1
      %v1781 = vpop.permute.xlu0 %1780
      %1782 = vrot.lane.b32.xlu0 %v1334, 1
      %v1783 = vpop.permute.xlu0 %1782
      %v1784 = vsel %vm852, %v1781, %v1783
      %v1788 = vmul.f32 %v1777, %v1781
      %v1789 = vmul.f32 %v1778, %v1784
      %v1790 = vmul.f32 %v1779, %v1783
      %s1791 = scalar_lea.vmem %s3, 56
      %v1792 = vld [vmem:[%s1791] sm:$0xff]
      %1796 = vrot.lane.b32.xlu0 %v1788, 127
      %v1797 = vpop.permute.xlu0 %1796
      %1798 = vrot.lane.b32.xlu0 %v1789, 127
      %v1799 = vpop.permute.xlu0 %1798
      %1800 = vrot.lane.b32.xlu0 %v1790, 127
      %v1801 = vpop.permute.xlu0 %1800
      %v1802 = vsel %vm442, %v1797, %v1799
      %v1803 = vsel %vm442, %v1799, %v1801
      %v1807 = vsel %vm1369, %v1792, 0
      %1809 = vmatpush.msra.mxu0 0.0
      %1810 = vmatpush.msra.mxu0 0.0
      %1811 = vmatpush.msra.mxu0 0.0
      %1812 = vmatpush.msra.mxu0 0.0
      %1813 = vmatpush.msra.mxu0 0.0
      %1814 = vmatpush.msra.mxu0 0.0
      %1815 = vmatpush.msra.mxu0 0.0
      %1816 = vmatpush.msra.mxu0 0.0
      %1817 = vmatpush.msra.mxu0 0.0
      %1818 = vmatpush.msra.mxu0 0.0
      %1819 = vmatpush.msra.mxu0 0.0
      %1820 = vmatpush.msra.mxu0 0.0
      %1821 = vmatpush.msra.mxu0 0.0
      %1822 = vmatpush.msra.mxu0 0.0
      %1823 = vmatpush.msra.mxu0 0.0
      %1824 = vmatpush.msra.mxu0 %v1802
      %1825 = vmatmul.f32.gmra.mxu0 %v1807
      %v1826 = vpop.f32.mrf.mxu0
      %v1827 = vadd.f32 0.0, %v1826
      %1828 = vdwg.mxu0
      %1829 = vmatpush.msra.mxu0 0.0
      %1830 = vmatpush.msra.mxu0 0.0
      %1831 = vmatpush.msra.mxu0 0.0
      %1832 = vmatpush.msra.mxu0 0.0
      %1833 = vmatpush.msra.mxu0 0.0
      %1834 = vmatpush.msra.mxu0 0.0
      %1835 = vmatpush.msra.mxu0 0.0
      %1836 = vmatpush.msra.mxu0 0.0
      %1837 = vmatpush.msra.mxu0 0.0
      %1838 = vmatpush.msra.mxu0 0.0
      %1839 = vmatpush.msra.mxu0 0.0
      %1840 = vmatpush.msra.mxu0 0.0
      %1841 = vmatpush.msra.mxu0 0.0
      %1842 = vmatpush.msra.mxu0 0.0
      %1843 = vmatpush.msra.mxu0 0.0
      %1844 = vmatpush.msra.mxu0 %v1803
      %1845 = vmatmul.f32.gmra.mxu0 %v1807
      %v1846 = vpop.f32.mrf.mxu0
      %v1847 = vadd.f32 0.0, %v1846
      %1848 = vdwg.mxu0
      %v1849 = vadd.f32 %v1775, %v1827
      %v1850 = vadd.f32 %v1776, %v1847
      %v1851 = vadd.f32 %v1849, %v1590
      %v1852 = vadd.f32 %v1850, %v1590
      %v1853 = vmax.f32 %v1851, 0.0
      %v1854 = vmax.f32 %v1852, 0.0
      %1855 = vst [vmem:[%s288 + $0x8] sm:$0xff] %v1853
      %1856 = vst [vmem:[%s288 + $0x10] sm:$0xff] %v1854
      %v1857 = vld [vmem:[#allocation3] sm:$0xff]
      %v1858 = vld [vmem:[#allocation3 + $0x8] sm:$0xff]
      %v1859 = vld [vmem:[#allocation3 + $0x10] sm:$0xff]
      %v1860 = vmul.f32 %v1857, %v1470
      %v1861 = vmul.f32 %v1858, %v1473
      %v1862 = vmul.f32 %v1859, %v1472
      %s1863 = scalar_lea.vmem %s3, 64
      %v1864 = vld [vmem:[%s1863] sm:$0xff]
      %s1865 = scalar_lea.vmem %s3, 72
      %v1866 = vld [vmem:[%s1865] sm:$0xff]
      %v1868 = vsel %vm1369, %v1866, 0
      %1870 = vmatpush.msra.mxu0 0.0
      %1871 = vmatpush.msra.mxu0 0.0
      %1872 = vmatpush.msra.mxu0 0.0
      %1873 = vmatpush.msra.mxu0 0.0
      %1874 = vmatpush.msra.mxu0 0.0
      %1875 = vmatpush.msra.mxu0 0.0
      %1876 = vmatpush.msra.mxu0 0.0
      %1877 = vmatpush.msra.mxu0 0.0
      %1878 = vmatpush.msra.mxu0 0.0
      %1879 = vmatpush.msra.mxu0 0.0
      %1880 = vmatpush.msra.mxu0 0.0
      %1881 = vmatpush.msra.mxu0 0.0
      %1882 = vmatpush.msra.mxu0 0.0
      %1883 = vmatpush.msra.mxu0 0.0
      %1884 = vmatpush.msra.mxu0 0.0
      %1885 = vmatpush.msra.mxu0 %v1858
      %1886 = vmatmul.f32.gmra.mxu0 %v1868
      %v1887 = vpop.f32.mrf.mxu0
      %v1888 = vadd.f32 0.0, %v1887
      %1889 = vdwg.mxu0
      %1890 = vmatpush.msra.mxu0 0.0
      %1891 = vmatpush.msra.mxu0 0.0
      %1892 = vmatpush.msra.mxu0 0.0
      %1893 = vmatpush.msra.mxu0 0.0
      %1894 = vmatpush.msra.mxu0 0.0
      %1895 = vmatpush.msra.mxu0 0.0
      %1896 = vmatpush.msra.mxu0 0.0
      %1897 = vmatpush.msra.mxu0 0.0
      %1898 = vmatpush.msra.mxu0 0.0
      %1899 = vmatpush.msra.mxu0 0.0
      %1900 = vmatpush.msra.mxu0 0.0
      %1901 = vmatpush.msra.mxu0 0.0
      %1902 = vmatpush.msra.mxu0 0.0
      %1903 = vmatpush.msra.mxu0 0.0
      %1904 = vmatpush.msra.mxu0 0.0
      %1905 = vmatpush.msra.mxu0 %v1859
      %1906 = vmatmul.f32.gmra.mxu0 %v1868
      %v1907 = vpop.f32.mrf.mxu0
      %v1908 = vadd.f32 0.0, %v1907
      %1909 = vdwg.mxu0
      %1913 = vrot.lane.b32.xlu0 %v1860, 1
      %v1914 = vpop.permute.xlu0 %1913
      %1915 = vrot.lane.b32.xlu0 %v1861, 1
      %v1916 = vpop.permute.xlu0 %1915
      %1917 = vrot.lane.b32.xlu0 %v1862, 1
      %v1918 = vpop.permute.xlu0 %1917
      %v1919 = vsel %vm852, %v1914, %v1916
      %v1920 = vsel %vm852, %v1916, %v1918
      %v1924 = vsel %vm1369, %v1864, 0
      %1926 = vmatpush.msra.mxu0 0.0
      %1927 = vmatpush.msra.mxu0 0.0
      %1928 = vmatpush.msra.mxu0 0.0
      %1929 = vmatpush.msra.mxu0 0.0
      %1930 = vmatpush.msra.mxu0 0.0
      %1931 = vmatpush.msra.mxu0 0.0
      %1932 = vmatpush.msra.mxu0 0.0
      %1933 = vmatpush.msra.mxu0 0.0
      %1934 = vmatpush.msra.mxu0 0.0
      %1935 = vmatpush.msra.mxu0 0.0
      %1936 = vmatpush.msra.mxu0 0.0
      %1937 = vmatpush.msra.mxu0 0.0
      %1938 = vmatpush.msra.mxu0 0.0
      %1939 = vmatpush.msra.mxu0 0.0
      %1940 = vmatpush.msra.mxu0 0.0
      %1941 = vmatpush.msra.mxu0 %v1919
      %1942 = vmatmul.f32.gmra.mxu0 %v1924
      %v1943 = vpop.f32.mrf.mxu0
      %v1944 = vadd.f32 %v1888, %v1943
      %1945 = vdwg.mxu0
      %1946 = vmatpush.msra.mxu0 0.0
      %1947 = vmatpush.msra.mxu0 0.0
      %1948 = vmatpush.msra.mxu0 0.0
      %1949 = vmatpush.msra.mxu0 0.0
      %1950 = vmatpush.msra.mxu0 0.0
      %1951 = vmatpush.msra.mxu0 0.0
      %1952 = vmatpush.msra.mxu0 0.0
      %1953 = vmatpush.msra.mxu0 0.0
      %1954 = vmatpush.msra.mxu0 0.0
      %1955 = vmatpush.msra.mxu0 0.0
      %1956 = vmatpush.msra.mxu0 0.0
      %1957 = vmatpush.msra.mxu0 0.0
      %1958 = vmatpush.msra.mxu0 0.0
      %1959 = vmatpush.msra.mxu0 0.0
      %1960 = vmatpush.msra.mxu0 0.0
      %1961 = vmatpush.msra.mxu0 %v1920
      %1962 = vmatmul.f32.gmra.mxu0 %v1924
      %v1963 = vpop.f32.mrf.mxu0
      %v1964 = vadd.f32 %v1908, %v1963
      %1965 = vdwg.mxu0
      %v1966 = vld [vmem:[#allocation3 + $0x8] sm:$0xff]
      %v1967 = vld [vmem:[#allocation3 + $0x10] sm:$0xff]
      %v1968 = vld [vmem:[#allocation3 + $0x18] sm:$0xff]
      %1969 = vrot.lane.b32.xlu0 %v1327, 15
      %v1970 = vpop.permute.xlu0 %1969
      %1971 = vrot.lane.b32.xlu0 %v1328, 15
      %v1972 = vpop.permute.xlu0 %1971
      %v1973 = vsel %vm969, %v1970, %v1972
      %v1977 = vmul.f32 %v1966, %v1970
      %v1978 = vmul.f32 %v1967, %v1973
      %v1979 = vmul.f32 %v1968, %v1972
      %s1980 = scalar_lea.vmem %s3, 80
      %v1981 = vld [vmem:[%s1980] sm:$0xff]
      %1985 = vrot.lane.b32.xlu0 %v1977, 113
      %v1986 = vpop.permute.xlu0 %1985
      %1987 = vrot.lane.b32.xlu0 %v1978, 113
      %v1988 = vpop.permute.xlu0 %1987
      %1989 = vrot.lane.b32.xlu0 %v1979, 113
      %v1990 = vpop.permute.xlu0 %1989
      %v1991 = vsel %vm673, %v1986, %v1988
      %v1992 = vsel %vm673, %v1988, %v1990
      %v1996 = vsel %vm1369, %v1981, 0
      %1998 = vmatpush.msra.mxu0 0.0
      %1999 = vmatpush.msra.mxu0 0.0
      %2000 = vmatpush.msra.mxu0 0.0
      %2001 = vmatpush.msra.mxu0 0.0
      %2002 = vmatpush.msra.mxu0 0.0
      %2003 = vmatpush.msra.mxu0 0.0
      %2004 = vmatpush.msra.mxu0 0.0
      %2005 = vmatpush.msra.mxu0 0.0
      %2006 = vmatpush.msra.mxu0 0.0
      %2007 = vmatpush.msra.mxu0 0.0
      %2008 = vmatpush.msra.mxu0 0.0
      %2009 = vmatpush.msra.mxu0 0.0
      %2010 = vmatpush.msra.mxu0 0.0
      %2011 = vmatpush.msra.mxu0 0.0
      %2012 = vmatpush.msra.mxu0 0.0
      %2013 = vmatpush.msra.mxu0 %v1991
      %2014 = vmatmul.f32.gmra.mxu0 %v1996
      %v2015 = vpop.f32.mrf.mxu0
      %v2016 = vadd.f32 0.0, %v2015
      %2017 = vdwg.mxu0
      %2018 = vmatpush.msra.mxu0 0.0
      %2019 = vmatpush.msra.mxu0 0.0
      %2020 = vmatpush.msra.mxu0 0.0
      %2021 = vmatpush.msra.mxu0 0.0
      %2022 = vmatpush.msra.mxu0 0.0
      %2023 = vmatpush.msra.mxu0 0.0
      %2024 = vmatpush.msra.mxu0 0.0
      %2025 = vmatpush.msra.mxu0 0.0
      %2026 = vmatpush.msra.mxu0 0.0
      %2027 = vmatpush.msra.mxu0 0.0
      %2028 = vmatpush.msra.mxu0 0.0
      %2029 = vmatpush.msra.mxu0 0.0
      %2030 = vmatpush.msra.mxu0 0.0
      %2031 = vmatpush.msra.mxu0 0.0
      %2032 = vmatpush.msra.mxu0 0.0
      %2033 = vmatpush.msra.mxu0 %v1992
      %2034 = vmatmul.f32.gmra.mxu0 %v1996
      %v2035 = vpop.f32.mrf.mxu0
      %v2036 = vadd.f32 0.0, %v2035
      %2037 = vdwg.mxu0
      %v2038 = vadd.f32 %v1944, %v2016
      %v2039 = vadd.f32 %v1964, %v2036
      %s2040 = scalar_lea.vmem %s3, 88
      %v2041 = vld [vmem:[%s2040] sm:$0xff]
      %2045 = vrot.lane.b32.xlu0 %v1966, 112
      %v2046 = vpop.permute.xlu0 %2045
      %2047 = vrot.lane.b32.xlu0 %v1967, 112
      %v2048 = vpop.permute.xlu0 %2047
      %2049 = vrot.lane.b32.xlu0 %v1968, 112
      %v2050 = vpop.permute.xlu0 %2049
      %v2051 = vsel %vm599, %v2046, %v2048
      %v2052 = vsel %vm599, %v2048, %v2050
      %v2056 = vsel %vm1369, %v2041, 0
      %2058 = vmatpush.msra.mxu0 0.0
      %2059 = vmatpush.msra.mxu0 0.0
      %2060 = vmatpush.msra.mxu0 0.0
      %2061 = vmatpush.msra.mxu0 0.0
      %2062 = vmatpush.msra.mxu0 0.0
      %2063 = vmatpush.msra.mxu0 0.0
      %2064 = vmatpush.msra.mxu0 0.0
      %2065 = vmatpush.msra.mxu0 0.0
      %2066 = vmatpush.msra.mxu0 0.0
      %2067 = vmatpush.msra.mxu0 0.0
      %2068 = vmatpush.msra.mxu0 0.0
      %2069 = vmatpush.msra.mxu0 0.0
      %2070 = vmatpush.msra.mxu0 0.0
      %2071 = vmatpush.msra.mxu0 0.0
      %2072 = vmatpush.msra.mxu0 0.0
      %2073 = vmatpush.msra.mxu0 %v2051
      %2074 = vmatmul.f32.gmra.mxu0 %v2056
      %v2075 = vpop.f32.mrf.mxu0
      %v2076 = vadd.f32 0.0, %v2075
      %2077 = vdwg.mxu0
      %2078 = vmatpush.msra.mxu0 0.0
      %2079 = vmatpush.msra.mxu0 0.0
      %2080 = vmatpush.msra.mxu0 0.0
      %2081 = vmatpush.msra.mxu0 0.0
      %2082 = vmatpush.msra.mxu0 0.0
      %2083 = vmatpush.msra.mxu0 0.0
      %2084 = vmatpush.msra.mxu0 0.0
      %2085 = vmatpush.msra.mxu0 0.0
      %2086 = vmatpush.msra.mxu0 0.0
      %2087 = vmatpush.msra.mxu0 0.0
      %2088 = vmatpush.msra.mxu0 0.0
      %2089 = vmatpush.msra.mxu0 0.0
      %2090 = vmatpush.msra.mxu0 0.0
      %2091 = vmatpush.msra.mxu0 0.0
      %2092 = vmatpush.msra.mxu0 0.0
      %2093 = vmatpush.msra.mxu0 %v2052
      %2094 = vmatmul.f32.gmra.mxu0 %v2056
      %v2095 = vpop.f32.mrf.mxu0
      %v2096 = vadd.f32 0.0, %v2095
      %2097 = vdwg.mxu0
      %v2098 = vadd.f32 %v2038, %v2076
      %v2099 = vadd.f32 %v2039, %v2096
      %v2100 = vadd.f32 %v2098, %v1590
      %v2101 = vadd.f32 %v2099, %v1590
      %v2102 = vmax.f32 %v2100, 0.0
      %v2103 = vmax.f32 %v2101, 0.0
      %2104 = vst [vmem:[%s291 + $0x8] sm:$0xff] %v2102
      %2105 = vst [vmem:[%s291 + $0x10] sm:$0xff] %v2103
      %v2106 = vld [vmem:[#allocation3 + $0x8] sm:$0xff]
      %v2107 = vld [vmem:[#allocation3 + $0x10] sm:$0xff]
      %s2108 = scalar_lea.vmem %s3, 96
      %v2109 = vld [vmem:[%s2108] sm:$0xff]
      %v2110 = vld [vmem:[#allocation3 + $0x8] sm:$0xff]
      %v2111 = vld [vmem:[#allocation3 + $0x10] sm:$0xff]
      %v2112 = vld [vmem:[#allocation3 + $0x18] sm:$0xff]
      %v2113 = vmul.f32 %v2110, %v1781
      %v2114 = vmul.f32 %v2111, %v1784
      %v2115 = vmul.f32 %v2112, %v1783
      %s2116 = scalar_lea.vmem %s3, 104
      %v2117 = vld [vmem:[%s2116] sm:$0xff]
      %2121 = vrot.lane.b32.xlu0 %v2113, 127
      %v2122 = vpop.permute.xlu0 %2121
      %2123 = vrot.lane.b32.xlu0 %v2114, 127
      %v2124 = vpop.permute.xlu0 %2123
      %2125 = vrot.lane.b32.xlu0 %v2115, 127
      %v2126 = vpop.permute.xlu0 %2125
      %v2127 = vsel %vm442, %v2122, %v2124
      %v2128 = vsel %vm442, %v2124, %v2126
      %v2132 = vsel %vm1369, %v2117, 0
      %2134 = vmatpush.msra.mxu0 0.0
      %2135 = vmatpush.msra.mxu0 0.0
      %2136 = vmatpush.msra.mxu0 0.0
      %2137 = vmatpush.msra.mxu0 0.0
      %2138 = vmatpush.msra.mxu0 0.0
      %2139 = vmatpush.msra.mxu0 0.0
      %2140 = vmatpush.msra.mxu0 0.0
      %2141 = vmatpush.msra.mxu0 0.0
      %2142 = vmatpush.msra.mxu0 0.0
      %2143 = vmatpush.msra.mxu0 0.0
      %2144 = vmatpush.msra.mxu0 0.0
      %2145 = vmatpush.msra.mxu0 0.0
      %2146 = vmatpush.msra.mxu0 0.0
      %2147 = vmatpush.msra.mxu0 0.0
      %2148 = vmatpush.msra.mxu0 0.0
      %2149 = vmatpush.msra.mxu0 %v2127
      %2150 = vmatmul.f32.gmra.mxu0 %v2132
      %v2151 = vpop.f32.mrf.mxu0
      %v2152 = vadd.f32 0.0, %v2151
      %2153 = vdwg.mxu0
      %2154 = vmatpush.msra.mxu0 0.0
      %2155 = vmatpush.msra.mxu0 0.0
      %2156 = vmatpush.msra.mxu0 0.0
      %2157 = vmatpush.msra.mxu0 0.0
      %2158 = vmatpush.msra.mxu0 0.0
      %2159 = vmatpush.msra.mxu0 0.0
      %2160 = vmatpush.msra.mxu0 0.0
      %2161 = vmatpush.msra.mxu0 0.0
      %2162 = vmatpush.msra.mxu0 0.0
      %2163 = vmatpush.msra.mxu0 0.0
      %2164 = vmatpush.msra.mxu0 0.0
      %2165 = vmatpush.msra.mxu0 0.0
      %2166 = vmatpush.msra.mxu0 0.0
      %2167 = vmatpush.msra.mxu0 0.0
      %2168 = vmatpush.msra.mxu0 0.0
      %2169 = vmatpush.msra.mxu0 %v2128
      %2170 = vmatmul.f32.gmra.mxu0 %v2132
      %v2171 = vpop.f32.mrf.mxu0
      %v2172 = vadd.f32 0.0, %v2171
      %2173 = vdwg.mxu0
      %v2175 = vsel %vm1369, %v2109, 0
      %2177 = vmatpush.msra.mxu0 0.0
      %2178 = vmatpush.msra.mxu0 0.0
      %2179 = vmatpush.msra.mxu0 0.0
      %2180 = vmatpush.msra.mxu0 0.0
      %2181 = vmatpush.msra.mxu0 0.0
      %2182 = vmatpush.msra.mxu0 0.0
      %2183 = vmatpush.msra.mxu0 0.0
      %2184 = vmatpush.msra.mxu0 0.0
      %2185 = vmatpush.msra.mxu0 0.0
      %2186 = vmatpush.msra.mxu0 0.0
      %2187 = vmatpush.msra.mxu0 0.0
      %2188 = vmatpush.msra.mxu0 0.0
      %2189 = vmatpush.msra.mxu0 0.0
      %2190 = vmatpush.msra.mxu0 0.0
      %2191 = vmatpush.msra.mxu0 0.0
      %2192 = vmatpush.msra.mxu0 %v2106
      %2193 = vmatmul.f32.gmra.mxu0 %v2175
      %v2194 = vpop.f32.mrf.mxu0
      %v2195 = vadd.f32 %v2152, %v2194
      %2196 = vdwg.mxu0
      %2197 = vmatpush.msra.mxu0 0.0
      %2198 = vmatpush.msra.mxu0 0.0
      %2199 = vmatpush.msra.mxu0 0.0
      %2200 = vmatpush.msra.mxu0 0.0
      %2201 = vmatpush.msra.mxu0 0.0
      %2202 = vmatpush.msra.mxu0 0.0
      %2203 = vmatpush.msra.mxu0 0.0
      %2204 = vmatpush.msra.mxu0 0.0
      %2205 = vmatpush.msra.mxu0 0.0
      %2206 = vmatpush.msra.mxu0 0.0
      %2207 = vmatpush.msra.mxu0 0.0
      %2208 = vmatpush.msra.mxu0 0.0
      %2209 = vmatpush.msra.mxu0 0.0
      %2210 = vmatpush.msra.mxu0 0.0
      %2211 = vmatpush.msra.mxu0 0.0
      %2212 = vmatpush.msra.mxu0 %v2107
      %2213 = vmatmul.f32.gmra.mxu0 %v2175
      %v2214 = vpop.f32.mrf.mxu0
      %v2215 = vadd.f32 %v2172, %v2214
      %2216 = vdwg.mxu0
      %s2217 = scalar_lea.vmem %s3, 112
      %v2218 = vld [vmem:[%s2217] sm:$0xff]
      %2222 = vrot.lane.b32.xlu0 %v2110, 112
      %v2223 = vpop.permute.xlu0 %2222
      %2224 = vrot.lane.b32.xlu0 %v2111, 112
      %v2225 = vpop.permute.xlu0 %2224
      %2226 = vrot.lane.b32.xlu0 %v2112, 112
      %v2227 = vpop.permute.xlu0 %2226
      %v2228 = vsel %vm599, %v2223, %v2225
      %v2229 = vsel %vm599, %v2225, %v2227
      %v2233 = vsel %vm1369, %v2218, 0
      %2235 = vmatpush.msra.mxu0 0.0
      %2236 = vmatpush.msra.mxu0 0.0
      %2237 = vmatpush.msra.mxu0 0.0
      %2238 = vmatpush.msra.mxu0 0.0
      %2239 = vmatpush.msra.mxu0 0.0
      %2240 = vmatpush.msra.mxu0 0.0
      %2241 = vmatpush.msra.mxu0 0.0
      %2242 = vmatpush.msra.mxu0 0.0
      %2243 = vmatpush.msra.mxu0 0.0
      %2244 = vmatpush.msra.mxu0 0.0
      %2245 = vmatpush.msra.mxu0 0.0
      %2246 = vmatpush.msra.mxu0 0.0
      %2247 = vmatpush.msra.mxu0 0.0
      %2248 = vmatpush.msra.mxu0 0.0
      %2249 = vmatpush.msra.mxu0 0.0
      %2250 = vmatpush.msra.mxu0 %v2228
      %2251 = vmatmul.f32.gmra.mxu0 %v2233
      %v2252 = vpop.f32.mrf.mxu0
      %v2253 = vadd.f32 0.0, %v2252
      %2254 = vdwg.mxu0
      %2255 = vmatpush.msra.mxu0 0.0
      %2256 = vmatpush.msra.mxu0 0.0
      %2257 = vmatpush.msra.mxu0 0.0
      %2258 = vmatpush.msra.mxu0 0.0
      %2259 = vmatpush.msra.mxu0 0.0
      %2260 = vmatpush.msra.mxu0 0.0
      %2261 = vmatpush.msra.mxu0 0.0
      %2262 = vmatpush.msra.mxu0 0.0
      %2263 = vmatpush.msra.mxu0 0.0
      %2264 = vmatpush.msra.mxu0 0.0
      %2265 = vmatpush.msra.mxu0 0.0
      %2266 = vmatpush.msra.mxu0 0.0
      %2267 = vmatpush.msra.mxu0 0.0
      %2268 = vmatpush.msra.mxu0 0.0
      %2269 = vmatpush.msra.mxu0 0.0
      %2270 = vmatpush.msra.mxu0 %v2229
      %2271 = vmatmul.f32.gmra.mxu0 %v2233
      %v2272 = vpop.f32.mrf.mxu0
      %v2273 = vadd.f32 0.0, %v2272
      %2274 = vdwg.mxu0
      %v2275 = vadd.f32 %v2195, %v2253
      %v2276 = vadd.f32 %v2215, %v2273
      %2277 = vrot.lane.b32.xlu0 %v1333, 17
      %v2278 = vpop.permute.xlu0 %2277
      %2279 = vrot.lane.b32.xlu0 %v1334, 17
      %v2280 = vpop.permute.xlu0 %2279
      %v2281 = vsel %vm1040, %v2278, %v2280
      %v2285 = vmul.f32 %v2110, %v2278
      %v2286 = vmul.f32 %v2111, %v2281
      %v2287 = vmul.f32 %v2112, %v2280
      %s2288 = scalar_lea.vmem %s3, 120
      %v2289 = vld [vmem:[%s2288] sm:$0xff]
      %2293 = vrot.lane.b32.xlu0 %v2285, 111
      %v2294 = vpop.permute.xlu0 %2293
      %2295 = vrot.lane.b32.xlu0 %v2286, 111
      %v2296 = vpop.permute.xlu0 %2295
      %2297 = vrot.lane.b32.xlu0 %v2287, 111
      %v2298 = vpop.permute.xlu0 %2297
      %v2299 = vsel %vm611, %v2294, %v2296
      %v2300 = vsel %vm611, %v2296, %v2298
      %v2304 = vsel %vm1369, %v2289, 0
      %2306 = vmatpush.msra.mxu0 0.0
      %2307 = vmatpush.msra.mxu0 0.0
      %2308 = vmatpush.msra.mxu0 0.0
      %2309 = vmatpush.msra.mxu0 0.0
      %2310 = vmatpush.msra.mxu0 0.0
      %2311 = vmatpush.msra.mxu0 0.0
      %2312 = vmatpush.msra.mxu0 0.0
      %2313 = vmatpush.msra.mxu0 0.0
      %2314 = vmatpush.msra.mxu0 0.0
      %2315 = vmatpush.msra.mxu0 0.0
      %2316 = vmatpush.msra.mxu0 0.0
      %2317 = vmatpush.msra.mxu0 0.0
      %2318 = vmatpush.msra.mxu0 0.0
      %2319 = vmatpush.msra.mxu0 0.0
      %2320 = vmatpush.msra.mxu0 0.0
      %2321 = vmatpush.msra.mxu0 %v2299
      %2322 = vmatmul.f32.gmra.mxu0 %v2304
      %v2323 = vpop.f32.mrf.mxu0
      %v2324 = vadd.f32 0.0, %v2323
      %2325 = vdwg.mxu0
      %2326 = vmatpush.msra.mxu0 0.0
      %2327 = vmatpush.msra.mxu0 0.0
      %2328 = vmatpush.msra.mxu0 0.0
      %2329 = vmatpush.msra.mxu0 0.0
      %2330 = vmatpush.msra.mxu0 0.0
      %2331 = vmatpush.msra.mxu0 0.0
      %2332 = vmatpush.msra.mxu0 0.0
      %2333 = vmatpush.msra.mxu0 0.0
      %2334 = vmatpush.msra.mxu0 0.0
      %2335 = vmatpush.msra.mxu0 0.0
      %2336 = vmatpush.msra.mxu0 0.0
      %2337 = vmatpush.msra.mxu0 0.0
      %2338 = vmatpush.msra.mxu0 0.0
      %2339 = vmatpush.msra.mxu0 0.0
      %2340 = vmatpush.msra.mxu0 0.0
      %2341 = vmatpush.msra.mxu0 %v2300
      %2342 = vmatmul.f32.gmra.mxu0 %v2304
      %v2343 = vpop.f32.mrf.mxu0
      %v2344 = vadd.f32 0.0, %v2343
      %2345 = vdwg.mxu0
      %v2346 = vadd.f32 %v2275, %v2324
      %v2347 = vadd.f32 %v2276, %v2344
      %v2348 = vadd.f32 %v2346, %v1590
      %v2349 = vadd.f32 %v2347, %v1590
      %v2350 = vmax.f32 %v2348, 0.0
      %v2351 = vmax.f32 %v2349, 0.0
      %2352 = vst [vmem:[%s294 + $0x8] sm:$0xff] %v2350
      %2353 = vst [vmem:[%s294 + $0x10] sm:$0xff] %v2351
      %v2354 = vld [vmem:[#allocation5] sm:$0x1]
      %v2355 = vld [vmem:[%s294] sm:$0xff]
      %v2356 = vld [vmem:[%s294 + $0x8] sm:$0xff]
      %v2357 = vld [vmem:[%s294 + $0x10] sm:$0xff]
      %v2358 = vmul.f32 %v2355, %v1342
      %v2359 = vmul.f32 %v2356, %v1345
      %v2360 = vmul.f32 %v2357, %v1344
      %v2361 = vld [vmem:[%s5] sm:$0x1]
      %v2362 = vld [vmem:[%s291] sm:$0xff]
      %v2363 = vld [vmem:[%s291 + $0x8] sm:$0xff]
      %v2364 = vld [vmem:[%s291 + $0x10] sm:$0xff]
      %s2365 = scalar_lea.vmem %s5, 1
      %v2366 = vld [vmem:[%s2365] sm:$0x1]
      %2370 = vrot.lane.b32.xlu0 %v2362, 16
      %v2371 = vpop.permute.xlu0 %2370
      %2372 = vrot.lane.b32.xlu0 %v2363, 16
      %v2373 = vpop.permute.xlu0 %2372
      %2374 = vrot.lane.b32.xlu0 %v2364, 16
      %v2375 = vpop.permute.xlu0 %2374
      %v2376 = vsel %vm1364, %v2371, %v2373
      %v2377 = vsel %vm1364, %v2373, %v2375
      %v2381 = vsel %vm1369, %v2366, 0
      %2383 = vmatpush.msra.mxu0 0.0
      %2384 = vmatpush.msra.mxu0 0.0
      %2385 = vmatpush.msra.mxu0 0.0
      %2386 = vmatpush.msra.mxu0 0.0
      %2387 = vmatpush.msra.mxu0 0.0
      %2388 = vmatpush.msra.mxu0 0.0
      %2389 = vmatpush.msra.mxu0 0.0
      %2390 = vmatpush.msra.mxu0 0.0
      %2391 = vmatpush.msra.mxu0 0.0
      %2392 = vmatpush.msra.mxu0 0.0
      %2393 = vmatpush.msra.mxu0 0.0
      %2394 = vmatpush.msra.mxu0 0.0
      %2395 = vmatpush.msra.mxu0 0.0
      %2396 = vmatpush.msra.mxu0 0.0
      %2397 = vmatpush.msra.mxu0 0.0
      %2398 = vmatpush.msra.mxu0 %v2376
      %2399 = vmatmul.f32.gmra.mxu0 %v2381
      %v2400 = vpop.f32.mrf.mxu0
      %v2401 = vadd.f32 0.0, %v2400
      %2402 = vdwg.mxu0
      %2403 = vmatpush.msra.mxu0 0.0
      %2404 = vmatpush.msra.mxu0 0.0
      %2405 = vmatpush.msra.mxu0 0.0
      %2406 = vmatpush.msra.mxu0 0.0
      %2407 = vmatpush.msra.mxu0 0.0
      %2408 = vmatpush.msra.mxu0 0.0
      %2409 = vmatpush.msra.mxu0 0.0
      %2410 = vmatpush.msra.mxu0 0.0
      %2411 = vmatpush.msra.mxu0 0.0
      %2412 = vmatpush.msra.mxu0 0.0
      %2413 = vmatpush.msra.mxu0 0.0
      %2414 = vmatpush.msra.mxu0 0.0
      %2415 = vmatpush.msra.mxu0 0.0
      %2416 = vmatpush.msra.mxu0 0.0
      %2417 = vmatpush.msra.mxu0 0.0
      %2418 = vmatpush.msra.mxu0 %v2377
      %2419 = vmatmul.f32.gmra.mxu0 %v2381
      %v2420 = vpop.f32.mrf.mxu0
      %v2421 = vadd.f32 0.0, %v2420
      %2422 = vdwg.mxu0
      %2426 = vrot.lane.b32.xlu0 %v2358, 17
      %v2427 = vpop.permute.xlu0 %2426
      %2428 = vrot.lane.b32.xlu0 %v2359, 17
      %v2429 = vpop.permute.xlu0 %2428
      %2430 = vrot.lane.b32.xlu0 %v2360, 17
      %v2431 = vpop.permute.xlu0 %2430
      %v2432 = vsel %vm1040, %v2427, %v2429
      %v2433 = vsel %vm1040, %v2429, %v2431
      %v2437 = vsel %vm1369, %v2361, 0
      %2439 = vmatpush.msra.mxu0 0.0
      %2440 = vmatpush.msra.mxu0 0.0
      %2441 = vmatpush.msra.mxu0 0.0
      %2442 = vmatpush.msra.mxu0 0.0
      %2443 = vmatpush.msra.mxu0 0.0
      %2444 = vmatpush.msra.mxu0 0.0
      %2445 = vmatpush.msra.mxu0 0.0
      %2446 = vmatpush.msra.mxu0 0.0
      %2447 = vmatpush.msra.mxu0 0.0
      %2448 = vmatpush.msra.mxu0 0.0
      %2449 = vmatpush.msra.mxu0 0.0
      %2450 = vmatpush.msra.mxu0 0.0
      %2451 = vmatpush.msra.mxu0 0.0
      %2452 = vmatpush.msra.mxu0 0.0
      %2453 = vmatpush.msra.mxu0 0.0
      %2454 = vmatpush.msra.mxu0 %v2432
      %2455 = vmatmul.f32.gmra.mxu0 %v2437
      %v2456 = vpop.f32.mrf.mxu0
      %v2457 = vadd.f32 %v2401, %v2456
      %2458 = vdwg.mxu0
      %2459 = vmatpush.msra.mxu0 0.0
      %2460 = vmatpush.msra.mxu0 0.0
      %2461 = vmatpush.msra.mxu0 0.0
      %2462 = vmatpush.msra.mxu0 0.0
      %2463 = vmatpush.msra.mxu0 0.0
      %2464 = vmatpush.msra.mxu0 0.0
      %2465 = vmatpush.msra.mxu0 0.0
      %2466 = vmatpush.msra.mxu0 0.0
      %2467 = vmatpush.msra.mxu0 0.0
      %2468 = vmatpush.msra.mxu0 0.0
      %2469 = vmatpush.msra.mxu0 0.0
      %2470 = vmatpush.msra.mxu0 0.0
      %2471 = vmatpush.msra.mxu0 0.0
      %2472 = vmatpush.msra.mxu0 0.0
      %2473 = vmatpush.msra.mxu0 0.0
      %2474 = vmatpush.msra.mxu0 %v2433
      %2475 = vmatmul.f32.gmra.mxu0 %v2437
      %v2476 = vpop.f32.mrf.mxu0
      %v2477 = vadd.f32 %v2421, %v2476
      %2478 = vdwg.mxu0
      %v2479 = vld [vmem:[%s288] sm:$0xff]
      %v2480 = vld [vmem:[%s288 + $0x8] sm:$0xff]
      %v2481 = vld [vmem:[%s288 + $0x10] sm:$0xff]
      %v2482 = vmul.f32 %v2479, %v1470
      %v2483 = vmul.f32 %v2480, %v1473
      %v2484 = vmul.f32 %v2481, %v1472
      %s2485 = scalar_lea.vmem %s5, 2
      %v2486 = vld [vmem:[%s2485] sm:$0x1]
      %2490 = vrot.lane.b32.xlu0 %v2482, 1
      %v2491 = vpop.permute.xlu0 %2490
      %2492 = vrot.lane.b32.xlu0 %v2483, 1
      %v2493 = vpop.permute.xlu0 %2492
      %2494 = vrot.lane.b32.xlu0 %v2484, 1
      %v2495 = vpop.permute.xlu0 %2494
      %v2496 = vsel %vm852, %v2491, %v2493
      %v2497 = vsel %vm852, %v2493, %v2495
      %v2501 = vsel %vm1369, %v2486, 0
      %2503 = vmatpush.msra.mxu0 0.0
      %2504 = vmatpush.msra.mxu0 0.0
      %2505 = vmatpush.msra.mxu0 0.0
      %2506 = vmatpush.msra.mxu0 0.0
      %2507 = vmatpush.msra.mxu0 0.0
      %2508 = vmatpush.msra.mxu0 0.0
      %2509 = vmatpush.msra.mxu0 0.0
      %2510 = vmatpush.msra.mxu0 0.0
      %2511 = vmatpush.msra.mxu0 0.0
      %2512 = vmatpush.msra.mxu0 0.0
      %2513 = vmatpush.msra.mxu0 0.0
      %2514 = vmatpush.msra.mxu0 0.0
      %2515 = vmatpush.msra.mxu0 0.0
      %2516 = vmatpush.msra.mxu0 0.0
      %2517 = vmatpush.msra.mxu0 0.0
      %2518 = vmatpush.msra.mxu0 %v2496
      %2519 = vmatmul.f32.gmra.mxu0 %v2501
      %v2520 = vpop.f32.mrf.mxu0
      %v2521 = vadd.f32 0.0, %v2520
      %2522 = vdwg.mxu0
      %2523 = vmatpush.msra.mxu0 0.0
      %2524 = vmatpush.msra.mxu0 0.0
      %2525 = vmatpush.msra.mxu0 0.0
      %2526 = vmatpush.msra.mxu0 0.0
      %2527 = vmatpush.msra.mxu0 0.0
      %2528 = vmatpush.msra.mxu0 0.0
      %2529 = vmatpush.msra.mxu0 0.0
      %2530 = vmatpush.msra.mxu0 0.0
      %2531 = vmatpush.msra.mxu0 0.0
      %2532 = vmatpush.msra.mxu0 0.0
      %2533 = vmatpush.msra.mxu0 0.0
      %2534 = vmatpush.msra.mxu0 0.0
      %2535 = vmatpush.msra.mxu0 0.0
      %2536 = vmatpush.msra.mxu0 0.0
      %2537 = vmatpush.msra.mxu0 0.0
      %2538 = vmatpush.msra.mxu0 %v2497
      %2539 = vmatmul.f32.gmra.mxu0 %v2501
      %v2540 = vpop.f32.mrf.mxu0
      %v2541 = vadd.f32 0.0, %v2540
      %2542 = vdwg.mxu0
      %v2543 = vadd.f32 %v2457, %v2521
      %v2544 = vadd.f32 %v2477, %v2541
      %v2545 = vld [vmem:[#allocation4 + $0x8] sm:$0xff]
      %v2546 = vld [vmem:[#allocation4 + $0x10] sm:$0xff]
      %s2547 = scalar_lea.vmem %s5, 3
      %v2548 = vld [vmem:[%s2547] sm:$0x1]
      %v2550 = vsel %vm1369, %v2548, 0
      %2552 = vmatpush.msra.mxu0 0.0
      %2553 = vmatpush.msra.mxu0 0.0
      %2554 = vmatpush.msra.mxu0 0.0
      %2555 = vmatpush.msra.mxu0 0.0
      %2556 = vmatpush.msra.mxu0 0.0
      %2557 = vmatpush.msra.mxu0 0.0
      %2558 = vmatpush.msra.mxu0 0.0
      %2559 = vmatpush.msra.mxu0 0.0
      %2560 = vmatpush.msra.mxu0 0.0
      %2561 = vmatpush.msra.mxu0 0.0
      %2562 = vmatpush.msra.mxu0 0.0
      %2563 = vmatpush.msra.mxu0 0.0
      %2564 = vmatpush.msra.mxu0 0.0
      %2565 = vmatpush.msra.mxu0 0.0
      %2566 = vmatpush.msra.mxu0 0.0
      %2567 = vmatpush.msra.mxu0 %v2545
      %2568 = vmatmul.f32.gmra.mxu0 %v2550
      %v2569 = vpop.f32.mrf.mxu0
      %v2570 = vadd.f32 0.0, %v2569
      %2571 = vdwg.mxu0
      %2572 = vmatpush.msra.mxu0 0.0
      %2573 = vmatpush.msra.mxu0 0.0
      %2574 = vmatpush.msra.mxu0 0.0
      %2575 = vmatpush.msra.mxu0 0.0
      %2576 = vmatpush.msra.mxu0 0.0
      %2577 = vmatpush.msra.mxu0 0.0
      %2578 = vmatpush.msra.mxu0 0.0
      %2579 = vmatpush.msra.mxu0 0.0
      %2580 = vmatpush.msra.mxu0 0.0
      %2581 = vmatpush.msra.mxu0 0.0
      %2582 = vmatpush.msra.mxu0 0.0
      %2583 = vmatpush.msra.mxu0 0.0
      %2584 = vmatpush.msra.mxu0 0.0
      %2585 = vmatpush.msra.mxu0 0.0
      %2586 = vmatpush.msra.mxu0 0.0
      %2587 = vmatpush.msra.mxu0 %v2546
      %2588 = vmatmul.f32.gmra.mxu0 %v2550
      %v2589 = vpop.f32.mrf.mxu0
      %v2590 = vadd.f32 0.0, %v2589
      %2591 = vdwg.mxu0
      %v2592 = vadd.f32 %v2543, %v2570
      %v2593 = vadd.f32 %v2544, %v2590
      %2595 = vset.pattern.permute.xlu0 0
      %2596 = vperm.xlu0 %2595, %v2354
      %v2597 = vpop.permute.xlu0 %2596
      %v2599 = vperm.slane %v2597, 0
      %v2600 = vadd.f32 %v2592, %v2599
      %v2601 = vadd.f32 %v2593, %v2599
      %v2602 = vmax.f32 %v2600, 0.0
      %v2603 = vmax.f32 %v2601, 0.0
      %v2606 = vrot.slane %v2603, 7
      %v2607 = vsel %vm381, %v2602, %v2606
      %2609 = vst.msk [vmem:[%s277] ss:$8 sm:$0x3] %vm299, %v2607
      %2610 = vst.msk [vmem:[%s277] ss:$8 sm:$0x0] %vm299, %v2607
      %v2611 = vld [vmem:[%s291] sm:$0xff]
      %v2612 = vld [vmem:[%s291 + $0x8] sm:$0xff]
      %v2613 = vld [vmem:[%s291 + $0x10] sm:$0xff]
      %s2614 = scalar_lea.vmem %s5, 4
      %v2615 = vld [vmem:[%s2614] sm:$0x1]
      %v2616 = vld [vmem:[%s294] sm:$0xff]
      %v2617 = vld [vmem:[%s294 + $0x8] sm:$0xff]
      %v2618 = vld [vmem:[%s294 + $0x10] sm:$0xff]
      %s2619 = scalar_lea.vmem %s5, 5
      %v2620 = vld [vmem:[%s2619] sm:$0x1]
      %2624 = vrot.lane.b32.xlu0 %v2616, 16
      %v2625 = vpop.permute.xlu0 %2624
      %2626 = vrot.lane.b32.xlu0 %v2617, 16
      %v2627 = vpop.permute.xlu0 %2626
      %2628 = vrot.lane.b32.xlu0 %v2618, 16
      %v2629 = vpop.permute.xlu0 %2628
      %v2630 = vsel %vm1364, %v2625, %v2627
      %v2631 = vsel %vm1364, %v2627, %v2629
      %v2635 = vsel %vm1369, %v2620, 0
      %2637 = vmatpush.msra.mxu0 0.0
      %2638 = vmatpush.msra.mxu0 0.0
      %2639 = vmatpush.msra.mxu0 0.0
      %2640 = vmatpush.msra.mxu0 0.0
      %2641 = vmatpush.msra.mxu0 0.0
      %2642 = vmatpush.msra.mxu0 0.0
      %2643 = vmatpush.msra.mxu0 0.0
      %2644 = vmatpush.msra.mxu0 0.0
      %2645 = vmatpush.msra.mxu0 0.0
      %2646 = vmatpush.msra.mxu0 0.0
      %2647 = vmatpush.msra.mxu0 0.0
      %2648 = vmatpush.msra.mxu0 0.0
      %2649 = vmatpush.msra.mxu0 0.0
      %2650 = vmatpush.msra.mxu0 0.0
      %2651 = vmatpush.msra.mxu0 0.0
      %2652 = vmatpush.msra.mxu0 %v2630
      %2653 = vmatmul.f32.gmra.mxu0 %v2635
      %v2654 = vpop.f32.mrf.mxu0
      %v2655 = vadd.f32 0.0, %v2654
      %2656 = vdwg.mxu0
      %2657 = vmatpush.msra.mxu0 0.0
      %2658 = vmatpush.msra.mxu0 0.0
      %2659 = vmatpush.msra.mxu0 0.0
      %2660 = vmatpush.msra.mxu0 0.0
      %2661 = vmatpush.msra.mxu0 0.0
      %2662 = vmatpush.msra.mxu0 0.0
      %2663 = vmatpush.msra.mxu0 0.0
      %2664 = vmatpush.msra.mxu0 0.0
      %2665 = vmatpush.msra.mxu0 0.0
      %2666 = vmatpush.msra.mxu0 0.0
      %2667 = vmatpush.msra.mxu0 0.0
      %2668 = vmatpush.msra.mxu0 0.0
      %2669 = vmatpush.msra.mxu0 0.0
      %2670 = vmatpush.msra.mxu0 0.0
      %2671 = vmatpush.msra.mxu0 0.0
      %2672 = vmatpush.msra.mxu0 %v2631
      %2673 = vmatmul.f32.gmra.mxu0 %v2635
      %v2674 = vpop.f32.mrf.mxu0
      %v2675 = vadd.f32 0.0, %v2674
      %2676 = vdwg.mxu0
      %2680 = vrot.lane.b32.xlu0 %v2611, 16
      %v2681 = vpop.permute.xlu0 %2680
      %2682 = vrot.lane.b32.xlu0 %v2612, 16
      %v2683 = vpop.permute.xlu0 %2682
      %2684 = vrot.lane.b32.xlu0 %v2613, 16
      %v2685 = vpop.permute.xlu0 %2684
      %v2686 = vsel %vm1364, %v2681, %v2683
      %v2687 = vsel %vm1364, %v2683, %v2685
      %v2691 = vsel %vm1369, %v2615, 0
      %2693 = vmatpush.msra.mxu0 0.0
      %2694 = vmatpush.msra.mxu0 0.0
      %2695 = vmatpush.msra.mxu0 0.0
      %2696 = vmatpush.msra.mxu0 0.0
      %2697 = vmatpush.msra.mxu0 0.0
      %2698 = vmatpush.msra.mxu0 0.0
      %2699 = vmatpush.msra.mxu0 0.0
      %2700 = vmatpush.msra.mxu0 0.0
      %2701 = vmatpush.msra.mxu0 0.0
      %2702 = vmatpush.msra.mxu0 0.0
      %2703 = vmatpush.msra.mxu0 0.0
      %2704 = vmatpush.msra.mxu0 0.0
      %2705 = vmatpush.msra.mxu0 0.0
      %2706 = vmatpush.msra.mxu0 0.0
      %2707 = vmatpush.msra.mxu0 0.0
      %2708 = vmatpush.msra.mxu0 %v2686
      %2709 = vmatmul.f32.gmra.mxu0 %v2691
      %v2710 = vpop.f32.mrf.mxu0
      %v2711 = vadd.f32 %v2655, %v2710
      %2712 = vdwg.mxu0
      %2713 = vmatpush.msra.mxu0 0.0
      %2714 = vmatpush.msra.mxu0 0.0
      %2715 = vmatpush.msra.mxu0 0.0
      %2716 = vmatpush.msra.mxu0 0.0
      %2717 = vmatpush.msra.mxu0 0.0
      %2718 = vmatpush.msra.mxu0 0.0
      %2719 = vmatpush.msra.mxu0 0.0
      %2720 = vmatpush.msra.mxu0 0.0
      %2721 = vmatpush.msra.mxu0 0.0
      %2722 = vmatpush.msra.mxu0 0.0
      %2723 = vmatpush.msra.mxu0 0.0
      %2724 = vmatpush.msra.mxu0 0.0
      %2725 = vmatpush.msra.mxu0 0.0
      %2726 = vmatpush.msra.mxu0 0.0
      %2727 = vmatpush.msra.mxu0 0.0
      %2728 = vmatpush.msra.mxu0 %v2687
      %2729 = vmatmul.f32.gmra.mxu0 %v2691
      %v2730 = vpop.f32.mrf.mxu0
      %v2731 = vadd.f32 %v2675, %v2730
      %2732 = vdwg.mxu0
      %v2733 = vld [vmem:[#allocation4 + $0x8] sm:$0xff]
      %v2734 = vld [vmem:[#allocation4 + $0x10] sm:$0xff]
      %s2735 = scalar_lea.vmem %s5, 6
      %v2736 = vld [vmem:[%s2735] sm:$0x1]
      %v2738 = vsel %vm1369, %v2736, 0
      %2740 = vmatpush.msra.mxu0 0.0
      %2741 = vmatpush.msra.mxu0 0.0
      %2742 = vmatpush.msra.mxu0 0.0
      %2743 = vmatpush.msra.mxu0 0.0
      %2744 = vmatpush.msra.mxu0 0.0
      %2745 = vmatpush.msra.mxu0 0.0
      %2746 = vmatpush.msra.mxu0 0.0
      %2747 = vmatpush.msra.mxu0 0.0
      %2748 = vmatpush.msra.mxu0 0.0
      %2749 = vmatpush.msra.mxu0 0.0
      %2750 = vmatpush.msra.mxu0 0.0
      %2751 = vmatpush.msra.mxu0 0.0
      %2752 = vmatpush.msra.mxu0 0.0
      %2753 = vmatpush.msra.mxu0 0.0
      %2754 = vmatpush.msra.mxu0 0.0
      %2755 = vmatpush.msra.mxu0 %v2733
      %2756 = vmatmul.f32.gmra.mxu0 %v2738
      %v2757 = vpop.f32.mrf.mxu0
      %v2758 = vadd.f32 0.0, %v2757
      %2759 = vdwg.mxu0
      %2760 = vmatpush.msra.mxu0 0.0
      %2761 = vmatpush.msra.mxu0 0.0
      %2762 = vmatpush.msra.mxu0 0.0
      %2763 = vmatpush.msra.mxu0 0.0
      %2764 = vmatpush.msra.mxu0 0.0
      %2765 = vmatpush.msra.mxu0 0.0
      %2766 = vmatpush.msra.mxu0 0.0
      %2767 = vmatpush.msra.mxu0 0.0
      %2768 = vmatpush.msra.mxu0 0.0
      %2769 = vmatpush.msra.mxu0 0.0
      %2770 = vmatpush.msra.mxu0 0.0
      %2771 = vmatpush.msra.mxu0 0.0
      %2772 = vmatpush.msra.mxu0 0.0
      %2773 = vmatpush.msra.mxu0 0.0
      %2774 = vmatpush.msra.mxu0 0.0
      %2775 = vmatpush.msra.mxu0 %v2734
      %2776 = vmatmul.f32.gmra.mxu0 %v2738
      %v2777 = vpop.f32.mrf.mxu0
      %v2778 = vadd.f32 0.0, %v2777
      %2779 = vdwg.mxu0
      %v2780 = vadd.f32 %v2711, %v2758
      %v2781 = vadd.f32 %v2731, %v2778
      %v2782 = vld [vmem:[%s288 + $0x8] sm:$0xff]
      %v2783 = vld [vmem:[%s288 + $0x10] sm:$0xff]
      %s2784 = scalar_lea.vmem %s5, 7
      %v2785 = vld [vmem:[%s2784] sm:$0x1]
      %v2787 = vsel %vm1369, %v2785, 0
      %2789 = vmatpush.msra.mxu0 0.0
      %2790 = vmatpush.msra.mxu0 0.0
      %2791 = vmatpush.msra.mxu0 0.0
      %2792 = vmatpush.msra.mxu0 0.0
      %2793 = vmatpush.msra.mxu0 0.0
      %2794 = vmatpush.msra.mxu0 0.0
      %2795 = vmatpush.msra.mxu0 0.0
      %2796 = vmatpush.msra.mxu0 0.0
      %2797 = vmatpush.msra.mxu0 0.0
      %2798 = vmatpush.msra.mxu0 0.0
      %2799 = vmatpush.msra.mxu0 0.0
      %2800 = vmatpush.msra.mxu0 0.0
      %2801 = vmatpush.msra.mxu0 0.0
      %2802 = vmatpush.msra.mxu0 0.0
      %2803 = vmatpush.msra.mxu0 0.0
      %2804 = vmatpush.msra.mxu0 %v2782
      %2805 = vmatmul.f32.gmra.mxu0 %v2787
      %v2806 = vpop.f32.mrf.mxu0
      %v2807 = vadd.f32 0.0, %v2806
      %2808 = vdwg.mxu0
      %2809 = vmatpush.msra.mxu0 0.0
      %2810 = vmatpush.msra.mxu0 0.0
      %2811 = vmatpush.msra.mxu0 0.0
      %2812 = vmatpush.msra.mxu0 0.0
      %2813 = vmatpush.msra.mxu0 0.0
      %2814 = vmatpush.msra.mxu0 0.0
      %2815 = vmatpush.msra.mxu0 0.0
      %2816 = vmatpush.msra.mxu0 0.0
      %2817 = vmatpush.msra.mxu0 0.0
      %2818 = vmatpush.msra.mxu0 0.0
      %2819 = vmatpush.msra.mxu0 0.0
      %2820 = vmatpush.msra.mxu0 0.0
      %2821 = vmatpush.msra.mxu0 0.0
      %2822 = vmatpush.msra.mxu0 0.0
      %2823 = vmatpush.msra.mxu0 0.0
      %2824 = vmatpush.msra.mxu0 %v2783
      %2825 = vmatmul.f32.gmra.mxu0 %v2787
      %v2826 = vpop.f32.mrf.mxu0
      %v2827 = vadd.f32 0.0, %v2826
      %2828 = vdwg.mxu0
      %v2829 = vadd.f32 %v2780, %v2807
      %v2830 = vadd.f32 %v2781, %v2827
      %v2831 = vadd.f32 %v2829, %v2599
      %v2832 = vadd.f32 %v2830, %v2599
      %v2833 = vmax.f32 %v2831, 0.0
      %v2834 = vmax.f32 %v2832, 0.0
      %v2837 = vrot.slane %v2834, 7
      %v2838 = vsel %vm381, %v2833, %v2837
      %s2840 = scalar_lea.vmem %s277, 1
      %2841 = vst.msk [vmem:[%s2840] ss:$8 sm:$0x3] %vm299, %v2838
      %2842 = vst.msk [vmem:[%s2840] ss:$8 sm:$0x0] %vm299, %v2838
      %v2843 = vld [vmem:[%s288] sm:$0xff]
      %v2844 = vld [vmem:[%s288 + $0x8] sm:$0xff]
      %v2845 = vld [vmem:[%s288 + $0x10] sm:$0xff]
      %v2846 = vmul.f32 %v2843, %v1470
      %v2847 = vmul.f32 %v2844, %v1473
      %v2848 = vmul.f32 %v2845, %v1472
      %s2849 = scalar_lea.vmem %s5, 8
      %v2850 = vld [vmem:[%s2849] sm:$0x1]
      %v2851 = vld [vmem:[#allocation4 + $0x8] sm:$0xff]
      %v2852 = vld [vmem:[#allocation4 + $0x10] sm:$0xff]
      %s2853 = scalar_lea.vmem %s5, 9
      %v2854 = vld [vmem:[%s2853] sm:$0x1]
      %v2856 = vsel %vm1369, %v2854, 0
      %2858 = vmatpush.msra.mxu0 0.0
      %2859 = vmatpush.msra.mxu0 0.0
      %2860 = vmatpush.msra.mxu0 0.0
      %2861 = vmatpush.msra.mxu0 0.0
      %2862 = vmatpush.msra.mxu0 0.0
      %2863 = vmatpush.msra.mxu0 0.0
      %2864 = vmatpush.msra.mxu0 0.0
      %2865 = vmatpush.msra.mxu0 0.0
      %2866 = vmatpush.msra.mxu0 0.0
      %2867 = vmatpush.msra.mxu0 0.0
      %2868 = vmatpush.msra.mxu0 0.0
      %2869 = vmatpush.msra.mxu0 0.0
      %2870 = vmatpush.msra.mxu0 0.0
      %2871 = vmatpush.msra.mxu0 0.0
      %2872 = vmatpush.msra.mxu0 0.0
      %2873 = vmatpush.msra.mxu0 %v2851
      %2874 = vmatmul.f32.gmra.mxu0 %v2856
      %v2875 = vpop.f32.mrf.mxu0
      %v2876 = vadd.f32 0.0, %v2875
      %2877 = vdwg.mxu0
      %2878 = vmatpush.msra.mxu0 0.0
      %2879 = vmatpush.msra.mxu0 0.0
      %2880 = vmatpush.msra.mxu0 0.0
      %2881 = vmatpush.msra.mxu0 0.0
      %2882 = vmatpush.msra.mxu0 0.0
      %2883 = vmatpush.msra.mxu0 0.0
      %2884 = vmatpush.msra.mxu0 0.0
      %2885 = vmatpush.msra.mxu0 0.0
      %2886 = vmatpush.msra.mxu0 0.0
      %2887 = vmatpush.msra.mxu0 0.0
      %2888 = vmatpush.msra.mxu0 0.0
      %2889 = vmatpush.msra.mxu0 0.0
      %2890 = vmatpush.msra.mxu0 0.0
      %2891 = vmatpush.msra.mxu0 0.0
      %2892 = vmatpush.msra.mxu0 0.0
      %2893 = vmatpush.msra.mxu0 %v2852
      %2894 = vmatmul.f32.gmra.mxu0 %v2856
      %v2895 = vpop.f32.mrf.mxu0
      %v2896 = vadd.f32 0.0, %v2895
      %2897 = vdwg.mxu0
      %2901 = vrot.lane.b32.xlu0 %v2846, 1
      %v2902 = vpop.permute.xlu0 %2901
      %2903 = vrot.lane.b32.xlu0 %v2847, 1
      %v2904 = vpop.permute.xlu0 %2903
      %2905 = vrot.lane.b32.xlu0 %v2848, 1
      %v2906 = vpop.permute.xlu0 %2905
      %v2907 = vsel %vm852, %v2902, %v2904
      %v2908 = vsel %vm852, %v2904, %v2906
      %v2912 = vsel %vm1369, %v2850, 0
      %2914 = vmatpush.msra.mxu0 0.0
      %2915 = vmatpush.msra.mxu0 0.0
      %2916 = vmatpush.msra.mxu0 0.0
      %2917 = vmatpush.msra.mxu0 0.0
      %2918 = vmatpush.msra.mxu0 0.0
      %2919 = vmatpush.msra.mxu0 0.0
      %2920 = vmatpush.msra.mxu0 0.0
      %2921 = vmatpush.msra.mxu0 0.0
      %2922 = vmatpush.msra.mxu0 0.0
      %2923 = vmatpush.msra.mxu0 0.0
      %2924 = vmatpush.msra.mxu0 0.0
      %2925 = vmatpush.msra.mxu0 0.0
      %2926 = vmatpush.msra.mxu0 0.0
      %2927 = vmatpush.msra.mxu0 0.0
      %2928 = vmatpush.msra.mxu0 0.0
      %2929 = vmatpush.msra.mxu0 %v2907
      %2930 = vmatmul.f32.gmra.mxu0 %v2912
      %v2931 = vpop.f32.mrf.mxu0
      %v2932 = vadd.f32 %v2876, %v2931
      %2933 = vdwg.mxu0
      %2934 = vmatpush.msra.mxu0 0.0
      %2935 = vmatpush.msra.mxu0 0.0
      %2936 = vmatpush.msra.mxu0 0.0
      %2937 = vmatpush.msra.mxu0 0.0
      %2938 = vmatpush.msra.mxu0 0.0
      %2939 = vmatpush.msra.mxu0 0.0
      %2940 = vmatpush.msra.mxu0 0.0
      %2941 = vmatpush.msra.mxu0 0.0
      %2942 = vmatpush.msra.mxu0 0.0
      %2943 = vmatpush.msra.mxu0 0.0
      %2944 = vmatpush.msra.mxu0 0.0
      %2945 = vmatpush.msra.mxu0 0.0
      %2946 = vmatpush.msra.mxu0 0.0
      %2947 = vmatpush.msra.mxu0 0.0
      %2948 = vmatpush.msra.mxu0 0.0
      %2949 = vmatpush.msra.mxu0 %v2908
      %2950 = vmatmul.f32.gmra.mxu0 %v2912
      %v2951 = vpop.f32.mrf.mxu0
      %v2952 = vadd.f32 %v2896, %v2951
      %2953 = vdwg.mxu0
      %v2954 = vld [vmem:[%s294] sm:$0xff]
      %v2955 = vld [vmem:[%s294 + $0x8] sm:$0xff]
      %v2956 = vld [vmem:[%s294 + $0x10] sm:$0xff]
      %v2957 = vmul.f32 %v2954, %v1470
      %v2958 = vmul.f32 %v2955, %v1473
      %v2959 = vmul.f32 %v2956, %v1472
      %s2960 = scalar_lea.vmem %s5, 10
      %v2961 = vld [vmem:[%s2960] sm:$0x1]
      %2965 = vrot.lane.b32.xlu0 %v2957, 1
      %v2966 = vpop.permute.xlu0 %2965
      %2967 = vrot.lane.b32.xlu0 %v2958, 1
      %v2968 = vpop.permute.xlu0 %2967
      %2969 = vrot.lane.b32.xlu0 %v2959, 1
      %v2970 = vpop.permute.xlu0 %2969
      %v2971 = vsel %vm852, %v2966, %v2968
      %v2972 = vsel %vm852, %v2968, %v2970
      %v2976 = vsel %vm1369, %v2961, 0
      %2978 = vmatpush.msra.mxu0 0.0
      %2979 = vmatpush.msra.mxu0 0.0
      %2980 = vmatpush.msra.mxu0 0.0
      %2981 = vmatpush.msra.mxu0 0.0
      %2982 = vmatpush.msra.mxu0 0.0
      %2983 = vmatpush.msra.mxu0 0.0
      %2984 = vmatpush.msra.mxu0 0.0
      %2985 = vmatpush.msra.mxu0 0.0
      %2986 = vmatpush.msra.mxu0 0.0
      %2987 = vmatpush.msra.mxu0 0.0
      %2988 = vmatpush.msra.mxu0 0.0
      %2989 = vmatpush.msra.mxu0 0.0
      %2990 = vmatpush.msra.mxu0 0.0
      %2991 = vmatpush.msra.mxu0 0.0
      %2992 = vmatpush.msra.mxu0 0.0
      %2993 = vmatpush.msra.mxu0 %v2971
      %2994 = vmatmul.f32.gmra.mxu0 %v2976
      %v2995 = vpop.f32.mrf.mxu0
      %v2996 = vadd.f32 0.0, %v2995
      %2997 = vdwg.mxu0
      %2998 = vmatpush.msra.mxu0 0.0
      %2999 = vmatpush.msra.mxu0 0.0
      %3000 = vmatpush.msra.mxu0 0.0
      %3001 = vmatpush.msra.mxu0 0.0
      %3002 = vmatpush.msra.mxu0 0.0
      %3003 = vmatpush.msra.mxu0 0.0
      %3004 = vmatpush.msra.mxu0 0.0
      %3005 = vmatpush.msra.mxu0 0.0
      %3006 = vmatpush.msra.mxu0 0.0
      %3007 = vmatpush.msra.mxu0 0.0
      %3008 = vmatpush.msra.mxu0 0.0
      %3009 = vmatpush.msra.mxu0 0.0
      %3010 = vmatpush.msra.mxu0 0.0
      %3011 = vmatpush.msra.mxu0 0.0
      %3012 = vmatpush.msra.mxu0 0.0
      %3013 = vmatpush.msra.mxu0 %v2972
      %3014 = vmatmul.f32.gmra.mxu0 %v2976
      %v3015 = vpop.f32.mrf.mxu0
      %v3016 = vadd.f32 0.0, %v3015
      %3017 = vdwg.mxu0
      %v3018 = vadd.f32 %v2932, %v2996
      %v3019 = vadd.f32 %v2952, %v3016
      %v3020 = vld [vmem:[%s291 + $0x8] sm:$0xff]
      %v3021 = vld [vmem:[%s291 + $0x10] sm:$0xff]
      %s3022 = scalar_lea.vmem %s5, 11
      %v3023 = vld [vmem:[%s3022] sm:$0x1]
      %v3025 = vsel %vm1369, %v3023, 0
      %3027 = vmatpush.msra.mxu0 0.0
      %3028 = vmatpush.msra.mxu0 0.0
      %3029 = vmatpush.msra.mxu0 0.0
      %3030 = vmatpush.msra.mxu0 0.0
      %3031 = vmatpush.msra.mxu0 0.0
      %3032 = vmatpush.msra.mxu0 0.0
      %3033 = vmatpush.msra.mxu0 0.0
      %3034 = vmatpush.msra.mxu0 0.0
      %3035 = vmatpush.msra.mxu0 0.0
      %3036 = vmatpush.msra.mxu0 0.0
      %3037 = vmatpush.msra.mxu0 0.0
      %3038 = vmatpush.msra.mxu0 0.0
      %3039 = vmatpush.msra.mxu0 0.0
      %3040 = vmatpush.msra.mxu0 0.0
      %3041 = vmatpush.msra.mxu0 0.0
      %3042 = vmatpush.msra.mxu0 %v3020
      %3043 = vmatmul.f32.gmra.mxu0 %v3025
      %v3044 = vpop.f32.mrf.mxu0
      %v3045 = vadd.f32 0.0, %v3044
      %3046 = vdwg.mxu0
      %3047 = vmatpush.msra.mxu0 0.0
      %3048 = vmatpush.msra.mxu0 0.0
      %3049 = vmatpush.msra.mxu0 0.0
      %3050 = vmatpush.msra.mxu0 0.0
      %3051 = vmatpush.msra.mxu0 0.0
      %3052 = vmatpush.msra.mxu0 0.0
      %3053 = vmatpush.msra.mxu0 0.0
      %3054 = vmatpush.msra.mxu0 0.0
      %3055 = vmatpush.msra.mxu0 0.0
      %3056 = vmatpush.msra.mxu0 0.0
      %3057 = vmatpush.msra.mxu0 0.0
      %3058 = vmatpush.msra.mxu0 0.0
      %3059 = vmatpush.msra.mxu0 0.0
      %3060 = vmatpush.msra.mxu0 0.0
      %3061 = vmatpush.msra.mxu0 0.0
      %3062 = vmatpush.msra.mxu0 %v3021
      %3063 = vmatmul.f32.gmra.mxu0 %v3025
      %v3064 = vpop.f32.mrf.mxu0
      %v3065 = vadd.f32 0.0, %v3064
      %3066 = vdwg.mxu0
      %v3067 = vadd.f32 %v3018, %v3045
      %v3068 = vadd.f32 %v3019, %v3065
      %v3069 = vadd.f32 %v3067, %v2599
      %v3070 = vadd.f32 %v3068, %v2599
      %v3071 = vmax.f32 %v3069, 0.0
      %v3072 = vmax.f32 %v3070, 0.0
      %v3075 = vrot.slane %v3072, 7
      %v3076 = vsel %vm381, %v3071, %v3075
      %s3078 = scalar_lea.vmem %s277, 4
      %3079 = vst.msk [vmem:[%s3078] ss:$8 sm:$0x3] %vm299, %v3076
      %3080 = vst.msk [vmem:[%s3078] ss:$8 sm:$0x0] %vm299, %v3076
      %v3081 = vld [vmem:[#allocation4 + $0x8] sm:$0xff]
      %v3082 = vld [vmem:[#allocation4 + $0x10] sm:$0xff]
      %s3083 = scalar_lea.vmem %s5, 12
      %v3084 = vld [vmem:[%s3083] sm:$0x1]
      %v3085 = vld [vmem:[%s288 + $0x8] sm:$0xff]
      %v3086 = vld [vmem:[%s288 + $0x10] sm:$0xff]
      %s3087 = scalar_lea.vmem %s5, 13
      %v3088 = vld [vmem:[%s3087] sm:$0x1]
      %v3090 = vsel %vm1369, %v3088, 0
      %3092 = vmatpush.msra.mxu0 0.0
      %3093 = vmatpush.msra.mxu0 0.0
      %3094 = vmatpush.msra.mxu0 0.0
      %3095 = vmatpush.msra.mxu0 0.0
      %3096 = vmatpush.msra.mxu0 0.0
      %3097 = vmatpush.msra.mxu0 0.0
      %3098 = vmatpush.msra.mxu0 0.0
      %3099 = vmatpush.msra.mxu0 0.0
      %3100 = vmatpush.msra.mxu0 0.0
      %3101 = vmatpush.msra.mxu0 0.0
      %3102 = vmatpush.msra.mxu0 0.0
      %3103 = vmatpush.msra.mxu0 0.0
      %3104 = vmatpush.msra.mxu0 0.0
      %3105 = vmatpush.msra.mxu0 0.0
      %3106 = vmatpush.msra.mxu0 0.0
      %3107 = vmatpush.msra.mxu0 %v3085
      %3108 = vmatmul.f32.gmra.mxu0 %v3090
      %v3109 = vpop.f32.mrf.mxu0
      %v3110 = vadd.f32 0.0, %v3109
      %3111 = vdwg.mxu0
      %3112 = vmatpush.msra.mxu0 0.0
      %3113 = vmatpush.msra.mxu0 0.0
      %3114 = vmatpush.msra.mxu0 0.0
      %3115 = vmatpush.msra.mxu0 0.0
      %3116 = vmatpush.msra.mxu0 0.0
      %3117 = vmatpush.msra.mxu0 0.0
      %3118 = vmatpush.msra.mxu0 0.0
      %3119 = vmatpush.msra.mxu0 0.0
      %3120 = vmatpush.msra.mxu0 0.0
      %3121 = vmatpush.msra.mxu0 0.0
      %3122 = vmatpush.msra.mxu0 0.0
      %3123 = vmatpush.msra.mxu0 0.0
      %3124 = vmatpush.msra.mxu0 0.0
      %3125 = vmatpush.msra.mxu0 0.0
      %3126 = vmatpush.msra.mxu0 0.0
      %3127 = vmatpush.msra.mxu0 %v3086
      %3128 = vmatmul.f32.gmra.mxu0 %v3090
      %v3129 = vpop.f32.mrf.mxu0
      %v3130 = vadd.f32 0.0, %v3129
      %3131 = vdwg.mxu0
      %v3133 = vsel %vm1369, %v3084, 0
      %3135 = vmatpush.msra.mxu0 0.0
      %3136 = vmatpush.msra.mxu0 0.0
      %3137 = vmatpush.msra.mxu0 0.0
      %3138 = vmatpush.msra.mxu0 0.0
      %3139 = vmatpush.msra.mxu0 0.0
      %3140 = vmatpush.msra.mxu0 0.0
      %3141 = vmatpush.msra.mxu0 0.0
      %3142 = vmatpush.msra.mxu0 0.0
      %3143 = vmatpush.msra.mxu0 0.0
      %3144 = vmatpush.msra.mxu0 0.0
      %3145 = vmatpush.msra.mxu0 0.0
      %3146 = vmatpush.msra.mxu0 0.0
      %3147 = vmatpush.msra.mxu0 0.0
      %3148 = vmatpush.msra.mxu0 0.0
      %3149 = vmatpush.msra.mxu0 0.0
      %3150 = vmatpush.msra.mxu0 %v3081
      %3151 = vmatmul.f32.gmra.mxu0 %v3133
      %v3152 = vpop.f32.mrf.mxu0
      %v3153 = vadd.f32 %v3110, %v3152
      %3154 = vdwg.mxu0
      %3155 = vmatpush.msra.mxu0 0.0
      %3156 = vmatpush.msra.mxu0 0.0
      %3157 = vmatpush.msra.mxu0 0.0
      %3158 = vmatpush.msra.mxu0 0.0
      %3159 = vmatpush.msra.mxu0 0.0
      %3160 = vmatpush.msra.mxu0 0.0
      %3161 = vmatpush.msra.mxu0 0.0
      %3162 = vmatpush.msra.mxu0 0.0
      %3163 = vmatpush.msra.mxu0 0.0
      %3164 = vmatpush.msra.mxu0 0.0
      %3165 = vmatpush.msra.mxu0 0.0
      %3166 = vmatpush.msra.mxu0 0.0
      %3167 = vmatpush.msra.mxu0 0.0
      %3168 = vmatpush.msra.mxu0 0.0
      %3169 = vmatpush.msra.mxu0 0.0
      %3170 = vmatpush.msra.mxu0 %v3082
      %3171 = vmatmul.f32.gmra.mxu0 %v3133
      %v3172 = vpop.f32.mrf.mxu0
      %v3173 = vadd.f32 %v3130, %v3172
      %3174 = vdwg.mxu0
      %v3175 = vld [vmem:[%s291 + $0x8] sm:$0xff]
      %v3176 = vld [vmem:[%s291 + $0x10] sm:$0xff]
      %s3177 = scalar_lea.vmem %s5, 14
      %v3178 = vld [vmem:[%s3177] sm:$0x1]
      %v3180 = vsel %vm1369, %v3178, 0
      %3182 = vmatpush.msra.mxu0 0.0
      %3183 = vmatpush.msra.mxu0 0.0
      %3184 = vmatpush.msra.mxu0 0.0
      %3185 = vmatpush.msra.mxu0 0.0
      %3186 = vmatpush.msra.mxu0 0.0
      %3187 = vmatpush.msra.mxu0 0.0
      %3188 = vmatpush.msra.mxu0 0.0
      %3189 = vmatpush.msra.mxu0 0.0
      %3190 = vmatpush.msra.mxu0 0.0
      %3191 = vmatpush.msra.mxu0 0.0
      %3192 = vmatpush.msra.mxu0 0.0
      %3193 = vmatpush.msra.mxu0 0.0
      %3194 = vmatpush.msra.mxu0 0.0
      %3195 = vmatpush.msra.mxu0 0.0
      %3196 = vmatpush.msra.mxu0 0.0
      %3197 = vmatpush.msra.mxu0 %v3175
      %3198 = vmatmul.f32.gmra.mxu0 %v3180
      %v3199 = vpop.f32.mrf.mxu0
      %v3200 = vadd.f32 0.0, %v3199
      %3201 = vdwg.mxu0
      %3202 = vmatpush.msra.mxu0 0.0
      %3203 = vmatpush.msra.mxu0 0.0
      %3204 = vmatpush.msra.mxu0 0.0
      %3205 = vmatpush.msra.mxu0 0.0
      %3206 = vmatpush.msra.mxu0 0.0
      %3207 = vmatpush.msra.mxu0 0.0
      %3208 = vmatpush.msra.mxu0 0.0
      %3209 = vmatpush.msra.mxu0 0.0
      %3210 = vmatpush.msra.mxu0 0.0
      %3211 = vmatpush.msra.mxu0 0.0
      %3212 = vmatpush.msra.mxu0 0.0
      %3213 = vmatpush.msra.mxu0 0.0
      %3214 = vmatpush.msra.mxu0 0.0
      %3215 = vmatpush.msra.mxu0 0.0
      %3216 = vmatpush.msra.mxu0 0.0
      %3217 = vmatpush.msra.mxu0 %v3176
      %3218 = vmatmul.f32.gmra.mxu0 %v3180
      %v3219 = vpop.f32.mrf.mxu0
      %v3220 = vadd.f32 0.0, %v3219
      %3221 = vdwg.mxu0
      %v3222 = vadd.f32 %v3153, %v3200
      %v3223 = vadd.f32 %v3173, %v3220
      %v3224 = vld [vmem:[%s294 + $0x8] sm:$0xff]
      %v3225 = vld [vmem:[%s294 + $0x10] sm:$0xff]
      %s3226 = scalar_lea.vmem %s5, 15
      %v3227 = vld [vmem:[%s3226] sm:$0x1]
      %v3229 = vsel %vm1369, %v3227, 0
      %3231 = vmatpush.msra.mxu0 0.0
      %3232 = vmatpush.msra.mxu0 0.0
      %3233 = vmatpush.msra.mxu0 0.0
      %3234 = vmatpush.msra.mxu0 0.0
      %3235 = vmatpush.msra.mxu0 0.0
      %3236 = vmatpush.msra.mxu0 0.0
      %3237 = vmatpush.msra.mxu0 0.0
      %3238 = vmatpush.msra.mxu0 0.0
      %3239 = vmatpush.msra.mxu0 0.0
      %3240 = vmatpush.msra.mxu0 0.0
      %3241 = vmatpush.msra.mxu0 0.0
      %3242 = vmatpush.msra.mxu0 0.0
      %3243 = vmatpush.msra.mxu0 0.0
      %3244 = vmatpush.msra.mxu0 0.0
      %3245 = vmatpush.msra.mxu0 0.0
      %3246 = vmatpush.msra.mxu0 %v3224
      %3247 = vmatmul.f32.gmra.mxu0 %v3229
      %v3248 = vpop.f32.mrf.mxu0
      %v3249 = vadd.f32 0.0, %v3248
      %3250 = vdwg.mxu0
      %3251 = vmatpush.msra.mxu0 0.0
      %3252 = vmatpush.msra.mxu0 0.0
      %3253 = vmatpush.msra.mxu0 0.0
      %3254 = vmatpush.msra.mxu0 0.0
      %3255 = vmatpush.msra.mxu0 0.0
      %3256 = vmatpush.msra.mxu0 0.0
      %3257 = vmatpush.msra.mxu0 0.0
      %3258 = vmatpush.msra.mxu0 0.0
      %3259 = vmatpush.msra.mxu0 0.0
      %3260 = vmatpush.msra.mxu0 0.0
      %3261 = vmatpush.msra.mxu0 0.0
      %3262 = vmatpush.msra.mxu0 0.0
      %3263 = vmatpush.msra.mxu0 0.0
      %3264 = vmatpush.msra.mxu0 0.0
      %3265 = vmatpush.msra.mxu0 0.0
      %3266 = vmatpush.msra.mxu0 %v3225
      %3267 = vmatmul.f32.gmra.mxu0 %v3229
      %v3268 = vpop.f32.mrf.mxu0
      %v3269 = vadd.f32 0.0, %v3268
      %3270 = vdwg.mxu0
      %v3271 = vadd.f32 %v3222, %v3249
      %v3272 = vadd.f32 %v3223, %v3269
      %v3273 = vadd.f32 %v3271, %v2599
      %v3274 = vadd.f32 %v3272, %v2599
      %v3275 = vmax.f32 %v3273, 0.0
      %v3276 = vmax.f32 %v3274, 0.0
      %v3279 = vrot.slane %v3276, 7
      %v3280 = vsel %vm381, %v3275, %v3279
      %s3282 = scalar_lea.vmem %s277, 5
      %3283 = vst.msk [vmem:[%s3282] ss:$8 sm:$0x3] %vm299, %v3280
      %3284 = vst.msk [vmem:[%s3282] ss:$8 sm:$0x0] %vm299, %v3280
      %v3285 = vld [vmem:[%s291] sm:$0xff]
      %v3286 = vld [vmem:[%s291 + $0x8] sm:$0xff]
      %v3287 = vld [vmem:[%s291 + $0x10] sm:$0xff]
      %v3288 = vld [vmem:[%s5] sm:$0x1]
      %v3289 = vld [vmem:[%s294] sm:$0xff]
      %v3290 = vld [vmem:[%s294 + $0x8] sm:$0xff]
      %v3291 = vld [vmem:[%s294 + $0x10] sm:$0xff]
      %v3292 = vld [vmem:[%s2365] sm:$0x1]
      %3296 = vrot.lane.b32.xlu0 %v3289, 16
      %v3297 = vpop.permute.xlu0 %3296
      %3298 = vrot.lane.b32.xlu0 %v3290, 16
      %v3299 = vpop.permute.xlu0 %3298
      %3300 = vrot.lane.b32.xlu0 %v3291, 16
      %v3301 = vpop.permute.xlu0 %3300
      %v3302 = vsel %vm1364, %v3297, %v3299
      %v3303 = vsel %vm1364, %v3299, %v3301
      %v3307 = vsel %vm1369, %v3292, 0
      %3309 = vmatpush.msra.mxu0 0.0
      %3310 = vmatpush.msra.mxu0 0.0
      %3311 = vmatpush.msra.mxu0 0.0
      %3312 = vmatpush.msra.mxu0 0.0
      %3313 = vmatpush.msra.mxu0 0.0
      %3314 = vmatpush.msra.mxu0 0.0
      %3315 = vmatpush.msra.mxu0 0.0
      %3316 = vmatpush.msra.mxu0 0.0
      %3317 = vmatpush.msra.mxu0 0.0
      %3318 = vmatpush.msra.mxu0 0.0
      %3319 = vmatpush.msra.mxu0 0.0
      %3320 = vmatpush.msra.mxu0 0.0
      %3321 = vmatpush.msra.mxu0 0.0
      %3322 = vmatpush.msra.mxu0 0.0
      %3323 = vmatpush.msra.mxu0 0.0
      %3324 = vmatpush.msra.mxu0 %v3302
      %3325 = vmatmul.f32.gmra.mxu0 %v3307
      %v3326 = vpop.f32.mrf.mxu0
      %v3327 = vadd.f32 0.0, %v3326
      %3328 = vdwg.mxu0
      %3329 = vmatpush.msra.mxu0 0.0
      %3330 = vmatpush.msra.mxu0 0.0
      %3331 = vmatpush.msra.mxu0 0.0
      %3332 = vmatpush.msra.mxu0 0.0
      %3333 = vmatpush.msra.mxu0 0.0
      %3334 = vmatpush.msra.mxu0 0.0
      %3335 = vmatpush.msra.mxu0 0.0
      %3336 = vmatpush.msra.mxu0 0.0
      %3337 = vmatpush.msra.mxu0 0.0
      %3338 = vmatpush.msra.mxu0 0.0
      %3339 = vmatpush.msra.mxu0 0.0
      %3340 = vmatpush.msra.mxu0 0.0
      %3341 = vmatpush.msra.mxu0 0.0
      %3342 = vmatpush.msra.mxu0 0.0
      %3343 = vmatpush.msra.mxu0 0.0
      %3344 = vmatpush.msra.mxu0 %v3303
      %3345 = vmatmul.f32.gmra.mxu0 %v3307
      %v3346 = vpop.f32.mrf.mxu0
      %v3347 = vadd.f32 0.0, %v3346
      %3348 = vdwg.mxu0
      %3352 = vrot.lane.b32.xlu0 %v3285, 16
      %v3353 = vpop.permute.xlu0 %3352
      %3354 = vrot.lane.b32.xlu0 %v3286, 16
      %v3355 = vpop.permute.xlu0 %3354
      %3356 = vrot.lane.b32.xlu0 %v3287, 16
      %v3357 = vpop.permute.xlu0 %3356
      %v3358 = vsel %vm1364, %v3353, %v3355
      %v3359 = vsel %vm1364, %v3355, %v3357
      %v3363 = vsel %vm1369, %v3288, 0
      %3365 = vmatpush.msra.mxu0 0.0
      %3366 = vmatpush.msra.mxu0 0.0
      %3367 = vmatpush.msra.mxu0 0.0
      %3368 = vmatpush.msra.mxu0 0.0
      %3369 = vmatpush.msra.mxu0 0.0
      %3370 = vmatpush.msra.mxu0 0.0
      %3371 = vmatpush.msra.mxu0 0.0
      %3372 = vmatpush.msra.mxu0 0.0
      %3373 = vmatpush.msra.mxu0 0.0
      %3374 = vmatpush.msra.mxu0 0.0
      %3375 = vmatpush.msra.mxu0 0.0
      %3376 = vmatpush.msra.mxu0 0.0
      %3377 = vmatpush.msra.mxu0 0.0
      %3378 = vmatpush.msra.mxu0 0.0
      %3379 = vmatpush.msra.mxu0 0.0
      %3380 = vmatpush.msra.mxu0 %v3358
      %3381 = vmatmul.f32.gmra.mxu0 %v3363
      %v3382 = vpop.f32.mrf.mxu0
      %v3383 = vadd.f32 %v3327, %v3382
      %3384 = vdwg.mxu0
      %3385 = vmatpush.msra.mxu0 0.0
      %3386 = vmatpush.msra.mxu0 0.0
      %3387 = vmatpush.msra.mxu0 0.0
      %3388 = vmatpush.msra.mxu0 0.0
      %3389 = vmatpush.msra.mxu0 0.0
      %3390 = vmatpush.msra.mxu0 0.0
      %3391 = vmatpush.msra.mxu0 0.0
      %3392 = vmatpush.msra.mxu0 0.0
      %3393 = vmatpush.msra.mxu0 0.0
      %3394 = vmatpush.msra.mxu0 0.0
      %3395 = vmatpush.msra.mxu0 0.0
      %3396 = vmatpush.msra.mxu0 0.0
      %3397 = vmatpush.msra.mxu0 0.0
      %3398 = vmatpush.msra.mxu0 0.0
      %3399 = vmatpush.msra.mxu0 0.0
      %3400 = vmatpush.msra.mxu0 %v3359
      %3401 = vmatmul.f32.gmra.mxu0 %v3363
      %v3402 = vpop.f32.mrf.mxu0
      %v3403 = vadd.f32 %v3347, %v3402
      %3404 = vdwg.mxu0
      %v3405 = vld [vmem:[#allocation4 + $0x8] sm:$0xff]
      %v3406 = vld [vmem:[#allocation4 + $0x10] sm:$0xff]
      %v3407 = vld [vmem:[%s2485] sm:$0x1]
      %v3409 = vsel %vm1369, %v3407, 0
      %3411 = vmatpush.msra.mxu0 0.0
      %3412 = vmatpush.msra.mxu0 0.0
      %3413 = vmatpush.msra.mxu0 0.0
      %3414 = vmatpush.msra.mxu0 0.0
      %3415 = vmatpush.msra.mxu0 0.0
      %3416 = vmatpush.msra.mxu0 0.0
      %3417 = vmatpush.msra.mxu0 0.0
      %3418 = vmatpush.msra.mxu0 0.0
      %3419 = vmatpush.msra.mxu0 0.0
      %3420 = vmatpush.msra.mxu0 0.0
      %3421 = vmatpush.msra.mxu0 0.0
      %3422 = vmatpush.msra.mxu0 0.0
      %3423 = vmatpush.msra.mxu0 0.0
      %3424 = vmatpush.msra.mxu0 0.0
      %3425 = vmatpush.msra.mxu0 0.0
      %3426 = vmatpush.msra.mxu0 %v3405
      %3427 = vmatmul.f32.gmra.mxu0 %v3409
      %v3428 = vpop.f32.mrf.mxu0
      %v3429 = vadd.f32 0.0, %v3428
      %3430 = vdwg.mxu0
      %3431 = vmatpush.msra.mxu0 0.0
      %3432 = vmatpush.msra.mxu0 0.0
      %3433 = vmatpush.msra.mxu0 0.0
      %3434 = vmatpush.msra.mxu0 0.0
      %3435 = vmatpush.msra.mxu0 0.0
      %3436 = vmatpush.msra.mxu0 0.0
      %3437 = vmatpush.msra.mxu0 0.0
      %3438 = vmatpush.msra.mxu0 0.0
      %3439 = vmatpush.msra.mxu0 0.0
      %3440 = vmatpush.msra.mxu0 0.0
      %3441 = vmatpush.msra.mxu0 0.0
      %3442 = vmatpush.msra.mxu0 0.0
      %3443 = vmatpush.msra.mxu0 0.0
      %3444 = vmatpush.msra.mxu0 0.0
      %3445 = vmatpush.msra.mxu0 0.0
      %3446 = vmatpush.msra.mxu0 %v3406
      %3447 = vmatmul.f32.gmra.mxu0 %v3409
      %v3448 = vpop.f32.mrf.mxu0
      %v3449 = vadd.f32 0.0, %v3448
      %3450 = vdwg.mxu0
      %v3451 = vadd.f32 %v3383, %v3429
      %v3452 = vadd.f32 %v3403, %v3449
      %v3453 = vld [vmem:[%s288 + $0x8] sm:$0xff]
      %v3454 = vld [vmem:[%s288 + $0x10] sm:$0xff]
      %v3455 = vld [vmem:[%s2547] sm:$0x1]
      %v3457 = vsel %vm1369, %v3455, 0
      %3459 = vmatpush.msra.mxu0 0.0
      %3460 = vmatpush.msra.mxu0 0.0
      %3461 = vmatpush.msra.mxu0 0.0
      %3462 = vmatpush.msra.mxu0 0.0
      %3463 = vmatpush.msra.mxu0 0.0
      %3464 = vmatpush.msra.mxu0 0.0
      %3465 = vmatpush.msra.mxu0 0.0
      %3466 = vmatpush.msra.mxu0 0.0
      %3467 = vmatpush.msra.mxu0 0.0
      %3468 = vmatpush.msra.mxu0 0.0
      %3469 = vmatpush.msra.mxu0 0.0
      %3470 = vmatpush.msra.mxu0 0.0
      %3471 = vmatpush.msra.mxu0 0.0
      %3472 = vmatpush.msra.mxu0 0.0
      %3473 = vmatpush.msra.mxu0 0.0
      %3474 = vmatpush.msra.mxu0 %v3453
      %3475 = vmatmul.f32.gmra.mxu0 %v3457
      %v3476 = vpop.f32.mrf.mxu0
      %v3477 = vadd.f32 0.0, %v3476
      %3478 = vdwg.mxu0
      %3479 = vmatpush.msra.mxu0 0.0
      %3480 = vmatpush.msra.mxu0 0.0
      %3481 = vmatpush.msra.mxu0 0.0
      %3482 = vmatpush.msra.mxu0 0.0
      %3483 = vmatpush.msra.mxu0 0.0
      %3484 = vmatpush.msra.mxu0 0.0
      %3485 = vmatpush.msra.mxu0 0.0
      %3486 = vmatpush.msra.mxu0 0.0
      %3487 = vmatpush.msra.mxu0 0.0
      %3488 = vmatpush.msra.mxu0 0.0
      %3489 = vmatpush.msra.mxu0 0.0
      %3490 = vmatpush.msra.mxu0 0.0
      %3491 = vmatpush.msra.mxu0 0.0
      %3492 = vmatpush.msra.mxu0 0.0
      %3493 = vmatpush.msra.mxu0 0.0
      %3494 = vmatpush.msra.mxu0 %v3454
      %3495 = vmatmul.f32.gmra.mxu0 %v3457
      %v3496 = vpop.f32.mrf.mxu0
      %v3497 = vadd.f32 0.0, %v3496
      %3498 = vdwg.mxu0
      %v3499 = vadd.f32 %v3451, %v3477
      %v3500 = vadd.f32 %v3452, %v3497
      %v3501 = vadd.f32 %v3499, %v2599
      %v3502 = vadd.f32 %v3500, %v2599
      %v3503 = vmax.f32 %v3501, 0.0
      %v3504 = vmax.f32 %v3502, 0.0
      %v3507 = vrot.slane %v3504, 7
      %v3508 = vsel %vm381, %v3503, %v3507
      %s3510 = scalar_lea.vmem %s277, 2
      %3511 = vst.msk [vmem:[%s3510] ss:$8 sm:$0x3] %vm299, %v3508
      %3512 = vst.msk [vmem:[%s3510] ss:$8 sm:$0x0] %vm299, %v3508
      %v3513 = vld [vmem:[%s294] sm:$0xff]
      %v3514 = vld [vmem:[%s294 + $0x8] sm:$0xff]
      %v3515 = vld [vmem:[%s294 + $0x10] sm:$0xff]
      %v3516 = vld [vmem:[%s2614] sm:$0x1]
      %v3517 = vld [vmem:[%s291] sm:$0xff]
      %v3518 = vld [vmem:[%s291 + $0x8] sm:$0xff]
      %v3519 = vld [vmem:[%s291 + $0x10] sm:$0xff]
      %v3520 = vmul.f32 %v3517, %v1606
      %v3521 = vmul.f32 %v3518, %v1609
      %v3522 = vmul.f32 %v3519, %v1608
      %v3523 = vld [vmem:[%s2619] sm:$0x1]
      %3527 = vrot.lane.b32.xlu0 %v3520, 15
      %v3528 = vpop.permute.xlu0 %3527
      %3529 = vrot.lane.b32.xlu0 %v3521, 15
      %v3530 = vpop.permute.xlu0 %3529
      %3531 = vrot.lane.b32.xlu0 %v3522, 15
      %v3532 = vpop.permute.xlu0 %3531
      %v3533 = vsel %vm969, %v3528, %v3530
      %v3534 = vsel %vm969, %v3530, %v3532
      %v3538 = vsel %vm1369, %v3523, 0
      %3540 = vmatpush.msra.mxu0 0.0
      %3541 = vmatpush.msra.mxu0 0.0
      %3542 = vmatpush.msra.mxu0 0.0
      %3543 = vmatpush.msra.mxu0 0.0
      %3544 = vmatpush.msra.mxu0 0.0
      %3545 = vmatpush.msra.mxu0 0.0
      %3546 = vmatpush.msra.mxu0 0.0
      %3547 = vmatpush.msra.mxu0 0.0
      %3548 = vmatpush.msra.mxu0 0.0
      %3549 = vmatpush.msra.mxu0 0.0
      %3550 = vmatpush.msra.mxu0 0.0
      %3551 = vmatpush.msra.mxu0 0.0
      %3552 = vmatpush.msra.mxu0 0.0
      %3553 = vmatpush.msra.mxu0 0.0
      %3554 = vmatpush.msra.mxu0 0.0
      %3555 = vmatpush.msra.mxu0 %v3533
      %3556 = vmatmul.f32.gmra.mxu0 %v3538
      %v3557 = vpop.f32.mrf.mxu0
      %v3558 = vadd.f32 0.0, %v3557
      %3559 = vdwg.mxu0
      %3560 = vmatpush.msra.mxu0 0.0
      %3561 = vmatpush.msra.mxu0 0.0
      %3562 = vmatpush.msra.mxu0 0.0
      %3563 = vmatpush.msra.mxu0 0.0
      %3564 = vmatpush.msra.mxu0 0.0
      %3565 = vmatpush.msra.mxu0 0.0
      %3566 = vmatpush.msra.mxu0 0.0
      %3567 = vmatpush.msra.mxu0 0.0
      %3568 = vmatpush.msra.mxu0 0.0
      %3569 = vmatpush.msra.mxu0 0.0
      %3570 = vmatpush.msra.mxu0 0.0
      %3571 = vmatpush.msra.mxu0 0.0
      %3572 = vmatpush.msra.mxu0 0.0
      %3573 = vmatpush.msra.mxu0 0.0
      %3574 = vmatpush.msra.mxu0 0.0
      %3575 = vmatpush.msra.mxu0 %v3534
      %3576 = vmatmul.f32.gmra.mxu0 %v3538
      %v3577 = vpop.f32.mrf.mxu0
      %v3578 = vadd.f32 0.0, %v3577
      %3579 = vdwg.mxu0
      %3583 = vrot.lane.b32.xlu0 %v3513, 16
      %v3584 = vpop.permute.xlu0 %3583
      %3585 = vrot.lane.b32.xlu0 %v3514, 16
      %v3586 = vpop.permute.xlu0 %3585
      %3587 = vrot.lane.b32.xlu0 %v3515, 16
      %v3588 = vpop.permute.xlu0 %3587
      %v3589 = vsel %vm1364, %v3584, %v3586
      %v3590 = vsel %vm1364, %v3586, %v3588
      %v3594 = vsel %vm1369, %v3516, 0
      %3596 = vmatpush.msra.mxu0 0.0
      %3597 = vmatpush.msra.mxu0 0.0
      %3598 = vmatpush.msra.mxu0 0.0
      %3599 = vmatpush.msra.mxu0 0.0
      %3600 = vmatpush.msra.mxu0 0.0
      %3601 = vmatpush.msra.mxu0 0.0
      %3602 = vmatpush.msra.mxu0 0.0
      %3603 = vmatpush.msra.mxu0 0.0
      %3604 = vmatpush.msra.mxu0 0.0
      %3605 = vmatpush.msra.mxu0 0.0
      %3606 = vmatpush.msra.mxu0 0.0
      %3607 = vmatpush.msra.mxu0 0.0
      %3608 = vmatpush.msra.mxu0 0.0
      %3609 = vmatpush.msra.mxu0 0.0
      %3610 = vmatpush.msra.mxu0 0.0
      %3611 = vmatpush.msra.mxu0 %v3589
      %3612 = vmatmul.f32.gmra.mxu0 %v3594
      %v3613 = vpop.f32.mrf.mxu0
      %v3614 = vadd.f32 %v3558, %v3613
      %3615 = vdwg.mxu0
      %3616 = vmatpush.msra.mxu0 0.0
      %3617 = vmatpush.msra.mxu0 0.0
      %3618 = vmatpush.msra.mxu0 0.0
      %3619 = vmatpush.msra.mxu0 0.0
      %3620 = vmatpush.msra.mxu0 0.0
      %3621 = vmatpush.msra.mxu0 0.0
      %3622 = vmatpush.msra.mxu0 0.0
      %3623 = vmatpush.msra.mxu0 0.0
      %3624 = vmatpush.msra.mxu0 0.0
      %3625 = vmatpush.msra.mxu0 0.0
      %3626 = vmatpush.msra.mxu0 0.0
      %3627 = vmatpush.msra.mxu0 0.0
      %3628 = vmatpush.msra.mxu0 0.0
      %3629 = vmatpush.msra.mxu0 0.0
      %3630 = vmatpush.msra.mxu0 0.0
      %3631 = vmatpush.msra.mxu0 %v3590
      %3632 = vmatmul.f32.gmra.mxu0 %v3594
      %v3633 = vpop.f32.mrf.mxu0
      %v3634 = vadd.f32 %v3578, %v3633
      %3635 = vdwg.mxu0
      %v3636 = vld [vmem:[%s288 + $0x8] sm:$0xff]
      %v3637 = vld [vmem:[%s288 + $0x10] sm:$0xff]
      %v3638 = vld [vmem:[%s2735] sm:$0x1]
      %v3640 = vsel %vm1369, %v3638, 0
      %3642 = vmatpush.msra.mxu0 0.0
      %3643 = vmatpush.msra.mxu0 0.0
      %3644 = vmatpush.msra.mxu0 0.0
      %3645 = vmatpush.msra.mxu0 0.0
      %3646 = vmatpush.msra.mxu0 0.0
      %3647 = vmatpush.msra.mxu0 0.0
      %3648 = vmatpush.msra.mxu0 0.0
      %3649 = vmatpush.msra.mxu0 0.0
      %3650 = vmatpush.msra.mxu0 0.0
      %3651 = vmatpush.msra.mxu0 0.0
      %3652 = vmatpush.msra.mxu0 0.0
      %3653 = vmatpush.msra.mxu0 0.0
      %3654 = vmatpush.msra.mxu0 0.0
      %3655 = vmatpush.msra.mxu0 0.0
      %3656 = vmatpush.msra.mxu0 0.0
      %3657 = vmatpush.msra.mxu0 %v3636
      %3658 = vmatmul.f32.gmra.mxu0 %v3640
      %v3659 = vpop.f32.mrf.mxu0
      %v3660 = vadd.f32 0.0, %v3659
      %3661 = vdwg.mxu0
      %3662 = vmatpush.msra.mxu0 0.0
      %3663 = vmatpush.msra.mxu0 0.0
      %3664 = vmatpush.msra.mxu0 0.0
      %3665 = vmatpush.msra.mxu0 0.0
      %3666 = vmatpush.msra.mxu0 0.0
      %3667 = vmatpush.msra.mxu0 0.0
      %3668 = vmatpush.msra.mxu0 0.0
      %3669 = vmatpush.msra.mxu0 0.0
      %3670 = vmatpush.msra.mxu0 0.0
      %3671 = vmatpush.msra.mxu0 0.0
      %3672 = vmatpush.msra.mxu0 0.0
      %3673 = vmatpush.msra.mxu0 0.0
      %3674 = vmatpush.msra.mxu0 0.0
      %3675 = vmatpush.msra.mxu0 0.0
      %3676 = vmatpush.msra.mxu0 0.0
      %3677 = vmatpush.msra.mxu0 %v3637
      %3678 = vmatmul.f32.gmra.mxu0 %v3640
      %v3679 = vpop.f32.mrf.mxu0
      %v3680 = vadd.f32 0.0, %v3679
      %3681 = vdwg.mxu0
      %v3682 = vadd.f32 %v3614, %v3660
      %v3683 = vadd.f32 %v3634, %v3680
      %v3684 = vld [vmem:[#allocation4 + $0x8] sm:$0xff]
      %v3685 = vld [vmem:[#allocation4 + $0x10] sm:$0xff]
      %v3686 = vld [vmem:[#allocation4 + $0x18] sm:$0xff]
      %v3687 = vmul.f32 %v3684, %v1781
      %v3688 = vmul.f32 %v3685, %v1784
      %v3689 = vmul.f32 %v3686, %v1783
      %v3690 = vld [vmem:[%s2784] sm:$0x1]
      %3694 = vrot.lane.b32.xlu0 %v3687, 127
      %v3695 = vpop.permute.xlu0 %3694
      %3696 = vrot.lane.b32.xlu0 %v3688, 127
      %v3697 = vpop.permute.xlu0 %3696
      %3698 = vrot.lane.b32.xlu0 %v3689, 127
      %v3699 = vpop.permute.xlu0 %3698
      %v3700 = vsel %vm442, %v3695, %v3697
      %v3701 = vsel %vm442, %v3697, %v3699
      %v3705 = vsel %vm1369, %v3690, 0
      %3707 = vmatpush.msra.mxu0 0.0
      %3708 = vmatpush.msra.mxu0 0.0
      %3709 = vmatpush.msra.mxu0 0.0
      %3710 = vmatpush.msra.mxu0 0.0
      %3711 = vmatpush.msra.mxu0 0.0
      %3712 = vmatpush.msra.mxu0 0.0
      %3713 = vmatpush.msra.mxu0 0.0
      %3714 = vmatpush.msra.mxu0 0.0
      %3715 = vmatpush.msra.mxu0 0.0
      %3716 = vmatpush.msra.mxu0 0.0
      %3717 = vmatpush.msra.mxu0 0.0
      %3718 = vmatpush.msra.mxu0 0.0
      %3719 = vmatpush.msra.mxu0 0.0
      %3720 = vmatpush.msra.mxu0 0.0
      %3721 = vmatpush.msra.mxu0 0.0
      %3722 = vmatpush.msra.mxu0 %v3700
      %3723 = vmatmul.f32.gmra.mxu0 %v3705
      %v3724 = vpop.f32.mrf.mxu0
      %v3725 = vadd.f32 0.0, %v3724
      %3726 = vdwg.mxu0
      %3727 = vmatpush.msra.mxu0 0.0
      %3728 = vmatpush.msra.mxu0 0.0
      %3729 = vmatpush.msra.mxu0 0.0
      %3730 = vmatpush.msra.mxu0 0.0
      %3731 = vmatpush.msra.mxu0 0.0
      %3732 = vmatpush.msra.mxu0 0.0
      %3733 = vmatpush.msra.mxu0 0.0
      %3734 = vmatpush.msra.mxu0 0.0
      %3735 = vmatpush.msra.mxu0 0.0
      %3736 = vmatpush.msra.mxu0 0.0
      %3737 = vmatpush.msra.mxu0 0.0
      %3738 = vmatpush.msra.mxu0 0.0
      %3739 = vmatpush.msra.mxu0 0.0
      %3740 = vmatpush.msra.mxu0 0.0
      %3741 = vmatpush.msra.mxu0 0.0
      %3742 = vmatpush.msra.mxu0 %v3701
      %3743 = vmatmul.f32.gmra.mxu0 %v3705
      %v3744 = vpop.f32.mrf.mxu0
      %v3745 = vadd.f32 0.0, %v3744
      %3746 = vdwg.mxu0
      %v3747 = vadd.f32 %v3682, %v3725
      %v3748 = vadd.f32 %v3683, %v3745
      %v3749 = vadd.f32 %v3747, %v2599
      %v3750 = vadd.f32 %v3748, %v2599
      %v3751 = vmax.f32 %v3749, 0.0
      %v3752 = vmax.f32 %v3750, 0.0
      %v3755 = vrot.slane %v3752, 7
      %v3756 = vsel %vm381, %v3751, %v3755
      %s3758 = scalar_lea.vmem %s277, 3
      %3759 = vst.msk [vmem:[%s3758] ss:$8 sm:$0x3] %vm299, %v3756
      %3760 = vst.msk [vmem:[%s3758] ss:$8 sm:$0x0] %vm299, %v3756
      %v3761 = vld [vmem:[#allocation4 + $0x8] sm:$0xff]
      %v3762 = vld [vmem:[#allocation4 + $0x10] sm:$0xff]
      %v3763 = vld [vmem:[%s2849] sm:$0x1]
      %v3764 = vld [vmem:[%s288 + $0x8] sm:$0xff]
      %v3765 = vld [vmem:[%s288 + $0x10] sm:$0xff]
      %v3766 = vld [vmem:[%s2853] sm:$0x1]
      %v3768 = vsel %vm1369, %v3766, 0
      %3770 = vmatpush.msra.mxu0 0.0
      %3771 = vmatpush.msra.mxu0 0.0
      %3772 = vmatpush.msra.mxu0 0.0
      %3773 = vmatpush.msra.mxu0 0.0
      %3774 = vmatpush.msra.mxu0 0.0
      %3775 = vmatpush.msra.mxu0 0.0
      %3776 = vmatpush.msra.mxu0 0.0
      %3777 = vmatpush.msra.mxu0 0.0
      %3778 = vmatpush.msra.mxu0 0.0
      %3779 = vmatpush.msra.mxu0 0.0
      %3780 = vmatpush.msra.mxu0 0.0
      %3781 = vmatpush.msra.mxu0 0.0
      %3782 = vmatpush.msra.mxu0 0.0
      %3783 = vmatpush.msra.mxu0 0.0
      %3784 = vmatpush.msra.mxu0 0.0
      %3785 = vmatpush.msra.mxu0 %v3764
      %3786 = vmatmul.f32.gmra.mxu0 %v3768
      %v3787 = vpop.f32.mrf.mxu0
      %v3788 = vadd.f32 0.0, %v3787
      %3789 = vdwg.mxu0
      %3790 = vmatpush.msra.mxu0 0.0
      %3791 = vmatpush.msra.mxu0 0.0
      %3792 = vmatpush.msra.mxu0 0.0
      %3793 = vmatpush.msra.mxu0 0.0
      %3794 = vmatpush.msra.mxu0 0.0
      %3795 = vmatpush.msra.mxu0 0.0
      %3796 = vmatpush.msra.mxu0 0.0
      %3797 = vmatpush.msra.mxu0 0.0
      %3798 = vmatpush.msra.mxu0 0.0
      %3799 = vmatpush.msra.mxu0 0.0
      %3800 = vmatpush.msra.mxu0 0.0
      %3801 = vmatpush.msra.mxu0 0.0
      %3802 = vmatpush.msra.mxu0 0.0
      %3803 = vmatpush.msra.mxu0 0.0
      %3804 = vmatpush.msra.mxu0 0.0
      %3805 = vmatpush.msra.mxu0 %v3765
      %3806 = vmatmul.f32.gmra.mxu0 %v3768
      %v3807 = vpop.f32.mrf.mxu0
      %v3808 = vadd.f32 0.0, %v3807
      %3809 = vdwg.mxu0
      %v3811 = vsel %vm1369, %v3763, 0
      %3813 = vmatpush.msra.mxu0 0.0
      %3814 = vmatpush.msra.mxu0 0.0
      %3815 = vmatpush.msra.mxu0 0.0
      %3816 = vmatpush.msra.mxu0 0.0
      %3817 = vmatpush.msra.mxu0 0.0
      %3818 = vmatpush.msra.mxu0 0.0
      %3819 = vmatpush.msra.mxu0 0.0
      %3820 = vmatpush.msra.mxu0 0.0
      %3821 = vmatpush.msra.mxu0 0.0
      %3822 = vmatpush.msra.mxu0 0.0
      %3823 = vmatpush.msra.mxu0 0.0
      %3824 = vmatpush.msra.mxu0 0.0
      %3825 = vmatpush.msra.mxu0 0.0
      %3826 = vmatpush.msra.mxu0 0.0
      %3827 = vmatpush.msra.mxu0 0.0
      %3828 = vmatpush.msra.mxu0 %v3761
      %3829 = vmatmul.f32.gmra.mxu0 %v3811
      %v3830 = vpop.f32.mrf.mxu0
      %v3831 = vadd.f32 %v3788, %v3830
      %3832 = vdwg.mxu0
      %3833 = vmatpush.msra.mxu0 0.0
      %3834 = vmatpush.msra.mxu0 0.0
      %3835 = vmatpush.msra.mxu0 0.0
      %3836 = vmatpush.msra.mxu0 0.0
      %3837 = vmatpush.msra.mxu0 0.0
      %3838 = vmatpush.msra.mxu0 0.0
      %3839 = vmatpush.msra.mxu0 0.0
      %3840 = vmatpush.msra.mxu0 0.0
      %3841 = vmatpush.msra.mxu0 0.0
      %3842 = vmatpush.msra.mxu0 0.0
      %3843 = vmatpush.msra.mxu0 0.0
      %3844 = vmatpush.msra.mxu0 0.0
      %3845 = vmatpush.msra.mxu0 0.0
      %3846 = vmatpush.msra.mxu0 0.0
      %3847 = vmatpush.msra.mxu0 0.0
      %3848 = vmatpush.msra.mxu0 %v3762
      %3849 = vmatmul.f32.gmra.mxu0 %v3811
      %v3850 = vpop.f32.mrf.mxu0
      %v3851 = vadd.f32 %v3808, %v3850
      %3852 = vdwg.mxu0
      %v3853 = vld [vmem:[%s291 + $0x8] sm:$0xff]
      %v3854 = vld [vmem:[%s291 + $0x10] sm:$0xff]
      %v3855 = vld [vmem:[%s2960] sm:$0x1]
      %v3857 = vsel %vm1369, %v3855, 0
      %3859 = vmatpush.msra.mxu0 0.0
      %3860 = vmatpush.msra.mxu0 0.0
      %3861 = vmatpush.msra.mxu0 0.0
      %3862 = vmatpush.msra.mxu0 0.0
      %3863 = vmatpush.msra.mxu0 0.0
      %3864 = vmatpush.msra.mxu0 0.0
      %3865 = vmatpush.msra.mxu0 0.0
      %3866 = vmatpush.msra.mxu0 0.0
      %3867 = vmatpush.msra.mxu0 0.0
      %3868 = vmatpush.msra.mxu0 0.0
      %3869 = vmatpush.msra.mxu0 0.0
      %3870 = vmatpush.msra.mxu0 0.0
      %3871 = vmatpush.msra.mxu0 0.0
      %3872 = vmatpush.msra.mxu0 0.0
      %3873 = vmatpush.msra.mxu0 0.0
      %3874 = vmatpush.msra.mxu0 %v3853
      %3875 = vmatmul.f32.gmra.mxu0 %v3857
      %v3876 = vpop.f32.mrf.mxu0
      %v3877 = vadd.f32 0.0, %v3876
      %3878 = vdwg.mxu0
      %3879 = vmatpush.msra.mxu0 0.0
      %3880 = vmatpush.msra.mxu0 0.0
      %3881 = vmatpush.msra.mxu0 0.0
      %3882 = vmatpush.msra.mxu0 0.0
      %3883 = vmatpush.msra.mxu0 0.0
      %3884 = vmatpush.msra.mxu0 0.0
      %3885 = vmatpush.msra.mxu0 0.0
      %3886 = vmatpush.msra.mxu0 0.0
      %3887 = vmatpush.msra.mxu0 0.0
      %3888 = vmatpush.msra.mxu0 0.0
      %3889 = vmatpush.msra.mxu0 0.0
      %3890 = vmatpush.msra.mxu0 0.0
      %3891 = vmatpush.msra.mxu0 0.0
      %3892 = vmatpush.msra.mxu0 0.0
      %3893 = vmatpush.msra.mxu0 0.0
      %3894 = vmatpush.msra.mxu0 %v3854
      %3895 = vmatmul.f32.gmra.mxu0 %v3857
      %v3896 = vpop.f32.mrf.mxu0
      %v3897 = vadd.f32 0.0, %v3896
      %3898 = vdwg.mxu0
      %v3899 = vadd.f32 %v3831, %v3877
      %v3900 = vadd.f32 %v3851, %v3897
      %v3901 = vld [vmem:[%s294 + $0x8] sm:$0xff]
      %v3902 = vld [vmem:[%s294 + $0x10] sm:$0xff]
      %v3903 = vld [vmem:[%s3022] sm:$0x1]
      %v3905 = vsel %vm1369, %v3903, 0
      %3907 = vmatpush.msra.mxu0 0.0
      %3908 = vmatpush.msra.mxu0 0.0
      %3909 = vmatpush.msra.mxu0 0.0
      %3910 = vmatpush.msra.mxu0 0.0
      %3911 = vmatpush.msra.mxu0 0.0
      %3912 = vmatpush.msra.mxu0 0.0
      %3913 = vmatpush.msra.mxu0 0.0
      %3914 = vmatpush.msra.mxu0 0.0
      %3915 = vmatpush.msra.mxu0 0.0
      %3916 = vmatpush.msra.mxu0 0.0
      %3917 = vmatpush.msra.mxu0 0.0
      %3918 = vmatpush.msra.mxu0 0.0
      %3919 = vmatpush.msra.mxu0 0.0
      %3920 = vmatpush.msra.mxu0 0.0
      %3921 = vmatpush.msra.mxu0 0.0
      %3922 = vmatpush.msra.mxu0 %v3901
      %3923 = vmatmul.f32.gmra.mxu0 %v3905
      %v3924 = vpop.f32.mrf.mxu0
      %v3925 = vadd.f32 0.0, %v3924
      %3926 = vdwg.mxu0
      %3927 = vmatpush.msra.mxu0 0.0
      %3928 = vmatpush.msra.mxu0 0.0
      %3929 = vmatpush.msra.mxu0 0.0
      %3930 = vmatpush.msra.mxu0 0.0
      %3931 = vmatpush.msra.mxu0 0.0
      %3932 = vmatpush.msra.mxu0 0.0
      %3933 = vmatpush.msra.mxu0 0.0
      %3934 = vmatpush.msra.mxu0 0.0
      %3935 = vmatpush.msra.mxu0 0.0
      %3936 = vmatpush.msra.mxu0 0.0
      %3937 = vmatpush.msra.mxu0 0.0
      %3938 = vmatpush.msra.mxu0 0.0
      %3939 = vmatpush.msra.mxu0 0.0
      %3940 = vmatpush.msra.mxu0 0.0
      %3941 = vmatpush.msra.mxu0 0.0
      %3942 = vmatpush.msra.mxu0 %v3902
      %3943 = vmatmul.f32.gmra.mxu0 %v3905
      %v3944 = vpop.f32.mrf.mxu0
      %v3945 = vadd.f32 0.0, %v3944
      %3946 = vdwg.mxu0
      %v3947 = vadd.f32 %v3899, %v3925
      %v3948 = vadd.f32 %v3900, %v3945
      %v3949 = vadd.f32 %v3947, %v2599
      %v3950 = vadd.f32 %v3948, %v2599
      %v3951 = vmax.f32 %v3949, 0.0
      %v3952 = vmax.f32 %v3950, 0.0
      %v3955 = vrot.slane %v3952, 7
      %v3956 = vsel %vm381, %v3951, %v3955
      %s3958 = scalar_lea.vmem %s277, 6
      %3959 = vst.msk [vmem:[%s3958] ss:$8 sm:$0x3] %vm299, %v3956
      %3960 = vst.msk [vmem:[%s3958] ss:$8 sm:$0x0] %vm299, %v3956
      %v3961 = vld [vmem:[%s288 + $0x8] sm:$0xff]
      %v3962 = vld [vmem:[%s288 + $0x10] sm:$0xff]
      %v3963 = vld [vmem:[%s3083] sm:$0x1]
      %v3964 = vld [vmem:[#allocation4 + $0x8] sm:$0xff]
      %v3965 = vld [vmem:[#allocation4 + $0x10] sm:$0xff]
      %v3966 = vld [vmem:[#allocation4 + $0x18] sm:$0xff]
      %v3967 = vmul.f32 %v3964, %v1781
      %v3968 = vmul.f32 %v3965, %v1784
      %v3969 = vmul.f32 %v3966, %v1783
      %v3970 = vld [vmem:[%s3087] sm:$0x1]
      %3974 = vrot.lane.b32.xlu0 %v3967, 127
      %v3975 = vpop.permute.xlu0 %3974
      %3976 = vrot.lane.b32.xlu0 %v3968, 127
      %v3977 = vpop.permute.xlu0 %3976
      %3978 = vrot.lane.b32.xlu0 %v3969, 127
      %v3979 = vpop.permute.xlu0 %3978
      %v3980 = vsel %vm442, %v3975, %v3977
      %v3981 = vsel %vm442, %v3977, %v3979
      %v3985 = vsel %vm1369, %v3970, 0
      %3987 = vmatpush.msra.mxu0 0.0
      %3988 = vmatpush.msra.mxu0 0.0
      %3989 = vmatpush.msra.mxu0 0.0
      %3990 = vmatpush.msra.mxu0 0.0
      %3991 = vmatpush.msra.mxu0 0.0
      %3992 = vmatpush.msra.mxu0 0.0
      %3993 = vmatpush.msra.mxu0 0.0
      %3994 = vmatpush.msra.mxu0 0.0
      %3995 = vmatpush.msra.mxu0 0.0
      %3996 = vmatpush.msra.mxu0 0.0
      %3997 = vmatpush.msra.mxu0 0.0
      %3998 = vmatpush.msra.mxu0 0.0
      %3999 = vmatpush.msra.mxu0 0.0
      %4000 = vmatpush.msra.mxu0 0.0
      %4001 = vmatpush.msra.mxu0 0.0
      %4002 = vmatpush.msra.mxu0 %v3980
      %4003 = vmatmul.f32.gmra.mxu0 %v3985
      %v4004 = vpop.f32.mrf.mxu0
      %v4005 = vadd.f32 0.0, %v4004
      %4006 = vdwg.mxu0
      %4007 = vmatpush.msra.mxu0 0.0
      %4008 = vmatpush.msra.mxu0 0.0
      %4009 = vmatpush.msra.mxu0 0.0
      %4010 = vmatpush.msra.mxu0 0.0
      %4011 = vmatpush.msra.mxu0 0.0
      %4012 = vmatpush.msra.mxu0 0.0
      %4013 = vmatpush.msra.mxu0 0.0
      %4014 = vmatpush.msra.mxu0 0.0
      %4015 = vmatpush.msra.mxu0 0.0
      %4016 = vmatpush.msra.mxu0 0.0
      %4017 = vmatpush.msra.mxu0 0.0
      %4018 = vmatpush.msra.mxu0 0.0
      %4019 = vmatpush.msra.mxu0 0.0
      %4020 = vmatpush.msra.mxu0 0.0
      %4021 = vmatpush.msra.mxu0 0.0
      %4022 = vmatpush.msra.mxu0 %v3981
      %4023 = vmatmul.f32.gmra.mxu0 %v3985
      %v4024 = vpop.f32.mrf.mxu0
      %v4025 = vadd.f32 0.0, %v4024
      %4026 = vdwg.mxu0
      %v4028 = vsel %vm1369, %v3963, 0
      %4030 = vmatpush.msra.mxu0 0.0
      %4031 = vmatpush.msra.mxu0 0.0
      %4032 = vmatpush.msra.mxu0 0.0
      %4033 = vmatpush.msra.mxu0 0.0
      %4034 = vmatpush.msra.mxu0 0.0
      %4035 = vmatpush.msra.mxu0 0.0
      %4036 = vmatpush.msra.mxu0 0.0
      %4037 = vmatpush.msra.mxu0 0.0
      %4038 = vmatpush.msra.mxu0 0.0
      %4039 = vmatpush.msra.mxu0 0.0
      %4040 = vmatpush.msra.mxu0 0.0
      %4041 = vmatpush.msra.mxu0 0.0
      %4042 = vmatpush.msra.mxu0 0.0
      %4043 = vmatpush.msra.mxu0 0.0
      %4044 = vmatpush.msra.mxu0 0.0
      %4045 = vmatpush.msra.mxu0 %v3961
      %4046 = vmatmul.f32.gmra.mxu0 %v4028
      %v4047 = vpop.f32.mrf.mxu0
      %v4048 = vadd.f32 %v4005, %v4047
      %4049 = vdwg.mxu0
      %4050 = vmatpush.msra.mxu0 0.0
      %4051 = vmatpush.msra.mxu0 0.0
      %4052 = vmatpush.msra.mxu0 0.0
      %4053 = vmatpush.msra.mxu0 0.0
      %4054 = vmatpush.msra.mxu0 0.0
      %4055 = vmatpush.msra.mxu0 0.0
      %4056 = vmatpush.msra.mxu0 0.0
      %4057 = vmatpush.msra.mxu0 0.0
      %4058 = vmatpush.msra.mxu0 0.0
      %4059 = vmatpush.msra.mxu0 0.0
      %4060 = vmatpush.msra.mxu0 0.0
      %4061 = vmatpush.msra.mxu0 0.0
      %4062 = vmatpush.msra.mxu0 0.0
      %4063 = vmatpush.msra.mxu0 0.0
      %4064 = vmatpush.msra.mxu0 0.0
      %4065 = vmatpush.msra.mxu0 %v3962
      %4066 = vmatmul.f32.gmra.mxu0 %v4028
      %v4067 = vpop.f32.mrf.mxu0
      %v4068 = vadd.f32 %v4025, %v4067
      %4069 = vdwg.mxu0
      %v4070 = vld [vmem:[%s294 + $0x8] sm:$0xff]
      %v4071 = vld [vmem:[%s294 + $0x10] sm:$0xff]
      %v4072 = vld [vmem:[%s3177] sm:$0x1]
      %v4074 = vsel %vm1369, %v4072, 0
      %4076 = vmatpush.msra.mxu0 0.0
      %4077 = vmatpush.msra.mxu0 0.0
      %4078 = vmatpush.msra.mxu0 0.0
      %4079 = vmatpush.msra.mxu0 0.0
      %4080 = vmatpush.msra.mxu0 0.0
      %4081 = vmatpush.msra.mxu0 0.0
      %4082 = vmatpush.msra.mxu0 0.0
      %4083 = vmatpush.msra.mxu0 0.0
      %4084 = vmatpush.msra.mxu0 0.0
      %4085 = vmatpush.msra.mxu0 0.0
      %4086 = vmatpush.msra.mxu0 0.0
      %4087 = vmatpush.msra.mxu0 0.0
      %4088 = vmatpush.msra.mxu0 0.0
      %4089 = vmatpush.msra.mxu0 0.0
      %4090 = vmatpush.msra.mxu0 0.0
      %4091 = vmatpush.msra.mxu0 %v4070
      %4092 = vmatmul.f32.gmra.mxu0 %v4074
      %v4093 = vpop.f32.mrf.mxu0
      %v4094 = vadd.f32 0.0, %v4093
      %4095 = vdwg.mxu0
      %4096 = vmatpush.msra.mxu0 0.0
      %4097 = vmatpush.msra.mxu0 0.0
      %4098 = vmatpush.msra.mxu0 0.0
      %4099 = vmatpush.msra.mxu0 0.0
      %4100 = vmatpush.msra.mxu0 0.0
      %4101 = vmatpush.msra.mxu0 0.0
      %4102 = vmatpush.msra.mxu0 0.0
      %4103 = vmatpush.msra.mxu0 0.0
      %4104 = vmatpush.msra.mxu0 0.0
      %4105 = vmatpush.msra.mxu0 0.0
      %4106 = vmatpush.msra.mxu0 0.0
      %4107 = vmatpush.msra.mxu0 0.0
      %4108 = vmatpush.msra.mxu0 0.0
      %4109 = vmatpush.msra.mxu0 0.0
      %4110 = vmatpush.msra.mxu0 0.0
      %4111 = vmatpush.msra.mxu0 %v4071
      %4112 = vmatmul.f32.gmra.mxu0 %v4074
      %v4113 = vpop.f32.mrf.mxu0
      %v4114 = vadd.f32 0.0, %v4113
      %4115 = vdwg.mxu0
      %v4116 = vadd.f32 %v4048, %v4094
      %v4117 = vadd.f32 %v4068, %v4114
      %v4118 = vld [vmem:[%s291 + $0x8] sm:$0xff]
      %v4119 = vld [vmem:[%s291 + $0x10] sm:$0xff]
      %v4120 = vld [vmem:[%s291 + $0x18] sm:$0xff]
      %v4121 = vmul.f32 %v4118, %v1781
      %v4122 = vmul.f32 %v4119, %v1784
      %v4123 = vmul.f32 %v4120, %v1783
      %v4124 = vld [vmem:[%s3226] sm:$0x1]
      %4128 = vrot.lane.b32.xlu0 %v4121, 127
      %v4129 = vpop.permute.xlu0 %4128
      %4130 = vrot.lane.b32.xlu0 %v4122, 127
      %v4131 = vpop.permute.xlu0 %4130
      %4132 = vrot.lane.b32.xlu0 %v4123, 127
      %v4133 = vpop.permute.xlu0 %4132
      %v4134 = vsel %vm442, %v4129, %v4131
      %v4135 = vsel %vm442, %v4131, %v4133
      %v4139 = vsel %vm1369, %v4124, 0
      %4141 = vmatpush.msra.mxu0 0.0
      %4142 = vmatpush.msra.mxu0 0.0
      %4143 = vmatpush.msra.mxu0 0.0
      %4144 = vmatpush.msra.mxu0 0.0
      %4145 = vmatpush.msra.mxu0 0.0
      %4146 = vmatpush.msra.mxu0 0.0
      %4147 = vmatpush.msra.mxu0 0.0
      %4148 = vmatpush.msra.mxu0 0.0
      %4149 = vmatpush.msra.mxu0 0.0
      %4150 = vmatpush.msra.mxu0 0.0
      %4151 = vmatpush.msra.mxu0 0.0
      %4152 = vmatpush.msra.mxu0 0.0
      %4153 = vmatpush.msra.mxu0 0.0
      %4154 = vmatpush.msra.mxu0 0.0
      %4155 = vmatpush.msra.mxu0 0.0
      %4156 = vmatpush.msra.mxu0 %v4134
      %4157 = vmatmul.f32.gmra.mxu0 %v4139
      %v4158 = vpop.f32.mrf.mxu0
      %v4159 = vadd.f32 0.0, %v4158
      %4160 = vdwg.mxu0
      %4161 = vmatpush.msra.mxu0 0.0
      %4162 = vmatpush.msra.mxu0 0.0
      %4163 = vmatpush.msra.mxu0 0.0
      %4164 = vmatpush.msra.mxu0 0.0
      %4165 = vmatpush.msra.mxu0 0.0
      %4166 = vmatpush.msra.mxu0 0.0
      %4167 = vmatpush.msra.mxu0 0.0
      %4168 = vmatpush.msra.mxu0 0.0
      %4169 = vmatpush.msra.mxu0 0.0
      %4170 = vmatpush.msra.mxu0 0.0
      %4171 = vmatpush.msra.mxu0 0.0
      %4172 = vmatpush.msra.mxu0 0.0
      %4173 = vmatpush.msra.mxu0 0.0
      %4174 = vmatpush.msra.mxu0 0.0
      %4175 = vmatpush.msra.mxu0 0.0
      %4176 = vmatpush.msra.mxu0 %v4135
      %4177 = vmatmul.f32.gmra.mxu0 %v4139
      %v4178 = vpop.f32.mrf.mxu0
      %v4179 = vadd.f32 0.0, %v4178
      %4180 = vdwg.mxu0
      %v4181 = vadd.f32 %v4116, %v4159
      %v4182 = vadd.f32 %v4117, %v4179
      %v4183 = vadd.f32 %v4181, %v2599
      %v4184 = vadd.f32 %v4182, %v2599
      %v4185 = vmax.f32 %v4183, 0.0
      %v4186 = vmax.f32 %v4184, 0.0
      %v4189 = vrot.slane %v4186, 7
      %v4190 = vsel %vm381, %v4185, %v4189
      %s4192 = scalar_lea.vmem %s277, 7
      %4193 = vst.msk [vmem:[%s4192] ss:$8 sm:$0x3] %vm299, %v4190
      %4194 = vst.msk [vmem:[%s4192] ss:$8 sm:$0x0] %vm299, %v4190
      %v4195 = vld [vmem:[%s288] sm:$0xff]
      %v4196 = vld [vmem:[%s288 + $0x8] sm:$0xff]
      %v4197 = vld [vmem:[%s288 + $0x10] sm:$0xff]
      %v4198 = vmul.f32 %v4195, %v1470
      %v4199 = vmul.f32 %v4196, %v1473
      %v4200 = vmul.f32 %v4197, %v1472
      %v4201 = vld [vmem:[%s5] sm:$0x1]
      %v4202 = vld [vmem:[#allocation4 + $0x8] sm:$0xff]
      %v4203 = vld [vmem:[#allocation4 + $0x10] sm:$0xff]
      %v4204 = vld [vmem:[%s2365] sm:$0x1]
      %v4206 = vsel %vm1369, %v4204, 0
      %4208 = vmatpush.msra.mxu0 0.0
      %4209 = vmatpush.msra.mxu0 0.0
      %4210 = vmatpush.msra.mxu0 0.0
      %4211 = vmatpush.msra.mxu0 0.0
      %4212 = vmatpush.msra.mxu0 0.0
      %4213 = vmatpush.msra.mxu0 0.0
      %4214 = vmatpush.msra.mxu0 0.0
      %4215 = vmatpush.msra.mxu0 0.0
      %4216 = vmatpush.msra.mxu0 0.0
      %4217 = vmatpush.msra.mxu0 0.0
      %4218 = vmatpush.msra.mxu0 0.0
      %4219 = vmatpush.msra.mxu0 0.0
      %4220 = vmatpush.msra.mxu0 0.0
      %4221 = vmatpush.msra.mxu0 0.0
      %4222 = vmatpush.msra.mxu0 0.0
      %4223 = vmatpush.msra.mxu0 %v4202
      %4224 = vmatmul.f32.gmra.mxu0 %v4206
      %v4225 = vpop.f32.mrf.mxu0
      %v4226 = vadd.f32 0.0, %v4225
      %4227 = vdwg.mxu0
      %4228 = vmatpush.msra.mxu0 0.0
      %4229 = vmatpush.msra.mxu0 0.0
      %4230 = vmatpush.msra.mxu0 0.0
      %4231 = vmatpush.msra.mxu0 0.0
      %4232 = vmatpush.msra.mxu0 0.0
      %4233 = vmatpush.msra.mxu0 0.0
      %4234 = vmatpush.msra.mxu0 0.0
      %4235 = vmatpush.msra.mxu0 0.0
      %4236 = vmatpush.msra.mxu0 0.0
      %4237 = vmatpush.msra.mxu0 0.0
      %4238 = vmatpush.msra.mxu0 0.0
      %4239 = vmatpush.msra.mxu0 0.0
      %4240 = vmatpush.msra.mxu0 0.0
      %4241 = vmatpush.msra.mxu0 0.0
      %4242 = vmatpush.msra.mxu0 0.0
      %4243 = vmatpush.msra.mxu0 %v4203
      %4244 = vmatmul.f32.gmra.mxu0 %v4206
      %v4245 = vpop.f32.mrf.mxu0
      %v4246 = vadd.f32 0.0, %v4245
      %4247 = vdwg.mxu0
      %4251 = vrot.lane.b32.xlu0 %v4198, 1
      %v4252 = vpop.permute.xlu0 %4251
      %4253 = vrot.lane.b32.xlu0 %v4199, 1
      %v4254 = vpop.permute.xlu0 %4253
      %4255 = vrot.lane.b32.xlu0 %v4200, 1
      %v4256 = vpop.permute.xlu0 %4255
      %v4257 = vsel %vm852, %v4252, %v4254
      %v4258 = vsel %vm852, %v4254, %v4256
      %v4262 = vsel %vm1369, %v4201, 0
      %4264 = vmatpush.msra.mxu0 0.0
      %4265 = vmatpush.msra.mxu0 0.0
      %4266 = vmatpush.msra.mxu0 0.0
      %4267 = vmatpush.msra.mxu0 0.0
      %4268 = vmatpush.msra.mxu0 0.0
      %4269 = vmatpush.msra.mxu0 0.0
      %4270 = vmatpush.msra.mxu0 0.0
      %4271 = vmatpush.msra.mxu0 0.0
      %4272 = vmatpush.msra.mxu0 0.0
      %4273 = vmatpush.msra.mxu0 0.0
      %4274 = vmatpush.msra.mxu0 0.0
      %4275 = vmatpush.msra.mxu0 0.0
      %4276 = vmatpush.msra.mxu0 0.0
      %4277 = vmatpush.msra.mxu0 0.0
      %4278 = vmatpush.msra.mxu0 0.0
      %4279 = vmatpush.msra.mxu0 %v4257
      %4280 = vmatmul.f32.gmra.mxu0 %v4262
      %v4281 = vpop.f32.mrf.mxu0
      %v4282 = vadd.f32 %v4226, %v4281
      %4283 = vdwg.mxu0
      %4284 = vmatpush.msra.mxu0 0.0
      %4285 = vmatpush.msra.mxu0 0.0
      %4286 = vmatpush.msra.mxu0 0.0
      %4287 = vmatpush.msra.mxu0 0.0
      %4288 = vmatpush.msra.mxu0 0.0
      %4289 = vmatpush.msra.mxu0 0.0
      %4290 = vmatpush.msra.mxu0 0.0
      %4291 = vmatpush.msra.mxu0 0.0
      %4292 = vmatpush.msra.mxu0 0.0
      %4293 = vmatpush.msra.mxu0 0.0
      %4294 = vmatpush.msra.mxu0 0.0
      %4295 = vmatpush.msra.mxu0 0.0
      %4296 = vmatpush.msra.mxu0 0.0
      %4297 = vmatpush.msra.mxu0 0.0
      %4298 = vmatpush.msra.mxu0 0.0
      %4299 = vmatpush.msra.mxu0 %v4258
      %4300 = vmatmul.f32.gmra.mxu0 %v4262
      %v4301 = vpop.f32.mrf.mxu0
      %v4302 = vadd.f32 %v4246, %v4301
      %4303 = vdwg.mxu0
      %v4304 = vld [vmem:[%s294] sm:$0xff]
      %v4305 = vld [vmem:[%s294 + $0x8] sm:$0xff]
      %v4306 = vld [vmem:[%s294 + $0x10] sm:$0xff]
      %v4307 = vmul.f32 %v4304, %v1470
      %v4308 = vmul.f32 %v4305, %v1473
      %v4309 = vmul.f32 %v4306, %v1472
      %v4310 = vld [vmem:[%s2485] sm:$0x1]
      %4314 = vrot.lane.b32.xlu0 %v4307, 1
      %v4315 = vpop.permute.xlu0 %4314
      %4316 = vrot.lane.b32.xlu0 %v4308, 1
      %v4317 = vpop.permute.xlu0 %4316
      %4318 = vrot.lane.b32.xlu0 %v4309, 1
      %v4319 = vpop.permute.xlu0 %4318
      %v4320 = vsel %vm852, %v4315, %v4317
      %v4321 = vsel %vm852, %v4317, %v4319
      %v4325 = vsel %vm1369, %v4310, 0
      %4327 = vmatpush.msra.mxu0 0.0
      %4328 = vmatpush.msra.mxu0 0.0
      %4329 = vmatpush.msra.mxu0 0.0
      %4330 = vmatpush.msra.mxu0 0.0
      %4331 = vmatpush.msra.mxu0 0.0
      %4332 = vmatpush.msra.mxu0 0.0
      %4333 = vmatpush.msra.mxu0 0.0
      %4334 = vmatpush.msra.mxu0 0.0
      %4335 = vmatpush.msra.mxu0 0.0
      %4336 = vmatpush.msra.mxu0 0.0
      %4337 = vmatpush.msra.mxu0 0.0
      %4338 = vmatpush.msra.mxu0 0.0
      %4339 = vmatpush.msra.mxu0 0.0
      %4340 = vmatpush.msra.mxu0 0.0
      %4341 = vmatpush.msra.mxu0 0.0
      %4342 = vmatpush.msra.mxu0 %v4320
      %4343 = vmatmul.f32.gmra.mxu0 %v4325
      %v4344 = vpop.f32.mrf.mxu0
      %v4345 = vadd.f32 0.0, %v4344
      %4346 = vdwg.mxu0
      %4347 = vmatpush.msra.mxu0 0.0
      %4348 = vmatpush.msra.mxu0 0.0
      %4349 = vmatpush.msra.mxu0 0.0
      %4350 = vmatpush.msra.mxu0 0.0
      %4351 = vmatpush.msra.mxu0 0.0
      %4352 = vmatpush.msra.mxu0 0.0
      %4353 = vmatpush.msra.mxu0 0.0
      %4354 = vmatpush.msra.mxu0 0.0
      %4355 = vmatpush.msra.mxu0 0.0
      %4356 = vmatpush.msra.mxu0 0.0
      %4357 = vmatpush.msra.mxu0 0.0
      %4358 = vmatpush.msra.mxu0 0.0
      %4359 = vmatpush.msra.mxu0 0.0
      %4360 = vmatpush.msra.mxu0 0.0
      %4361 = vmatpush.msra.mxu0 0.0
      %4362 = vmatpush.msra.mxu0 %v4321
      %4363 = vmatmul.f32.gmra.mxu0 %v4325
      %v4364 = vpop.f32.mrf.mxu0
      %v4365 = vadd.f32 0.0, %v4364
      %4366 = vdwg.mxu0
      %v4367 = vadd.f32 %v4282, %v4345
      %v4368 = vadd.f32 %v4302, %v4365
      %v4369 = vld [vmem:[%s291 + $0x8] sm:$0xff]
      %v4370 = vld [vmem:[%s291 + $0x10] sm:$0xff]
      %v4371 = vld [vmem:[%s2547] sm:$0x1]
      %v4373 = vsel %vm1369, %v4371, 0
      %4375 = vmatpush.msra.mxu0 0.0
      %4376 = vmatpush.msra.mxu0 0.0
      %4377 = vmatpush.msra.mxu0 0.0
      %4378 = vmatpush.msra.mxu0 0.0
      %4379 = vmatpush.msra.mxu0 0.0
      %4380 = vmatpush.msra.mxu0 0.0
      %4381 = vmatpush.msra.mxu0 0.0
      %4382 = vmatpush.msra.mxu0 0.0
      %4383 = vmatpush.msra.mxu0 0.0
      %4384 = vmatpush.msra.mxu0 0.0
      %4385 = vmatpush.msra.mxu0 0.0
      %4386 = vmatpush.msra.mxu0 0.0
      %4387 = vmatpush.msra.mxu0 0.0
      %4388 = vmatpush.msra.mxu0 0.0
      %4389 = vmatpush.msra.mxu0 0.0
      %4390 = vmatpush.msra.mxu0 %v4369
      %4391 = vmatmul.f32.gmra.mxu0 %v4373
      %v4392 = vpop.f32.mrf.mxu0
      %v4393 = vadd.f32 0.0, %v4392
      %4394 = vdwg.mxu0
      %4395 = vmatpush.msra.mxu0 0.0
      %4396 = vmatpush.msra.mxu0 0.0
      %4397 = vmatpush.msra.mxu0 0.0
      %4398 = vmatpush.msra.mxu0 0.0
      %4399 = vmatpush.msra.mxu0 0.0
      %4400 = vmatpush.msra.mxu0 0.0
      %4401 = vmatpush.msra.mxu0 0.0
      %4402 = vmatpush.msra.mxu0 0.0
      %4403 = vmatpush.msra.mxu0 0.0
      %4404 = vmatpush.msra.mxu0 0.0
      %4405 = vmatpush.msra.mxu0 0.0
      %4406 = vmatpush.msra.mxu0 0.0
      %4407 = vmatpush.msra.mxu0 0.0
      %4408 = vmatpush.msra.mxu0 0.0
      %4409 = vmatpush.msra.mxu0 0.0
      %4410 = vmatpush.msra.mxu0 %v4370
      %4411 = vmatmul.f32.gmra.mxu0 %v4373
      %v4412 = vpop.f32.mrf.mxu0
      %v4413 = vadd.f32 0.0, %v4412
      %4414 = vdwg.mxu0
      %v4415 = vadd.f32 %v4367, %v4393
      %v4416 = vadd.f32 %v4368, %v4413
      %v4417 = vadd.f32 %v4415, %v2599
      %v4418 = vadd.f32 %v4416, %v2599
      %v4419 = vmax.f32 %v4417, 0.0
      %v4420 = vmax.f32 %v4418, 0.0
      %v4423 = vrot.slane %v4420, 7
      %v4424 = vsel %vm381, %v4419, %v4423
      %s4426 = scalar_lea.vmem %s277, 16
      %4427 = vst.msk [vmem:[%s4426] ss:$8 sm:$0x3] %vm299, %v4424
      %4428 = vst.msk [vmem:[%s4426] ss:$8 sm:$0x0] %vm299, %v4424
      %v4429 = vld [vmem:[#allocation4 + $0x8] sm:$0xff]
      %v4430 = vld [vmem:[#allocation4 + $0x10] sm:$0xff]
      %v4431 = vld [vmem:[%s2614] sm:$0x1]
      %v4432 = vld [vmem:[%s288 + $0x8] sm:$0xff]
      %v4433 = vld [vmem:[%s288 + $0x10] sm:$0xff]
      %v4434 = vld [vmem:[%s2619] sm:$0x1]
      %v4436 = vsel %vm1369, %v4434, 0
      %4438 = vmatpush.msra.mxu0 0.0
      %4439 = vmatpush.msra.mxu0 0.0
      %4440 = vmatpush.msra.mxu0 0.0
      %4441 = vmatpush.msra.mxu0 0.0
      %4442 = vmatpush.msra.mxu0 0.0
      %4443 = vmatpush.msra.mxu0 0.0
      %4444 = vmatpush.msra.mxu0 0.0
      %4445 = vmatpush.msra.mxu0 0.0
      %4446 = vmatpush.msra.mxu0 0.0
      %4447 = vmatpush.msra.mxu0 0.0
      %4448 = vmatpush.msra.mxu0 0.0
      %4449 = vmatpush.msra.mxu0 0.0
      %4450 = vmatpush.msra.mxu0 0.0
      %4451 = vmatpush.msra.mxu0 0.0
      %4452 = vmatpush.msra.mxu0 0.0
      %4453 = vmatpush.msra.mxu0 %v4432
      %4454 = vmatmul.f32.gmra.mxu0 %v4436
      %v4455 = vpop.f32.mrf.mxu0
      %v4456 = vadd.f32 0.0, %v4455
      %4457 = vdwg.mxu0
      %4458 = vmatpush.msra.mxu0 0.0
      %4459 = vmatpush.msra.mxu0 0.0
      %4460 = vmatpush.msra.mxu0 0.0
      %4461 = vmatpush.msra.mxu0 0.0
      %4462 = vmatpush.msra.mxu0 0.0
      %4463 = vmatpush.msra.mxu0 0.0
      %4464 = vmatpush.msra.mxu0 0.0
      %4465 = vmatpush.msra.mxu0 0.0
      %4466 = vmatpush.msra.mxu0 0.0
      %4467 = vmatpush.msra.mxu0 0.0
      %4468 = vmatpush.msra.mxu0 0.0
      %4469 = vmatpush.msra.mxu0 0.0
      %4470 = vmatpush.msra.mxu0 0.0
      %4471 = vmatpush.msra.mxu0 0.0
      %4472 = vmatpush.msra.mxu0 0.0
      %4473 = vmatpush.msra.mxu0 %v4433
      %4474 = vmatmul.f32.gmra.mxu0 %v4436
      %v4475 = vpop.f32.mrf.mxu0
      %v4476 = vadd.f32 0.0, %v4475
      %4477 = vdwg.mxu0
      %v4479 = vsel %vm1369, %v4431, 0
      %4481 = vmatpush.msra.mxu0 0.0
      %4482 = vmatpush.msra.mxu0 0.0
      %4483 = vmatpush.msra.mxu0 0.0
      %4484 = vmatpush.msra.mxu0 0.0
      %4485 = vmatpush.msra.mxu0 0.0
      %4486 = vmatpush.msra.mxu0 0.0
      %4487 = vmatpush.msra.mxu0 0.0
      %4488 = vmatpush.msra.mxu0 0.0
      %4489 = vmatpush.msra.mxu0 0.0
      %4490 = vmatpush.msra.mxu0 0.0
      %4491 = vmatpush.msra.mxu0 0.0
      %4492 = vmatpush.msra.mxu0 0.0
      %4493 = vmatpush.msra.mxu0 0.0
      %4494 = vmatpush.msra.mxu0 0.0
      %4495 = vmatpush.msra.mxu0 0.0
      %4496 = vmatpush.msra.mxu0 %v4429
      %4497 = vmatmul.f32.gmra.mxu0 %v4479
      %v4498 = vpop.f32.mrf.mxu0
      %v4499 = vadd.f32 %v4456, %v4498
      %4500 = vdwg.mxu0
      %4501 = vmatpush.msra.mxu0 0.0
      %4502 = vmatpush.msra.mxu0 0.0
      %4503 = vmatpush.msra.mxu0 0.0
      %4504 = vmatpush.msra.mxu0 0.0
      %4505 = vmatpush.msra.mxu0 0.0
      %4506 = vmatpush.msra.mxu0 0.0
      %4507 = vmatpush.msra.mxu0 0.0
      %4508 = vmatpush.msra.mxu0 0.0
      %4509 = vmatpush.msra.mxu0 0.0
      %4510 = vmatpush.msra.mxu0 0.0
      %4511 = vmatpush.msra.mxu0 0.0
      %4512 = vmatpush.msra.mxu0 0.0
      %4513 = vmatpush.msra.mxu0 0.0
      %4514 = vmatpush.msra.mxu0 0.0
      %4515 = vmatpush.msra.mxu0 0.0
      %4516 = vmatpush.msra.mxu0 %v4430
      %4517 = vmatmul.f32.gmra.mxu0 %v4479
      %v4518 = vpop.f32.mrf.mxu0
      %v4519 = vadd.f32 %v4476, %v4518
      %4520 = vdwg.mxu0
      %v4521 = vld [vmem:[%s291 + $0x8] sm:$0xff]
      %v4522 = vld [vmem:[%s291 + $0x10] sm:$0xff]
      %v4523 = vld [vmem:[%s2735] sm:$0x1]
      %v4525 = vsel %vm1369, %v4523, 0
      %4527 = vmatpush.msra.mxu0 0.0
      %4528 = vmatpush.msra.mxu0 0.0
      %4529 = vmatpush.msra.mxu0 0.0
      %4530 = vmatpush.msra.mxu0 0.0
      %4531 = vmatpush.msra.mxu0 0.0
      %4532 = vmatpush.msra.mxu0 0.0
      %4533 = vmatpush.msra.mxu0 0.0
      %4534 = vmatpush.msra.mxu0 0.0
      %4535 = vmatpush.msra.mxu0 0.0
      %4536 = vmatpush.msra.mxu0 0.0
      %4537 = vmatpush.msra.mxu0 0.0
      %4538 = vmatpush.msra.mxu0 0.0
      %4539 = vmatpush.msra.mxu0 0.0
      %4540 = vmatpush.msra.mxu0 0.0
      %4541 = vmatpush.msra.mxu0 0.0
      %4542 = vmatpush.msra.mxu0 %v4521
      %4543 = vmatmul.f32.gmra.mxu0 %v4525
      %v4544 = vpop.f32.mrf.mxu0
      %v4545 = vadd.f32 0.0, %v4544
      %4546 = vdwg.mxu0
      %4547 = vmatpush.msra.mxu0 0.0
      %4548 = vmatpush.msra.mxu0 0.0
      %4549 = vmatpush.msra.mxu0 0.0
      %4550 = vmatpush.msra.mxu0 0.0
      %4551 = vmatpush.msra.mxu0 0.0
      %4552 = vmatpush.msra.mxu0 0.0
      %4553 = vmatpush.msra.mxu0 0.0
      %4554 = vmatpush.msra.mxu0 0.0
      %4555 = vmatpush.msra.mxu0 0.0
      %4556 = vmatpush.msra.mxu0 0.0
      %4557 = vmatpush.msra.mxu0 0.0
      %4558 = vmatpush.msra.mxu0 0.0
      %4559 = vmatpush.msra.mxu0 0.0
      %4560 = vmatpush.msra.mxu0 0.0
      %4561 = vmatpush.msra.mxu0 0.0
      %4562 = vmatpush.msra.mxu0 %v4522
      %4563 = vmatmul.f32.gmra.mxu0 %v4525
      %v4564 = vpop.f32.mrf.mxu0
      %v4565 = vadd.f32 0.0, %v4564
      %4566 = vdwg.mxu0
      %v4567 = vadd.f32 %v4499, %v4545
      %v4568 = vadd.f32 %v4519, %v4565
      %v4569 = vld [vmem:[%s294 + $0x8] sm:$0xff]
      %v4570 = vld [vmem:[%s294 + $0x10] sm:$0xff]
      %v4571 = vld [vmem:[%s2784] sm:$0x1]
      %v4573 = vsel %vm1369, %v4571, 0
      %4575 = vmatpush.msra.mxu0 0.0
      %4576 = vmatpush.msra.mxu0 0.0
      %4577 = vmatpush.msra.mxu0 0.0
      %4578 = vmatpush.msra.mxu0 0.0
      %4579 = vmatpush.msra.mxu0 0.0
      %4580 = vmatpush.msra.mxu0 0.0
      %4581 = vmatpush.msra.mxu0 0.0
      %4582 = vmatpush.msra.mxu0 0.0
      %4583 = vmatpush.msra.mxu0 0.0
      %4584 = vmatpush.msra.mxu0 0.0
      %4585 = vmatpush.msra.mxu0 0.0
      %4586 = vmatpush.msra.mxu0 0.0
      %4587 = vmatpush.msra.mxu0 0.0
      %4588 = vmatpush.msra.mxu0 0.0
      %4589 = vmatpush.msra.mxu0 0.0
      %4590 = vmatpush.msra.mxu0 %v4569
      %4591 = vmatmul.f32.gmra.mxu0 %v4573
      %v4592 = vpop.f32.mrf.mxu0
      %v4593 = vadd.f32 0.0, %v4592
      %4594 = vdwg.mxu0
      %4595 = vmatpush.msra.mxu0 0.0
      %4596 = vmatpush.msra.mxu0 0.0
      %4597 = vmatpush.msra.mxu0 0.0
      %4598 = vmatpush.msra.mxu0 0.0
      %4599 = vmatpush.msra.mxu0 0.0
      %4600 = vmatpush.msra.mxu0 0.0
      %4601 = vmatpush.msra.mxu0 0.0
      %4602 = vmatpush.msra.mxu0 0.0
      %4603 = vmatpush.msra.mxu0 0.0
      %4604 = vmatpush.msra.mxu0 0.0
      %4605 = vmatpush.msra.mxu0 0.0
      %4606 = vmatpush.msra.mxu0 0.0
      %4607 = vmatpush.msra.mxu0 0.0
      %4608 = vmatpush.msra.mxu0 0.0
      %4609 = vmatpush.msra.mxu0 0.0
      %4610 = vmatpush.msra.mxu0 %v4570
      %4611 = vmatmul.f32.gmra.mxu0 %v4573
      %v4612 = vpop.f32.mrf.mxu0
      %v4613 = vadd.f32 0.0, %v4612
      %4614 = vdwg.mxu0
      %v4615 = vadd.f32 %v4567, %v4593
      %v4616 = vadd.f32 %v4568, %v4613
      %v4617 = vadd.f32 %v4615, %v2599
      %v4618 = vadd.f32 %v4616, %v2599
      %v4619 = vmax.f32 %v4617, 0.0
      %v4620 = vmax.f32 %v4618, 0.0
      %v4623 = vrot.slane %v4620, 7
      %v4624 = vsel %vm381, %v4619, %v4623
      %s4626 = scalar_lea.vmem %s277, 17
      %4627 = vst.msk [vmem:[%s4626] ss:$8 sm:$0x3] %vm299, %v4624
      %4628 = vst.msk [vmem:[%s4626] ss:$8 sm:$0x0] %vm299, %v4624
      %v4629 = vld [vmem:[%s294] sm:$0xff]
      %v4630 = vld [vmem:[%s294 + $0x8] sm:$0xff]
      %v4631 = vld [vmem:[%s294 + $0x10] sm:$0xff]
      %v4632 = vmul.f32 %v4629, %v1470
      %v4633 = vmul.f32 %v4630, %v1473
      %v4634 = vmul.f32 %v4631, %v1472
      %v4635 = vld [vmem:[%s2849] sm:$0x1]
      %v4636 = vld [vmem:[%s291 + $0x8] sm:$0xff]
      %v4637 = vld [vmem:[%s291 + $0x10] sm:$0xff]
      %v4638 = vld [vmem:[%s2853] sm:$0x1]
      %v4640 = vsel %vm1369, %v4638, 0
      %4642 = vmatpush.msra.mxu0 0.0
      %4643 = vmatpush.msra.mxu0 0.0
      %4644 = vmatpush.msra.mxu0 0.0
      %4645 = vmatpush.msra.mxu0 0.0
      %4646 = vmatpush.msra.mxu0 0.0
      %4647 = vmatpush.msra.mxu0 0.0
      %4648 = vmatpush.msra.mxu0 0.0
      %4649 = vmatpush.msra.mxu0 0.0
      %4650 = vmatpush.msra.mxu0 0.0
      %4651 = vmatpush.msra.mxu0 0.0
      %4652 = vmatpush.msra.mxu0 0.0
      %4653 = vmatpush.msra.mxu0 0.0
      %4654 = vmatpush.msra.mxu0 0.0
      %4655 = vmatpush.msra.mxu0 0.0
      %4656 = vmatpush.msra.mxu0 0.0
      %4657 = vmatpush.msra.mxu0 %v4636
      %4658 = vmatmul.f32.gmra.mxu0 %v4640
      %v4659 = vpop.f32.mrf.mxu0
      %v4660 = vadd.f32 0.0, %v4659
      %4661 = vdwg.mxu0
      %4662 = vmatpush.msra.mxu0 0.0
      %4663 = vmatpush.msra.mxu0 0.0
      %4664 = vmatpush.msra.mxu0 0.0
      %4665 = vmatpush.msra.mxu0 0.0
      %4666 = vmatpush.msra.mxu0 0.0
      %4667 = vmatpush.msra.mxu0 0.0
      %4668 = vmatpush.msra.mxu0 0.0
      %4669 = vmatpush.msra.mxu0 0.0
      %4670 = vmatpush.msra.mxu0 0.0
      %4671 = vmatpush.msra.mxu0 0.0
      %4672 = vmatpush.msra.mxu0 0.0
      %4673 = vmatpush.msra.mxu0 0.0
      %4674 = vmatpush.msra.mxu0 0.0
      %4675 = vmatpush.msra.mxu0 0.0
      %4676 = vmatpush.msra.mxu0 0.0
      %4677 = vmatpush.msra.mxu0 %v4637
      %4678 = vmatmul.f32.gmra.mxu0 %v4640
      %v4679 = vpop.f32.mrf.mxu0
      %v4680 = vadd.f32 0.0, %v4679
      %4681 = vdwg.mxu0
      %4685 = vrot.lane.b32.xlu0 %v4632, 1
      %v4686 = vpop.permute.xlu0 %4685
      %4687 = vrot.lane.b32.xlu0 %v4633, 1
      %v4688 = vpop.permute.xlu0 %4687
      %4689 = vrot.lane.b32.xlu0 %v4634, 1
      %v4690 = vpop.permute.xlu0 %4689
      %v4691 = vsel %vm852, %v4686, %v4688
      %v4692 = vsel %vm852, %v4688, %v4690
      %v4696 = vsel %vm1369, %v4635, 0
      %4698 = vmatpush.msra.mxu0 0.0
      %4699 = vmatpush.msra.mxu0 0.0
      %4700 = vmatpush.msra.mxu0 0.0
      %4701 = vmatpush.msra.mxu0 0.0
      %4702 = vmatpush.msra.mxu0 0.0
      %4703 = vmatpush.msra.mxu0 0.0
      %4704 = vmatpush.msra.mxu0 0.0
      %4705 = vmatpush.msra.mxu0 0.0
      %4706 = vmatpush.msra.mxu0 0.0
      %4707 = vmatpush.msra.mxu0 0.0
      %4708 = vmatpush.msra.mxu0 0.0
      %4709 = vmatpush.msra.mxu0 0.0
      %4710 = vmatpush.msra.mxu0 0.0
      %4711 = vmatpush.msra.mxu0 0.0
      %4712 = vmatpush.msra.mxu0 0.0
      %4713 = vmatpush.msra.mxu0 %v4691
      %4714 = vmatmul.f32.gmra.mxu0 %v4696
      %v4715 = vpop.f32.mrf.mxu0
      %v4716 = vadd.f32 %v4660, %v4715
      %4717 = vdwg.mxu0
      %4718 = vmatpush.msra.mxu0 0.0
      %4719 = vmatpush.msra.mxu0 0.0
      %4720 = vmatpush.msra.mxu0 0.0
      %4721 = vmatpush.msra.mxu0 0.0
      %4722 = vmatpush.msra.mxu0 0.0
      %4723 = vmatpush.msra.mxu0 0.0
      %4724 = vmatpush.msra.mxu0 0.0
      %4725 = vmatpush.msra.mxu0 0.0
      %4726 = vmatpush.msra.mxu0 0.0
      %4727 = vmatpush.msra.mxu0 0.0
      %4728 = vmatpush.msra.mxu0 0.0
      %4729 = vmatpush.msra.mxu0 0.0
      %4730 = vmatpush.msra.mxu0 0.0
      %4731 = vmatpush.msra.mxu0 0.0
      %4732 = vmatpush.msra.mxu0 0.0
      %4733 = vmatpush.msra.mxu0 %v4692
      %4734 = vmatmul.f32.gmra.mxu0 %v4696
      %v4735 = vpop.f32.mrf.mxu0
      %v4736 = vadd.f32 %v4680, %v4735
      %4737 = vdwg.mxu0
      %v4738 = vld [vmem:[%s288 + $0x8] sm:$0xff]
      %v4739 = vld [vmem:[%s288 + $0x10] sm:$0xff]
      %v4740 = vld [vmem:[%s288 + $0x18] sm:$0xff]
      %v4741 = vmul.f32 %v4738, %v1970
      %v4742 = vmul.f32 %v4739, %v1973
      %v4743 = vmul.f32 %v4740, %v1972
      %v4744 = vld [vmem:[%s2960] sm:$0x1]
      %4748 = vrot.lane.b32.xlu0 %v4741, 113
      %v4749 = vpop.permute.xlu0 %4748
      %4750 = vrot.lane.b32.xlu0 %v4742, 113
      %v4751 = vpop.permute.xlu0 %4750
      %4752 = vrot.lane.b32.xlu0 %v4743, 113
      %v4753 = vpop.permute.xlu0 %4752
      %v4754 = vsel %vm673, %v4749, %v4751
      %v4755 = vsel %vm673, %v4751, %v4753
      %v4759 = vsel %vm1369, %v4744, 0
      %4761 = vmatpush.msra.mxu0 0.0
      %4762 = vmatpush.msra.mxu0 0.0
      %4763 = vmatpush.msra.mxu0 0.0
      %4764 = vmatpush.msra.mxu0 0.0
      %4765 = vmatpush.msra.mxu0 0.0
      %4766 = vmatpush.msra.mxu0 0.0
      %4767 = vmatpush.msra.mxu0 0.0
      %4768 = vmatpush.msra.mxu0 0.0
      %4769 = vmatpush.msra.mxu0 0.0
      %4770 = vmatpush.msra.mxu0 0.0
      %4771 = vmatpush.msra.mxu0 0.0
      %4772 = vmatpush.msra.mxu0 0.0
      %4773 = vmatpush.msra.mxu0 0.0
      %4774 = vmatpush.msra.mxu0 0.0
      %4775 = vmatpush.msra.mxu0 0.0
      %4776 = vmatpush.msra.mxu0 %v4754
      %4777 = vmatmul.f32.gmra.mxu0 %v4759
      %v4778 = vpop.f32.mrf.mxu0
      %v4779 = vadd.f32 0.0, %v4778
      %4780 = vdwg.mxu0
      %4781 = vmatpush.msra.mxu0 0.0
      %4782 = vmatpush.msra.mxu0 0.0
      %4783 = vmatpush.msra.mxu0 0.0
      %4784 = vmatpush.msra.mxu0 0.0
      %4785 = vmatpush.msra.mxu0 0.0
      %4786 = vmatpush.msra.mxu0 0.0
      %4787 = vmatpush.msra.mxu0 0.0
      %4788 = vmatpush.msra.mxu0 0.0
      %4789 = vmatpush.msra.mxu0 0.0
      %4790 = vmatpush.msra.mxu0 0.0
      %4791 = vmatpush.msra.mxu0 0.0
      %4792 = vmatpush.msra.mxu0 0.0
      %4793 = vmatpush.msra.mxu0 0.0
      %4794 = vmatpush.msra.mxu0 0.0
      %4795 = vmatpush.msra.mxu0 0.0
      %4796 = vmatpush.msra.mxu0 %v4755
      %4797 = vmatmul.f32.gmra.mxu0 %v4759
      %v4798 = vpop.f32.mrf.mxu0
      %v4799 = vadd.f32 0.0, %v4798
      %4800 = vdwg.mxu0
      %v4801 = vadd.f32 %v4716, %v4779
      %v4802 = vadd.f32 %v4736, %v4799
      %v4803 = vld [vmem:[#allocation4 + $0x8] sm:$0xff]
      %v4804 = vld [vmem:[#allocation4 + $0x10] sm:$0xff]
      %v4805 = vld [vmem:[#allocation4 + $0x18] sm:$0xff]
      %v4806 = vld [vmem:[%s3022] sm:$0x1]
      %4810 = vrot.lane.b32.xlu0 %v4803, 112
      %v4811 = vpop.permute.xlu0 %4810
      %4812 = vrot.lane.b32.xlu0 %v4804, 112
      %v4813 = vpop.permute.xlu0 %4812
      %4814 = vrot.lane.b32.xlu0 %v4805, 112
      %v4815 = vpop.permute.xlu0 %4814
      %v4816 = vsel %vm599, %v4811, %v4813
      %v4817 = vsel %vm599, %v4813, %v4815
      %v4821 = vsel %vm1369, %v4806, 0
      %4823 = vmatpush.msra.mxu0 0.0
      %4824 = vmatpush.msra.mxu0 0.0
      %4825 = vmatpush.msra.mxu0 0.0
      %4826 = vmatpush.msra.mxu0 0.0
      %4827 = vmatpush.msra.mxu0 0.0
      %4828 = vmatpush.msra.mxu0 0.0
      %4829 = vmatpush.msra.mxu0 0.0
      %4830 = vmatpush.msra.mxu0 0.0
      %4831 = vmatpush.msra.mxu0 0.0
      %4832 = vmatpush.msra.mxu0 0.0
      %4833 = vmatpush.msra.mxu0 0.0
      %4834 = vmatpush.msra.mxu0 0.0
      %4835 = vmatpush.msra.mxu0 0.0
      %4836 = vmatpush.msra.mxu0 0.0
      %4837 = vmatpush.msra.mxu0 0.0
      %4838 = vmatpush.msra.mxu0 %v4816
      %4839 = vmatmul.f32.gmra.mxu0 %v4821
      %v4840 = vpop.f32.mrf.mxu0
      %v4841 = vadd.f32 0.0, %v4840
      %4842 = vdwg.mxu0
      %4843 = vmatpush.msra.mxu0 0.0
      %4844 = vmatpush.msra.mxu0 0.0
      %4845 = vmatpush.msra.mxu0 0.0
      %4846 = vmatpush.msra.mxu0 0.0
      %4847 = vmatpush.msra.mxu0 0.0
      %4848 = vmatpush.msra.mxu0 0.0
      %4849 = vmatpush.msra.mxu0 0.0
      %4850 = vmatpush.msra.mxu0 0.0
      %4851 = vmatpush.msra.mxu0 0.0
      %4852 = vmatpush.msra.mxu0 0.0
      %4853 = vmatpush.msra.mxu0 0.0
      %4854 = vmatpush.msra.mxu0 0.0
      %4855 = vmatpush.msra.mxu0 0.0
      %4856 = vmatpush.msra.mxu0 0.0
      %4857 = vmatpush.msra.mxu0 0.0
      %4858 = vmatpush.msra.mxu0 %v4817
      %4859 = vmatmul.f32.gmra.mxu0 %v4821
      %v4860 = vpop.f32.mrf.mxu0
      %v4861 = vadd.f32 0.0, %v4860
      %4862 = vdwg.mxu0
      %v4863 = vadd.f32 %v4801, %v4841
      %v4864 = vadd.f32 %v4802, %v4861
      %v4865 = vadd.f32 %v4863, %v2599
      %v4866 = vadd.f32 %v4864, %v2599
      %v4867 = vmax.f32 %v4865, 0.0
      %v4868 = vmax.f32 %v4866, 0.0
      %v4871 = vrot.slane %v4868, 7
      %v4872 = vsel %vm381, %v4867, %v4871
      %s4874 = scalar_lea.vmem %s277, 20
      %4875 = vst.msk [vmem:[%s4874] ss:$8 sm:$0x3] %vm299, %v4872
      %4876 = vst.msk [vmem:[%s4874] ss:$8 sm:$0x0] %vm299, %v4872
      %v4877 = vld [vmem:[%s291 + $0x8] sm:$0xff]
      %v4878 = vld [vmem:[%s291 + $0x10] sm:$0xff]
      %v4879 = vld [vmem:[%s3083] sm:$0x1]
      %v4880 = vld [vmem:[%s294 + $0x8] sm:$0xff]
      %v4881 = vld [vmem:[%s294 + $0x10] sm:$0xff]
      %v4882 = vld [vmem:[%s3087] sm:$0x1]
      %v4884 = vsel %vm1369, %v4882, 0
      %4886 = vmatpush.msra.mxu0 0.0
      %4887 = vmatpush.msra.mxu0 0.0
      %4888 = vmatpush.msra.mxu0 0.0
      %4889 = vmatpush.msra.mxu0 0.0
      %4890 = vmatpush.msra.mxu0 0.0
      %4891 = vmatpush.msra.mxu0 0.0
      %4892 = vmatpush.msra.mxu0 0.0
      %4893 = vmatpush.msra.mxu0 0.0
      %4894 = vmatpush.msra.mxu0 0.0
      %4895 = vmatpush.msra.mxu0 0.0
      %4896 = vmatpush.msra.mxu0 0.0
      %4897 = vmatpush.msra.mxu0 0.0
      %4898 = vmatpush.msra.mxu0 0.0
      %4899 = vmatpush.msra.mxu0 0.0
      %4900 = vmatpush.msra.mxu0 0.0
      %4901 = vmatpush.msra.mxu0 %v4880
      %4902 = vmatmul.f32.gmra.mxu0 %v4884
      %v4903 = vpop.f32.mrf.mxu0
      %v4904 = vadd.f32 0.0, %v4903
      %4905 = vdwg.mxu0
      %4906 = vmatpush.msra.mxu0 0.0
      %4907 = vmatpush.msra.mxu0 0.0
      %4908 = vmatpush.msra.mxu0 0.0
      %4909 = vmatpush.msra.mxu0 0.0
      %4910 = vmatpush.msra.mxu0 0.0
      %4911 = vmatpush.msra.mxu0 0.0
      %4912 = vmatpush.msra.mxu0 0.0
      %4913 = vmatpush.msra.mxu0 0.0
      %4914 = vmatpush.msra.mxu0 0.0
      %4915 = vmatpush.msra.mxu0 0.0
      %4916 = vmatpush.msra.mxu0 0.0
      %4917 = vmatpush.msra.mxu0 0.0
      %4918 = vmatpush.msra.mxu0 0.0
      %4919 = vmatpush.msra.mxu0 0.0
      %4920 = vmatpush.msra.mxu0 0.0
      %4921 = vmatpush.msra.mxu0 %v4881
      %4922 = vmatmul.f32.gmra.mxu0 %v4884
      %v4923 = vpop.f32.mrf.mxu0
      %v4924 = vadd.f32 0.0, %v4923
      %4925 = vdwg.mxu0
      %v4927 = vsel %vm1369, %v4879, 0
      %4929 = vmatpush.msra.mxu0 0.0
      %4930 = vmatpush.msra.mxu0 0.0
      %4931 = vmatpush.msra.mxu0 0.0
      %4932 = vmatpush.msra.mxu0 0.0
      %4933 = vmatpush.msra.mxu0 0.0
      %4934 = vmatpush.msra.mxu0 0.0
      %4935 = vmatpush.msra.mxu0 0.0
      %4936 = vmatpush.msra.mxu0 0.0
      %4937 = vmatpush.msra.mxu0 0.0
      %4938 = vmatpush.msra.mxu0 0.0
      %4939 = vmatpush.msra.mxu0 0.0
      %4940 = vmatpush.msra.mxu0 0.0
      %4941 = vmatpush.msra.mxu0 0.0
      %4942 = vmatpush.msra.mxu0 0.0
      %4943 = vmatpush.msra.mxu0 0.0
      %4944 = vmatpush.msra.mxu0 %v4877
      %4945 = vmatmul.f32.gmra.mxu0 %v4927
      %v4946 = vpop.f32.mrf.mxu0
      %v4947 = vadd.f32 %v4904, %v4946
      %4948 = vdwg.mxu0
      %4949 = vmatpush.msra.mxu0 0.0
      %4950 = vmatpush.msra.mxu0 0.0
      %4951 = vmatpush.msra.mxu0 0.0
      %4952 = vmatpush.msra.mxu0 0.0
      %4953 = vmatpush.msra.mxu0 0.0
      %4954 = vmatpush.msra.mxu0 0.0
      %4955 = vmatpush.msra.mxu0 0.0
      %4956 = vmatpush.msra.mxu0 0.0
      %4957 = vmatpush.msra.mxu0 0.0
      %4958 = vmatpush.msra.mxu0 0.0
      %4959 = vmatpush.msra.mxu0 0.0
      %4960 = vmatpush.msra.mxu0 0.0
      %4961 = vmatpush.msra.mxu0 0.0
      %4962 = vmatpush.msra.mxu0 0.0
      %4963 = vmatpush.msra.mxu0 0.0
      %4964 = vmatpush.msra.mxu0 %v4878
      %4965 = vmatmul.f32.gmra.mxu0 %v4927
      %v4966 = vpop.f32.mrf.mxu0
      %v4967 = vadd.f32 %v4924, %v4966
      %4968 = vdwg.mxu0
      %v4969 = vld [vmem:[#allocation4 + $0x8] sm:$0xff]
      %v4970 = vld [vmem:[#allocation4 + $0x10] sm:$0xff]
      %v4971 = vld [vmem:[#allocation4 + $0x18] sm:$0xff]
      %v4972 = vld [vmem:[%s3177] sm:$0x1]
      %4976 = vrot.lane.b32.xlu0 %v4969, 112
      %v4977 = vpop.permute.xlu0 %4976
      %4978 = vrot.lane.b32.xlu0 %v4970, 112
      %v4979 = vpop.permute.xlu0 %4978
      %4980 = vrot.lane.b32.xlu0 %v4971, 112
      %v4981 = vpop.permute.xlu0 %4980
      %v4982 = vsel %vm599, %v4977, %v4979
      %v4983 = vsel %vm599, %v4979, %v4981
      %v4987 = vsel %vm1369, %v4972, 0
      %4989 = vmatpush.msra.mxu0 0.0
      %4990 = vmatpush.msra.mxu0 0.0
      %4991 = vmatpush.msra.mxu0 0.0
      %4992 = vmatpush.msra.mxu0 0.0
      %4993 = vmatpush.msra.mxu0 0.0
      %4994 = vmatpush.msra.mxu0 0.0
      %4995 = vmatpush.msra.mxu0 0.0
      %4996 = vmatpush.msra.mxu0 0.0
      %4997 = vmatpush.msra.mxu0 0.0
      %4998 = vmatpush.msra.mxu0 0.0
      %4999 = vmatpush.msra.mxu0 0.0
      %5000 = vmatpush.msra.mxu0 0.0
      %5001 = vmatpush.msra.mxu0 0.0
      %5002 = vmatpush.msra.mxu0 0.0
      %5003 = vmatpush.msra.mxu0 0.0
      %5004 = vmatpush.msra.mxu0 %v4982
      %5005 = vmatmul.f32.gmra.mxu0 %v4987
      %v5006 = vpop.f32.mrf.mxu0
      %v5007 = vadd.f32 0.0, %v5006
      %5008 = vdwg.mxu0
      %5009 = vmatpush.msra.mxu0 0.0
      %5010 = vmatpush.msra.mxu0 0.0
      %5011 = vmatpush.msra.mxu0 0.0
      %5012 = vmatpush.msra.mxu0 0.0
      %5013 = vmatpush.msra.mxu0 0.0
      %5014 = vmatpush.msra.mxu0 0.0
      %5015 = vmatpush.msra.mxu0 0.0
      %5016 = vmatpush.msra.mxu0 0.0
      %5017 = vmatpush.msra.mxu0 0.0
      %5018 = vmatpush.msra.mxu0 0.0
      %5019 = vmatpush.msra.mxu0 0.0
      %5020 = vmatpush.msra.mxu0 0.0
      %5021 = vmatpush.msra.mxu0 0.0
      %5022 = vmatpush.msra.mxu0 0.0
      %5023 = vmatpush.msra.mxu0 0.0
      %5024 = vmatpush.msra.mxu0 %v4983
      %5025 = vmatmul.f32.gmra.mxu0 %v4987
      %v5026 = vpop.f32.mrf.mxu0
      %v5027 = vadd.f32 0.0, %v5026
      %5028 = vdwg.mxu0
      %v5029 = vadd.f32 %v4947, %v5007
      %v5030 = vadd.f32 %v4967, %v5027
      %v5031 = vld [vmem:[%s288 + $0x8] sm:$0xff]
      %v5032 = vld [vmem:[%s288 + $0x10] sm:$0xff]
      %v5033 = vld [vmem:[%s288 + $0x18] sm:$0xff]
      %v5034 = vld [vmem:[%s3226] sm:$0x1]
      %5038 = vrot.lane.b32.xlu0 %v5031, 112
      %v5039 = vpop.permute.xlu0 %5038
      %5040 = vrot.lane.b32.xlu0 %v5032, 112
      %v5041 = vpop.permute.xlu0 %5040
      %5042 = vrot.lane.b32.xlu0 %v5033, 112
      %v5043 = vpop.permute.xlu0 %5042
      %v5044 = vsel %vm599, %v5039, %v5041
      %v5045 = vsel %vm599, %v5041, %v5043
      %v5049 = vsel %vm1369, %v5034, 0
      %5051 = vmatpush.msra.mxu0 0.0
      %5052 = vmatpush.msra.mxu0 0.0
      %5053 = vmatpush.msra.mxu0 0.0
      %5054 = vmatpush.msra.mxu0 0.0
      %5055 = vmatpush.msra.mxu0 0.0
      %5056 = vmatpush.msra.mxu0 0.0
      %5057 = vmatpush.msra.mxu0 0.0
      %5058 = vmatpush.msra.mxu0 0.0
      %5059 = vmatpush.msra.mxu0 0.0
      %5060 = vmatpush.msra.mxu0 0.0
      %5061 = vmatpush.msra.mxu0 0.0
      %5062 = vmatpush.msra.mxu0 0.0
      %5063 = vmatpush.msra.mxu0 0.0
      %5064 = vmatpush.msra.mxu0 0.0
      %5065 = vmatpush.msra.mxu0 0.0
      %5066 = vmatpush.msra.mxu0 %v5044
      %5067 = vmatmul.f32.gmra.mxu0 %v5049
      %v5068 = vpop.f32.mrf.mxu0
      %v5069 = vadd.f32 0.0, %v5068
      %5070 = vdwg.mxu0
      %5071 = vmatpush.msra.mxu0 0.0
      %5072 = vmatpush.msra.mxu0 0.0
      %5073 = vmatpush.msra.mxu0 0.0
      %5074 = vmatpush.msra.mxu0 0.0
      %5075 = vmatpush.msra.mxu0 0.0
      %5076 = vmatpush.msra.mxu0 0.0
      %5077 = vmatpush.msra.mxu0 0.0
      %5078 = vmatpush.msra.mxu0 0.0
      %5079 = vmatpush.msra.mxu0 0.0
      %5080 = vmatpush.msra.mxu0 0.0
      %5081 = vmatpush.msra.mxu0 0.0
      %5082 = vmatpush.msra.mxu0 0.0
      %5083 = vmatpush.msra.mxu0 0.0
      %5084 = vmatpush.msra.mxu0 0.0
      %5085 = vmatpush.msra.mxu0 0.0
      %5086 = vmatpush.msra.mxu0 %v5045
      %5087 = vmatmul.f32.gmra.mxu0 %v5049
      %v5088 = vpop.f32.mrf.mxu0
      %v5089 = vadd.f32 0.0, %v5088
      %5090 = vdwg.mxu0
      %v5091 = vadd.f32 %v5029, %v5069
      %v5092 = vadd.f32 %v5030, %v5089
      %v5093 = vadd.f32 %v5091, %v2599
      %v5094 = vadd.f32 %v5092, %v2599
      %v5095 = vmax.f32 %v5093, 0.0
      %v5096 = vmax.f32 %v5094, 0.0
      %v5099 = vrot.slane %v5096, 7
      %v5100 = vsel %vm381, %v5095, %v5099
      %s5102 = scalar_lea.vmem %s277, 21
      %5103 = vst.msk [vmem:[%s5102] ss:$8 sm:$0x3] %vm299, %v5100
      %5104 = vst.msk [vmem:[%s5102] ss:$8 sm:$0x0] %vm299, %v5100
      %v5105 = vld [vmem:[#allocation4 + $0x8] sm:$0xff]
      %v5106 = vld [vmem:[#allocation4 + $0x10] sm:$0xff]
      %v5107 = vld [vmem:[%s5] sm:$0x1]
      %v5108 = vld [vmem:[%s288 + $0x8] sm:$0xff]
      %v5109 = vld [vmem:[%s288 + $0x10] sm:$0xff]
      %v5110 = vld [vmem:[%s2365] sm:$0x1]
      %v5112 = vsel %vm1369, %v5110, 0
      %5114 = vmatpush.msra.mxu0 0.0
      %5115 = vmatpush.msra.mxu0 0.0
      %5116 = vmatpush.msra.mxu0 0.0
      %5117 = vmatpush.msra.mxu0 0.0
      %5118 = vmatpush.msra.mxu0 0.0
      %5119 = vmatpush.msra.mxu0 0.0
      %5120 = vmatpush.msra.mxu0 0.0
      %5121 = vmatpush.msra.mxu0 0.0
      %5122 = vmatpush.msra.mxu0 0.0
      %5123 = vmatpush.msra.mxu0 0.0
      %5124 = vmatpush.msra.mxu0 0.0
      %5125 = vmatpush.msra.mxu0 0.0
      %5126 = vmatpush.msra.mxu0 0.0
      %5127 = vmatpush.msra.mxu0 0.0
      %5128 = vmatpush.msra.mxu0 0.0
      %5129 = vmatpush.msra.mxu0 %v5108
      %5130 = vmatmul.f32.gmra.mxu0 %v5112
      %v5131 = vpop.f32.mrf.mxu0
      %v5132 = vadd.f32 0.0, %v5131
      %5133 = vdwg.mxu0
      %5134 = vmatpush.msra.mxu0 0.0
      %5135 = vmatpush.msra.mxu0 0.0
      %5136 = vmatpush.msra.mxu0 0.0
      %5137 = vmatpush.msra.mxu0 0.0
      %5138 = vmatpush.msra.mxu0 0.0
      %5139 = vmatpush.msra.mxu0 0.0
      %5140 = vmatpush.msra.mxu0 0.0
      %5141 = vmatpush.msra.mxu0 0.0
      %5142 = vmatpush.msra.mxu0 0.0
      %5143 = vmatpush.msra.mxu0 0.0
      %5144 = vmatpush.msra.mxu0 0.0
      %5145 = vmatpush.msra.mxu0 0.0
      %5146 = vmatpush.msra.mxu0 0.0
      %5147 = vmatpush.msra.mxu0 0.0
      %5148 = vmatpush.msra.mxu0 0.0
      %5149 = vmatpush.msra.mxu0 %v5109
      %5150 = vmatmul.f32.gmra.mxu0 %v5112
      %v5151 = vpop.f32.mrf.mxu0
      %v5152 = vadd.f32 0.0, %v5151
      %5153 = vdwg.mxu0
      %v5155 = vsel %vm1369, %v5107, 0
      %5157 = vmatpush.msra.mxu0 0.0
      %5158 = vmatpush.msra.mxu0 0.0
      %5159 = vmatpush.msra.mxu0 0.0
      %5160 = vmatpush.msra.mxu0 0.0
      %5161 = vmatpush.msra.mxu0 0.0
      %5162 = vmatpush.msra.mxu0 0.0
      %5163 = vmatpush.msra.mxu0 0.0
      %5164 = vmatpush.msra.mxu0 0.0
      %5165 = vmatpush.msra.mxu0 0.0
      %5166 = vmatpush.msra.mxu0 0.0
      %5167 = vmatpush.msra.mxu0 0.0
      %5168 = vmatpush.msra.mxu0 0.0
      %5169 = vmatpush.msra.mxu0 0.0
      %5170 = vmatpush.msra.mxu0 0.0
      %5171 = vmatpush.msra.mxu0 0.0
      %5172 = vmatpush.msra.mxu0 %v5105
      %5173 = vmatmul.f32.gmra.mxu0 %v5155
      %v5174 = vpop.f32.mrf.mxu0
      %v5175 = vadd.f32 %v5132, %v5174
      %5176 = vdwg.mxu0
      %5177 = vmatpush.msra.mxu0 0.0
      %5178 = vmatpush.msra.mxu0 0.0
      %5179 = vmatpush.msra.mxu0 0.0
      %5180 = vmatpush.msra.mxu0 0.0
      %5181 = vmatpush.msra.mxu0 0.0
      %5182 = vmatpush.msra.mxu0 0.0
      %5183 = vmatpush.msra.mxu0 0.0
      %5184 = vmatpush.msra.mxu0 0.0
      %5185 = vmatpush.msra.mxu0 0.0
      %5186 = vmatpush.msra.mxu0 0.0
      %5187 = vmatpush.msra.mxu0 0.0
      %5188 = vmatpush.msra.mxu0 0.0
      %5189 = vmatpush.msra.mxu0 0.0
      %5190 = vmatpush.msra.mxu0 0.0
      %5191 = vmatpush.msra.mxu0 0.0
      %5192 = vmatpush.msra.mxu0 %v5106
      %5193 = vmatmul.f32.gmra.mxu0 %v5155
      %v5194 = vpop.f32.mrf.mxu0
      %v5195 = vadd.f32 %v5152, %v5194
      %5196 = vdwg.mxu0
      %v5197 = vld [vmem:[%s291 + $0x8] sm:$0xff]
      %v5198 = vld [vmem:[%s291 + $0x10] sm:$0xff]
      %v5199 = vld [vmem:[%s2485] sm:$0x1]
      %v5201 = vsel %vm1369, %v5199, 0
      %5203 = vmatpush.msra.mxu0 0.0
      %5204 = vmatpush.msra.mxu0 0.0
      %5205 = vmatpush.msra.mxu0 0.0
      %5206 = vmatpush.msra.mxu0 0.0
      %5207 = vmatpush.msra.mxu0 0.0
      %5208 = vmatpush.msra.mxu0 0.0
      %5209 = vmatpush.msra.mxu0 0.0
      %5210 = vmatpush.msra.mxu0 0.0
      %5211 = vmatpush.msra.mxu0 0.0
      %5212 = vmatpush.msra.mxu0 0.0
      %5213 = vmatpush.msra.mxu0 0.0
      %5214 = vmatpush.msra.mxu0 0.0
      %5215 = vmatpush.msra.mxu0 0.0
      %5216 = vmatpush.msra.mxu0 0.0
      %5217 = vmatpush.msra.mxu0 0.0
      %5218 = vmatpush.msra.mxu0 %v5197
      %5219 = vmatmul.f32.gmra.mxu0 %v5201
      %v5220 = vpop.f32.mrf.mxu0
      %v5221 = vadd.f32 0.0, %v5220
      %5222 = vdwg.mxu0
      %5223 = vmatpush.msra.mxu0 0.0
      %5224 = vmatpush.msra.mxu0 0.0
      %5225 = vmatpush.msra.mxu0 0.0
      %5226 = vmatpush.msra.mxu0 0.0
      %5227 = vmatpush.msra.mxu0 0.0
      %5228 = vmatpush.msra.mxu0 0.0
      %5229 = vmatpush.msra.mxu0 0.0
      %5230 = vmatpush.msra.mxu0 0.0
      %5231 = vmatpush.msra.mxu0 0.0
      %5232 = vmatpush.msra.mxu0 0.0
      %5233 = vmatpush.msra.mxu0 0.0
      %5234 = vmatpush.msra.mxu0 0.0
      %5235 = vmatpush.msra.mxu0 0.0
      %5236 = vmatpush.msra.mxu0 0.0
      %5237 = vmatpush.msra.mxu0 0.0
      %5238 = vmatpush.msra.mxu0 %v5198
      %5239 = vmatmul.f32.gmra.mxu0 %v5201
      %v5240 = vpop.f32.mrf.mxu0
      %v5241 = vadd.f32 0.0, %v5240
      %5242 = vdwg.mxu0
      %v5243 = vadd.f32 %v5175, %v5221
      %v5244 = vadd.f32 %v5195, %v5241
      %v5245 = vld [vmem:[%s294 + $0x8] sm:$0xff]
      %v5246 = vld [vmem:[%s294 + $0x10] sm:$0xff]
      %v5247 = vld [vmem:[%s2547] sm:$0x1]
      %v5249 = vsel %vm1369, %v5247, 0
      %5251 = vmatpush.msra.mxu0 0.0
      %5252 = vmatpush.msra.mxu0 0.0
      %5253 = vmatpush.msra.mxu0 0.0
      %5254 = vmatpush.msra.mxu0 0.0
      %5255 = vmatpush.msra.mxu0 0.0
      %5256 = vmatpush.msra.mxu0 0.0
      %5257 = vmatpush.msra.mxu0 0.0
      %5258 = vmatpush.msra.mxu0 0.0
      %5259 = vmatpush.msra.mxu0 0.0
      %5260 = vmatpush.msra.mxu0 0.0
      %5261 = vmatpush.msra.mxu0 0.0
      %5262 = vmatpush.msra.mxu0 0.0
      %5263 = vmatpush.msra.mxu0 0.0
      %5264 = vmatpush.msra.mxu0 0.0
      %5265 = vmatpush.msra.mxu0 0.0
      %5266 = vmatpush.msra.mxu0 %v5245
      %5267 = vmatmul.f32.gmra.mxu0 %v5249
      %v5268 = vpop.f32.mrf.mxu0
      %v5269 = vadd.f32 0.0, %v5268
      %5270 = vdwg.mxu0
      %5271 = vmatpush.msra.mxu0 0.0
      %5272 = vmatpush.msra.mxu0 0.0
      %5273 = vmatpush.msra.mxu0 0.0
      %5274 = vmatpush.msra.mxu0 0.0
      %5275 = vmatpush.msra.mxu0 0.0
      %5276 = vmatpush.msra.mxu0 0.0
      %5277 = vmatpush.msra.mxu0 0.0
      %5278 = vmatpush.msra.mxu0 0.0
      %5279 = vmatpush.msra.mxu0 0.0
      %5280 = vmatpush.msra.mxu0 0.0
      %5281 = vmatpush.msra.mxu0 0.0
      %5282 = vmatpush.msra.mxu0 0.0
      %5283 = vmatpush.msra.mxu0 0.0
      %5284 = vmatpush.msra.mxu0 0.0
      %5285 = vmatpush.msra.mxu0 0.0
      %5286 = vmatpush.msra.mxu0 %v5246
      %5287 = vmatmul.f32.gmra.mxu0 %v5249
      %v5288 = vpop.f32.mrf.mxu0
      %v5289 = vadd.f32 0.0, %v5288
      %5290 = vdwg.mxu0
      %v5291 = vadd.f32 %v5243, %v5269
      %v5292 = vadd.f32 %v5244, %v5289
      %v5293 = vadd.f32 %v5291, %v2599
      %v5294 = vadd.f32 %v5292, %v2599
      %v5295 = vmax.f32 %v5293, 0.0
      %v5296 = vmax.f32 %v5294, 0.0
      %v5299 = vrot.slane %v5296, 7
      %v5300 = vsel %vm381, %v5295, %v5299
      %s5302 = scalar_lea.vmem %s277, 18
      %5303 = vst.msk [vmem:[%s5302] ss:$8 sm:$0x3] %vm299, %v5300
      %5304 = vst.msk [vmem:[%s5302] ss:$8 sm:$0x0] %vm299, %v5300
      %v5305 = vld [vmem:[%s288 + $0x8] sm:$0xff]
      %v5306 = vld [vmem:[%s288 + $0x10] sm:$0xff]
      %v5307 = vld [vmem:[%s2614] sm:$0x1]
      %v5308 = vld [vmem:[#allocation4 + $0x8] sm:$0xff]
      %v5309 = vld [vmem:[#allocation4 + $0x10] sm:$0xff]
      %v5310 = vld [vmem:[#allocation4 + $0x18] sm:$0xff]
      %v5311 = vmul.f32 %v5308, %v1781
      %v5312 = vmul.f32 %v5309, %v1784
      %v5313 = vmul.f32 %v5310, %v1783
      %v5314 = vld [vmem:[%s2619] sm:$0x1]
      %5318 = vrot.lane.b32.xlu0 %v5311, 127
      %v5319 = vpop.permute.xlu0 %5318
      %5320 = vrot.lane.b32.xlu0 %v5312, 127
      %v5321 = vpop.permute.xlu0 %5320
      %5322 = vrot.lane.b32.xlu0 %v5313, 127
      %v5323 = vpop.permute.xlu0 %5322
      %v5324 = vsel %vm442, %v5319, %v5321
      %v5325 = vsel %vm442, %v5321, %v5323
      %v5329 = vsel %vm1369, %v5314, 0
      %5331 = vmatpush.msra.mxu0 0.0
      %5332 = vmatpush.msra.mxu0 0.0
      %5333 = vmatpush.msra.mxu0 0.0
      %5334 = vmatpush.msra.mxu0 0.0
      %5335 = vmatpush.msra.mxu0 0.0
      %5336 = vmatpush.msra.mxu0 0.0
      %5337 = vmatpush.msra.mxu0 0.0
      %5338 = vmatpush.msra.mxu0 0.0
      %5339 = vmatpush.msra.mxu0 0.0
      %5340 = vmatpush.msra.mxu0 0.0
      %5341 = vmatpush.msra.mxu0 0.0
      %5342 = vmatpush.msra.mxu0 0.0
      %5343 = vmatpush.msra.mxu0 0.0
      %5344 = vmatpush.msra.mxu0 0.0
      %5345 = vmatpush.msra.mxu0 0.0
      %5346 = vmatpush.msra.mxu0 %v5324
      %5347 = vmatmul.f32.gmra.mxu0 %v5329
      %v5348 = vpop.f32.mrf.mxu0
      %v5349 = vadd.f32 0.0, %v5348
      %5350 = vdwg.mxu0
      %5351 = vmatpush.msra.mxu0 0.0
      %5352 = vmatpush.msra.mxu0 0.0
      %5353 = vmatpush.msra.mxu0 0.0
      %5354 = vmatpush.msra.mxu0 0.0
      %5355 = vmatpush.msra.mxu0 0.0
      %5356 = vmatpush.msra.mxu0 0.0
      %5357 = vmatpush.msra.mxu0 0.0
      %5358 = vmatpush.msra.mxu0 0.0
      %5359 = vmatpush.msra.mxu0 0.0
      %5360 = vmatpush.msra.mxu0 0.0
      %5361 = vmatpush.msra.mxu0 0.0
      %5362 = vmatpush.msra.mxu0 0.0
      %5363 = vmatpush.msra.mxu0 0.0
      %5364 = vmatpush.msra.mxu0 0.0
      %5365 = vmatpush.msra.mxu0 0.0
      %5366 = vmatpush.msra.mxu0 %v5325
      %5367 = vmatmul.f32.gmra.mxu0 %v5329
      %v5368 = vpop.f32.mrf.mxu0
      %v5369 = vadd.f32 0.0, %v5368
      %5370 = vdwg.mxu0
      %v5372 = vsel %vm1369, %v5307, 0
      %5374 = vmatpush.msra.mxu0 0.0
      %5375 = vmatpush.msra.mxu0 0.0
      %5376 = vmatpush.msra.mxu0 0.0
      %5377 = vmatpush.msra.mxu0 0.0
      %5378 = vmatpush.msra.mxu0 0.0
      %5379 = vmatpush.msra.mxu0 0.0
      %5380 = vmatpush.msra.mxu0 0.0
      %5381 = vmatpush.msra.mxu0 0.0
      %5382 = vmatpush.msra.mxu0 0.0
      %5383 = vmatpush.msra.mxu0 0.0
      %5384 = vmatpush.msra.mxu0 0.0
      %5385 = vmatpush.msra.mxu0 0.0
      %5386 = vmatpush.msra.mxu0 0.0
      %5387 = vmatpush.msra.mxu0 0.0
      %5388 = vmatpush.msra.mxu0 0.0
      %5389 = vmatpush.msra.mxu0 %v5305
      %5390 = vmatmul.f32.gmra.mxu0 %v5372
      %v5391 = vpop.f32.mrf.mxu0
      %v5392 = vadd.f32 %v5349, %v5391
      %5393 = vdwg.mxu0
      %5394 = vmatpush.msra.mxu0 0.0
      %5395 = vmatpush.msra.mxu0 0.0
      %5396 = vmatpush.msra.mxu0 0.0
      %5397 = vmatpush.msra.mxu0 0.0
      %5398 = vmatpush.msra.mxu0 0.0
      %5399 = vmatpush.msra.mxu0 0.0
      %5400 = vmatpush.msra.mxu0 0.0
      %5401 = vmatpush.msra.mxu0 0.0
      %5402 = vmatpush.msra.mxu0 0.0
      %5403 = vmatpush.msra.mxu0 0.0
      %5404 = vmatpush.msra.mxu0 0.0
      %5405 = vmatpush.msra.mxu0 0.0
      %5406 = vmatpush.msra.mxu0 0.0
      %5407 = vmatpush.msra.mxu0 0.0
      %5408 = vmatpush.msra.mxu0 0.0
      %5409 = vmatpush.msra.mxu0 %v5306
      %5410 = vmatmul.f32.gmra.mxu0 %v5372
      %v5411 = vpop.f32.mrf.mxu0
      %v5412 = vadd.f32 %v5369, %v5411
      %5413 = vdwg.mxu0
      %v5414 = vld [vmem:[%s294 + $0x8] sm:$0xff]
      %v5415 = vld [vmem:[%s294 + $0x10] sm:$0xff]
      %v5416 = vld [vmem:[%s2735] sm:$0x1]
      %v5418 = vsel %vm1369, %v5416, 0
      %5420 = vmatpush.msra.mxu0 0.0
      %5421 = vmatpush.msra.mxu0 0.0
      %5422 = vmatpush.msra.mxu0 0.0
      %5423 = vmatpush.msra.mxu0 0.0
      %5424 = vmatpush.msra.mxu0 0.0
      %5425 = vmatpush.msra.mxu0 0.0
      %5426 = vmatpush.msra.mxu0 0.0
      %5427 = vmatpush.msra.mxu0 0.0
      %5428 = vmatpush.msra.mxu0 0.0
      %5429 = vmatpush.msra.mxu0 0.0
      %5430 = vmatpush.msra.mxu0 0.0
      %5431 = vmatpush.msra.mxu0 0.0
      %5432 = vmatpush.msra.mxu0 0.0
      %5433 = vmatpush.msra.mxu0 0.0
      %5434 = vmatpush.msra.mxu0 0.0
      %5435 = vmatpush.msra.mxu0 %v5414
      %5436 = vmatmul.f32.gmra.mxu0 %v5418
      %v5437 = vpop.f32.mrf.mxu0
      %v5438 = vadd.f32 0.0, %v5437
      %5439 = vdwg.mxu0
      %5440 = vmatpush.msra.mxu0 0.0
      %5441 = vmatpush.msra.mxu0 0.0
      %5442 = vmatpush.msra.mxu0 0.0
      %5443 = vmatpush.msra.mxu0 0.0
      %5444 = vmatpush.msra.mxu0 0.0
      %5445 = vmatpush.msra.mxu0 0.0
      %5446 = vmatpush.msra.mxu0 0.0
      %5447 = vmatpush.msra.mxu0 0.0
      %5448 = vmatpush.msra.mxu0 0.0
      %5449 = vmatpush.msra.mxu0 0.0
      %5450 = vmatpush.msra.mxu0 0.0
      %5451 = vmatpush.msra.mxu0 0.0
      %5452 = vmatpush.msra.mxu0 0.0
      %5453 = vmatpush.msra.mxu0 0.0
      %5454 = vmatpush.msra.mxu0 0.0
      %5455 = vmatpush.msra.mxu0 %v5415
      %5456 = vmatmul.f32.gmra.mxu0 %v5418
      %v5457 = vpop.f32.mrf.mxu0
      %v5458 = vadd.f32 0.0, %v5457
      %5459 = vdwg.mxu0
      %v5460 = vadd.f32 %v5392, %v5438
      %v5461 = vadd.f32 %v5412, %v5458
      %v5462 = vld [vmem:[%s291 + $0x8] sm:$0xff]
      %v5463 = vld [vmem:[%s291 + $0x10] sm:$0xff]
      %v5464 = vld [vmem:[%s291 + $0x18] sm:$0xff]
      %v5465 = vmul.f32 %v5462, %v1781
      %v5466 = vmul.f32 %v5463, %v1784
      %v5467 = vmul.f32 %v5464, %v1783
      %v5468 = vld [vmem:[%s2784] sm:$0x1]
      %5472 = vrot.lane.b32.xlu0 %v5465, 127
      %v5473 = vpop.permute.xlu0 %5472
      %5474 = vrot.lane.b32.xlu0 %v5466, 127
      %v5475 = vpop.permute.xlu0 %5474
      %5476 = vrot.lane.b32.xlu0 %v5467, 127
      %v5477 = vpop.permute.xlu0 %5476
      %v5478 = vsel %vm442, %v5473, %v5475
      %v5479 = vsel %vm442, %v5475, %v5477
      %v5483 = vsel %vm1369, %v5468, 0
      %5485 = vmatpush.msra.mxu0 0.0
      %5486 = vmatpush.msra.mxu0 0.0
      %5487 = vmatpush.msra.mxu0 0.0
      %5488 = vmatpush.msra.mxu0 0.0
      %5489 = vmatpush.msra.mxu0 0.0
      %5490 = vmatpush.msra.mxu0 0.0
      %5491 = vmatpush.msra.mxu0 0.0
      %5492 = vmatpush.msra.mxu0 0.0
      %5493 = vmatpush.msra.mxu0 0.0
      %5494 = vmatpush.msra.mxu0 0.0
      %5495 = vmatpush.msra.mxu0 0.0
      %5496 = vmatpush.msra.mxu0 0.0
      %5497 = vmatpush.msra.mxu0 0.0
      %5498 = vmatpush.msra.mxu0 0.0
      %5499 = vmatpush.msra.mxu0 0.0
      %5500 = vmatpush.msra.mxu0 %v5478
      %5501 = vmatmul.f32.gmra.mxu0 %v5483
      %v5502 = vpop.f32.mrf.mxu0
      %v5503 = vadd.f32 0.0, %v5502
      %5504 = vdwg.mxu0
      %5505 = vmatpush.msra.mxu0 0.0
      %5506 = vmatpush.msra.mxu0 0.0
      %5507 = vmatpush.msra.mxu0 0.0
      %5508 = vmatpush.msra.mxu0 0.0
      %5509 = vmatpush.msra.mxu0 0.0
      %5510 = vmatpush.msra.mxu0 0.0
      %5511 = vmatpush.msra.mxu0 0.0
      %5512 = vmatpush.msra.mxu0 0.0
      %5513 = vmatpush.msra.mxu0 0.0
      %5514 = vmatpush.msra.mxu0 0.0
      %5515 = vmatpush.msra.mxu0 0.0
      %5516 = vmatpush.msra.mxu0 0.0
      %5517 = vmatpush.msra.mxu0 0.0
      %5518 = vmatpush.msra.mxu0 0.0
      %5519 = vmatpush.msra.mxu0 0.0
      %5520 = vmatpush.msra.mxu0 %v5479
      %5521 = vmatmul.f32.gmra.mxu0 %v5483
      %v5522 = vpop.f32.mrf.mxu0
      %v5523 = vadd.f32 0.0, %v5522
      %5524 = vdwg.mxu0
      %v5525 = vadd.f32 %v5460, %v5503
      %v5526 = vadd.f32 %v5461, %v5523
      %v5527 = vadd.f32 %v5525, %v2599
      %v5528 = vadd.f32 %v5526, %v2599
      %v5529 = vmax.f32 %v5527, 0.0
      %v5530 = vmax.f32 %v5528, 0.0
      %v5533 = vrot.slane %v5530, 7
      %v5534 = vsel %vm381, %v5529, %v5533
      %s5536 = scalar_lea.vmem %s277, 19
      %5537 = vst.msk [vmem:[%s5536] ss:$8 sm:$0x3] %vm299, %v5534
      %5538 = vst.msk [vmem:[%s5536] ss:$8 sm:$0x0] %vm299, %v5534
      %v5539 = vld [vmem:[%s291 + $0x8] sm:$0xff]
      %v5540 = vld [vmem:[%s291 + $0x10] sm:$0xff]
      %v5541 = vld [vmem:[%s2849] sm:$0x1]
      %v5542 = vld [vmem:[%s294 + $0x8] sm:$0xff]
      %v5543 = vld [vmem:[%s294 + $0x10] sm:$0xff]
      %v5544 = vld [vmem:[%s2853] sm:$0x1]
      %v5546 = vsel %vm1369, %v5544, 0
      %5548 = vmatpush.msra.mxu0 0.0
      %5549 = vmatpush.msra.mxu0 0.0
      %5550 = vmatpush.msra.mxu0 0.0
      %5551 = vmatpush.msra.mxu0 0.0
      %5552 = vmatpush.msra.mxu0 0.0
      %5553 = vmatpush.msra.mxu0 0.0
      %5554 = vmatpush.msra.mxu0 0.0
      %5555 = vmatpush.msra.mxu0 0.0
      %5556 = vmatpush.msra.mxu0 0.0
      %5557 = vmatpush.msra.mxu0 0.0
      %5558 = vmatpush.msra.mxu0 0.0
      %5559 = vmatpush.msra.mxu0 0.0
      %5560 = vmatpush.msra.mxu0 0.0
      %5561 = vmatpush.msra.mxu0 0.0
      %5562 = vmatpush.msra.mxu0 0.0
      %5563 = vmatpush.msra.mxu0 %v5542
      %5564 = vmatmul.f32.gmra.mxu0 %v5546
      %v5565 = vpop.f32.mrf.mxu0
      %v5566 = vadd.f32 0.0, %v5565
      %5567 = vdwg.mxu0
      %5568 = vmatpush.msra.mxu0 0.0
      %5569 = vmatpush.msra.mxu0 0.0
      %5570 = vmatpush.msra.mxu0 0.0
      %5571 = vmatpush.msra.mxu0 0.0
      %5572 = vmatpush.msra.mxu0 0.0
      %5573 = vmatpush.msra.mxu0 0.0
      %5574 = vmatpush.msra.mxu0 0.0
      %5575 = vmatpush.msra.mxu0 0.0
      %5576 = vmatpush.msra.mxu0 0.0
      %5577 = vmatpush.msra.mxu0 0.0
      %5578 = vmatpush.msra.mxu0 0.0
      %5579 = vmatpush.msra.mxu0 0.0
      %5580 = vmatpush.msra.mxu0 0.0
      %5581 = vmatpush.msra.mxu0 0.0
      %5582 = vmatpush.msra.mxu0 0.0
      %5583 = vmatpush.msra.mxu0 %v5543
      %5584 = vmatmul.f32.gmra.mxu0 %v5546
      %v5585 = vpop.f32.mrf.mxu0
      %v5586 = vadd.f32 0.0, %v5585
      %5587 = vdwg.mxu0
      %v5589 = vsel %vm1369, %v5541, 0
      %5591 = vmatpush.msra.mxu0 0.0
      %5592 = vmatpush.msra.mxu0 0.0
      %5593 = vmatpush.msra.mxu0 0.0
      %5594 = vmatpush.msra.mxu0 0.0
      %5595 = vmatpush.msra.mxu0 0.0
      %5596 = vmatpush.msra.mxu0 0.0
      %5597 = vmatpush.msra.mxu0 0.0
      %5598 = vmatpush.msra.mxu0 0.0
      %5599 = vmatpush.msra.mxu0 0.0
      %5600 = vmatpush.msra.mxu0 0.0
      %5601 = vmatpush.msra.mxu0 0.0
      %5602 = vmatpush.msra.mxu0 0.0
      %5603 = vmatpush.msra.mxu0 0.0
      %5604 = vmatpush.msra.mxu0 0.0
      %5605 = vmatpush.msra.mxu0 0.0
      %5606 = vmatpush.msra.mxu0 %v5539
      %5607 = vmatmul.f32.gmra.mxu0 %v5589
      %v5608 = vpop.f32.mrf.mxu0
      %v5609 = vadd.f32 %v5566, %v5608
      %5610 = vdwg.mxu0
      %5611 = vmatpush.msra.mxu0 0.0
      %5612 = vmatpush.msra.mxu0 0.0
      %5613 = vmatpush.msra.mxu0 0.0
      %5614 = vmatpush.msra.mxu0 0.0
      %5615 = vmatpush.msra.mxu0 0.0
      %5616 = vmatpush.msra.mxu0 0.0
      %5617 = vmatpush.msra.mxu0 0.0
      %5618 = vmatpush.msra.mxu0 0.0
      %5619 = vmatpush.msra.mxu0 0.0
      %5620 = vmatpush.msra.mxu0 0.0
      %5621 = vmatpush.msra.mxu0 0.0
      %5622 = vmatpush.msra.mxu0 0.0
      %5623 = vmatpush.msra.mxu0 0.0
      %5624 = vmatpush.msra.mxu0 0.0
      %5625 = vmatpush.msra.mxu0 0.0
      %5626 = vmatpush.msra.mxu0 %v5540
      %5627 = vmatmul.f32.gmra.mxu0 %v5589
      %v5628 = vpop.f32.mrf.mxu0
      %v5629 = vadd.f32 %v5586, %v5628
      %5630 = vdwg.mxu0
      %v5631 = vld [vmem:[#allocation4 + $0x8] sm:$0xff]
      %v5632 = vld [vmem:[#allocation4 + $0x10] sm:$0xff]
      %v5633 = vld [vmem:[#allocation4 + $0x18] sm:$0xff]
      %v5634 = vld [vmem:[%s2960] sm:$0x1]
      %5638 = vrot.lane.b32.xlu0 %v5631, 112
      %v5639 = vpop.permute.xlu0 %5638
      %5640 = vrot.lane.b32.xlu0 %v5632, 112
      %v5641 = vpop.permute.xlu0 %5640
      %5642 = vrot.lane.b32.xlu0 %v5633, 112
      %v5643 = vpop.permute.xlu0 %5642
      %v5644 = vsel %vm599, %v5639, %v5641
      %v5645 = vsel %vm599, %v5641, %v5643
      %v5649 = vsel %vm1369, %v5634, 0
      %5651 = vmatpush.msra.mxu0 0.0
      %5652 = vmatpush.msra.mxu0 0.0
      %5653 = vmatpush.msra.mxu0 0.0
      %5654 = vmatpush.msra.mxu0 0.0
      %5655 = vmatpush.msra.mxu0 0.0
      %5656 = vmatpush.msra.mxu0 0.0
      %5657 = vmatpush.msra.mxu0 0.0
      %5658 = vmatpush.msra.mxu0 0.0
      %5659 = vmatpush.msra.mxu0 0.0
      %5660 = vmatpush.msra.mxu0 0.0
      %5661 = vmatpush.msra.mxu0 0.0
      %5662 = vmatpush.msra.mxu0 0.0
      %5663 = vmatpush.msra.mxu0 0.0
      %5664 = vmatpush.msra.mxu0 0.0
      %5665 = vmatpush.msra.mxu0 0.0
      %5666 = vmatpush.msra.mxu0 %v5644
      %5667 = vmatmul.f32.gmra.mxu0 %v5649
      %v5668 = vpop.f32.mrf.mxu0
      %v5669 = vadd.f32 0.0, %v5668
      %5670 = vdwg.mxu0
      %5671 = vmatpush.msra.mxu0 0.0
      %5672 = vmatpush.msra.mxu0 0.0
      %5673 = vmatpush.msra.mxu0 0.0
      %5674 = vmatpush.msra.mxu0 0.0
      %5675 = vmatpush.msra.mxu0 0.0
      %5676 = vmatpush.msra.mxu0 0.0
      %5677 = vmatpush.msra.mxu0 0.0
      %5678 = vmatpush.msra.mxu0 0.0
      %5679 = vmatpush.msra.mxu0 0.0
      %5680 = vmatpush.msra.mxu0 0.0
      %5681 = vmatpush.msra.mxu0 0.0
      %5682 = vmatpush.msra.mxu0 0.0
      %5683 = vmatpush.msra.mxu0 0.0
      %5684 = vmatpush.msra.mxu0 0.0
      %5685 = vmatpush.msra.mxu0 0.0
      %5686 = vmatpush.msra.mxu0 %v5645
      %5687 = vmatmul.f32.gmra.mxu0 %v5649
      %v5688 = vpop.f32.mrf.mxu0
      %v5689 = vadd.f32 0.0, %v5688
      %5690 = vdwg.mxu0
      %v5691 = vadd.f32 %v5609, %v5669
      %v5692 = vadd.f32 %v5629, %v5689
      %v5693 = vld [vmem:[%s288 + $0x8] sm:$0xff]
      %v5694 = vld [vmem:[%s288 + $0x10] sm:$0xff]
      %v5695 = vld [vmem:[%s288 + $0x18] sm:$0xff]
      %v5696 = vld [vmem:[%s3022] sm:$0x1]
      %5700 = vrot.lane.b32.xlu0 %v5693, 112
      %v5701 = vpop.permute.xlu0 %5700
      %5702 = vrot.lane.b32.xlu0 %v5694, 112
      %v5703 = vpop.permute.xlu0 %5702
      %5704 = vrot.lane.b32.xlu0 %v5695, 112
      %v5705 = vpop.permute.xlu0 %5704
      %v5706 = vsel %vm599, %v5701, %v5703
      %v5707 = vsel %vm599, %v5703, %v5705
      %v5711 = vsel %vm1369, %v5696, 0
      %5713 = vmatpush.msra.mxu0 0.0
      %5714 = vmatpush.msra.mxu0 0.0
      %5715 = vmatpush.msra.mxu0 0.0
      %5716 = vmatpush.msra.mxu0 0.0
      %5717 = vmatpush.msra.mxu0 0.0
      %5718 = vmatpush.msra.mxu0 0.0
      %5719 = vmatpush.msra.mxu0 0.0
      %5720 = vmatpush.msra.mxu0 0.0
      %5721 = vmatpush.msra.mxu0 0.0
      %5722 = vmatpush.msra.mxu0 0.0
      %5723 = vmatpush.msra.mxu0 0.0
      %5724 = vmatpush.msra.mxu0 0.0
      %5725 = vmatpush.msra.mxu0 0.0
      %5726 = vmatpush.msra.mxu0 0.0
      %5727 = vmatpush.msra.mxu0 0.0
      %5728 = vmatpush.msra.mxu0 %v5706
      %5729 = vmatmul.f32.gmra.mxu0 %v5711
      %v5730 = vpop.f32.mrf.mxu0
      %v5731 = vadd.f32 0.0, %v5730
      %5732 = vdwg.mxu0
      %5733 = vmatpush.msra.mxu0 0.0
      %5734 = vmatpush.msra.mxu0 0.0
      %5735 = vmatpush.msra.mxu0 0.0
      %5736 = vmatpush.msra.mxu0 0.0
      %5737 = vmatpush.msra.mxu0 0.0
      %5738 = vmatpush.msra.mxu0 0.0
      %5739 = vmatpush.msra.mxu0 0.0
      %5740 = vmatpush.msra.mxu0 0.0
      %5741 = vmatpush.msra.mxu0 0.0
      %5742 = vmatpush.msra.mxu0 0.0
      %5743 = vmatpush.msra.mxu0 0.0
      %5744 = vmatpush.msra.mxu0 0.0
      %5745 = vmatpush.msra.mxu0 0.0
      %5746 = vmatpush.msra.mxu0 0.0
      %5747 = vmatpush.msra.mxu0 0.0
      %5748 = vmatpush.msra.mxu0 %v5707
      %5749 = vmatmul.f32.gmra.mxu0 %v5711
      %v5750 = vpop.f32.mrf.mxu0
      %v5751 = vadd.f32 0.0, %v5750
      %5752 = vdwg.mxu0
      %v5753 = vadd.f32 %v5691, %v5731
      %v5754 = vadd.f32 %v5692, %v5751
      %v5755 = vadd.f32 %v5753, %v2599
      %v5756 = vadd.f32 %v5754, %v2599
      %v5757 = vmax.f32 %v5755, 0.0
      %v5758 = vmax.f32 %v5756, 0.0
      %v5761 = vrot.slane %v5758, 7
      %v5762 = vsel %vm381, %v5757, %v5761
      %s5764 = scalar_lea.vmem %s277, 22
      %5765 = vst.msk [vmem:[%s5764] ss:$8 sm:$0x3] %vm299, %v5762
      %5766 = vst.msk [vmem:[%s5764] ss:$8 sm:$0x0] %vm299, %v5762
      %v5767 = vld [vmem:[%s294 + $0x8] sm:$0xff]
      %v5768 = vld [vmem:[%s294 + $0x10] sm:$0xff]
      %v5769 = vld [vmem:[%s3083] sm:$0x1]
      %v5770 = vld [vmem:[%s291 + $0x8] sm:$0xff]
      %v5771 = vld [vmem:[%s291 + $0x10] sm:$0xff]
      %v5772 = vld [vmem:[%s291 + $0x18] sm:$0xff]
      %v5773 = vmul.f32 %v5770, %v1781
      %v5774 = vmul.f32 %v5771, %v1784
      %v5775 = vmul.f32 %v5772, %v1783
      %v5776 = vld [vmem:[%s3087] sm:$0x1]
      %5780 = vrot.lane.b32.xlu0 %v5773, 127
      %v5781 = vpop.permute.xlu0 %5780
      %5782 = vrot.lane.b32.xlu0 %v5774, 127
      %v5783 = vpop.permute.xlu0 %5782
      %5784 = vrot.lane.b32.xlu0 %v5775, 127
      %v5785 = vpop.permute.xlu0 %5784
      %v5786 = vsel %vm442, %v5781, %v5783
      %v5787 = vsel %vm442, %v5783, %v5785
      %v5791 = vsel %vm1369, %v5776, 0
      %5793 = vmatpush.msra.mxu0 0.0
      %5794 = vmatpush.msra.mxu0 0.0
      %5795 = vmatpush.msra.mxu0 0.0
      %5796 = vmatpush.msra.mxu0 0.0
      %5797 = vmatpush.msra.mxu0 0.0
      %5798 = vmatpush.msra.mxu0 0.0
      %5799 = vmatpush.msra.mxu0 0.0
      %5800 = vmatpush.msra.mxu0 0.0
      %5801 = vmatpush.msra.mxu0 0.0
      %5802 = vmatpush.msra.mxu0 0.0
      %5803 = vmatpush.msra.mxu0 0.0
      %5804 = vmatpush.msra.mxu0 0.0
      %5805 = vmatpush.msra.mxu0 0.0
      %5806 = vmatpush.msra.mxu0 0.0
      %5807 = vmatpush.msra.mxu0 0.0
      %5808 = vmatpush.msra.mxu0 %v5786
      %5809 = vmatmul.f32.gmra.mxu0 %v5791
      %v5810 = vpop.f32.mrf.mxu0
      %v5811 = vadd.f32 0.0, %v5810
      %5812 = vdwg.mxu0
      %5813 = vmatpush.msra.mxu0 0.0
      %5814 = vmatpush.msra.mxu0 0.0
      %5815 = vmatpush.msra.mxu0 0.0
      %5816 = vmatpush.msra.mxu0 0.0
      %5817 = vmatpush.msra.mxu0 0.0
      %5818 = vmatpush.msra.mxu0 0.0
      %5819 = vmatpush.msra.mxu0 0.0
      %5820 = vmatpush.msra.mxu0 0.0
      %5821 = vmatpush.msra.mxu0 0.0
      %5822 = vmatpush.msra.mxu0 0.0
      %5823 = vmatpush.msra.mxu0 0.0
      %5824 = vmatpush.msra.mxu0 0.0
      %5825 = vmatpush.msra.mxu0 0.0
      %5826 = vmatpush.msra.mxu0 0.0
      %5827 = vmatpush.msra.mxu0 0.0
      %5828 = vmatpush.msra.mxu0 %v5787
      %5829 = vmatmul.f32.gmra.mxu0 %v5791
      %v5830 = vpop.f32.mrf.mxu0
      %v5831 = vadd.f32 0.0, %v5830
      %5832 = vdwg.mxu0
      %v5834 = vsel %vm1369, %v5769, 0
      %5836 = vmatpush.msra.mxu0 0.0
      %5837 = vmatpush.msra.mxu0 0.0
      %5838 = vmatpush.msra.mxu0 0.0
      %5839 = vmatpush.msra.mxu0 0.0
      %5840 = vmatpush.msra.mxu0 0.0
      %5841 = vmatpush.msra.mxu0 0.0
      %5842 = vmatpush.msra.mxu0 0.0
      %5843 = vmatpush.msra.mxu0 0.0
      %5844 = vmatpush.msra.mxu0 0.0
      %5845 = vmatpush.msra.mxu0 0.0
      %5846 = vmatpush.msra.mxu0 0.0
      %5847 = vmatpush.msra.mxu0 0.0
      %5848 = vmatpush.msra.mxu0 0.0
      %5849 = vmatpush.msra.mxu0 0.0
      %5850 = vmatpush.msra.mxu0 0.0
      %5851 = vmatpush.msra.mxu0 %v5767
      %5852 = vmatmul.f32.gmra.mxu0 %v5834
      %v5853 = vpop.f32.mrf.mxu0
      %v5854 = vadd.f32 %v5811, %v5853
      %5855 = vdwg.mxu0
      %5856 = vmatpush.msra.mxu0 0.0
      %5857 = vmatpush.msra.mxu0 0.0
      %5858 = vmatpush.msra.mxu0 0.0
      %5859 = vmatpush.msra.mxu0 0.0
      %5860 = vmatpush.msra.mxu0 0.0
      %5861 = vmatpush.msra.mxu0 0.0
      %5862 = vmatpush.msra.mxu0 0.0
      %5863 = vmatpush.msra.mxu0 0.0
      %5864 = vmatpush.msra.mxu0 0.0
      %5865 = vmatpush.msra.mxu0 0.0
      %5866 = vmatpush.msra.mxu0 0.0
      %5867 = vmatpush.msra.mxu0 0.0
      %5868 = vmatpush.msra.mxu0 0.0
      %5869 = vmatpush.msra.mxu0 0.0
      %5870 = vmatpush.msra.mxu0 0.0
      %5871 = vmatpush.msra.mxu0 %v5768
      %5872 = vmatmul.f32.gmra.mxu0 %v5834
      %v5873 = vpop.f32.mrf.mxu0
      %v5874 = vadd.f32 %v5831, %v5873
      %5875 = vdwg.mxu0
      %v5876 = vld [vmem:[%s288 + $0x8] sm:$0xff]
      %v5877 = vld [vmem:[%s288 + $0x10] sm:$0xff]
      %v5878 = vld [vmem:[%s288 + $0x18] sm:$0xff]
      %v5879 = vld [vmem:[%s3177] sm:$0x1]
      %5883 = vrot.lane.b32.xlu0 %v5876, 112
      %v5884 = vpop.permute.xlu0 %5883
      %5885 = vrot.lane.b32.xlu0 %v5877, 112
      %v5886 = vpop.permute.xlu0 %5885
      %5887 = vrot.lane.b32.xlu0 %v5878, 112
      %v5888 = vpop.permute.xlu0 %5887
      %v5889 = vsel %vm599, %v5884, %v5886
      %v5890 = vsel %vm599, %v5886, %v5888
      %v5894 = vsel %vm1369, %v5879, 0
      %5896 = vmatpush.msra.mxu0 0.0
      %5897 = vmatpush.msra.mxu0 0.0
      %5898 = vmatpush.msra.mxu0 0.0
      %5899 = vmatpush.msra.mxu0 0.0
      %5900 = vmatpush.msra.mxu0 0.0
      %5901 = vmatpush.msra.mxu0 0.0
      %5902 = vmatpush.msra.mxu0 0.0
      %5903 = vmatpush.msra.mxu0 0.0
      %5904 = vmatpush.msra.mxu0 0.0
      %5905 = vmatpush.msra.mxu0 0.0
      %5906 = vmatpush.msra.mxu0 0.0
      %5907 = vmatpush.msra.mxu0 0.0
      %5908 = vmatpush.msra.mxu0 0.0
      %5909 = vmatpush.msra.mxu0 0.0
      %5910 = vmatpush.msra.mxu0 0.0
      %5911 = vmatpush.msra.mxu0 %v5889
      %5912 = vmatmul.f32.gmra.mxu0 %v5894
      %v5913 = vpop.f32.mrf.mxu0
      %v5914 = vadd.f32 0.0, %v5913
      %5915 = vdwg.mxu0
      %5916 = vmatpush.msra.mxu0 0.0
      %5917 = vmatpush.msra.mxu0 0.0
      %5918 = vmatpush.msra.mxu0 0.0
      %5919 = vmatpush.msra.mxu0 0.0
      %5920 = vmatpush.msra.mxu0 0.0
      %5921 = vmatpush.msra.mxu0 0.0
      %5922 = vmatpush.msra.mxu0 0.0
      %5923 = vmatpush.msra.mxu0 0.0
      %5924 = vmatpush.msra.mxu0 0.0
      %5925 = vmatpush.msra.mxu0 0.0
      %5926 = vmatpush.msra.mxu0 0.0
      %5927 = vmatpush.msra.mxu0 0.0
      %5928 = vmatpush.msra.mxu0 0.0
      %5929 = vmatpush.msra.mxu0 0.0
      %5930 = vmatpush.msra.mxu0 0.0
      %5931 = vmatpush.msra.mxu0 %v5890
      %5932 = vmatmul.f32.gmra.mxu0 %v5894
      %v5933 = vpop.f32.mrf.mxu0
      %v5934 = vadd.f32 0.0, %v5933
      %5935 = vdwg.mxu0
      %v5936 = vadd.f32 %v5854, %v5914
      %v5937 = vadd.f32 %v5874, %v5934
      %v5938 = vld [vmem:[#allocation4 + $0x8] sm:$0xff]
      %v5939 = vld [vmem:[#allocation4 + $0x10] sm:$0xff]
      %v5940 = vld [vmem:[#allocation4 + $0x18] sm:$0xff]
      %v5941 = vmul.f32 %v5938, %v2278
      %v5942 = vmul.f32 %v5939, %v2281
      %v5943 = vmul.f32 %v5940, %v2280
      %v5944 = vld [vmem:[%s3226] sm:$0x1]
      %5948 = vrot.lane.b32.xlu0 %v5941, 111
      %v5949 = vpop.permute.xlu0 %5948
      %5950 = vrot.lane.b32.xlu0 %v5942, 111
      %v5951 = vpop.permute.xlu0 %5950
      %5952 = vrot.lane.b32.xlu0 %v5943, 111
      %v5953 = vpop.permute.xlu0 %5952
      %v5954 = vsel %vm611, %v5949, %v5951
      %v5955 = vsel %vm611, %v5951, %v5953
      %v5959 = vsel %vm1369, %v5944, 0
      %5961 = vmatpush.msra.mxu0 0.0
      %5962 = vmatpush.msra.mxu0 0.0
      %5963 = vmatpush.msra.mxu0 0.0
      %5964 = vmatpush.msra.mxu0 0.0
      %5965 = vmatpush.msra.mxu0 0.0
      %5966 = vmatpush.msra.mxu0 0.0
      %5967 = vmatpush.msra.mxu0 0.0
      %5968 = vmatpush.msra.mxu0 0.0
      %5969 = vmatpush.msra.mxu0 0.0
      %5970 = vmatpush.msra.mxu0 0.0
      %5971 = vmatpush.msra.mxu0 0.0
      %5972 = vmatpush.msra.mxu0 0.0
      %5973 = vmatpush.msra.mxu0 0.0
      %5974 = vmatpush.msra.mxu0 0.0
      %5975 = vmatpush.msra.mxu0 0.0
      %5976 = vmatpush.msra.mxu0 %v5954
      %5977 = vmatmul.f32.gmra.mxu0 %v5959
      %v5978 = vpop.f32.mrf.mxu0
      %v5979 = vadd.f32 0.0, %v5978
      %5980 = vdwg.mxu0
      %5981 = vmatpush.msra.mxu0 0.0
      %5982 = vmatpush.msra.mxu0 0.0
      %5983 = vmatpush.msra.mxu0 0.0
      %5984 = vmatpush.msra.mxu0 0.0
      %5985 = vmatpush.msra.mxu0 0.0
      %5986 = vmatpush.msra.mxu0 0.0
      %5987 = vmatpush.msra.mxu0 0.0
      %5988 = vmatpush.msra.mxu0 0.0
      %5989 = vmatpush.msra.mxu0 0.0
      %5990 = vmatpush.msra.mxu0 0.0
      %5991 = vmatpush.msra.mxu0 0.0
      %5992 = vmatpush.msra.mxu0 0.0
      %5993 = vmatpush.msra.mxu0 0.0
      %5994 = vmatpush.msra.mxu0 0.0
      %5995 = vmatpush.msra.mxu0 0.0
      %5996 = vmatpush.msra.mxu0 %v5955
      %5997 = vmatmul.f32.gmra.mxu0 %v5959
      %v5998 = vpop.f32.mrf.mxu0
      %v5999 = vadd.f32 0.0, %v5998
      %6000 = vdwg.mxu0
      %v6001 = vadd.f32 %v5936, %v5979
      %v6002 = vadd.f32 %v5937, %v5999
      %v6003 = vadd.f32 %v6001, %v2599
      %v6004 = vadd.f32 %v6002, %v2599
      %v6005 = vmax.f32 %v6003, 0.0
      %v6006 = vmax.f32 %v6004, 0.0
      %v6009 = vrot.slane %v6006, 7
      %v6010 = vsel %vm381, %v6005, %v6009
      %s6012 = scalar_lea.vmem %s277, 23
      %6013 = vst.msk [vmem:[%s6012] ss:$8 sm:$0x3] %vm299, %v6010
      %6014 = vst.msk [vmem:[%s6012] ss:$8 sm:$0x0] %vm299, %v6010
      %p6015 = scmp.lt.s32.totalorder %s20, 1
      %s6016 = scalar_select %p6015, %s20, 1
      %s6017 = smul.addr %s6016, 4
      %s6018 = smul.addr %s6017, 8
      %s6019 = scalar_lea.vmem %s7, %s6018
      // Predicated region
      $region49: #{decoder_forward.1} parent=47 // pred_check
        %p6020 = pneg %p190
      $region50: #{decoder_forward.1} parent=47 // pred_check_branch
        %6022 = sbr.rel (%p6020) target = $region52
      $region51: #{decoder_forward.1} parent=47 // pred_region
        _
      $region52: #{decoder_forward.1} parent=47 // pred_fallthru
        _
    $region48: #{decoder_forward.1} parent=5 // pred_fallthru
      _
    %p6023 = scmp.le.s32.totalorder 2, %s15
    // Predicated region
    $region53: #{decoder_forward.1} parent=5 // pred_check
      %p6024 = pneg %p6023
    $region54: #{decoder_forward.1} parent=5 // pred_check_branch
      %6026 = sbr.rel (%p6024) target = $region56
    $region55: #{decoder_forward.1} parent=5 // pred_region
      %s6027 = ssub.s32 %s15, 2
      // Predicated region
      $region57: #{decoder_forward.1} parent=55 // pred_check
        %p6028 = pneg %p196
      $region58: #{decoder_forward.1} parent=55 // pred_check_branch
        %6030 = sbr.rel (%p6028) target = $region60
      $region59: #{decoder_forward.1} parent=55 // pred_region
        %p6031 = scmp.lt.s32.totalorder %s21, 1
        %s6032 = scalar_select %p6031, %s21, 1
        %s6033 = smul.addr %s6032, 4
        %s6034 = smul.addr %s6033, 8
        %s6035 = scalar_lea.vmem %s7, %s6034
      $region60: #{decoder_forward.1} parent=55 // pred_fallthru
        _
    $region56: #{decoder_forward.1} parent=5 // pred_fallthru
      _
  $region6: #{decoder_forward.1} parent=0 // loop_footer
    %s19 = sadd.s32 1, %s15
  $region7: #{decoder_forward.1} parent=0 // loop_footer_branch
    %14 = sbr.rel target = $region3
  $region8: #{decoder_forward.1} parent=0 // loop_exit
    _

</llo_original>
